<compile_context>
chip_gen: v6e
topology: v6e:2x2x1
jax: 0.10.0
libtpu: 0.0.40
codegen_flags: <defaults>
</compile_context>

<pallas_src>
import functools

import jax
import jax.numpy as jnp
from jax import lax
from jax.experimental import pallas as pl
from jax.experimental.pallas import tpu as pltpu


def _round_up(x, m):
    return ((x + m - 1) // m) * m


# ---------------------------------------------------------------------------
# Fused Pallas kernel (one image per grid step):
#   conv3x3(concat[x2, x1u]) -> (+bias, ReLU) -> conv3x3 -> (+bias, ReLU)
# The concatenated input is 1-px halo-padded NHWC, spatially flattened to 2D
# (rows = padded pixels in row-major order, lanes = channels), bf16.
# For a flat row p = y*(W+2) + x, the tap (dy, dx) of the 3x3 stencil is row
# p + dy*(W+2) + dx of the flattened padded image, so each tap is a static
# contiguous slice followed by one (rows, C1+C2) x (C1+C2, Cm) MXU matmul.
# Rows whose x is in {W, W+1} are junk; they are masked to zero (which also
# realizes the left/right zero halo of conv2) and dropped in the wrapper.
# ---------------------------------------------------------------------------
def _fused_upblock_kernel(xin_ref, w1_ref, b1_ref, w2_ref, b2_ref, o_ref,
                          acc1_ref, hpad_ref, acc2_ref, *, H, W):
    Wp = W + 2
    M = H * Wp                       # conv output rows (incl. junk columns)
    FLAT = hpad_ref.shape[0]
    Cm = hpad_ref.shape[1]

    # ---------------- conv1: 9 taps, K = C1 + C2 (BN scale folded in w1) -----
    for dy in range(3):
        for dx in range(3):
            t = dy * 3 + dx
            off = dy * Wp + dx
            d = jnp.dot(xin_ref[0, off:off + M, :], w1_ref[t],
                        preferred_element_type=jnp.float32)
            if t == 0:
                acc1_ref[...] = d
            else:
                acc1_ref[...] += d

    # bias + ReLU, then zero the junk columns x in {W, W+1}: in the flat
    # layout those rows land exactly on the right/left halo positions of the
    # conv2 input, so masking them here IS conv2's left/right zero padding.
    col = lax.broadcasted_iota(jnp.int32, (M, 1), 0) % Wp
    h = jnp.maximum(acc1_ref[...] + b1_ref[...], 0.0)
    h = jnp.where(col < W, h, 0.0)

    # conv2 input scratch: only the top/bottom halo rows need explicit zeroing
    # (the interior, incl. left/right halos via the masked junk columns, is
    # fully overwritten every step).  Re-zeroed EVERY grid step — never gated
    # on program_id==0 (scratch is per-core under megacore-parallel grids).
    hpad_ref[0:Wp + 1, :] = jnp.zeros((Wp + 1, Cm), hpad_ref.dtype)
    hpad_ref[Wp + 1 + M:FLAT, :] = jnp.zeros((FLAT - Wp - 1 - M, Cm),
                                             hpad_ref.dtype)
    hpad_ref[Wp + 1:Wp + 1 + M, :] = h

    # ---------------- conv2: 9 taps (BN scale folded in w2) ------------------
    for dy in range(3):
        for dx in range(3):
            t = dy * 3 + dx
            off = dy * Wp + dx
            d = jnp.dot(hpad_ref[off:off + M, :].astype(jnp.bfloat16),
                        w2_ref[t], preferred_element_type=jnp.float32)
            if t == 0:
                acc2_ref[...] = d
            else:
                acc2_ref[...] += d

    o_ref[0] = jnp.maximum(acc2_ref[...] + b2_ref[...], 0.0).astype(o_ref.dtype)


# ---------------------------------------------------------------------------
# Helpers (wrapper-side glue, plain JAX)
# ---------------------------------------------------------------------------
def _interp_matrix_align_corners(out_len, in_len):
    """(out_len, in_len) bilinear interpolation matrix, align_corners=True."""
    if in_len == 1:
        return jnp.ones((out_len, 1), jnp.float32)
    src = jnp.arange(out_len, dtype=jnp.float32) * (in_len - 1) / (out_len - 1)
    i0 = jnp.floor(src).astype(jnp.int32)
    i1 = jnp.minimum(i0 + 1, in_len - 1)
    frac = src - i0.astype(jnp.float32)
    oh0 = jax.nn.one_hot(i0, in_len, dtype=jnp.float32)
    oh1 = jax.nn.one_hot(i1, in_len, dtype=jnp.float32)
    return (1.0 - frac)[:, None] * oh0 + frac[:, None] * oh1


def _fold_bn(conv_bias, gamma, beta, mean, var, eps=1e-5):
    """Fold conv bias + eval-mode BN into per-channel scale / bias (f32)."""
    scale = gamma / jnp.sqrt(var + eps)
    bias = beta + (conv_bias - mean) * scale
    return scale.astype(jnp.float32), bias.astype(jnp.float32)


# ---------------------------------------------------------------------------
# Full UpSample forward (bilinear=True path).  Returns bf16 NCHW.
# ---------------------------------------------------------------------------
@jax.jit
def upsample_forward(x1, x2, params):
    """x1, x2: NCHW float32 (x1 = deeper map, x2 = skip)."""
    N, C1, h1, w1sp = x1.shape
    _, C2, H, W = x2.shape
    Cin = C1 + C2
    Wp = W + 2
    M = H * Wp                       # conv output rows per image (flat layout)
    FLAT = (H + 3) * Wp              # padded rows: 1 top halo + H + 2 bottom
                                     # (2nd bottom row keeps tap slices in-bounds)

    # --- bilinear x2 upsample (align_corners=True) as two small matmuls ------
    Ah = _interp_matrix_align_corners(2 * h1, h1)
    Aw = _interp_matrix_align_corners(2 * w1sp, w1sp)
    x1n = jnp.transpose(x1, (0, 2, 3, 1))                  # (N, h1, w1, C1)
    x1u = jnp.einsum('oh,nhwc->nowc', Ah, x1n)
    x1u = jnp.einsum('nowc,pw->nopc', x1u, Aw)             # (N, 2h1, 2w1, C1)

    diffY = H - x1u.shape[1]
    diffX = W - x1u.shape[2]

    # --- pad both maps to the halo'd (H+3, W+2) window, concat channel-last,
    #     flatten, bf16: ONE lane-packed (FLAT, C1+C2) stream per image so the
    #     kernel never builds the concat and conv1 runs K = C1+C2 matmuls.  ---
    x2p = jnp.pad(jnp.transpose(x2, (0, 2, 3, 1)),
                  ((0, 0), (1, 2), (1, 1), (0, 0)))
    x1p = jnp.pad(x1u, ((0, 0),
                        (1 + diffY // 2, 2 + (diffY - diffY // 2)),
                        (1 + diffX // 2, 1 + (diffX - diffX // 2)),
                        (0, 0)))
    xin = jnp.concatenate([x2p, x1p], axis=-1)             # torch.cat order
    xin = xin.reshape(N, FLAT, Cin).astype(jnp.bfloat16)

    # --- weights: OIHW -> per-tap (9, Cin, Cout), BN scale folded in, bf16 ---
    w1 = params["w1"]
    Cm = w1.shape[0]
    assert w1.shape[1] == Cin
    w2 = params["w2"]
    Cout = w2.shape[0]

    s1, b1 = _fold_bn(params["b1"], params["g1"], params["be1"],
                      params["m1"], params["v1"])
    s2, b2 = _fold_bn(params["b2"], params["g2"], params["be2"],
                      params["m2"], params["v2"])

    w1t = jnp.transpose(w1, (2, 3, 1, 0)).reshape(9, Cin, Cm)
    w1t = (w1t * s1[None, None, :]).astype(jnp.bfloat16)

    # Lane-pad the last conv's output channels only when it pays off: at small
    # Cout (e.g. 4) padding to 128 would inflate the HBM writeback 32x.
    Coutp = _round_up(Cout, 128) if Cout >= 64 else Cout
    w2t = jnp.transpose(w2, (2, 3, 1, 0)).reshape(9, Cm, Cout)
    w2t = w2t * s2[None, None, :]
    w2t = jnp.pad(w2t, ((0, 0), (0, 0), (0, Coutp - Cout))).astype(jnp.bfloat16)

    b1 = b1.reshape(1, Cm)
    b2 = jnp.pad(b2, (0, Coutp - Cout)).reshape(1, Coutp)

    flops = 2 * N * M * 9 * (Cin * Cm + Cm * Coutp)
    bytes_accessed = (xin.size * 2 + w1t.size * 2 + w2t.size * 2
                      + b1.size * 4 + b2.size * 4 + N * M * Coutp * 2)

    kernel = functools.partial(_fused_upblock_kernel, H=H, W=W)

    out = pl.pallas_call(
        kernel,
        out_shape=jax.ShapeDtypeStruct((N, M, Coutp), jnp.bfloat16),
        grid_spec=pltpu.PrefetchScalarGridSpec(
            num_scalar_prefetch=0,
            grid=(N,),
            in_specs=[
                pl.BlockSpec((1, FLAT, Cin), lambda n: (n, 0, 0)),
                pl.BlockSpec((9, Cin, Cm), lambda n: (0, 0, 0)),
                pl.BlockSpec((1, Cm), lambda n: (0, 0)),
                pl.BlockSpec((9, Cm, Coutp), lambda n: (0, 0, 0)),
                pl.BlockSpec((1, Coutp), lambda n: (0, 0)),
            ],
            out_specs=pl.BlockSpec((1, M, Coutp), lambda n: (n, 0, 0)),
            scratch_shapes=[
                pltpu.VMEM((M, Cm), jnp.float32),       # conv1 accumulator
                pltpu.VMEM((FLAT, Cm), jnp.float32),    # conv2 halo'd input
                pltpu.VMEM((M, Coutp), jnp.float32),    # conv2 accumulator
            ],
        ),
        compiler_params=pltpu.CompilerParams(
            dimension_semantics=("parallel",),          # batch steps -> both TCs
            vmem_limit_bytes=32 * 1024 * 1024,
        ),
        cost_estimate=pl.CostEstimate(flops=int(flops), transcendentals=0,
                                      bytes_accessed=int(bytes_accessed)),
    )(xin, w1t, b1, w2t, b2)

    # un-flatten, drop junk columns / padded channels, NCHW (stays bf16 — the
    # surrounding U-Net is bf16-friendly and this halves the cleanup traffic).
    out = out.reshape(N, H, Wp, Coutp)[:, :, :W, :Cout]
    return jnp.transpose(out, (0, 3, 1, 2))


# ---------------------------------------------------------------------------
# Pure-JAX f32 reference (matches the PyTorch module in eval mode)
# ---------------------------------------------------------------------------
def _reference_forward(x1, x2, params, eps=1e-5):
    N, C1, h1, w1sp = x1.shape
    Ah = _interp_matrix_align_corners(2 * h1, h1)
    Aw = _interp_matrix_align_corners(2 * w1sp, w1sp)
    x1u = jnp.einsum('oh,nchw->ncow', Ah, x1)
    x1u = jnp.einsum('ncow,pw->ncop', x1u, Aw)
    H, W = x2.shape[2], x2.shape[3]
    diffY = H - x1u.shape[2]
    diffX = W - x1u.shape[3]
    x1u = jnp.pad(x1u, ((0, 0), (0, 0),
                        (diffY // 2, diffY - diffY // 2),
                        (diffX // 2, diffX - diffX // 2)))
    x = jnp.concatenate([x2, x1u], axis=1)

    def cbr(x, w, b, g, be, m, v):
        y = lax.conv_general_dilated(
            x, w, window_strides=(1, 1), padding=((1, 1), (1, 1)),
            dimension_numbers=('NCHW', 'OIHW', 'NCHW'))
        y = y + b[None, :, None, None]
        y = g[None, :, None, None] * (y - m[None, :, None, None]) \
            / jnp.sqrt(v + eps)[None, :, None, None] + be[None, :, None, None]
        return jnp.maximum(y, 0.0)

    h = cbr(x, params["w1"], params["b1"], params["g1"], params["be1"],
            params["m1"], params["v1"])
    return cbr(h, params["w2"], params["b2"], params["g2"], params["be2"],
               params["m2"], params["v2"])


def init_params(key, in_channels, out_channels):
    ks = jax.random.split(key, 8)
    return {
        # Conv1: in_channels -> out_channels
        "w1": 0.1 * jax.random.normal(ks[0], (out_channels, in_channels, 3, 3), jnp.float32),
        "b1": 0.1 * jax.random.normal(ks[1], (out_channels,), jnp.float32),
        "g1": 1.0 + 0.1 * jax.random.normal(ks[2], (out_channels,), jnp.float32),
        "be1": 0.1 * jax.random.normal(ks[3], (out_channels,), jnp.float32),
        "m1": 0.05 * jax.random.normal(ks[4], (out_channels,), jnp.float32),
        "v1": 1.0 + 0.1 * jnp.abs(jax.random.normal(ks[5], (out_channels,), jnp.float32)),
        # Conv2: out_channels -> out_channels
        "w2": 0.1 * jax.random.normal(ks[6], (out_channels, out_channels, 3, 3), jnp.float32),
        "b2": 0.1 * jax.random.normal(ks[7], (out_channels,), jnp.float32),
        "g2": jnp.ones((out_channels,), jnp.float32),
        "be2": jnp.zeros((out_channels,), jnp.float32),
        "m2": jnp.zeros((out_channels,), jnp.float32),
        "v2": jnp.ones((out_channels,), jnp.float32),
    }


if __name__ == "__main__":
    key = jax.random.PRNGKey(0)
    k1, k2, kp = jax.random.split(key, 3)

    # U-Net decoder: x1 is the deeper (smaller-spatial) map, x2 the skip.
    # in_channels = C(x2) + C(x1) = 8, out_channels = 4.
    x1 = jax.random.normal(k1, (2, 4, 8, 8), jnp.float32)      # NCHW
    x2 = jax.random.normal(k2, (2, 4, 16, 16), jnp.float32)    # NCHW
    params = init_params(kp, in_channels=8, out_channels=4)

    out = upsample_forward(x1, x2, params)
    jax.block_until_ready(out)
    assert out.shape == (2, 4, 16, 16), out.shape

    # loose check vs f32 reference (kernel uses bf16 operands + bf16 output)
    ref = _reference_forward(x1, x2, params)
    err = float(jnp.max(jnp.abs(out.astype(jnp.float32) - ref)))
    assert err < 2e-1, f"max abs error vs f32 reference too large: {err}"

    print("KERNEL_OK")
</pallas_src>

<mosaic_0001>
module attributes {stable_mosaic.version = 11 : i64} {
  func.func @_fused_upblock_kernel(%arg0: i32, %arg1: memref<1x342x8xbf16, #tpu.memory_space<vmem>>, %arg2: memref<9x8x4xbf16, #tpu.memory_space<vmem>>, %arg3: memref<1x4xf32, #tpu.memory_space<vmem>>, %arg4: memref<9x4x4xbf16, #tpu.memory_space<vmem>>, %arg5: memref<1x4xf32, #tpu.memory_space<vmem>>, %arg6: memref<1x288x4xbf16, #tpu.memory_space<vmem>>, %arg7: memref<288x4xf32, #tpu.memory_space<vmem>>, %arg8: memref<342x4xf32, #tpu.memory_space<vmem>>, %arg9: memref<288x4xf32, #tpu.memory_space<vmem>>) attributes {dimension_semantics = [#tpu.dimension_semantics<parallel>], iteration_bounds = array<i64: 2>, scalar_prefetch = 0 : i64, scratch_operands = 3 : i64, tpu.core_type = #tpu.core_type<tc>, window_params = [{transform_indices = @transform_0, window_bounds = array<i64: 1, 342, 8>}, {pipeline_mode = #tpu.pipeline_mode<synchronous>, transform_indices = @transform_1, window_bounds = array<i64: 9, 8, 4>}, {pipeline_mode = #tpu.pipeline_mode<synchronous>, transform_indices = @transform_2, window_bounds = array<i64: 1, 4>}, {pipeline_mode = #tpu.pipeline_mode<synchronous>, transform_indices = @transform_3, window_bounds = array<i64: 9, 4, 4>}, {pipeline_mode = #tpu.pipeline_mode<synchronous>, transform_indices = @transform_4, window_bounds = array<i64: 1, 4>}, {transform_indices = @transform_5, window_bounds = array<i64: 1, 288, 4>}]} {
    %c0 = arith.constant 0 : index
    %c0_0 = arith.constant 0 : index
    %c0_1 = arith.constant 0 : index
    %0 = vector.load %arg1[%c0, %c0_0, %c0_1] : memref<1x342x8xbf16, #tpu.memory_space<vmem>>, vector<1x288x8xbf16>
    %1 = vector.shape_cast %0 : vector<1x288x8xbf16> to vector<288x8xbf16>
    %c0_2 = arith.constant 0 : index
    %c0_3 = arith.constant 0 : index
    %c0_4 = arith.constant 0 : index
    %2 = vector.load %arg2[%c0_2, %c0_3, %c0_4] : memref<9x8x4xbf16, #tpu.memory_space<vmem>>, vector<1x8x4xbf16>
    %3 = vector.shape_cast %2 : vector<1x8x4xbf16> to vector<8x4xbf16>
    %cst = arith.constant dense<0.000000e+00> : vector<288x4xf32>
    %4 = tpu.matmul %1, %3, %cst {dimension_numbers = #tpu.dot_dimension_numbers<[1], [0], [0], [1], [0, 0, 1, 1], [], []>} : vector<288x8xbf16>, vector<8x4xbf16>, vector<288x4xf32> -> vector<288x4xf32>
    %c0_5 = arith.constant 0 : index
    %c0_6 = arith.constant 0 : index
    %5 = vector.load %arg7[%c0_5, %c0_6] : memref<288x4xf32, #tpu.memory_space<vmem>>, vector<288x4xf32>
    tpu.vector_store %arg7[%c0_5, %c0_6], %4 {strides = array<i32>} : memref<288x4xf32, #tpu.memory_space<vmem>>, vector<288x4xf32>,
    %c0_7 = arith.constant 0 : index
    %c1 = arith.constant 1 : index
    %c0_8 = arith.constant 0 : index
    %6 = vector.load %arg1[%c0_7, %c1, %c0_8] : memref<1x342x8xbf16, #tpu.memory_space<vmem>>, vector<1x288x8xbf16>
    %7 = vector.shape_cast %6 : vector<1x288x8xbf16> to vector<288x8xbf16>
    %c1_9 = arith.constant 1 : index
    %c0_10 = arith.constant 0 : index
    %c0_11 = arith.constant 0 : index
    %8 = vector.load %arg2[%c1_9, %c0_10, %c0_11] : memref<9x8x4xbf16, #tpu.memory_space<vmem>>, vector<1x8x4xbf16>
    %9 = vector.shape_cast %8 : vector<1x8x4xbf16> to vector<8x4xbf16>
    %cst_12 = arith.constant dense<0.000000e+00> : vector<288x4xf32>
    %10 = tpu.matmul %7, %9, %cst_12 {dimension_numbers = #tpu.dot_dimension_numbers<[1], [0], [0], [1], [0, 0, 1, 1], [], []>} : vector<288x8xbf16>, vector<8x4xbf16>, vector<288x4xf32> -> vector<288x4xf32>
    %c0_13 = arith.constant 0 : index
    %c0_14 = arith.constant 0 : index
    %11 = vector.load %arg7[%c0_13, %c0_14] : memref<288x4xf32, #tpu.memory_space<vmem>>, vector<288x4xf32>
    %12 = arith.addf %11, %10 : vector<288x4xf32>
    %c0_15 = arith.constant 0 : index
    %c0_16 = arith.constant 0 : index
    %13 = vector.load %arg7[%c0_15, %c0_16] : memref<288x4xf32, #tpu.memory_space<vmem>>, vector<288x4xf32>
    tpu.vector_store %arg7[%c0_15, %c0_16], %12 {strides = array<i32>} : memref<288x4xf32, #tpu.memory_space<vmem>>, vector<288x4xf32>,
    %c0_17 = arith.constant 0 : index
    %c2 = arith.constant 2 : index
    %c0_18 = arith.constant 0 : index
    %14 = vector.load %arg1[%c0_17, %c2, %c0_18] : memref<1x342x8xbf16, #tpu.memory_space<vmem>>, vector<1x288x8xbf16>
    %15 = vector.shape_cast %14 : vector<1x288x8xbf16> to vector<288x8xbf16>
    %c2_19 = arith.constant 2 : index
    %c0_20 = arith.constant 0 : index
    %c0_21 = arith.constant 0 : index
    %16 = vector.load %arg2[%c2_19, %c0_20, %c0_21] : memref<9x8x4xbf16, #tpu.memory_space<vmem>>, vector<1x8x4xbf16>
    %17 = vector.shape_cast %16 : vector<1x8x4xbf16> to vector<8x4xbf16>
    %cst_22 = arith.constant dense<0.000000e+00> : vector<288x4xf32>
    %18 = tpu.matmul %15, %17, %cst_22 {dimension_numbers = #tpu.dot_dimension_numbers<[1], [0], [0], [1], [0, 0, 1, 1], [], []>} : vector<288x8xbf16>, vector<8x4xbf16>, vector<288x4xf32> -> vector<288x4xf32>
    %c0_23 = arith.constant 0 : index
    %c0_24 = arith.constant 0 : index
    %19 = vector.load %arg7[%c0_23, %c0_24] : memref<288x4xf32, #tpu.memory_space<vmem>>, vector<288x4xf32>
    %20 = arith.addf %19, %18 : vector<288x4xf32>
    %c0_25 = arith.constant 0 : index
    %c0_26 = arith.constant 0 : index
    %21 = vector.load %arg7[%c0_25, %c0_26] : memref<288x4xf32, #tpu.memory_space<vmem>>, vector<288x4xf32>
    tpu.vector_store %arg7[%c0_25, %c0_26], %20 {strides = array<i32>} : memref<288x4xf32, #tpu.memory_space<vmem>>, vector<288x4xf32>,
    %c0_27 = arith.constant 0 : index
    %c18 = arith.constant 18 : index
    %c0_28 = arith.constant 0 : index
    %22 = vector.load %arg1[%c0_27, %c18, %c0_28] : memref<1x342x8xbf16, #tpu.memory_space<vmem>>, vector<1x288x8xbf16>
    %23 = vector.shape_cast %22 : vector<1x288x8xbf16> to vector<288x8xbf16>
    %c3 = arith.constant 3 : index
    %c0_29 = arith.constant 0 : index
    %c0_30 = arith.constant 0 : index
    %24 = vector.load %arg2[%c3, %c0_29, %c0_30] : memref<9x8x4xbf16, #tpu.memory_space<vmem>>, vector<1x8x4xbf16>
    %25 = vector.shape_cast %24 : vector<1x8x4xbf16> to vector<8x4xbf16>
    %cst_31 = arith.constant dense<0.000000e+00> : vector<288x4xf32>
    %26 = tpu.matmul %23, %25, %cst_31 {dimension_numbers = #tpu.dot_dimension_numbers<[1], [0], [0], [1], [0, 0, 1, 1], [], []>} : vector<288x8xbf16>, vector<8x4xbf16>, vector<288x4xf32> -> vector<288x4xf32>
    %c0_32 = arith.constant 0 : index
    %c0_33 = arith.constant 0 : index
    %27 = vector.load %arg7[%c0_32, %c0_33] : memref<288x4xf32, #tpu.memory_space<vmem>>, vector<288x4xf32>
    %28 = arith.addf %27, %26 : vector<288x4xf32>
    %c0_34 = arith.constant 0 : index
    %c0_35 = arith.constant 0 : index
    %29 = vector.load %arg7[%c0_34, %c0_35] : memref<288x4xf32, #tpu.memory_space<vmem>>, vector<288x4xf32>
    tpu.vector_store %arg7[%c0_34, %c0_35], %28 {strides = array<i32>} : memref<288x4xf32, #tpu.memory_space<vmem>>, vector<288x4xf32>,
    %c0_36 = arith.constant 0 : index
    %c19 = arith.constant 19 : index
    %c0_37 = arith.constant 0 : index
    %30 = vector.load %arg1[%c0_36, %c19, %c0_37] : memref<1x342x8xbf16, #tpu.memory_space<vmem>>, vector<1x288x8xbf16>
    %31 = vector.shape_cast %30 : vector<1x288x8xbf16> to vector<288x8xbf16>
    %c4 = arith.constant 4 : index
    %c0_38 = arith.constant 0 : index
    %c0_39 = arith.constant 0 : index
    %32 = vector.load %arg2[%c4, %c0_38, %c0_39] : memref<9x8x4xbf16, #tpu.memory_space<vmem>>, vector<1x8x4xbf16>
    %33 = vector.shape_cast %32 : vector<1x8x4xbf16> to vector<8x4xbf16>
    %cst_40 = arith.constant dense<0.000000e+00> : vector<288x4xf32>
    %34 = tpu.matmul %31, %33, %cst_40 {dimension_numbers = #tpu.dot_dimension_numbers<[1], [0], [0], [1], [0, 0, 1, 1], [], []>} : vector<288x8xbf16>, vector<8x4xbf16>, vector<288x4xf32> -> vector<288x4xf32>
    %c0_41 = arith.constant 0 : index
    %c0_42 = arith.constant 0 : index
    %35 = vector.load %arg7[%c0_41, %c0_42] : memref<288x4xf32, #tpu.memory_space<vmem>>, vector<288x4xf32>
    %36 = arith.addf %35, %34 : vector<288x4xf32>
    %c0_43 = arith.constant 0 : index
    %c0_44 = arith.constant 0 : index
    %37 = vector.load %arg7[%c0_43, %c0_44] : memref<288x4xf32, #tpu.memory_space<vmem>>, vector<288x4xf32>
    tpu.vector_store %arg7[%c0_43, %c0_44], %36 {strides = array<i32>} : memref<288x4xf32, #tpu.memory_space<vmem>>, vector<288x4xf32>,
    %c0_45 = arith.constant 0 : index
    %c20 = arith.constant 20 : index
    %c0_46 = arith.constant 0 : index
    %38 = vector.load %arg1[%c0_45, %c20, %c0_46] : memref<1x342x8xbf16, #tpu.memory_space<vmem>>, vector<1x288x8xbf16>
    %39 = vector.shape_cast %38 : vector<1x288x8xbf16> to vector<288x8xbf16>
    %c5 = arith.constant 5 : index
    %c0_47 = arith.constant 0 : index
    %c0_48 = arith.constant 0 : index
    %40 = vector.load %arg2[%c5, %c0_47, %c0_48] : memref<9x8x4xbf16, #tpu.memory_space<vmem>>, vector<1x8x4xbf16>
    %41 = vector.shape_cast %40 : vector<1x8x4xbf16> to vector<8x4xbf16>
    %cst_49 = arith.constant dense<0.000000e+00> : vector<288x4xf32>
    %42 = tpu.matmul %39, %41, %cst_49 {dimension_numbers = #tpu.dot_dimension_numbers<[1], [0], [0], [1], [0, 0, 1, 1], [], []>} : vector<288x8xbf16>, vector<8x4xbf16>, vector<288x4xf32> -> vector<288x4xf32>
    %c0_50 = arith.constant 0 : index
    %c0_51 = arith.constant 0 : index
    %43 = vector.load %arg7[%c0_50, %c0_51] : memref<288x4xf32, #tpu.memory_space<vmem>>, vector<288x4xf32>
    %44 = arith.addf %43, %42 : vector<288x4xf32>
    %c0_52 = arith.constant 0 : index
    %c0_53 = arith.constant 0 : index
    %45 = vector.load %arg7[%c0_52, %c0_53] : memref<288x4xf32, #tpu.memory_space<vmem>>, vector<288x4xf32>
    tpu.vector_store %arg7[%c0_52, %c0_53], %44 {strides = array<i32>} : memref<288x4xf32, #tpu.memory_space<vmem>>, vector<288x4xf32>,
    %c0_54 = arith.constant 0 : index
    %c36 = arith.constant 36 : index
    %c0_55 = arith.constant 0 : index
    %46 = vector.load %arg1[%c0_54, %c36, %c0_55] : memref<1x342x8xbf16, #tpu.memory_space<vmem>>, vector<1x288x8xbf16>
    %47 = vector.shape_cast %46 : vector<1x288x8xbf16> to vector<288x8xbf16>
    %c6 = arith.constant 6 : index
    %c0_56 = arith.constant 0 : index
    %c0_57 = arith.constant 0 : index
    %48 = vector.load %arg2[%c6, %c0_56, %c0_57] : memref<9x8x4xbf16, #tpu.memory_space<vmem>>, vector<1x8x4xbf16>
    %49 = vector.shape_cast %48 : vector<1x8x4xbf16> to vector<8x4xbf16>
    %cst_58 = arith.constant dense<0.000000e+00> : vector<288x4xf32>
    %50 = tpu.matmul %47, %49, %cst_58 {dimension_numbers = #tpu.dot_dimension_numbers<[1], [0], [0], [1], [0, 0, 1, 1], [], []>} : vector<288x8xbf16>, vector<8x4xbf16>, vector<288x4xf32> -> vector<288x4xf32>
    %c0_59 = arith.constant 0 : index
    %c0_60 = arith.constant 0 : index
    %51 = vector.load %arg7[%c0_59, %c0_60] : memref<288x4xf32, #tpu.memory_space<vmem>>, vector<288x4xf32>
    %52 = arith.addf %51, %50 : vector<288x4xf32>
    %c0_61 = arith.constant 0 : index
    %c0_62 = arith.constant 0 : index
    %53 = vector.load %arg7[%c0_61, %c0_62] : memref<288x4xf32, #tpu.memory_space<vmem>>, vector<288x4xf32>
    tpu.vector_store %arg7[%c0_61, %c0_62], %52 {strides = array<i32>} : memref<288x4xf32, #tpu.memory_space<vmem>>, vector<288x4xf32>,
    %c0_63 = arith.constant 0 : index
    %c37 = arith.constant 37 : index
    %c0_64 = arith.constant 0 : index
    %54 = vector.load %arg1[%c0_63, %c37, %c0_64] : memref<1x342x8xbf16, #tpu.memory_space<vmem>>, vector<1x288x8xbf16>
    %55 = vector.shape_cast %54 : vector<1x288x8xbf16> to vector<288x8xbf16>
    %c7 = arith.constant 7 : index
    %c0_65 = arith.constant 0 : index
    %c0_66 = arith.constant 0 : index
    %56 = vector.load %arg2[%c7, %c0_65, %c0_66] : memref<9x8x4xbf16, #tpu.memory_space<vmem>>, vector<1x8x4xbf16>
    %57 = vector.shape_cast %56 : vector<1x8x4xbf16> to vector<8x4xbf16>
    %cst_67 = arith.constant dense<0.000000e+00> : vector<288x4xf32>
    %58 = tpu.matmul %55, %57, %cst_67 {dimension_numbers = #tpu.dot_dimension_numbers<[1], [0], [0], [1], [0, 0, 1, 1], [], []>} : vector<288x8xbf16>, vector<8x4xbf16>, vector<288x4xf32> -> vector<288x4xf32>
    %c0_68 = arith.constant 0 : index
    %c0_69 = arith.constant 0 : index
    %59 = vector.load %arg7[%c0_68, %c0_69] : memref<288x4xf32, #tpu.memory_space<vmem>>, vector<288x4xf32>
    %60 = arith.addf %59, %58 : vector<288x4xf32>
    %c0_70 = arith.constant 0 : index
    %c0_71 = arith.constant 0 : index
    %61 = vector.load %arg7[%c0_70, %c0_71] : memref<288x4xf32, #tpu.memory_space<vmem>>, vector<288x4xf32>
    tpu.vector_store %arg7[%c0_70, %c0_71], %60 {strides = array<i32>} : memref<288x4xf32, #tpu.memory_space<vmem>>, vector<288x4xf32>,
    %c0_72 = arith.constant 0 : index
    %c38 = arith.constant 38 : index
    %c0_73 = arith.constant 0 : index
    %62 = vector.load %arg1[%c0_72, %c38, %c0_73] : memref<1x342x8xbf16, #tpu.memory_space<vmem>>, vector<1x288x8xbf16>
    %63 = vector.shape_cast %62 : vector<1x288x8xbf16> to vector<288x8xbf16>
    %c8 = arith.constant 8 : index
    %c0_74 = arith.constant 0 : index
    %c0_75 = arith.constant 0 : index
    %64 = vector.load %arg2[%c8, %c0_74, %c0_75] : memref<9x8x4xbf16, #tpu.memory_space<vmem>>, vector<1x8x4xbf16>
    %65 = vector.shape_cast %64 : vector<1x8x4xbf16> to vector<8x4xbf16>
    %cst_76 = arith.constant dense<0.000000e+00> : vector<288x4xf32>
    %66 = tpu.matmul %63, %65, %cst_76 {dimension_numbers = #tpu.dot_dimension_numbers<[1], [0], [0], [1], [0, 0, 1, 1], [], []>} : vector<288x8xbf16>, vector<8x4xbf16>, vector<288x4xf32> -> vector<288x4xf32>
    %c0_77 = arith.constant 0 : index
    %c0_78 = arith.constant 0 : index
    %67 = vector.load %arg7[%c0_77, %c0_78] : memref<288x4xf32, #tpu.memory_space<vmem>>, vector<288x4xf32>
    %68 = arith.addf %67, %66 : vector<288x4xf32>
    %c0_79 = arith.constant 0 : index
    %c0_80 = arith.constant 0 : index
    %69 = vector.load %arg7[%c0_79, %c0_80] : memref<288x4xf32, #tpu.memory_space<vmem>>, vector<288x4xf32>
    tpu.vector_store %arg7[%c0_79, %c0_80], %68 {strides = array<i32>} : memref<288x4xf32, #tpu.memory_space<vmem>>, vector<288x4xf32>,
    %70 = tpu.iota {dimensions = array<i32: 0>} : vector<288x1xi32>
    %c18_i32 = arith.constant 18 : i32
    %c0_i32 = arith.constant 0 : i32
    %71 = arith.cmpi eq, %c18_i32, %c0_i32 : i32
    %c1_i32 = arith.constant 1 : i32
    %72 = arith.select %71, %c1_i32, %c18_i32 : i32
    %73 = vector.broadcast %72 : i32 to vector<288x1xi32>
    %74 = arith.remsi %70, %73 : vector<288x1xi32>
    %c0_i32_81 = arith.constant 0 : i32
    %75 = vector.broadcast %c0_i32_81 : i32 to vector<288x1xi32>
    %76 = arith.cmpi ne, %74, %75 : vector<288x1xi32>
    %c0_i32_82 = arith.constant 0 : i32
    %77 = vector.broadcast %c0_i32_82 : i32 to vector<288x1xi32>
    %78 = arith.cmpi slt, %74, %77 : vector<288x1xi32>
    %c0_i32_83 = arith.constant 0 : i32
    %79 = arith.cmpi slt, %72, %c0_i32_83 : i32
    %80 = vector.broadcast %79 : i1 to vector<288x1xi1>
    %81 = vector.broadcast %80 : vector<288x1xi1> to vector<288x1xi1>
    %82 = arith.xori %78, %81 : vector<288x1xi1>
    %83 = arith.andi %82, %76 : vector<288x1xi1>
    %84 = vector.broadcast %72 : i32 to vector<288x1xi32>
    %85 = arith.addi %74, %84 : vector<288x1xi32>
    %86 = arith.select %83, %85, %74 : vector<288x1xi1>, vector<288x1xi32>
    %c0_84 = arith.constant 0 : index
    %c0_85 = arith.constant 0 : index
    %87 = vector.load %arg7[%c0_84, %c0_85] : memref<288x4xf32, #tpu.memory_space<vmem>>, vector<288x4xf32>
    %c0_86 = arith.constant 0 : index
    %c0_87 = arith.constant 0 : index
    %88 = vector.load %arg3[%c0_86, %c0_87] : memref<1x4xf32, #tpu.memory_space<vmem>>, vector<1x4xf32>
    %89 = vector.broadcast %88 : vector<1x4xf32> to vector<288x4xf32>
    %90 = arith.addf %87, %89 : vector<288x4xf32>
    %cst_88 = arith.constant 0.000000e+00 : f32
    %91 = vector.broadcast %cst_88 : f32 to vector<288x4xf32>
    %92 = arith.maximumf %90, %91 : vector<288x4xf32>
    %c16_i32 = arith.constant 16 : i32
    %93 = vector.broadcast %c16_i32 : i32 to vector<288x1xi32>
    %94 = arith.cmpi slt, %86, %93 : vector<288x1xi32>
    %cst_89 = arith.constant 0.000000e+00 : f32
    %95 = vector.shape_cast %94 : vector<288x1xi1> to vector<288x1xi1>
    %96 = vector.broadcast %95 : vector<288x1xi1> to vector<288x4xi1>
    %97 = vector.broadcast %cst_89 : f32 to vector<288x4xf32>
    %98 = arith.select %96, %92, %97 : vector<288x4xi1>, vector<288x4xf32>
    %cst_90 = arith.constant 0.000000e+00 : f32
    %99 = vector.broadcast %cst_90 : f32 to vector<19x4xf32>
    %c0_91 = arith.constant 0 : index
    %c0_92 = arith.constant 0 : index
    %100 = vector.load %arg8[%c0_91, %c0_92] : memref<342x4xf32, #tpu.memory_space<vmem>>, vector<19x4xf32>
    tpu.vector_store %arg8[%c0_91, %c0_92], %99 {strides = array<i32>} : memref<342x4xf32, #tpu.memory_space<vmem>>, vector<19x4xf32>,
    %cst_93 = arith.constant 0.000000e+00 : f32
    %101 = vector.broadcast %cst_93 : f32 to vector<35x4xf32>
    %c307 = arith.constant 307 : index
    %c0_94 = arith.constant 0 : index
    %102 = vector.load %arg8[%c307, %c0_94] : memref<342x4xf32, #tpu.memory_space<vmem>>, vector<35x4xf32>
    tpu.vector_store %arg8[%c307, %c0_94], %101 {strides = array<i32>} : memref<342x4xf32, #tpu.memory_space<vmem>>, vector<35x4xf32>,
    %c19_95 = arith.constant 19 : index
    %c0_96 = arith.constant 0 : index
    %103 = vector.load %arg8[%c19_95, %c0_96] : memref<342x4xf32, #tpu.memory_space<vmem>>, vector<288x4xf32>
    tpu.vector_store %arg8[%c19_95, %c0_96], %98 {strides = array<i32>} : memref<342x4xf32, #tpu.memory_space<vmem>>, vector<288x4xf32>,
    %c0_97 = arith.constant 0 : index
    %c0_98 = arith.constant 0 : index
    %104 = vector.load %arg8[%c0_97, %c0_98] : memref<342x4xf32, #tpu.memory_space<vmem>>, vector<288x4xf32>
    %105 = arith.truncf %104 : vector<288x4xf32> to vector<288x4xbf16>
    %c0_99 = arith.constant 0 : index
    %c0_100 = arith.constant 0 : index
    %c0_101 = arith.constant 0 : index
    %106 = vector.load %arg4[%c0_99, %c0_100, %c0_101] : memref<9x4x4xbf16, #tpu.memory_space<vmem>>, vector<1x4x4xbf16>
    %107 = vector.shape_cast %106 : vector<1x4x4xbf16> to vector<4x4xbf16>
    %cst_102 = arith.constant dense<0.000000e+00> : vector<288x4xf32>
    %108 = tpu.matmul %105, %107, %cst_102 {dimension_numbers = #tpu.dot_dimension_numbers<[1], [0], [0], [1], [0, 0, 1, 1], [], []>} : vector<288x4xbf16>, vector<4x4xbf16>, vector<288x4xf32> -> vector<288x4xf32>
    %c0_103 = arith.constant 0 : index
    %c0_104 = arith.constant 0 : index
    %109 = vector.load %arg9[%c0_103, %c0_104] : memref<288x4xf32, #tpu.memory_space<vmem>>, vector<288x4xf32>
    tpu.vector_store %arg9[%c0_103, %c0_104], %108 {strides = array<i32>} : memref<288x4xf32, #tpu.memory_space<vmem>>, vector<288x4xf32>,
    %c1_105 = arith.constant 1 : index
    %c0_106 = arith.constant 0 : index
    %110 = vector.load %arg8[%c1_105, %c0_106] : memref<342x4xf32, #tpu.memory_space<vmem>>, vector<288x4xf32>
    %111 = arith.truncf %110 : vector<288x4xf32> to vector<288x4xbf16>
    %c1_107 = arith.constant 1 : index
    %c0_108 = arith.constant 0 : index
    %c0_109 = arith.constant 0 : index
    %112 = vector.load %arg4[%c1_107, %c0_108, %c0_109] : memref<9x4x4xbf16, #tpu.memory_space<vmem>>, vector<1x4x4xbf16>
    %113 = vector.shape_cast %112 : vector<1x4x4xbf16> to vector<4x4xbf16>
    %cst_110 = arith.constant dense<0.000000e+00> : vector<288x4xf32>
    %114 = tpu.matmul %111, %113, %cst_110 {dimension_numbers = #tpu.dot_dimension_numbers<[1], [0], [0], [1], [0, 0, 1, 1], [], []>} : vector<288x4xbf16>, vector<4x4xbf16>, vector<288x4xf32> -> vector<288x4xf32>
    %c0_111 = arith.constant 0 : index
    %c0_112 = arith.constant 0 : index
    %115 = vector.load %arg9[%c0_111, %c0_112] : memref<288x4xf32, #tpu.memory_space<vmem>>, vector<288x4xf32>
    %116 = arith.addf %115, %114 : vector<288x4xf32>
    %c0_113 = arith.constant 0 : index
    %c0_114 = arith.constant 0 : index
    %117 = vector.load %arg9[%c0_113, %c0_114] : memref<288x4xf32, #tpu.memory_space<vmem>>, vector<288x4xf32>
    tpu.vector_store %arg9[%c0_113, %c0_114], %116 {strides = array<i32>} : memref<288x4xf32, #tpu.memory_space<vmem>>, vector<288x4xf32>,
    %c2_115 = arith.constant 2 : index
    %c0_116 = arith.constant 0 : index
    %118 = vector.load %arg8[%c2_115, %c0_116] : memref<342x4xf32, #tpu.memory_space<vmem>>, vector<288x4xf32>
    %119 = arith.truncf %118 : vector<288x4xf32> to vector<288x4xbf16>
    %c2_117 = arith.constant 2 : index
    %c0_118 = arith.constant 0 : index
    %c0_119 = arith.constant 0 : index
    %120 = vector.load %arg4[%c2_117, %c0_118, %c0_119] : memref<9x4x4xbf16, #tpu.memory_space<vmem>>, vector<1x4x4xbf16>
    %121 = vector.shape_cast %120 : vector<1x4x4xbf16> to vector<4x4xbf16>
    %cst_120 = arith.constant dense<0.000000e+00> : vector<288x4xf32>
    %122 = tpu.matmul %119, %121, %cst_120 {dimension_numbers = #tpu.dot_dimension_numbers<[1], [0], [0], [1], [0, 0, 1, 1], [], []>} : vector<288x4xbf16>, vector<4x4xbf16>, vector<288x4xf32> -> vector<288x4xf32>
    %c0_121 = arith.constant 0 : index
    %c0_122 = arith.constant 0 : index
    %123 = vector.load %arg9[%c0_121, %c0_122] : memref<288x4xf32, #tpu.memory_space<vmem>>, vector<288x4xf32>
    %124 = arith.addf %123, %122 : vector<288x4xf32>
    %c0_123 = arith.constant 0 : index
    %c0_124 = arith.constant 0 : index
    %125 = vector.load %arg9[%c0_123, %c0_124] : memref<288x4xf32, #tpu.memory_space<vmem>>, vector<288x4xf32>
    tpu.vector_store %arg9[%c0_123, %c0_124], %124 {strides = array<i32>} : memref<288x4xf32, #tpu.memory_space<vmem>>, vector<288x4xf32>,
    %c18_125 = arith.constant 18 : index
    %c0_126 = arith.constant 0 : index
    %126 = vector.load %arg8[%c18_125, %c0_126] : memref<342x4xf32, #tpu.memory_space<vmem>>, vector<288x4xf32>
    %127 = arith.truncf %126 : vector<288x4xf32> to vector<288x4xbf16>
    %c3_127 = arith.constant 3 : index
    %c0_128 = arith.constant 0 : index
    %c0_129 = arith.constant 0 : index
    %128 = vector.load %arg4[%c3_127, %c0_128, %c0_129] : memref<9x4x4xbf16, #tpu.memory_space<vmem>>, vector<1x4x4xbf16>
    %129 = vector.shape_cast %128 : vector<1x4x4xbf16> to vector<4x4xbf16>
    %cst_130 = arith.constant dense<0.000000e+00> : vector<288x4xf32>
    %130 = tpu.matmul %127, %129, %cst_130 {dimension_numbers = #tpu.dot_dimension_numbers<[1], [0], [0], [1], [0, 0, 1, 1], [], []>} : vector<288x4xbf16>, vector<4x4xbf16>, vector<288x4xf32> -> vector<288x4xf32>
    %c0_131 = arith.constant 0 : index
    %c0_132 = arith.constant 0 : index
    %131 = vector.load %arg9[%c0_131, %c0_132] : memref<288x4xf32, #tpu.memory_space<vmem>>, vector<288x4xf32>
    %132 = arith.addf %131, %130 : vector<288x4xf32>
    %c0_133 = arith.constant 0 : index
    %c0_134 = arith.constant 0 : index
    %133 = vector.load %arg9[%c0_133, %c0_134] : memref<288x4xf32, #tpu.memory_space<vmem>>, vector<288x4xf32>
    tpu.vector_store %arg9[%c0_133, %c0_134], %132 {strides = array<i32>} : memref<288x4xf32, #tpu.memory_space<vmem>>, vector<288x4xf32>,
    %c19_135 = arith.constant 19 : index
    %c0_136 = arith.constant 0 : index
    %134 = vector.load %arg8[%c19_135, %c0_136] : memref<342x4xf32, #tpu.memory_space<vmem>>, vector<288x4xf32>
    %135 = arith.truncf %134 : vector<288x4xf32> to vector<288x4xbf16>
    %c4_137 = arith.constant 4 : index
    %c0_138 = arith.constant 0 : index
    %c0_139 = arith.constant 0 : index
    %136 = vector.load %arg4[%c4_137, %c0_138, %c0_139] : memref<9x4x4xbf16, #tpu.memory_space<vmem>>, vector<1x4x4xbf16>
    %137 = vector.shape_cast %136 : vector<1x4x4xbf16> to vector<4x4xbf16>
    %cst_140 = arith.constant dense<0.000000e+00> : vector<288x4xf32>
    %138 = tpu.matmul %135, %137, %cst_140 {dimension_numbers = #tpu.dot_dimension_numbers<[1], [0], [0], [1], [0, 0, 1, 1], [], []>} : vector<288x4xbf16>, vector<4x4xbf16>, vector<288x4xf32> -> vector<288x4xf32>
    %c0_141 = arith.constant 0 : index
    %c0_142 = arith.constant 0 : index
    %139 = vector.load %arg9[%c0_141, %c0_142] : memref<288x4xf32, #tpu.memory_space<vmem>>, vector<288x4xf32>
    %140 = arith.addf %139, %138 : vector<288x4xf32>
    %c0_143 = arith.constant 0 : index
    %c0_144 = arith.constant 0 : index
    %141 = vector.load %arg9[%c0_143, %c0_144] : memref<288x4xf32, #tpu.memory_space<vmem>>, vector<288x4xf32>
    tpu.vector_store %arg9[%c0_143, %c0_144], %140 {strides = array<i32>} : memref<288x4xf32, #tpu.memory_space<vmem>>, vector<288x4xf32>,
    %c20_145 = arith.constant 20 : index
    %c0_146 = arith.constant 0 : index
    %142 = vector.load %arg8[%c20_145, %c0_146] : memref<342x4xf32, #tpu.memory_space<vmem>>, vector<288x4xf32>
    %143 = arith.truncf %142 : vector<288x4xf32> to vector<288x4xbf16>
    %c5_147 = arith.constant 5 : index
    %c0_148 = arith.constant 0 : index
    %c0_149 = arith.constant 0 : index
    %144 = vector.load %arg4[%c5_147, %c0_148, %c0_149] : memref<9x4x4xbf16, #tpu.memory_space<vmem>>, vector<1x4x4xbf16>
    %145 = vector.shape_cast %144 : vector<1x4x4xbf16> to vector<4x4xbf16>
    %cst_150 = arith.constant dense<0.000000e+00> : vector<288x4xf32>
    %146 = tpu.matmul %143, %145, %cst_150 {dimension_numbers = #tpu.dot_dimension_numbers<[1], [0], [0], [1], [0, 0, 1, 1], [], []>} : vector<288x4xbf16>, vector<4x4xbf16>, vector<288x4xf32> -> vector<288x4xf32>
    %c0_151 = arith.constant 0 : index
    %c0_152 = arith.constant 0 : index
    %147 = vector.load %arg9[%c0_151, %c0_152] : memref<288x4xf32, #tpu.memory_space<vmem>>, vector<288x4xf32>
    %148 = arith.addf %147, %146 : vector<288x4xf32>
    %c0_153 = arith.constant 0 : index
    %c0_154 = arith.constant 0 : index
    %149 = vector.load %arg9[%c0_153, %c0_154] : memref<288x4xf32, #tpu.memory_space<vmem>>, vector<288x4xf32>
    tpu.vector_store %arg9[%c0_153, %c0_154], %148 {strides = array<i32>} : memref<288x4xf32, #tpu.memory_space<vmem>>, vector<288x4xf32>,
    %c36_155 = arith.constant 36 : index
    %c0_156 = arith.constant 0 : index
    %150 = vector.load %arg8[%c36_155, %c0_156] : memref<342x4xf32, #tpu.memory_space<vmem>>, vector<288x4xf32>
    %151 = arith.truncf %150 : vector<288x4xf32> to vector<288x4xbf16>
    %c6_157 = arith.constant 6 : index
    %c0_158 = arith.constant 0 : index
    %c0_159 = arith.constant 0 : index
    %152 = vector.load %arg4[%c6_157, %c0_158, %c0_159] : memref<9x4x4xbf16, #tpu.memory_space<vmem>>, vector<1x4x4xbf16>
    %153 = vector.shape_cast %152 : vector<1x4x4xbf16> to vector<4x4xbf16>
    %cst_160 = arith.constant dense<0.000000e+00> : vector<288x4xf32>
    %154 = tpu.matmul %151, %153, %cst_160 {dimension_numbers = #tpu.dot_dimension_numbers<[1], [0], [0], [1], [0, 0, 1, 1], [], []>} : vector<288x4xbf16>, vector<4x4xbf16>, vector<288x4xf32> -> vector<288x4xf32>
    %c0_161 = arith.constant 0 : index
    %c0_162 = arith.constant 0 : index
    %155 = vector.load %arg9[%c0_161, %c0_162] : memref<288x4xf32, #tpu.memory_space<vmem>>, vector<288x4xf32>
    %156 = arith.addf %155, %154 : vector<288x4xf32>
    %c0_163 = arith.constant 0 : index
    %c0_164 = arith.constant 0 : index
    %157 = vector.load %arg9[%c0_163, %c0_164] : memref<288x4xf32, #tpu.memory_space<vmem>>, vector<288x4xf32>
    tpu.vector_store %arg9[%c0_163, %c0_164], %156 {strides = array<i32>} : memref<288x4xf32, #tpu.memory_space<vmem>>, vector<288x4xf32>,
    %c37_165 = arith.constant 37 : index
    %c0_166 = arith.constant 0 : index
    %158 = vector.load %arg8[%c37_165, %c0_166] : memref<342x4xf32, #tpu.memory_space<vmem>>, vector<288x4xf32>
    %159 = arith.truncf %158 : vector<288x4xf32> to vector<288x4xbf16>
    %c7_167 = arith.constant 7 : index
    %c0_168 = arith.constant 0 : index
    %c0_169 = arith.constant 0 : index
    %160 = vector.load %arg4[%c7_167, %c0_168, %c0_169] : memref<9x4x4xbf16, #tpu.memory_space<vmem>>, vector<1x4x4xbf16>
    %161 = vector.shape_cast %160 : vector<1x4x4xbf16> to vector<4x4xbf16>
    %cst_170 = arith.constant dense<0.000000e+00> : vector<288x4xf32>
    %162 = tpu.matmul %159, %161, %cst_170 {dimension_numbers = #tpu.dot_dimension_numbers<[1], [0], [0], [1], [0, 0, 1, 1], [], []>} : vector<288x4xbf16>, vector<4x4xbf16>, vector<288x4xf32> -> vector<288x4xf32>
    %c0_171 = arith.constant 0 : index
    %c0_172 = arith.constant 0 : index
    %163 = vector.load %arg9[%c0_171, %c0_172] : memref<288x4xf32, #tpu.memory_space<vmem>>, vector<288x4xf32>
    %164 = arith.addf %163, %162 : vector<288x4xf32>
    %c0_173 = arith.constant 0 : index
    %c0_174 = arith.constant 0 : index
    %165 = vector.load %arg9[%c0_173, %c0_174] : memref<288x4xf32, #tpu.memory_space<vmem>>, vector<288x4xf32>
    tpu.vector_store %arg9[%c0_173, %c0_174], %164 {strides = array<i32>} : memref<288x4xf32, #tpu.memory_space<vmem>>, vector<288x4xf32>,
    %c38_175 = arith.constant 38 : index
    %c0_176 = arith.constant 0 : index
    %166 = vector.load %arg8[%c38_175, %c0_176] : memref<342x4xf32, #tpu.memory_space<vmem>>, vector<288x4xf32>
    %167 = arith.truncf %166 : vector<288x4xf32> to vector<288x4xbf16>
    %c8_177 = arith.constant 8 : index
    %c0_178 = arith.constant 0 : index
    %c0_179 = arith.constant 0 : index
    %168 = vector.load %arg4[%c8_177, %c0_178, %c0_179] : memref<9x4x4xbf16, #tpu.memory_space<vmem>>, vector<1x4x4xbf16>
    %169 = vector.shape_cast %168 : vector<1x4x4xbf16> to vector<4x4xbf16>
    %cst_180 = arith.constant dense<0.000000e+00> : vector<288x4xf32>
    %170 = tpu.matmul %167, %169, %cst_180 {dimension_numbers = #tpu.dot_dimension_numbers<[1], [0], [0], [1], [0, 0, 1, 1], [], []>} : vector<288x4xbf16>, vector<4x4xbf16>, vector<288x4xf32> -> vector<288x4xf32>
    %c0_181 = arith.constant 0 : index
    %c0_182 = arith.constant 0 : index
    %171 = vector.load %arg9[%c0_181, %c0_182] : memref<288x4xf32, #tpu.memory_space<vmem>>, vector<288x4xf32>
    %172 = arith.addf %171, %170 : vector<288x4xf32>
    %c0_183 = arith.constant 0 : index
    %c0_184 = arith.constant 0 : index
    %173 = vector.load %arg9[%c0_183, %c0_184] : memref<288x4xf32, #tpu.memory_space<vmem>>, vector<288x4xf32>
    tpu.vector_store %arg9[%c0_183, %c0_184], %172 {strides = array<i32>} : memref<288x4xf32, #tpu.memory_space<vmem>>, vector<288x4xf32>,
    %c0_185 = arith.constant 0 : index
    %c0_186 = arith.constant 0 : index
    %174 = vector.load %arg9[%c0_185, %c0_186] : memref<288x4xf32, #tpu.memory_space<vmem>>, vector<288x4xf32>
    %c0_187 = arith.constant 0 : index
    %c0_188 = arith.constant 0 : index
    %175 = vector.load %arg5[%c0_187, %c0_188] : memref<1x4xf32, #tpu.memory_space<vmem>>, vector<1x4xf32>
    %176 = vector.broadcast %175 : vector<1x4xf32> to vector<288x4xf32>
    %177 = arith.addf %174, %176 : vector<288x4xf32>
    %cst_189 = arith.constant 0.000000e+00 : f32
    %178 = vector.broadcast %cst_189 : f32 to vector<288x4xf32>
    %179 = arith.maximumf %177, %178 : vector<288x4xf32>
    %180 = arith.truncf %179 : vector<288x4xf32> to vector<288x4xbf16>
    %c0_190 = arith.constant 0 : index
    %c0_191 = arith.constant 0 : index
    %c0_192 = arith.constant 0 : index
    %181 = vector.load %arg6[%c0_190, %c0_191, %c0_192] : memref<1x288x4xbf16, #tpu.memory_space<vmem>>, vector<1x288x4xbf16>
    %182 = vector.shape_cast %181 : vector<1x288x4xbf16> to vector<288x4xbf16>
    %183 = vector.shape_cast %180 : vector<288x4xbf16> to vector<1x288x4xbf16>
    tpu.vector_store %arg6[%c0_190, %c0_191, %c0_192], %183 {strides = array<i32>} : memref<1x288x4xbf16, #tpu.memory_space<vmem>>, vector<1x288x4xbf16>,
    return
  }
  func.func @transform_0(%arg0: i32) -> (i32, i32, i32) {
    %c0_i32 = arith.constant 0 : i32
    %c0_i32_0 = arith.constant 0 : i32
    %c0_i32_1 = arith.constant 0 : i32
    return %arg0, %c0_i32, %c0_i32_0 : i32, i32, i32
  }
  func.func @transform_1(%arg0: i32) -> (i32, i32, i32) {
    %c0_i32 = arith.constant 0 : i32
    %c0_i32_0 = arith.constant 0 : i32
    %c0_i32_1 = arith.constant 0 : i32
    %c0_i32_2 = arith.constant 0 : i32
    return %c0_i32, %c0_i32_0, %c0_i32_1 : i32, i32, i32
  }
  func.func @transform_2(%arg0: i32) -> (i32, i32) {
    %c0_i32 = arith.constant 0 : i32
    %c0_i32_0 = arith.constant 0 : i32
    %c0_i32_1 = arith.constant 0 : i32
    return %c0_i32, %c0_i32_0 : i32, i32
  }
  func.func @transform_3(%arg0: i32) -> (i32, i32, i32) {
    %c0_i32 = arith.constant 0 : i32
    %c0_i32_0 = arith.constant 0 : i32
    %c0_i32_1 = arith.constant 0 : i32
    %c0_i32_2 = arith.constant 0 : i32
    return %c0_i32, %c0_i32_0, %c0_i32_1 : i32, i32, i32
  }
  func.func @transform_4(%arg0: i32) -> (i32, i32) {
    %c0_i32 = arith.constant 0 : i32
    %c0_i32_0 = arith.constant 0 : i32
    %c0_i32_1 = arith.constant 0 : i32
    return %c0_i32, %c0_i32_0 : i32, i32
  }
  func.func @transform_5(%arg0: i32) -> (i32, i32, i32) {
    %c0_i32 = arith.constant 0 : i32
    %c0_i32_0 = arith.constant 0 : i32
    %c0_i32_1 = arith.constant 0 : i32
    return %arg0, %c0_i32, %c0_i32_0 : i32, i32, i32
  }
}

</mosaic_0001>

<llo_original>
// kernel: upsample_forward.1
$region0: #{upsample_forward.1}
  #allocation0 [shape = 'u32[]', space=smem, size = 0x4, offset = 0x4, fixed_abs, tag = 'smem constant byte address 0x4 - core index']
  #allocation1 [shape = 'u32[144,128]{1,0:T(1,128)}', space=vmem, size = 0x12000, scoped, tag = 'internal scratch']
  #allocation2 [shape = 'f32[288,4]{1,0:T(8,128)}', space=vmem, size = 0x24000, scoped, tag = 'scratch operand']
  #allocation3 [shape = 'f32[342,4]{1,0:T(8,128)}', space=vmem, size = 0x2b000, scoped, tag = 'scratch operand']
  #allocation4 [shape = 'f32[288,4]{1,0:T(8,128)}', space=vmem, size = 0x24000, scoped, tag = 'scratch operand']
  %s0 = inlined_call_operand.vmem [shape: bf16[2,342,8], index: 0, kind: input, shape index: {}]
  %s1 = inlined_call_operand.vmem [shape: bf16[9,8,4], index: 1, kind: input, shape index: {}]
  %s2 = inlined_call_operand.vmem [shape: f32[1,4], index: 2, kind: input, shape index: {}]
  %s3 = inlined_call_operand.vmem [shape: bf16[9,4,4], index: 3, kind: input, shape index: {}]
  %s4 = inlined_call_operand.vmem [shape: f32[1,4], index: 4, kind: input, shape index: {}]
  %s5 = inlined_call_operand.vmem [shape: bf16[2,288,4], index: 5, kind: output, shape index: {}]
  %s6 = sld [smem:[#allocation0]]
  $region53: #{upsample_forward.1} parent=0
    _
  %s8 = ssub.s32 1, %s6
  %s9 = scalar_select 0, %s8, %s6
  loop: start=0, step=1, limit=4
  $region2: #{upsample_forward.1} parent=0 // loop_pre_header
    _
  $region3: #{upsample_forward.1} parent=0 // loop_header
    %s11 = sphi 0, %s15
    %p12 = scmp.ge.s32.totalorder %s11, 4
    %s21 = sphi 0, %s23
    %s24 = sphi 0, %s21
    %s25 = sphi 0, %s24
    %s41 = sphi 0, %s25
    %s45 = sphi 0, %s45
    %s47 = sphi 0, %s45
    %s48 = sphi 0, %s47
    %s62 = sphi 0, %s48
    %s66 = sphi 0, %s66
    %s68 = sphi 0, %s66
    %s69 = sphi 0, %s68
    %s83 = sphi 0, %s69
    %s87 = sphi 0, %s87
    %s89 = sphi 0, %s87
    %s90 = sphi 0, %s89
    %s104 = sphi 0, %s90
    %s108 = sphi 0, %s108
    %s110 = sphi 0, %s108
    %s111 = sphi 0, %s110
    %s125 = sphi 0, %s111
    %s131 = sphi 0, %s133
    %s134 = sphi 0, %s131
    %s135 = sphi 0, %s134
    %s151 = sphi 0, %s135
  $region4: #{upsample_forward.1} parent=0 // loop_header_branch
    %14 = sbr.rel (%p12) target = $region8
  $region5: #{upsample_forward.1} parent=0 // loop_body
    %s16 = ssub.s32 %s11, 1
    %s17 = ssub.s32 %s11, 2
    %s18 = sadd.s32 %s11, 1
    %s19 = ssub.s32 %s11, %s18
    %p20 = scmp.eq.s32.totalorder %s19, 0
    %s22 = sadd.s32 %s21, 1
    %s23 = scalar_select %p20, %s21, %s22
    %p26 = pneg %p20
    %p27 = scmp.eq.s32.totalorder %s11, 1
    %p28 = por %p26, %p27
    %p29 = scmp.ne.s32.totalorder %s21, %s24
    %p30 = scmp.eq.s32.totalorder %s11, 0
    %p31 = por %p29, %p30
    %p32 = scmp.ne.s32.totalorder %s21, %s24
    %p33 = scmp.eq.s32.totalorder %s16, 1
    %p34 = por %p32, %p33
    %p35 = scmp.ne.s32.totalorder %s24, %s25
    %p36 = scmp.eq.s32.totalorder %s16, 0
    %p37 = por %p35, %p36
    %p38 = scmp.ne.s32.totalorder %s24, %s25
    %p39 = scmp.eq.s32.totalorder %s17, 1
    %p40 = por %p38, %p39
    %p42 = scmp.ne.s32.totalorder %s25, %s41
    %p43 = scmp.eq.s32.totalorder %s17, 0
    %p44 = por %p42, %p43
    %s46 = sadd.s32 %s45, 1
    %p49 = scmp.eq.s32.totalorder %s11, 1
    %p50 = scmp.ne.s32.totalorder %s45, %s47
    %p51 = scmp.eq.s32.totalorder %s11, 0
    %p52 = por %p50, %p51
    %p53 = scmp.ne.s32.totalorder %s45, %s47
    %p54 = scmp.eq.s32.totalorder %s16, 1
    %p55 = por %p53, %p54
    %p56 = scmp.ne.s32.totalorder %s47, %s48
    %p57 = scmp.eq.s32.totalorder %s16, 0
    %p58 = por %p56, %p57
    %p59 = scmp.ne.s32.totalorder %s47, %s48
    %p60 = scmp.eq.s32.totalorder %s17, 1
    %p61 = por %p59, %p60
    %p63 = scmp.ne.s32.totalorder %s48, %s62
    %p64 = scmp.eq.s32.totalorder %s17, 0
    %p65 = por %p63, %p64
    %s67 = sadd.s32 %s66, 1
    %p70 = scmp.eq.s32.totalorder %s11, 1
    %p71 = scmp.ne.s32.totalorder %s66, %s68
    %p72 = scmp.eq.s32.totalorder %s11, 0
    %p73 = por %p71, %p72
    %p74 = scmp.ne.s32.totalorder %s66, %s68
    %p75 = scmp.eq.s32.totalorder %s16, 1
    %p76 = por %p74, %p75
    %p77 = scmp.ne.s32.totalorder %s68, %s69
    %p78 = scmp.eq.s32.totalorder %s16, 0
    %p79 = por %p77, %p78
    %p80 = scmp.ne.s32.totalorder %s68, %s69
    %p81 = scmp.eq.s32.totalorder %s17, 1
    %p82 = por %p80, %p81
    %p84 = scmp.ne.s32.totalorder %s69, %s83
    %p85 = scmp.eq.s32.totalorder %s17, 0
    %p86 = por %p84, %p85
    %s88 = sadd.s32 %s87, 1
    %p91 = scmp.eq.s32.totalorder %s11, 1
    %p92 = scmp.ne.s32.totalorder %s87, %s89
    %p93 = scmp.eq.s32.totalorder %s11, 0
    %p94 = por %p92, %p93
    %p95 = scmp.ne.s32.totalorder %s87, %s89
    %p96 = scmp.eq.s32.totalorder %s16, 1
    %p97 = por %p95, %p96
    %p98 = scmp.ne.s32.totalorder %s89, %s90
    %p99 = scmp.eq.s32.totalorder %s16, 0
    %p100 = por %p98, %p99
    %p101 = scmp.ne.s32.totalorder %s89, %s90
    %p102 = scmp.eq.s32.totalorder %s17, 1
    %p103 = por %p101, %p102
    %p105 = scmp.ne.s32.totalorder %s90, %s104
    %p106 = scmp.eq.s32.totalorder %s17, 0
    %p107 = por %p105, %p106
    %s109 = sadd.s32 %s108, 1
    %p112 = scmp.eq.s32.totalorder %s11, 1
    %p113 = scmp.ne.s32.totalorder %s108, %s110
    %p114 = scmp.eq.s32.totalorder %s11, 0
    %p115 = por %p113, %p114
    %p116 = scmp.ne.s32.totalorder %s108, %s110
    %p117 = scmp.eq.s32.totalorder %s16, 1
    %p118 = por %p116, %p117
    %p119 = scmp.ne.s32.totalorder %s110, %s111
    %p120 = scmp.eq.s32.totalorder %s16, 0
    %p121 = por %p119, %p120
    %p122 = scmp.ne.s32.totalorder %s110, %s111
    %p123 = scmp.eq.s32.totalorder %s17, 1
    %p124 = por %p122, %p123
    %p126 = scmp.ne.s32.totalorder %s111, %s125
    %p127 = scmp.eq.s32.totalorder %s17, 0
    %p128 = por %p126, %p127
    %s129 = ssub.s32 %s11, %s18
    %p130 = scmp.eq.s32.totalorder %s129, 0
    %s132 = sadd.s32 %s131, 1
    %s133 = scalar_select %p130, %s131, %s132
    %p136 = pneg %p130
    %p137 = scmp.eq.s32.totalorder %s11, 1
    %p138 = por %p136, %p137
    %p139 = scmp.ne.s32.totalorder %s131, %s134
    %p140 = scmp.eq.s32.totalorder %s11, 0
    %p141 = por %p139, %p140
    %p142 = scmp.ne.s32.totalorder %s131, %s134
    %p143 = scmp.eq.s32.totalorder %s16, 1
    %p144 = por %p142, %p143
    %p145 = scmp.ne.s32.totalorder %s134, %s135
    %p146 = scmp.eq.s32.totalorder %s16, 0
    %p147 = por %p145, %p146
    %p148 = scmp.ne.s32.totalorder %s134, %s135
    %p149 = scmp.eq.s32.totalorder %s17, 1
    %p150 = por %p148, %p149
    %p152 = scmp.ne.s32.totalorder %s135, %s151
    %p153 = scmp.eq.s32.totalorder %s17, 0
    %p154 = por %p152, %p153
    %p155 = scmp.le.s32.totalorder 1, %s11
    %p156 = scmp.lt.s32.totalorder %s11, 3
    %p157 = pnand %p155, %p156
    %p158 = pneg %p157
    // Predicated region
    $region9: #{upsample_forward.1} parent=5 // pred_check
      _
    $region10: #{upsample_forward.1} parent=5 // pred_check_branch
      %160 = sbr.rel (%p157) target = $region12
    $region11: #{upsample_forward.1} parent=5 // pred_region
      %s161 = ssub.s32 %s11, 1
      // Predicated region
      $region13: #{upsample_forward.1} parent=11 // pred_check
        %p162 = pneg %p58
      $region14: #{upsample_forward.1} parent=11 // pred_check_branch
        %164 = sbr.rel (%p162) target = $region16
      $region15: #{upsample_forward.1} parent=11 // pred_region
        _
      $region16: #{upsample_forward.1} parent=11 // pred_fallthru
        _
      // Predicated region
      $region17: #{upsample_forward.1} parent=11 // pred_check
        %p165 = pneg %p79
      $region18: #{upsample_forward.1} parent=11 // pred_check_branch
        %167 = sbr.rel (%p165) target = $region20
      $region19: #{upsample_forward.1} parent=11 // pred_region
        _
      $region20: #{upsample_forward.1} parent=11 // pred_fallthru
        _
      // Predicated region
      $region21: #{upsample_forward.1} parent=11 // pred_check
        %p168 = pneg %p100
      $region22: #{upsample_forward.1} parent=11 // pred_check_branch
        %170 = sbr.rel (%p168) target = $region24
      $region23: #{upsample_forward.1} parent=11 // pred_region
        _
      $region24: #{upsample_forward.1} parent=11 // pred_fallthru
        _
      // Predicated region
      $region25: #{upsample_forward.1} parent=11 // pred_check
        %p171 = pneg %p121
      $region26: #{upsample_forward.1} parent=11 // pred_check_branch
        %173 = sbr.rel (%p171) target = $region28
      $region27: #{upsample_forward.1} parent=11 // pred_region
        _
      $region28: #{upsample_forward.1} parent=11 // pred_fallthru
        _
    $region12: #{upsample_forward.1} parent=5 // pred_fallthru
      _
    %p174 = scmp.lt.s32.totalorder %s11, 2
    // Predicated region
    $region29: #{upsample_forward.1} parent=5 // pred_check
      %p175 = pneg %p174
    $region30: #{upsample_forward.1} parent=5 // pred_check_branch
      %177 = sbr.rel (%p175) target = $region32
    $region31: #{upsample_forward.1} parent=5 // pred_region
      // Predicated region
      $region33: #{upsample_forward.1} parent=31 // pred_check
        %p178 = pneg %p31
      $region34: #{upsample_forward.1} parent=31 // pred_check_branch
        %180 = sbr.rel (%p178) target = $region36
      $region35: #{upsample_forward.1} parent=31 // pred_region
        %p181 = scmp.lt.s32.totalorder %s11, 1
        %s182 = scalar_select %p181, %s11, 1
        %s183 = smul.addr %s182, 43
        %s184 = smul.addr %s183, 4
        %s185 = scalar_lea.vmem %s0, %s184
      $region36: #{upsample_forward.1} parent=31 // pred_fallthru
        _
    $region32: #{upsample_forward.1} parent=5 // pred_fallthru
      _
    %p186 = scmp.le.s32.totalorder 1, %s11
    %p187 = scmp.lt.s32.totalorder %s11, 3
    %p188 = pnand %p186, %p187
    %p189 = pneg %p188
    // Predicated region
    $region37: #{upsample_forward.1} parent=5 // pred_check
      _
    $region38: #{upsample_forward.1} parent=5 // pred_check_branch
      %191 = sbr.rel (%p188) target = $region40
    $region39: #{upsample_forward.1} parent=5 // pred_region
      %s192 = ssub.s32 %s11, 1
      %p193 = scmp.lt.s32.totalorder %s16, 1
      %s194 = scalar_select %p193, %s16, 1
      %s195 = smul.addr %s194, 43
      %s196 = smul.addr %s195, 4
      %s197 = scalar_lea.vmem %s0, %s196
      %p198 = pneg %p37
      %p199 = pneg %p34
      %p200 = pneg %p58
      %p201 = pneg %p55
      %p202 = pneg %p79
      %p203 = pneg %p76
      %p204 = pneg %p100
      %p205 = pneg %p97
      %p206 = pneg %p121
      %p207 = pneg %p118
      %p208 = pneg %p147
      %p209 = pneg %p144
      %p210 = scmp.lt.s32.totalorder %s16, 1
      %s211 = scalar_select %p210, %s16, 1
      %s212 = smul.addr %s211, 36
      %s213 = smul.addr %s212, 4
      %s214 = scalar_lea.vmem %s5, %s213
      %p215 = scmp.lt.s32.totalorder %s16, 1
      %s216 = scalar_select %p215, %s16, 1
      %s217 = smul.addr %s216, 43
      %s218 = smul.addr %s217, 4
      %s219 = scalar_lea.vmem %s0, %s218
      %p220 = scmp.lt.s32.totalorder %s16, 1
      %s221 = scalar_select %p220, %s16, 1
      %s222 = smul.addr %s221, 36
      %s223 = smul.addr %s222, 4
      %s224 = scalar_lea.vmem %s5, %s223
      %v226 = vld [vmem:[%s219] sm:$0xf]
      %v227 = vld [vmem:[%s219 + $0x4] sm:$0xf]
      %v228 = vld [vmem:[%s219 + $0x8] sm:$0xf]
      %v229 = vld [vmem:[%s219 + $0xc] sm:$0xf]
      %v230 = vld [vmem:[%s219 + $0x10] sm:$0xf]
      %v231 = vld [vmem:[%s219 + $0x14] sm:$0xf]
      %v232 = vld [vmem:[%s219 + $0x18] sm:$0xf]
      %v233 = vld [vmem:[%s219 + $0x1c] sm:$0xf]
      %v234 = vld [vmem:[%s219 + $0x20] sm:$0xf]
      %v235 = vld [vmem:[%s219 + $0x24] sm:$0xf]
      %v236 = vld [vmem:[%s219 + $0x28] sm:$0xf]
      %v237 = vld [vmem:[%s219 + $0x2c] sm:$0xf]
      %v238 = vld [vmem:[%s219 + $0x30] sm:$0xf]
      %v239 = vld [vmem:[%s219 + $0x34] sm:$0xf]
      %v240 = vld [vmem:[%s219 + $0x38] sm:$0xf]
      %v241 = vld [vmem:[%s219 + $0x3c] sm:$0xf]
      %v242 = vld [vmem:[%s219 + $0x40] sm:$0xf]
      %v243 = vld [vmem:[%s219 + $0x44] sm:$0xf]
      %v244 = vld [vmem:[%s219 + $0x48] sm:$0xf]
      %v245 = vld [vmem:[%s219 + $0x4c] sm:$0xf]
      %v246 = vld [vmem:[%s219 + $0x50] sm:$0xf]
      %v247 = vld [vmem:[%s219 + $0x54] sm:$0xf]
      %v248 = vld [vmem:[%s219 + $0x58] sm:$0xf]
      %v249 = vld [vmem:[%s219 + $0x5c] sm:$0xf]
      %v250 = vld [vmem:[%s219 + $0x60] sm:$0xf]
      %v251 = vld [vmem:[%s219 + $0x64] sm:$0xf]
      %v252 = vld [vmem:[%s219 + $0x68] sm:$0xf]
      %v253 = vld [vmem:[%s219 + $0x6c] sm:$0xf]
      %v254 = vld [vmem:[%s219 + $0x70] sm:$0xf]
      %v255 = vld [vmem:[%s219 + $0x74] sm:$0xf]
      %v256 = vld [vmem:[%s219 + $0x78] sm:$0xf]
      %v257 = vld [vmem:[%s219 + $0x7c] sm:$0xf]
      %v258 = vld [vmem:[%s219 + $0x80] sm:$0xf]
      %v259 = vld [vmem:[%s219 + $0x84] sm:$0xf]
      %v260 = vld [vmem:[%s219 + $0x88] sm:$0xf]
      %v261 = vld [vmem:[%s219 + $0x8c] sm:$0xf]
      %v262 = vld [vmem:[%s1] sm:$0xf]
      %v299 = vunpack.c.l.b16 %v226
      %v300 = vunpack.c.l.b16 %v227
      %v301 = vunpack.c.l.b16 %v228
      %v302 = vunpack.c.l.b16 %v229
      %v303 = vunpack.c.l.b16 %v230
      %v304 = vunpack.c.l.b16 %v231
      %v305 = vunpack.c.l.b16 %v232
      %v306 = vunpack.c.l.b16 %v233
      %v307 = vunpack.c.l.b16 %v234
      %v308 = vunpack.c.l.b16 %v235
      %v309 = vunpack.c.l.b16 %v236
      %v310 = vunpack.c.l.b16 %v237
      %v311 = vunpack.c.l.b16 %v238
      %v312 = vunpack.c.l.b16 %v239
      %v313 = vunpack.c.l.b16 %v240
      %v314 = vunpack.c.l.b16 %v241
      %v315 = vunpack.c.l.b16 %v242
      %v316 = vunpack.c.l.b16 %v243
      %v317 = vunpack.c.l.b16 %v244
      %v318 = vunpack.c.l.b16 %v245
      %v319 = vunpack.c.l.b16 %v246
      %v320 = vunpack.c.l.b16 %v247
      %v321 = vunpack.c.l.b16 %v248
      %v322 = vunpack.c.l.b16 %v249
      %v323 = vunpack.c.l.b16 %v250
      %v324 = vunpack.c.l.b16 %v251
      %v325 = vunpack.c.l.b16 %v252
      %v326 = vunpack.c.l.b16 %v253
      %v327 = vunpack.c.l.b16 %v254
      %v328 = vunpack.c.l.b16 %v255
      %v329 = vunpack.c.l.b16 %v256
      %v330 = vunpack.c.l.b16 %v257
      %v331 = vunpack.c.l.b16 %v258
      %v332 = vunpack.c.l.b16 %v259
      %v333 = vunpack.c.l.b16 %v260
      %v334 = vunpack.c.l.b16 %v261
      %v335 = vpack.c.b16 %v300, %v299
      %v336 = vpack.c.b16 %v302, %v301
      %v337 = vpack.c.b16 %v304, %v303
      %v338 = vpack.c.b16 %v306, %v305
      %v339 = vpack.c.b16 %v308, %v307
      %v340 = vpack.c.b16 %v310, %v309
      %v341 = vpack.c.b16 %v312, %v311
      %v342 = vpack.c.b16 %v314, %v313
      %v343 = vpack.c.b16 %v316, %v315
      %v344 = vpack.c.b16 %v318, %v317
      %v345 = vpack.c.b16 %v320, %v319
      %v346 = vpack.c.b16 %v322, %v321
      %v347 = vpack.c.b16 %v324, %v323
      %v348 = vpack.c.b16 %v326, %v325
      %v349 = vpack.c.b16 %v328, %v327
      %v350 = vpack.c.b16 %v330, %v329
      %v351 = vpack.c.b16 %v332, %v331
      %v352 = vpack.c.b16 %v334, %v333
      %vm353 = vcmask 64512
      %v355 = vsel %vm353, %v335, 0
      %v358 = vsel %vm353, %v336, 0
      %v361 = vsel %vm353, %v337, 0
      %v364 = vsel %vm353, %v338, 0
      %v367 = vsel %vm353, %v339, 0
      %v370 = vsel %vm353, %v340, 0
      %v373 = vsel %vm353, %v341, 0
      %v376 = vsel %vm353, %v342, 0
      %v379 = vsel %vm353, %v343, 0
      %v382 = vsel %vm353, %v344, 0
      %v385 = vsel %vm353, %v345, 0
      %v388 = vsel %vm353, %v346, 0
      %v391 = vsel %vm353, %v347, 0
      %v394 = vsel %vm353, %v348, 0
      %v397 = vsel %vm353, %v349, 0
      %v400 = vsel %vm353, %v350, 0
      %v403 = vsel %vm353, %v351, 0
      %v406 = vsel %vm353, %v352, 0
      %vm408 = vcmask 1043456
      %v410 = vsel %vm408, %v262, 0
      %412 = vmatprep.subr.bf16.mxu0 0
      %413 = vmatpush1.bf16.msra.mxu0 0
      %414 = vmatprep.subr.bf16.mxu0 0
      %415 = vmatpush1.bf16.msra.mxu0 0
      %416 = vmatprep.subr.bf16.mxu0 0
      %417 = vmatpush1.bf16.msra.mxu0 0
      %418 = vmatprep.subr.bf16.mxu0 0
      %419 = vmatpush1.bf16.msra.mxu0 0
      %420 = vmatprep.subr.bf16.mxu0 0
      %421 = vmatpush1.bf16.msra.mxu0 0
      %422 = vmatprep.subr.bf16.mxu0 0
      %423 = vmatpush1.bf16.msra.mxu0 0
      %424 = vmatprep.subr.bf16.mxu0 0
      %425 = vmatpush1.bf16.msra.mxu0 0
      %426 = vmatprep.subr.bf16.mxu0 0
      %427 = vmatpush1.bf16.msra.mxu0 %v410
      %428 = vmatprep.subr.bf16.mxu0 0
      %429 = vmatpush2.bf16.msra.mxu0 0
      %430 = vmatprep.subr.bf16.mxu0 0
      %431 = vmatpush2.bf16.msra.mxu0 0
      %432 = vmatprep.subr.bf16.mxu0 0
      %433 = vmatpush2.bf16.msra.mxu0 0
      %434 = vmatprep.subr.bf16.mxu0 0
      %435 = vmatpush2.bf16.msra.mxu0 0
      %436 = vmatprep.subr.bf16.mxu0 0
      %437 = vmatpush2.bf16.msra.mxu0 0
      %438 = vmatprep.subr.bf16.mxu0 0
      %439 = vmatpush2.bf16.msra.mxu0 0
      %440 = vmatprep.subr.bf16.mxu0 0
      %441 = vmatpush2.bf16.msra.mxu0 0
      %442 = vmatprep.subr.bf16.mxu0 0
      %443 = vmatpush2.bf16.msra.mxu0 0
      %444 = vmatprep.mubr.bf16.mxu0 0
      %445 = vmatmul.mubr.bf16.gmra.mxu0 %v355
      %v446 = vpop.f32.mrf.mxu0
      %v447 = vadd.f32 0.0, %v446
      %v448 = vpop.f32.mrf.mxu0
      %v449 = vpop.f32.mrf.mxu0
      %v450 = vadd.f32 0.0, %v449
      %v451 = vpop.f32.mrf.mxu0
      %452 = vmatprep.mubr.bf16.mxu0 0
      %453 = vmatmul.mubr.bf16.gmra.mxu0 %v358
      %v454 = vpop.f32.mrf.mxu0
      %v455 = vadd.f32 0.0, %v454
      %v456 = vpop.f32.mrf.mxu0
      %v457 = vpop.f32.mrf.mxu0
      %v458 = vadd.f32 0.0, %v457
      %v459 = vpop.f32.mrf.mxu0
      %460 = vmatprep.mubr.bf16.mxu0 0
      %461 = vmatmul.mubr.bf16.gmra.mxu0 %v361
      %v462 = vpop.f32.mrf.mxu0
      %v463 = vadd.f32 0.0, %v462
      %v464 = vpop.f32.mrf.mxu0
      %v465 = vpop.f32.mrf.mxu0
      %v466 = vadd.f32 0.0, %v465
      %v467 = vpop.f32.mrf.mxu0
      %468 = vmatprep.mubr.bf16.mxu0 0
      %469 = vmatmul.mubr.bf16.gmra.mxu0 %v364
      %v470 = vpop.f32.mrf.mxu0
      %v471 = vadd.f32 0.0, %v470
      %v472 = vpop.f32.mrf.mxu0
      %v473 = vpop.f32.mrf.mxu0
      %v474 = vadd.f32 0.0, %v473
      %v475 = vpop.f32.mrf.mxu0
      %476 = vmatprep.mubr.bf16.mxu0 0
      %477 = vmatmul.mubr.bf16.gmra.mxu0 %v367
      %v478 = vpop.f32.mrf.mxu0
      %v479 = vadd.f32 0.0, %v478
      %v480 = vpop.f32.mrf.mxu0
      %v481 = vpop.f32.mrf.mxu0
      %v482 = vadd.f32 0.0, %v481
      %v483 = vpop.f32.mrf.mxu0
      %484 = vmatprep.mubr.bf16.mxu0 0
      %485 = vmatmul.mubr.bf16.gmra.mxu0 %v370
      %v486 = vpop.f32.mrf.mxu0
      %v487 = vadd.f32 0.0, %v486
      %v488 = vpop.f32.mrf.mxu0
      %v489 = vpop.f32.mrf.mxu0
      %v490 = vadd.f32 0.0, %v489
      %v491 = vpop.f32.mrf.mxu0
      %492 = vmatprep.mubr.bf16.mxu0 0
      %493 = vmatmul.mubr.bf16.gmra.mxu0 %v373
      %v494 = vpop.f32.mrf.mxu0
      %v495 = vadd.f32 0.0, %v494
      %v496 = vpop.f32.mrf.mxu0
      %v497 = vpop.f32.mrf.mxu0
      %v498 = vadd.f32 0.0, %v497
      %v499 = vpop.f32.mrf.mxu0
      %500 = vmatprep.mubr.bf16.mxu0 0
      %501 = vmatmul.mubr.bf16.gmra.mxu0 %v376
      %v502 = vpop.f32.mrf.mxu0
      %v503 = vadd.f32 0.0, %v502
      %v504 = vpop.f32.mrf.mxu0
      %v505 = vpop.f32.mrf.mxu0
      %v506 = vadd.f32 0.0, %v505
      %v507 = vpop.f32.mrf.mxu0
      %508 = vmatprep.mubr.bf16.mxu0 0
      %509 = vmatmul.mubr.bf16.gmra.mxu0 %v379
      %v510 = vpop.f32.mrf.mxu0
      %v511 = vadd.f32 0.0, %v510
      %v512 = vpop.f32.mrf.mxu0
      %v513 = vpop.f32.mrf.mxu0
      %v514 = vadd.f32 0.0, %v513
      %v515 = vpop.f32.mrf.mxu0
      %516 = vmatprep.mubr.bf16.mxu0 0
      %517 = vmatmul.mubr.bf16.gmra.mxu0 %v382
      %v518 = vpop.f32.mrf.mxu0
      %v519 = vadd.f32 0.0, %v518
      %v520 = vpop.f32.mrf.mxu0
      %v521 = vpop.f32.mrf.mxu0
      %v522 = vadd.f32 0.0, %v521
      %v523 = vpop.f32.mrf.mxu0
      %524 = vmatprep.mubr.bf16.mxu0 0
      %525 = vmatmul.mubr.bf16.gmra.mxu0 %v385
      %v526 = vpop.f32.mrf.mxu0
      %v527 = vadd.f32 0.0, %v526
      %v528 = vpop.f32.mrf.mxu0
      %v529 = vpop.f32.mrf.mxu0
      %v530 = vadd.f32 0.0, %v529
      %v531 = vpop.f32.mrf.mxu0
      %532 = vmatprep.mubr.bf16.mxu0 0
      %533 = vmatmul.mubr.bf16.gmra.mxu0 %v388
      %v534 = vpop.f32.mrf.mxu0
      %v535 = vadd.f32 0.0, %v534
      %v536 = vpop.f32.mrf.mxu0
      %v537 = vpop.f32.mrf.mxu0
      %v538 = vadd.f32 0.0, %v537
      %v539 = vpop.f32.mrf.mxu0
      %540 = vmatprep.mubr.bf16.mxu0 0
      %541 = vmatmul.mubr.bf16.gmra.mxu0 %v391
      %v542 = vpop.f32.mrf.mxu0
      %v543 = vadd.f32 0.0, %v542
      %v544 = vpop.f32.mrf.mxu0
      %v545 = vpop.f32.mrf.mxu0
      %v546 = vadd.f32 0.0, %v545
      %v547 = vpop.f32.mrf.mxu0
      %548 = vmatprep.mubr.bf16.mxu0 0
      %549 = vmatmul.mubr.bf16.gmra.mxu0 %v394
      %v550 = vpop.f32.mrf.mxu0
      %v551 = vadd.f32 0.0, %v550
      %v552 = vpop.f32.mrf.mxu0
      %v553 = vpop.f32.mrf.mxu0
      %v554 = vadd.f32 0.0, %v553
      %v555 = vpop.f32.mrf.mxu0
      %556 = vmatprep.mubr.bf16.mxu0 0
      %557 = vmatmul.mubr.bf16.gmra.mxu0 %v397
      %v558 = vpop.f32.mrf.mxu0
      %v559 = vadd.f32 0.0, %v558
      %v560 = vpop.f32.mrf.mxu0
      %v561 = vpop.f32.mrf.mxu0
      %v562 = vadd.f32 0.0, %v561
      %v563 = vpop.f32.mrf.mxu0
      %564 = vmatprep.mubr.bf16.mxu0 0
      %565 = vmatmul.mubr.bf16.gmra.mxu0 %v400
      %v566 = vpop.f32.mrf.mxu0
      %v567 = vadd.f32 0.0, %v566
      %v568 = vpop.f32.mrf.mxu0
      %v569 = vpop.f32.mrf.mxu0
      %v570 = vadd.f32 0.0, %v569
      %v571 = vpop.f32.mrf.mxu0
      %572 = vmatprep.mubr.bf16.mxu0 0
      %573 = vmatmul.mubr.bf16.gmra.mxu0 %v403
      %v574 = vpop.f32.mrf.mxu0
      %v575 = vadd.f32 0.0, %v574
      %v576 = vpop.f32.mrf.mxu0
      %v577 = vpop.f32.mrf.mxu0
      %v578 = vadd.f32 0.0, %v577
      %v579 = vpop.f32.mrf.mxu0
      %580 = vmatprep.mubr.bf16.mxu0 0
      %581 = vmatmul.mubr.bf16.gmra.mxu0 %v406
      %v582 = vpop.f32.mrf.mxu0
      %v583 = vadd.f32 0.0, %v582
      %v584 = vpop.f32.mrf.mxu0
      %v585 = vpop.f32.mrf.mxu0
      %v586 = vadd.f32 0.0, %v585
      %v587 = vpop.f32.mrf.mxu0
      %588 = vdwg.mxu0
      %vm589 = vcmask 31744
      %590 = vst.msk [vmem:[#allocation2] sm:$0xff] %vm589, %v447
      %591 = vst.msk [vmem:[#allocation2 + $0x8] sm:$0xff] %vm589, %v450
      %592 = vst.msk [vmem:[#allocation2 + $0x10] sm:$0xff] %vm589, %v455
      %593 = vst.msk [vmem:[#allocation2 + $0x18] sm:$0xff] %vm589, %v458
      %594 = vst.msk [vmem:[#allocation2 + $0x20] sm:$0xff] %vm589, %v463
      %595 = vst.msk [vmem:[#allocation2 + $0x28] sm:$0xff] %vm589, %v466
      %596 = vst.msk [vmem:[#allocation2 + $0x30] sm:$0xff] %vm589, %v471
      %597 = vst.msk [vmem:[#allocation2 + $0x38] sm:$0xff] %vm589, %v474
      %598 = vst.msk [vmem:[#allocation2 + $0x40] sm:$0xff] %vm589, %v479
      %599 = vst.msk [vmem:[#allocation2 + $0x48] sm:$0xff] %vm589, %v482
      %600 = vst.msk [vmem:[#allocation2 + $0x50] sm:$0xff] %vm589, %v487
      %601 = vst.msk [vmem:[#allocation2 + $0x58] sm:$0xff] %vm589, %v490
      %602 = vst.msk [vmem:[#allocation2 + $0x60] sm:$0xff] %vm589, %v495
      %603 = vst.msk [vmem:[#allocation2 + $0x68] sm:$0xff] %vm589, %v498
      %604 = vst.msk [vmem:[#allocation2 + $0x70] sm:$0xff] %vm589, %v503
      %605 = vst.msk [vmem:[#allocation2 + $0x78] sm:$0xff] %vm589, %v506
      %606 = vst.msk [vmem:[#allocation2 + $0x80] sm:$0xff] %vm589, %v511
      %607 = vst.msk [vmem:[#allocation2 + $0x88] sm:$0xff] %vm589, %v514
      %608 = vst.msk [vmem:[#allocation2 + $0x90] sm:$0xff] %vm589, %v519
      %609 = vst.msk [vmem:[#allocation2 + $0x98] sm:$0xff] %vm589, %v522
      %610 = vst.msk [vmem:[#allocation2 + $0xa0] sm:$0xff] %vm589, %v527
      %611 = vst.msk [vmem:[#allocation2 + $0xa8] sm:$0xff] %vm589, %v530
      %612 = vst.msk [vmem:[#allocation2 + $0xb0] sm:$0xff] %vm589, %v535
      %613 = vst.msk [vmem:[#allocation2 + $0xb8] sm:$0xff] %vm589, %v538
      %614 = vst.msk [vmem:[#allocation2 + $0xc0] sm:$0xff] %vm589, %v543
      %615 = vst.msk [vmem:[#allocation2 + $0xc8] sm:$0xff] %vm589, %v546
      %616 = vst.msk [vmem:[#allocation2 + $0xd0] sm:$0xff] %vm589, %v551
      %617 = vst.msk [vmem:[#allocation2 + $0xd8] sm:$0xff] %vm589, %v554
      %618 = vst.msk [vmem:[#allocation2 + $0xe0] sm:$0xff] %vm589, %v559
      %619 = vst.msk [vmem:[#allocation2 + $0xe8] sm:$0xff] %vm589, %v562
      %620 = vst.msk [vmem:[#allocation2 + $0xf0] sm:$0xff] %vm589, %v567
      %621 = vst.msk [vmem:[#allocation2 + $0xf8] sm:$0xff] %vm589, %v570
      %622 = vst.msk [vmem:[#allocation2 + $0x100] sm:$0xff] %vm589, %v575
      %623 = vst.msk [vmem:[#allocation2 + $0x108] sm:$0xff] %vm589, %v578
      %624 = vst.msk [vmem:[#allocation2 + $0x110] sm:$0xff] %vm589, %v583
      %625 = vst.msk [vmem:[#allocation2 + $0x118] sm:$0xff] %vm589, %v586
      %v626 = vld [vmem:[%s219] sm:$0xf]
      %v627 = vld [vmem:[%s219 + $0x4] sm:$0xf]
      %v628 = vld [vmem:[%s219 + $0x8] sm:$0xf]
      %v629 = vld [vmem:[%s219 + $0xc] sm:$0xf]
      %v630 = vld [vmem:[%s219 + $0x10] sm:$0xf]
      %v631 = vld [vmem:[%s219 + $0x14] sm:$0xf]
      %v632 = vld [vmem:[%s219 + $0x18] sm:$0xf]
      %v633 = vld [vmem:[%s219 + $0x1c] sm:$0xf]
      %v634 = vld [vmem:[%s219 + $0x20] sm:$0xf]
      %v635 = vld [vmem:[%s219 + $0x24] sm:$0xf]
      %v636 = vld [vmem:[%s219 + $0x28] sm:$0xf]
      %v637 = vld [vmem:[%s219 + $0x2c] sm:$0xf]
      %v638 = vld [vmem:[%s219 + $0x30] sm:$0xf]
      %v639 = vld [vmem:[%s219 + $0x34] sm:$0xf]
      %v640 = vld [vmem:[%s219 + $0x38] sm:$0xf]
      %v641 = vld [vmem:[%s219 + $0x3c] sm:$0xf]
      %v642 = vld [vmem:[%s219 + $0x40] sm:$0xf]
      %v643 = vld [vmem:[%s219 + $0x44] sm:$0xf]
      %v644 = vld [vmem:[%s219 + $0x48] sm:$0xf]
      %v645 = vld [vmem:[%s219 + $0x4c] sm:$0xf]
      %v646 = vld [vmem:[%s219 + $0x50] sm:$0xf]
      %v647 = vld [vmem:[%s219 + $0x54] sm:$0xf]
      %v648 = vld [vmem:[%s219 + $0x58] sm:$0xf]
      %v649 = vld [vmem:[%s219 + $0x5c] sm:$0xf]
      %v650 = vld [vmem:[%s219 + $0x60] sm:$0xf]
      %v651 = vld [vmem:[%s219 + $0x64] sm:$0xf]
      %v652 = vld [vmem:[%s219 + $0x68] sm:$0xf]
      %v653 = vld [vmem:[%s219 + $0x6c] sm:$0xf]
      %v654 = vld [vmem:[%s219 + $0x70] sm:$0xf]
      %v655 = vld [vmem:[%s219 + $0x74] sm:$0xf]
      %v656 = vld [vmem:[%s219 + $0x78] sm:$0xf]
      %v657 = vld [vmem:[%s219 + $0x7c] sm:$0xf]
      %v658 = vld [vmem:[%s219 + $0x80] sm:$0xf]
      %v659 = vld [vmem:[%s219 + $0x84] sm:$0xf]
      %v660 = vld [vmem:[%s219 + $0x88] sm:$0xf]
      %v661 = vld [vmem:[%s219 + $0x8c] sm:$0xf]
      %v662 = vld [vmem:[%s219 + $0x90] sm:$0x1]
      %s663 = scalar_lea.vmem %s1, 4
      %v664 = vld [vmem:[%s663] sm:$0xf]
      %v702 = vunpack.c.l.b16 %v626
      %v703 = vunpack.c.l.b16 %v627
      %v704 = vunpack.c.l.b16 %v628
      %v705 = vunpack.c.l.b16 %v629
      %v706 = vunpack.c.l.b16 %v630
      %v707 = vunpack.c.l.b16 %v631
      %v708 = vunpack.c.l.b16 %v632
      %v709 = vunpack.c.l.b16 %v633
      %v710 = vunpack.c.l.b16 %v634
      %v711 = vunpack.c.l.b16 %v635
      %v712 = vunpack.c.l.b16 %v636
      %v713 = vunpack.c.l.b16 %v637
      %v714 = vunpack.c.l.b16 %v638
      %v715 = vunpack.c.l.b16 %v639
      %v716 = vunpack.c.l.b16 %v640
      %v717 = vunpack.c.l.b16 %v641
      %v718 = vunpack.c.l.b16 %v642
      %v719 = vunpack.c.l.b16 %v643
      %v720 = vunpack.c.l.b16 %v644
      %v721 = vunpack.c.l.b16 %v645
      %v722 = vunpack.c.l.b16 %v646
      %v723 = vunpack.c.l.b16 %v647
      %v724 = vunpack.c.l.b16 %v648
      %v725 = vunpack.c.l.b16 %v649
      %v726 = vunpack.c.l.b16 %v650
      %v727 = vunpack.c.l.b16 %v651
      %v728 = vunpack.c.l.b16 %v652
      %v729 = vunpack.c.l.b16 %v653
      %v730 = vunpack.c.l.b16 %v654
      %v731 = vunpack.c.l.b16 %v655
      %v732 = vunpack.c.l.b16 %v656
      %v733 = vunpack.c.l.b16 %v657
      %v734 = vunpack.c.l.b16 %v658
      %v735 = vunpack.c.l.b16 %v659
      %v736 = vunpack.c.l.b16 %v660
      %v737 = vunpack.c.l.b16 %v661
      %v738 = vunpack.c.l.b16 %v662
      %v739 = vpack.c.b16 %v703, %v702
      %v740 = vpack.c.b16 %v705, %v704
      %v741 = vpack.c.b16 %v707, %v706
      %v742 = vpack.c.b16 %v709, %v708
      %v743 = vpack.c.b16 %v711, %v710
      %v744 = vpack.c.b16 %v713, %v712
      %v745 = vpack.c.b16 %v715, %v714
      %v746 = vpack.c.b16 %v717, %v716
      %v747 = vpack.c.b16 %v719, %v718
      %v748 = vpack.c.b16 %v721, %v720
      %v749 = vpack.c.b16 %v723, %v722
      %v750 = vpack.c.b16 %v725, %v724
      %v751 = vpack.c.b16 %v727, %v726
      %v752 = vpack.c.b16 %v729, %v728
      %v753 = vpack.c.b16 %v731, %v730
      %v754 = vpack.c.b16 %v733, %v732
      %v755 = vpack.c.b16 %v735, %v734
      %v756 = vpack.c.b16 %v737, %v736
      %v757 = vpack.c.b16 %v738, %v738
      %vm758 = vsmask.f32 7424
      %v760 = vshrl.u32 %v739, 16
      %v762 = vshll.u32 %v739, 16
      %v764 = vrot.slane %v762, 1
      %v765 = vor.u32 %v760, %v764
      %v767 = vshll.u32 %v740, 16
      %v769 = vrot.slane %v767, 1
      %v770 = vsel %vm758, %v765, %v769
      %v771 = vshrl.u32 %v740, 16
      %v773 = vor.u32 %v771, %v769
      %v775 = vshll.u32 %v741, 16
      %v777 = vrot.slane %v775, 1
      %v778 = vsel %vm758, %v773, %v777
      %v779 = vshrl.u32 %v741, 16
      %v781 = vor.u32 %v779, %v777
      %v783 = vshll.u32 %v742, 16
      %v785 = vrot.slane %v783, 1
      %v786 = vsel %vm758, %v781, %v785
      %v787 = vshrl.u32 %v742, 16
      %v789 = vor.u32 %v787, %v785
      %v791 = vshll.u32 %v743, 16
      %v793 = vrot.slane %v791, 1
      %v794 = vsel %vm758, %v789, %v793
      %v795 = vshrl.u32 %v743, 16
      %v797 = vor.u32 %v795, %v793
      %v799 = vshll.u32 %v744, 16
      %v801 = vrot.slane %v799, 1
      %v802 = vsel %vm758, %v797, %v801
      %v803 = vshrl.u32 %v744, 16
      %v805 = vor.u32 %v803, %v801
      %v807 = vshll.u32 %v745, 16
      %v809 = vrot.slane %v807, 1
      %v810 = vsel %vm758, %v805, %v809
      %v811 = vshrl.u32 %v745, 16
      %v813 = vor.u32 %v811, %v809
      %v815 = vshll.u32 %v746, 16
      %v817 = vrot.slane %v815, 1
      %v818 = vsel %vm758, %v813, %v817
      %v819 = vshrl.u32 %v746, 16
      %v821 = vor.u32 %v819, %v817
      %v823 = vshll.u32 %v747, 16
      %v825 = vrot.slane %v823, 1
      %v826 = vsel %vm758, %v821, %v825
      %v827 = vshrl.u32 %v747, 16
      %v829 = vor.u32 %v827, %v825
      %v831 = vshll.u32 %v748, 16
      %v833 = vrot.slane %v831, 1
      %v834 = vsel %vm758, %v829, %v833
      %v835 = vshrl.u32 %v748, 16
      %v837 = vor.u32 %v835, %v833
      %v839 = vshll.u32 %v749, 16
      %v841 = vrot.slane %v839, 1
      %v842 = vsel %vm758, %v837, %v841
      %v843 = vshrl.u32 %v749, 16
      %v845 = vor.u32 %v843, %v841
      %v847 = vshll.u32 %v750, 16
      %v849 = vrot.slane %v847, 1
      %v850 = vsel %vm758, %v845, %v849
      %v851 = vshrl.u32 %v750, 16
      %v853 = vor.u32 %v851, %v849
      %v855 = vshll.u32 %v751, 16
      %v857 = vrot.slane %v855, 1
      %v858 = vsel %vm758, %v853, %v857
      %v859 = vshrl.u32 %v751, 16
      %v861 = vor.u32 %v859, %v857
      %v863 = vshll.u32 %v752, 16
      %v865 = vrot.slane %v863, 1
      %v866 = vsel %vm758, %v861, %v865
      %v867 = vshrl.u32 %v752, 16
      %v869 = vor.u32 %v867, %v865
      %v871 = vshll.u32 %v753, 16
      %v873 = vrot.slane %v871, 1
      %v874 = vsel %vm758, %v869, %v873
      %v875 = vshrl.u32 %v753, 16
      %v877 = vor.u32 %v875, %v873
      %v879 = vshll.u32 %v754, 16
      %v881 = vrot.slane %v879, 1
      %v882 = vsel %vm758, %v877, %v881
      %v883 = vshrl.u32 %v754, 16
      %v885 = vor.u32 %v883, %v881
      %v887 = vshll.u32 %v755, 16
      %v889 = vrot.slane %v887, 1
      %v890 = vsel %vm758, %v885, %v889
      %v891 = vshrl.u32 %v755, 16
      %v893 = vor.u32 %v891, %v889
      %v895 = vshll.u32 %v756, 16
      %v897 = vrot.slane %v895, 1
      %v898 = vsel %vm758, %v893, %v897
      %v899 = vshrl.u32 %v756, 16
      %v901 = vor.u32 %v899, %v897
      %v903 = vshll.u32 %v757, 16
      %v905 = vrot.slane %v903, 1
      %v906 = vsel %vm758, %v901, %v905
      %v908 = vsel %vm353, %v770, 0
      %v911 = vsel %vm353, %v778, 0
      %v914 = vsel %vm353, %v786, 0
      %v917 = vsel %vm353, %v794, 0
      %v920 = vsel %vm353, %v802, 0
      %v923 = vsel %vm353, %v810, 0
      %v926 = vsel %vm353, %v818, 0
      %v929 = vsel %vm353, %v826, 0
      %v932 = vsel %vm353, %v834, 0
      %v935 = vsel %vm353, %v842, 0
      %v938 = vsel %vm353, %v850, 0
      %v941 = vsel %vm353, %v858, 0
      %v944 = vsel %vm353, %v866, 0
      %v947 = vsel %vm353, %v874, 0
      %v950 = vsel %vm353, %v882, 0
      %v953 = vsel %vm353, %v890, 0
      %v956 = vsel %vm353, %v898, 0
      %v959 = vsel %vm353, %v906, 0
      %v962 = vsel %vm408, %v664, 0
      %964 = vmatprep.subr.bf16.mxu0 0
      %965 = vmatpush1.bf16.msra.mxu0 0
      %966 = vmatprep.subr.bf16.mxu0 0
      %967 = vmatpush1.bf16.msra.mxu0 0
      %968 = vmatprep.subr.bf16.mxu0 0
      %969 = vmatpush1.bf16.msra.mxu0 0
      %970 = vmatprep.subr.bf16.mxu0 0
      %971 = vmatpush1.bf16.msra.mxu0 0
      %972 = vmatprep.subr.bf16.mxu0 0
      %973 = vmatpush1.bf16.msra.mxu0 0
      %974 = vmatprep.subr.bf16.mxu0 0
      %975 = vmatpush1.bf16.msra.mxu0 0
      %976 = vmatprep.subr.bf16.mxu0 0
      %977 = vmatpush1.bf16.msra.mxu0 0
      %978 = vmatprep.subr.bf16.mxu0 0
      %979 = vmatpush1.bf16.msra.mxu0 %v962
      %980 = vmatprep.subr.bf16.mxu0 0
      %981 = vmatpush2.bf16.msra.mxu0 0
      %982 = vmatprep.subr.bf16.mxu0 0
      %983 = vmatpush2.bf16.msra.mxu0 0
      %984 = vmatprep.subr.bf16.mxu0 0
      %985 = vmatpush2.bf16.msra.mxu0 0
      %986 = vmatprep.subr.bf16.mxu0 0
      %987 = vmatpush2.bf16.msra.mxu0 0
      %988 = vmatprep.subr.bf16.mxu0 0
      %989 = vmatpush2.bf16.msra.mxu0 0
      %990 = vmatprep.subr.bf16.mxu0 0
      %991 = vmatpush2.bf16.msra.mxu0 0
      %992 = vmatprep.subr.bf16.mxu0 0
      %993 = vmatpush2.bf16.msra.mxu0 0
      %994 = vmatprep.subr.bf16.mxu0 0
      %995 = vmatpush2.bf16.msra.mxu0 0
      %996 = vmatprep.mubr.bf16.mxu0 0
      %997 = vmatmul.mubr.bf16.gmra.mxu0 %v908
      %v998 = vpop.f32.mrf.mxu0
      %v999 = vadd.f32 0.0, %v998
      %v1000 = vpop.f32.mrf.mxu0
      %v1001 = vpop.f32.mrf.mxu0
      %v1002 = vadd.f32 0.0, %v1001
      %v1003 = vpop.f32.mrf.mxu0
      %1004 = vmatprep.mubr.bf16.mxu0 0
      %1005 = vmatmul.mubr.bf16.gmra.mxu0 %v911
      %v1006 = vpop.f32.mrf.mxu0
      %v1007 = vadd.f32 0.0, %v1006
      %v1008 = vpop.f32.mrf.mxu0
      %v1009 = vpop.f32.mrf.mxu0
      %v1010 = vadd.f32 0.0, %v1009
      %v1011 = vpop.f32.mrf.mxu0
      %1012 = vmatprep.mubr.bf16.mxu0 0
      %1013 = vmatmul.mubr.bf16.gmra.mxu0 %v914
      %v1014 = vpop.f32.mrf.mxu0
      %v1015 = vadd.f32 0.0, %v1014
      %v1016 = vpop.f32.mrf.mxu0
      %v1017 = vpop.f32.mrf.mxu0
      %v1018 = vadd.f32 0.0, %v1017
      %v1019 = vpop.f32.mrf.mxu0
      %1020 = vmatprep.mubr.bf16.mxu0 0
      %1021 = vmatmul.mubr.bf16.gmra.mxu0 %v917
      %v1022 = vpop.f32.mrf.mxu0
      %v1023 = vadd.f32 0.0, %v1022
      %v1024 = vpop.f32.mrf.mxu0
      %v1025 = vpop.f32.mrf.mxu0
      %v1026 = vadd.f32 0.0, %v1025
      %v1027 = vpop.f32.mrf.mxu0
      %1028 = vmatprep.mubr.bf16.mxu0 0
      %1029 = vmatmul.mubr.bf16.gmra.mxu0 %v920
      %v1030 = vpop.f32.mrf.mxu0
      %v1031 = vadd.f32 0.0, %v1030
      %v1032 = vpop.f32.mrf.mxu0
      %v1033 = vpop.f32.mrf.mxu0
      %v1034 = vadd.f32 0.0, %v1033
      %v1035 = vpop.f32.mrf.mxu0
      %1036 = vmatprep.mubr.bf16.mxu0 0
      %1037 = vmatmul.mubr.bf16.gmra.mxu0 %v923
      %v1038 = vpop.f32.mrf.mxu0
      %v1039 = vadd.f32 0.0, %v1038
      %v1040 = vpop.f32.mrf.mxu0
      %v1041 = vpop.f32.mrf.mxu0
      %v1042 = vadd.f32 0.0, %v1041
      %v1043 = vpop.f32.mrf.mxu0
      %1044 = vmatprep.mubr.bf16.mxu0 0
      %1045 = vmatmul.mubr.bf16.gmra.mxu0 %v926
      %v1046 = vpop.f32.mrf.mxu0
      %v1047 = vadd.f32 0.0, %v1046
      %v1048 = vpop.f32.mrf.mxu0
      %v1049 = vpop.f32.mrf.mxu0
      %v1050 = vadd.f32 0.0, %v1049
      %v1051 = vpop.f32.mrf.mxu0
      %1052 = vmatprep.mubr.bf16.mxu0 0
      %1053 = vmatmul.mubr.bf16.gmra.mxu0 %v929
      %v1054 = vpop.f32.mrf.mxu0
      %v1055 = vadd.f32 0.0, %v1054
      %v1056 = vpop.f32.mrf.mxu0
      %v1057 = vpop.f32.mrf.mxu0
      %v1058 = vadd.f32 0.0, %v1057
      %v1059 = vpop.f32.mrf.mxu0
      %1060 = vmatprep.mubr.bf16.mxu0 0
      %1061 = vmatmul.mubr.bf16.gmra.mxu0 %v932
      %v1062 = vpop.f32.mrf.mxu0
      %v1063 = vadd.f32 0.0, %v1062
      %v1064 = vpop.f32.mrf.mxu0
      %v1065 = vpop.f32.mrf.mxu0
      %v1066 = vadd.f32 0.0, %v1065
      %v1067 = vpop.f32.mrf.mxu0
      %1068 = vmatprep.mubr.bf16.mxu0 0
      %1069 = vmatmul.mubr.bf16.gmra.mxu0 %v935
      %v1070 = vpop.f32.mrf.mxu0
      %v1071 = vadd.f32 0.0, %v1070
      %v1072 = vpop.f32.mrf.mxu0
      %v1073 = vpop.f32.mrf.mxu0
      %v1074 = vadd.f32 0.0, %v1073
      %v1075 = vpop.f32.mrf.mxu0
      %1076 = vmatprep.mubr.bf16.mxu0 0
      %1077 = vmatmul.mubr.bf16.gmra.mxu0 %v938
      %v1078 = vpop.f32.mrf.mxu0
      %v1079 = vadd.f32 0.0, %v1078
      %v1080 = vpop.f32.mrf.mxu0
      %v1081 = vpop.f32.mrf.mxu0
      %v1082 = vadd.f32 0.0, %v1081
      %v1083 = vpop.f32.mrf.mxu0
      %1084 = vmatprep.mubr.bf16.mxu0 0
      %1085 = vmatmul.mubr.bf16.gmra.mxu0 %v941
      %v1086 = vpop.f32.mrf.mxu0
      %v1087 = vadd.f32 0.0, %v1086
      %v1088 = vpop.f32.mrf.mxu0
      %v1089 = vpop.f32.mrf.mxu0
      %v1090 = vadd.f32 0.0, %v1089
      %v1091 = vpop.f32.mrf.mxu0
      %1092 = vmatprep.mubr.bf16.mxu0 0
      %1093 = vmatmul.mubr.bf16.gmra.mxu0 %v944
      %v1094 = vpop.f32.mrf.mxu0
      %v1095 = vadd.f32 0.0, %v1094
      %v1096 = vpop.f32.mrf.mxu0
      %v1097 = vpop.f32.mrf.mxu0
      %v1098 = vadd.f32 0.0, %v1097
      %v1099 = vpop.f32.mrf.mxu0
      %1100 = vmatprep.mubr.bf16.mxu0 0
      %1101 = vmatmul.mubr.bf16.gmra.mxu0 %v947
      %v1102 = vpop.f32.mrf.mxu0
      %v1103 = vadd.f32 0.0, %v1102
      %v1104 = vpop.f32.mrf.mxu0
      %v1105 = vpop.f32.mrf.mxu0
      %v1106 = vadd.f32 0.0, %v1105
      %v1107 = vpop.f32.mrf.mxu0
      %1108 = vmatprep.mubr.bf16.mxu0 0
      %1109 = vmatmul.mubr.bf16.gmra.mxu0 %v950
      %v1110 = vpop.f32.mrf.mxu0
      %v1111 = vadd.f32 0.0, %v1110
      %v1112 = vpop.f32.mrf.mxu0
      %v1113 = vpop.f32.mrf.mxu0
      %v1114 = vadd.f32 0.0, %v1113
      %v1115 = vpop.f32.mrf.mxu0
      %1116 = vmatprep.mubr.bf16.mxu0 0
      %1117 = vmatmul.mubr.bf16.gmra.mxu0 %v953
      %v1118 = vpop.f32.mrf.mxu0
      %v1119 = vadd.f32 0.0, %v1118
      %v1120 = vpop.f32.mrf.mxu0
      %v1121 = vpop.f32.mrf.mxu0
      %v1122 = vadd.f32 0.0, %v1121
      %v1123 = vpop.f32.mrf.mxu0
      %1124 = vmatprep.mubr.bf16.mxu0 0
      %1125 = vmatmul.mubr.bf16.gmra.mxu0 %v956
      %v1126 = vpop.f32.mrf.mxu0
      %v1127 = vadd.f32 0.0, %v1126
      %v1128 = vpop.f32.mrf.mxu0
      %v1129 = vpop.f32.mrf.mxu0
      %v1130 = vadd.f32 0.0, %v1129
      %v1131 = vpop.f32.mrf.mxu0
      %1132 = vmatprep.mubr.bf16.mxu0 0
      %1133 = vmatmul.mubr.bf16.gmra.mxu0 %v959
      %v1134 = vpop.f32.mrf.mxu0
      %v1135 = vadd.f32 0.0, %v1134
      %v1136 = vpop.f32.mrf.mxu0
      %v1137 = vpop.f32.mrf.mxu0
      %v1138 = vadd.f32 0.0, %v1137
      %v1139 = vpop.f32.mrf.mxu0
      %1140 = vdwg.mxu0
      %v1141 = vld [vmem:[#allocation2] sm:$0xff]
      %v1142 = vld [vmem:[#allocation2 + $0x8] sm:$0xff]
      %v1143 = vld [vmem:[#allocation2 + $0x10] sm:$0xff]
      %v1144 = vld [vmem:[#allocation2 + $0x18] sm:$0xff]
      %v1145 = vld [vmem:[#allocation2 + $0x20] sm:$0xff]
      %v1146 = vld [vmem:[#allocation2 + $0x28] sm:$0xff]
      %v1147 = vld [vmem:[#allocation2 + $0x30] sm:$0xff]
      %v1148 = vld [vmem:[#allocation2 + $0x38] sm:$0xff]
      %v1149 = vld [vmem:[#allocation2 + $0x40] sm:$0xff]
      %v1150 = vld [vmem:[#allocation2 + $0x48] sm:$0xff]
      %v1151 = vld [vmem:[#allocation2 + $0x50] sm:$0xff]
      %v1152 = vld [vmem:[#allocation2 + $0x58] sm:$0xff]
      %v1153 = vld [vmem:[#allocation2 + $0x60] sm:$0xff]
      %v1154 = vld [vmem:[#allocation2 + $0x68] sm:$0xff]
      %v1155 = vld [vmem:[#allocation2 + $0x70] sm:$0xff]
      %v1156 = vld [vmem:[#allocation2 + $0x78] sm:$0xff]
      %v1157 = vld [vmem:[#allocation2 + $0x80] sm:$0xff]
      %v1158 = vld [vmem:[#allocation2 + $0x88] sm:$0xff]
      %v1159 = vld [vmem:[#allocation2 + $0x90] sm:$0xff]
      %v1160 = vld [vmem:[#allocation2 + $0x98] sm:$0xff]
      %v1161 = vld [vmem:[#allocation2 + $0xa0] sm:$0xff]
      %v1162 = vld [vmem:[#allocation2 + $0xa8] sm:$0xff]
      %v1163 = vld [vmem:[#allocation2 + $0xb0] sm:$0xff]
      %v1164 = vld [vmem:[#allocation2 + $0xb8] sm:$0xff]
      %v1165 = vld [vmem:[#allocation2 + $0xc0] sm:$0xff]
      %v1166 = vld [vmem:[#allocation2 + $0xc8] sm:$0xff]
      %v1167 = vld [vmem:[#allocation2 + $0xd0] sm:$0xff]
      %v1168 = vld [vmem:[#allocation2 + $0xd8] sm:$0xff]
      %v1169 = vld [vmem:[#allocation2 + $0xe0] sm:$0xff]
      %v1170 = vld [vmem:[#allocation2 + $0xe8] sm:$0xff]
      %v1171 = vld [vmem:[#allocation2 + $0xf0] sm:$0xff]
      %v1172 = vld [vmem:[#allocation2 + $0xf8] sm:$0xff]
      %v1173 = vld [vmem:[#allocation2 + $0x100] sm:$0xff]
      %v1174 = vld [vmem:[#allocation2 + $0x108] sm:$0xff]
      %v1175 = vld [vmem:[#allocation2 + $0x110] sm:$0xff]
      %v1176 = vld [vmem:[#allocation2 + $0x118] sm:$0xff]
      %v1177 = vadd.f32 %v1141, %v999
      %v1178 = vadd.f32 %v1142, %v1002
      %v1179 = vadd.f32 %v1143, %v1007
      %v1180 = vadd.f32 %v1144, %v1010
      %v1181 = vadd.f32 %v1145, %v1015
      %v1182 = vadd.f32 %v1146, %v1018
      %v1183 = vadd.f32 %v1147, %v1023
      %v1184 = vadd.f32 %v1148, %v1026
      %v1185 = vadd.f32 %v1149, %v1031
      %v1186 = vadd.f32 %v1150, %v1034
      %v1187 = vadd.f32 %v1151, %v1039
      %v1188 = vadd.f32 %v1152, %v1042
      %v1189 = vadd.f32 %v1153, %v1047
      %v1190 = vadd.f32 %v1154, %v1050
      %v1191 = vadd.f32 %v1155, %v1055
      %v1192 = vadd.f32 %v1156, %v1058
      %v1193 = vadd.f32 %v1157, %v1063
      %v1194 = vadd.f32 %v1158, %v1066
      %v1195 = vadd.f32 %v1159, %v1071
      %v1196 = vadd.f32 %v1160, %v1074
      %v1197 = vadd.f32 %v1161, %v1079
      %v1198 = vadd.f32 %v1162, %v1082
      %v1199 = vadd.f32 %v1163, %v1087
      %v1200 = vadd.f32 %v1164, %v1090
      %v1201 = vadd.f32 %v1165, %v1095
      %v1202 = vadd.f32 %v1166, %v1098
      %v1203 = vadd.f32 %v1167, %v1103
      %v1204 = vadd.f32 %v1168, %v1106
      %v1205 = vadd.f32 %v1169, %v1111
      %v1206 = vadd.f32 %v1170, %v1114
      %v1207 = vadd.f32 %v1171, %v1119
      %v1208 = vadd.f32 %v1172, %v1122
      %v1209 = vadd.f32 %v1173, %v1127
      %v1210 = vadd.f32 %v1174, %v1130
      %v1211 = vadd.f32 %v1175, %v1135
      %v1212 = vadd.f32 %v1176, %v1138
      %1213 = vst.msk [vmem:[#allocation2] sm:$0xff] %vm589, %v1177
      %1214 = vst.msk [vmem:[#allocation2 + $0x8] sm:$0xff] %vm589, %v1178
      %1215 = vst.msk [vmem:[#allocation2 + $0x10] sm:$0xff] %vm589, %v1179
      %1216 = vst.msk [vmem:[#allocation2 + $0x18] sm:$0xff] %vm589, %v1180
      %1217 = vst.msk [vmem:[#allocation2 + $0x20] sm:$0xff] %vm589, %v1181
      %1218 = vst.msk [vmem:[#allocation2 + $0x28] sm:$0xff] %vm589, %v1182
      %1219 = vst.msk [vmem:[#allocation2 + $0x30] sm:$0xff] %vm589, %v1183
      %1220 = vst.msk [vmem:[#allocation2 + $0x38] sm:$0xff] %vm589, %v1184
      %1221 = vst.msk [vmem:[#allocation2 + $0x40] sm:$0xff] %vm589, %v1185
      %1222 = vst.msk [vmem:[#allocation2 + $0x48] sm:$0xff] %vm589, %v1186
      %1223 = vst.msk [vmem:[#allocation2 + $0x50] sm:$0xff] %vm589, %v1187
      %1224 = vst.msk [vmem:[#allocation2 + $0x58] sm:$0xff] %vm589, %v1188
      %1225 = vst.msk [vmem:[#allocation2 + $0x60] sm:$0xff] %vm589, %v1189
      %1226 = vst.msk [vmem:[#allocation2 + $0x68] sm:$0xff] %vm589, %v1190
      %1227 = vst.msk [vmem:[#allocation2 + $0x70] sm:$0xff] %vm589, %v1191
      %1228 = vst.msk [vmem:[#allocation2 + $0x78] sm:$0xff] %vm589, %v1192
      %1229 = vst.msk [vmem:[#allocation2 + $0x80] sm:$0xff] %vm589, %v1193
      %1230 = vst.msk [vmem:[#allocation2 + $0x88] sm:$0xff] %vm589, %v1194
      %1231 = vst.msk [vmem:[#allocation2 + $0x90] sm:$0xff] %vm589, %v1195
      %1232 = vst.msk [vmem:[#allocation2 + $0x98] sm:$0xff] %vm589, %v1196
      %1233 = vst.msk [vmem:[#allocation2 + $0xa0] sm:$0xff] %vm589, %v1197
      %1234 = vst.msk [vmem:[#allocation2 + $0xa8] sm:$0xff] %vm589, %v1198
      %1235 = vst.msk [vmem:[#allocation2 + $0xb0] sm:$0xff] %vm589, %v1199
      %1236 = vst.msk [vmem:[#allocation2 + $0xb8] sm:$0xff] %vm589, %v1200
      %1237 = vst.msk [vmem:[#allocation2 + $0xc0] sm:$0xff] %vm589, %v1201
      %1238 = vst.msk [vmem:[#allocation2 + $0xc8] sm:$0xff] %vm589, %v1202
      %1239 = vst.msk [vmem:[#allocation2 + $0xd0] sm:$0xff] %vm589, %v1203
      %1240 = vst.msk [vmem:[#allocation2 + $0xd8] sm:$0xff] %vm589, %v1204
      %1241 = vst.msk [vmem:[#allocation2 + $0xe0] sm:$0xff] %vm589, %v1205
      %1242 = vst.msk [vmem:[#allocation2 + $0xe8] sm:$0xff] %vm589, %v1206
      %1243 = vst.msk [vmem:[#allocation2 + $0xf0] sm:$0xff] %vm589, %v1207
      %1244 = vst.msk [vmem:[#allocation2 + $0xf8] sm:$0xff] %vm589, %v1208
      %1245 = vst.msk [vmem:[#allocation2 + $0x100] sm:$0xff] %vm589, %v1209
      %1246 = vst.msk [vmem:[#allocation2 + $0x108] sm:$0xff] %vm589, %v1210
      %1247 = vst.msk [vmem:[#allocation2 + $0x110] sm:$0xff] %vm589, %v1211
      %1248 = vst.msk [vmem:[#allocation2 + $0x118] sm:$0xff] %vm589, %v1212
      %v1249 = vld [vmem:[%s219] sm:$0xe]
      %v1250 = vld [vmem:[%s219 + $0x4] sm:$0xf]
      %v1251 = vld [vmem:[%s219 + $0x8] sm:$0xf]
      %v1252 = vld [vmem:[%s219 + $0xc] sm:$0xf]
      %v1253 = vld [vmem:[%s219 + $0x10] sm:$0xf]
      %v1254 = vld [vmem:[%s219 + $0x14] sm:$0xf]
      %v1255 = vld [vmem:[%s219 + $0x18] sm:$0xf]
      %v1256 = vld [vmem:[%s219 + $0x1c] sm:$0xf]
      %v1257 = vld [vmem:[%s219 + $0x20] sm:$0xf]
      %v1258 = vld [vmem:[%s219 + $0x24] sm:$0xf]
      %v1259 = vld [vmem:[%s219 + $0x28] sm:$0xf]
      %v1260 = vld [vmem:[%s219 + $0x2c] sm:$0xf]
      %v1261 = vld [vmem:[%s219 + $0x30] sm:$0xf]
      %v1262 = vld [vmem:[%s219 + $0x34] sm:$0xf]
      %v1263 = vld [vmem:[%s219 + $0x38] sm:$0xf]
      %v1264 = vld [vmem:[%s219 + $0x3c] sm:$0xf]
      %v1265 = vld [vmem:[%s219 + $0x40] sm:$0xf]
      %v1266 = vld [vmem:[%s219 + $0x44] sm:$0xf]
      %v1267 = vld [vmem:[%s219 + $0x48] sm:$0xf]
      %v1268 = vld [vmem:[%s219 + $0x4c] sm:$0xf]
      %v1269 = vld [vmem:[%s219 + $0x50] sm:$0xf]
      %v1270 = vld [vmem:[%s219 + $0x54] sm:$0xf]
      %v1271 = vld [vmem:[%s219 + $0x58] sm:$0xf]
      %v1272 = vld [vmem:[%s219 + $0x5c] sm:$0xf]
      %v1273 = vld [vmem:[%s219 + $0x60] sm:$0xf]
      %v1274 = vld [vmem:[%s219 + $0x64] sm:$0xf]
      %v1275 = vld [vmem:[%s219 + $0x68] sm:$0xf]
      %v1276 = vld [vmem:[%s219 + $0x6c] sm:$0xf]
      %v1277 = vld [vmem:[%s219 + $0x70] sm:$0xf]
      %v1278 = vld [vmem:[%s219 + $0x74] sm:$0xf]
      %v1279 = vld [vmem:[%s219 + $0x78] sm:$0xf]
      %v1280 = vld [vmem:[%s219 + $0x7c] sm:$0xf]
      %v1281 = vld [vmem:[%s219 + $0x80] sm:$0xf]
      %v1282 = vld [vmem:[%s219 + $0x84] sm:$0xf]
      %v1283 = vld [vmem:[%s219 + $0x88] sm:$0xf]
      %v1284 = vld [vmem:[%s219 + $0x8c] sm:$0xf]
      %v1285 = vld [vmem:[%s219 + $0x90] sm:$0x1]
      %s1286 = scalar_lea.vmem %s1, 8
      %v1287 = vld [vmem:[%s1286] sm:$0xf]
      %v1325 = vunpack.c.l.b16 %v1249
      %v1326 = vunpack.c.l.b16 %v1250
      %v1327 = vunpack.c.l.b16 %v1251
      %v1328 = vunpack.c.l.b16 %v1252
      %v1329 = vunpack.c.l.b16 %v1253
      %v1330 = vunpack.c.l.b16 %v1254
      %v1331 = vunpack.c.l.b16 %v1255
      %v1332 = vunpack.c.l.b16 %v1256
      %v1333 = vunpack.c.l.b16 %v1257
      %v1334 = vunpack.c.l.b16 %v1258
      %v1335 = vunpack.c.l.b16 %v1259
      %v1336 = vunpack.c.l.b16 %v1260
      %v1337 = vunpack.c.l.b16 %v1261
      %v1338 = vunpack.c.l.b16 %v1262
      %v1339 = vunpack.c.l.b16 %v1263
      %v1340 = vunpack.c.l.b16 %v1264
      %v1341 = vunpack.c.l.b16 %v1265
      %v1342 = vunpack.c.l.b16 %v1266
      %v1343 = vunpack.c.l.b16 %v1267
      %v1344 = vunpack.c.l.b16 %v1268
      %v1345 = vunpack.c.l.b16 %v1269
      %v1346 = vunpack.c.l.b16 %v1270
      %v1347 = vunpack.c.l.b16 %v1271
      %v1348 = vunpack.c.l.b16 %v1272
      %v1349 = vunpack.c.l.b16 %v1273
      %v1350 = vunpack.c.l.b16 %v1274
      %v1351 = vunpack.c.l.b16 %v1275
      %v1352 = vunpack.c.l.b16 %v1276
      %v1353 = vunpack.c.l.b16 %v1277
      %v1354 = vunpack.c.l.b16 %v1278
      %v1355 = vunpack.c.l.b16 %v1279
      %v1356 = vunpack.c.l.b16 %v1280
      %v1357 = vunpack.c.l.b16 %v1281
      %v1358 = vunpack.c.l.b16 %v1282
      %v1359 = vunpack.c.l.b16 %v1283
      %v1360 = vunpack.c.l.b16 %v1284
      %v1361 = vunpack.c.l.b16 %v1285
      %v1362 = vpack.c.b16 %v1326, %v1325
      %v1363 = vpack.c.b16 %v1328, %v1327
      %v1364 = vpack.c.b16 %v1330, %v1329
      %v1365 = vpack.c.b16 %v1332, %v1331
      %v1366 = vpack.c.b16 %v1334, %v1333
      %v1367 = vpack.c.b16 %v1336, %v1335
      %v1368 = vpack.c.b16 %v1338, %v1337
      %v1369 = vpack.c.b16 %v1340, %v1339
      %v1370 = vpack.c.b16 %v1342, %v1341
      %v1371 = vpack.c.b16 %v1344, %v1343
      %v1372 = vpack.c.b16 %v1346, %v1345
      %v1373 = vpack.c.b16 %v1348, %v1347
      %v1374 = vpack.c.b16 %v1350, %v1349
      %v1375 = vpack.c.b16 %v1352, %v1351
      %v1376 = vpack.c.b16 %v1354, %v1353
      %v1377 = vpack.c.b16 %v1356, %v1355
      %v1378 = vpack.c.b16 %v1358, %v1357
      %v1379 = vpack.c.b16 %v1360, %v1359
      %v1380 = vpack.c.b16 %v1361, %v1361
      %vm1381 = vcmask 1046528
      %v1382 = vrot.slane %v1362, 1
      %v1383 = vrot.slane %v1363, 1
      %v1384 = vsel %vm1381, %v1382, %v1383
      %v1385 = vrot.slane %v1364, 1
      %v1386 = vsel %vm1381, %v1383, %v1385
      %v1387 = vrot.slane %v1365, 1
      %v1388 = vsel %vm1381, %v1385, %v1387
      %v1389 = vrot.slane %v1366, 1
      %v1390 = vsel %vm1381, %v1387, %v1389
      %v1391 = vrot.slane %v1367, 1
      %v1392 = vsel %vm1381, %v1389, %v1391
      %v1393 = vrot.slane %v1368, 1
      %v1394 = vsel %vm1381, %v1391, %v1393
      %v1395 = vrot.slane %v1369, 1
      %v1396 = vsel %vm1381, %v1393, %v1395
      %v1397 = vrot.slane %v1370, 1
      %v1398 = vsel %vm1381, %v1395, %v1397
      %v1399 = vrot.slane %v1371, 1
      %v1400 = vsel %vm1381, %v1397, %v1399
      %v1401 = vrot.slane %v1372, 1
      %v1402 = vsel %vm1381, %v1399, %v1401
      %v1403 = vrot.slane %v1373, 1
      %v1404 = vsel %vm1381, %v1401, %v1403
      %v1405 = vrot.slane %v1374, 1
      %v1406 = vsel %vm1381, %v1403, %v1405
      %v1407 = vrot.slane %v1375, 1
      %v1408 = vsel %vm1381, %v1405, %v1407
      %v1409 = vrot.slane %v1376, 1
      %v1410 = vsel %vm1381, %v1407, %v1409
      %v1411 = vrot.slane %v1377, 1
      %v1412 = vsel %vm1381, %v1409, %v1411
      %v1413 = vrot.slane %v1378, 1
      %v1414 = vsel %vm1381, %v1411, %v1413
      %v1415 = vrot.slane %v1379, 1
      %v1416 = vsel %vm1381, %v1413, %v1415
      %v1417 = vrot.slane %v1380, 1
      %v1418 = vsel %vm1381, %v1415, %v1417
      %v1420 = vsel %vm353, %v1384, 0
      %v1423 = vsel %vm353, %v1386, 0
      %v1426 = vsel %vm353, %v1388, 0
      %v1429 = vsel %vm353, %v1390, 0
      %v1432 = vsel %vm353, %v1392, 0
      %v1435 = vsel %vm353, %v1394, 0
      %v1438 = vsel %vm353, %v1396, 0
      %v1441 = vsel %vm353, %v1398, 0
      %v1444 = vsel %vm353, %v1400, 0
      %v1447 = vsel %vm353, %v1402, 0
      %v1450 = vsel %vm353, %v1404, 0
      %v1453 = vsel %vm353, %v1406, 0
      %v1456 = vsel %vm353, %v1408, 0
      %v1459 = vsel %vm353, %v1410, 0
      %v1462 = vsel %vm353, %v1412, 0
      %v1465 = vsel %vm353, %v1414, 0
      %v1468 = vsel %vm353, %v1416, 0
      %v1471 = vsel %vm353, %v1418, 0
      %v1474 = vsel %vm408, %v1287, 0
      %1476 = vmatprep.subr.bf16.mxu0 0
      %1477 = vmatpush1.bf16.msra.mxu0 0
      %1478 = vmatprep.subr.bf16.mxu0 0
      %1479 = vmatpush1.bf16.msra.mxu0 0
      %1480 = vmatprep.subr.bf16.mxu0 0
      %1481 = vmatpush1.bf16.msra.mxu0 0
      %1482 = vmatprep.subr.bf16.mxu0 0
      %1483 = vmatpush1.bf16.msra.mxu0 0
      %1484 = vmatprep.subr.bf16.mxu0 0
      %1485 = vmatpush1.bf16.msra.mxu0 0
      %1486 = vmatprep.subr.bf16.mxu0 0
      %1487 = vmatpush1.bf16.msra.mxu0 0
      %1488 = vmatprep.subr.bf16.mxu0 0
      %1489 = vmatpush1.bf16.msra.mxu0 0
      %1490 = vmatprep.subr.bf16.mxu0 0
      %1491 = vmatpush1.bf16.msra.mxu0 %v1474
      %1492 = vmatprep.subr.bf16.mxu0 0
      %1493 = vmatpush2.bf16.msra.mxu0 0
      %1494 = vmatprep.subr.bf16.mxu0 0
      %1495 = vmatpush2.bf16.msra.mxu0 0
      %1496 = vmatprep.subr.bf16.mxu0 0
      %1497 = vmatpush2.bf16.msra.mxu0 0
      %1498 = vmatprep.subr.bf16.mxu0 0
      %1499 = vmatpush2.bf16.msra.mxu0 0
      %1500 = vmatprep.subr.bf16.mxu0 0
      %1501 = vmatpush2.bf16.msra.mxu0 0
      %1502 = vmatprep.subr.bf16.mxu0 0
      %1503 = vmatpush2.bf16.msra.mxu0 0
      %1504 = vmatprep.subr.bf16.mxu0 0
      %1505 = vmatpush2.bf16.msra.mxu0 0
      %1506 = vmatprep.subr.bf16.mxu0 0
      %1507 = vmatpush2.bf16.msra.mxu0 0
      %1508 = vmatprep.mubr.bf16.mxu0 0
      %1509 = vmatmul.mubr.bf16.gmra.mxu0 %v1420
      %v1510 = vpop.f32.mrf.mxu0
      %v1511 = vadd.f32 0.0, %v1510
      %v1512 = vpop.f32.mrf.mxu0
      %v1513 = vpop.f32.mrf.mxu0
      %v1514 = vadd.f32 0.0, %v1513
      %v1515 = vpop.f32.mrf.mxu0
      %1516 = vmatprep.mubr.bf16.mxu0 0
      %1517 = vmatmul.mubr.bf16.gmra.mxu0 %v1423
      %v1518 = vpop.f32.mrf.mxu0
      %v1519 = vadd.f32 0.0, %v1518
      %v1520 = vpop.f32.mrf.mxu0
      %v1521 = vpop.f32.mrf.mxu0
      %v1522 = vadd.f32 0.0, %v1521
      %v1523 = vpop.f32.mrf.mxu0
      %1524 = vmatprep.mubr.bf16.mxu0 0
      %1525 = vmatmul.mubr.bf16.gmra.mxu0 %v1426
      %v1526 = vpop.f32.mrf.mxu0
      %v1527 = vadd.f32 0.0, %v1526
      %v1528 = vpop.f32.mrf.mxu0
      %v1529 = vpop.f32.mrf.mxu0
      %v1530 = vadd.f32 0.0, %v1529
      %v1531 = vpop.f32.mrf.mxu0
      %1532 = vmatprep.mubr.bf16.mxu0 0
      %1533 = vmatmul.mubr.bf16.gmra.mxu0 %v1429
      %v1534 = vpop.f32.mrf.mxu0
      %v1535 = vadd.f32 0.0, %v1534
      %v1536 = vpop.f32.mrf.mxu0
      %v1537 = vpop.f32.mrf.mxu0
      %v1538 = vadd.f32 0.0, %v1537
      %v1539 = vpop.f32.mrf.mxu0
      %1540 = vmatprep.mubr.bf16.mxu0 0
      %1541 = vmatmul.mubr.bf16.gmra.mxu0 %v1432
      %v1542 = vpop.f32.mrf.mxu0
      %v1543 = vadd.f32 0.0, %v1542
      %v1544 = vpop.f32.mrf.mxu0
      %v1545 = vpop.f32.mrf.mxu0
      %v1546 = vadd.f32 0.0, %v1545
      %v1547 = vpop.f32.mrf.mxu0
      %1548 = vmatprep.mubr.bf16.mxu0 0
      %1549 = vmatmul.mubr.bf16.gmra.mxu0 %v1435
      %v1550 = vpop.f32.mrf.mxu0
      %v1551 = vadd.f32 0.0, %v1550
      %v1552 = vpop.f32.mrf.mxu0
      %v1553 = vpop.f32.mrf.mxu0
      %v1554 = vadd.f32 0.0, %v1553
      %v1555 = vpop.f32.mrf.mxu0
      %1556 = vmatprep.mubr.bf16.mxu0 0
      %1557 = vmatmul.mubr.bf16.gmra.mxu0 %v1438
      %v1558 = vpop.f32.mrf.mxu0
      %v1559 = vadd.f32 0.0, %v1558
      %v1560 = vpop.f32.mrf.mxu0
      %v1561 = vpop.f32.mrf.mxu0
      %v1562 = vadd.f32 0.0, %v1561
      %v1563 = vpop.f32.mrf.mxu0
      %1564 = vmatprep.mubr.bf16.mxu0 0
      %1565 = vmatmul.mubr.bf16.gmra.mxu0 %v1441
      %v1566 = vpop.f32.mrf.mxu0
      %v1567 = vadd.f32 0.0, %v1566
      %v1568 = vpop.f32.mrf.mxu0
      %v1569 = vpop.f32.mrf.mxu0
      %v1570 = vadd.f32 0.0, %v1569
      %v1571 = vpop.f32.mrf.mxu0
      %1572 = vmatprep.mubr.bf16.mxu0 0
      %1573 = vmatmul.mubr.bf16.gmra.mxu0 %v1444
      %v1574 = vpop.f32.mrf.mxu0
      %v1575 = vadd.f32 0.0, %v1574
      %v1576 = vpop.f32.mrf.mxu0
      %v1577 = vpop.f32.mrf.mxu0
      %v1578 = vadd.f32 0.0, %v1577
      %v1579 = vpop.f32.mrf.mxu0
      %1580 = vmatprep.mubr.bf16.mxu0 0
      %1581 = vmatmul.mubr.bf16.gmra.mxu0 %v1447
      %v1582 = vpop.f32.mrf.mxu0
      %v1583 = vadd.f32 0.0, %v1582
      %v1584 = vpop.f32.mrf.mxu0
      %v1585 = vpop.f32.mrf.mxu0
      %v1586 = vadd.f32 0.0, %v1585
      %v1587 = vpop.f32.mrf.mxu0
      %1588 = vmatprep.mubr.bf16.mxu0 0
      %1589 = vmatmul.mubr.bf16.gmra.mxu0 %v1450
      %v1590 = vpop.f32.mrf.mxu0
      %v1591 = vadd.f32 0.0, %v1590
      %v1592 = vpop.f32.mrf.mxu0
      %v1593 = vpop.f32.mrf.mxu0
      %v1594 = vadd.f32 0.0, %v1593
      %v1595 = vpop.f32.mrf.mxu0
      %1596 = vmatprep.mubr.bf16.mxu0 0
      %1597 = vmatmul.mubr.bf16.gmra.mxu0 %v1453
      %v1598 = vpop.f32.mrf.mxu0
      %v1599 = vadd.f32 0.0, %v1598
      %v1600 = vpop.f32.mrf.mxu0
      %v1601 = vpop.f32.mrf.mxu0
      %v1602 = vadd.f32 0.0, %v1601
      %v1603 = vpop.f32.mrf.mxu0
      %1604 = vmatprep.mubr.bf16.mxu0 0
      %1605 = vmatmul.mubr.bf16.gmra.mxu0 %v1456
      %v1606 = vpop.f32.mrf.mxu0
      %v1607 = vadd.f32 0.0, %v1606
      %v1608 = vpop.f32.mrf.mxu0
      %v1609 = vpop.f32.mrf.mxu0
      %v1610 = vadd.f32 0.0, %v1609
      %v1611 = vpop.f32.mrf.mxu0
      %1612 = vmatprep.mubr.bf16.mxu0 0
      %1613 = vmatmul.mubr.bf16.gmra.mxu0 %v1459
      %v1614 = vpop.f32.mrf.mxu0
      %v1615 = vadd.f32 0.0, %v1614
      %v1616 = vpop.f32.mrf.mxu0
      %v1617 = vpop.f32.mrf.mxu0
      %v1618 = vadd.f32 0.0, %v1617
      %v1619 = vpop.f32.mrf.mxu0
      %1620 = vmatprep.mubr.bf16.mxu0 0
      %1621 = vmatmul.mubr.bf16.gmra.mxu0 %v1462
      %v1622 = vpop.f32.mrf.mxu0
      %v1623 = vadd.f32 0.0, %v1622
      %v1624 = vpop.f32.mrf.mxu0
      %v1625 = vpop.f32.mrf.mxu0
      %v1626 = vadd.f32 0.0, %v1625
      %v1627 = vpop.f32.mrf.mxu0
      %1628 = vmatprep.mubr.bf16.mxu0 0
      %1629 = vmatmul.mubr.bf16.gmra.mxu0 %v1465
      %v1630 = vpop.f32.mrf.mxu0
      %v1631 = vadd.f32 0.0, %v1630
      %v1632 = vpop.f32.mrf.mxu0
      %v1633 = vpop.f32.mrf.mxu0
      %v1634 = vadd.f32 0.0, %v1633
      %v1635 = vpop.f32.mrf.mxu0
      %1636 = vmatprep.mubr.bf16.mxu0 0
      %1637 = vmatmul.mubr.bf16.gmra.mxu0 %v1468
      %v1638 = vpop.f32.mrf.mxu0
      %v1639 = vadd.f32 0.0, %v1638
      %v1640 = vpop.f32.mrf.mxu0
      %v1641 = vpop.f32.mrf.mxu0
      %v1642 = vadd.f32 0.0, %v1641
      %v1643 = vpop.f32.mrf.mxu0
      %1644 = vmatprep.mubr.bf16.mxu0 0
      %1645 = vmatmul.mubr.bf16.gmra.mxu0 %v1471
      %v1646 = vpop.f32.mrf.mxu0
      %v1647 = vadd.f32 0.0, %v1646
      %v1648 = vpop.f32.mrf.mxu0
      %v1649 = vpop.f32.mrf.mxu0
      %v1650 = vadd.f32 0.0, %v1649
      %v1651 = vpop.f32.mrf.mxu0
      %1652 = vdwg.mxu0
      %v1653 = vld [vmem:[#allocation2] sm:$0xff]
      %v1654 = vld [vmem:[#allocation2 + $0x8] sm:$0xff]
      %v1655 = vld [vmem:[#allocation2 + $0x10] sm:$0xff]
      %v1656 = vld [vmem:[#allocation2 + $0x18] sm:$0xff]
      %v1657 = vld [vmem:[#allocation2 + $0x20] sm:$0xff]
      %v1658 = vld [vmem:[#allocation2 + $0x28] sm:$0xff]
      %v1659 = vld [vmem:[#allocation2 + $0x30] sm:$0xff]
      %v1660 = vld [vmem:[#allocation2 + $0x38] sm:$0xff]
      %v1661 = vld [vmem:[#allocation2 + $0x40] sm:$0xff]
      %v1662 = vld [vmem:[#allocation2 + $0x48] sm:$0xff]
      %v1663 = vld [vmem:[#allocation2 + $0x50] sm:$0xff]
      %v1664 = vld [vmem:[#allocation2 + $0x58] sm:$0xff]
      %v1665 = vld [vmem:[#allocation2 + $0x60] sm:$0xff]
      %v1666 = vld [vmem:[#allocation2 + $0x68] sm:$0xff]
      %v1667 = vld [vmem:[#allocation2 + $0x70] sm:$0xff]
      %v1668 = vld [vmem:[#allocation2 + $0x78] sm:$0xff]
      %v1669 = vld [vmem:[#allocation2 + $0x80] sm:$0xff]
      %v1670 = vld [vmem:[#allocation2 + $0x88] sm:$0xff]
      %v1671 = vld [vmem:[#allocation2 + $0x90] sm:$0xff]
      %v1672 = vld [vmem:[#allocation2 + $0x98] sm:$0xff]
      %v1673 = vld [vmem:[#allocation2 + $0xa0] sm:$0xff]
      %v1674 = vld [vmem:[#allocation2 + $0xa8] sm:$0xff]
      %v1675 = vld [vmem:[#allocation2 + $0xb0] sm:$0xff]
      %v1676 = vld [vmem:[#allocation2 + $0xb8] sm:$0xff]
      %v1677 = vld [vmem:[#allocation2 + $0xc0] sm:$0xff]
      %v1678 = vld [vmem:[#allocation2 + $0xc8] sm:$0xff]
      %v1679 = vld [vmem:[#allocation2 + $0xd0] sm:$0xff]
      %v1680 = vld [vmem:[#allocation2 + $0xd8] sm:$0xff]
      %v1681 = vld [vmem:[#allocation2 + $0xe0] sm:$0xff]
      %v1682 = vld [vmem:[#allocation2 + $0xe8] sm:$0xff]
      %v1683 = vld [vmem:[#allocation2 + $0xf0] sm:$0xff]
      %v1684 = vld [vmem:[#allocation2 + $0xf8] sm:$0xff]
      %v1685 = vld [vmem:[#allocation2 + $0x100] sm:$0xff]
      %v1686 = vld [vmem:[#allocation2 + $0x108] sm:$0xff]
      %v1687 = vld [vmem:[#allocation2 + $0x110] sm:$0xff]
      %v1688 = vld [vmem:[#allocation2 + $0x118] sm:$0xff]
      %v1689 = vadd.f32 %v1653, %v1511
      %v1690 = vadd.f32 %v1654, %v1514
      %v1691 = vadd.f32 %v1655, %v1519
      %v1692 = vadd.f32 %v1656, %v1522
      %v1693 = vadd.f32 %v1657, %v1527
      %v1694 = vadd.f32 %v1658, %v1530
      %v1695 = vadd.f32 %v1659, %v1535
      %v1696 = vadd.f32 %v1660, %v1538
      %v1697 = vadd.f32 %v1661, %v1543
      %v1698 = vadd.f32 %v1662, %v1546
      %v1699 = vadd.f32 %v1663, %v1551
      %v1700 = vadd.f32 %v1664, %v1554
      %v1701 = vadd.f32 %v1665, %v1559
      %v1702 = vadd.f32 %v1666, %v1562
      %v1703 = vadd.f32 %v1667, %v1567
      %v1704 = vadd.f32 %v1668, %v1570
      %v1705 = vadd.f32 %v1669, %v1575
      %v1706 = vadd.f32 %v1670, %v1578
      %v1707 = vadd.f32 %v1671, %v1583
      %v1708 = vadd.f32 %v1672, %v1586
      %v1709 = vadd.f32 %v1673, %v1591
      %v1710 = vadd.f32 %v1674, %v1594
      %v1711 = vadd.f32 %v1675, %v1599
      %v1712 = vadd.f32 %v1676, %v1602
      %v1713 = vadd.f32 %v1677, %v1607
      %v1714 = vadd.f32 %v1678, %v1610
      %v1715 = vadd.f32 %v1679, %v1615
      %v1716 = vadd.f32 %v1680, %v1618
      %v1717 = vadd.f32 %v1681, %v1623
      %v1718 = vadd.f32 %v1682, %v1626
      %v1719 = vadd.f32 %v1683, %v1631
      %v1720 = vadd.f32 %v1684, %v1634
      %v1721 = vadd.f32 %v1685, %v1639
      %v1722 = vadd.f32 %v1686, %v1642
      %v1723 = vadd.f32 %v1687, %v1647
      %v1724 = vadd.f32 %v1688, %v1650
      %1725 = vst.msk [vmem:[#allocation2] sm:$0xff] %vm589, %v1689
      %1726 = vst.msk [vmem:[#allocation2 + $0x8] sm:$0xff] %vm589, %v1690
      %1727 = vst.msk [vmem:[#allocation2 + $0x10] sm:$0xff] %vm589, %v1691
      %1728 = vst.msk [vmem:[#allocation2 + $0x18] sm:$0xff] %vm589, %v1692
      %1729 = vst.msk [vmem:[#allocation2 + $0x20] sm:$0xff] %vm589, %v1693
      %1730 = vst.msk [vmem:[#allocation2 + $0x28] sm:$0xff] %vm589, %v1694
      %1731 = vst.msk [vmem:[#allocation2 + $0x30] sm:$0xff] %vm589, %v1695
      %1732 = vst.msk [vmem:[#allocation2 + $0x38] sm:$0xff] %vm589, %v1696
      %1733 = vst.msk [vmem:[#allocation2 + $0x40] sm:$0xff] %vm589, %v1697
      %1734 = vst.msk [vmem:[#allocation2 + $0x48] sm:$0xff] %vm589, %v1698
      %1735 = vst.msk [vmem:[#allocation2 + $0x50] sm:$0xff] %vm589, %v1699
      %1736 = vst.msk [vmem:[#allocation2 + $0x58] sm:$0xff] %vm589, %v1700
      %1737 = vst.msk [vmem:[#allocation2 + $0x60] sm:$0xff] %vm589, %v1701
      %1738 = vst.msk [vmem:[#allocation2 + $0x68] sm:$0xff] %vm589, %v1702
      %1739 = vst.msk [vmem:[#allocation2 + $0x70] sm:$0xff] %vm589, %v1703
      %1740 = vst.msk [vmem:[#allocation2 + $0x78] sm:$0xff] %vm589, %v1704
      %1741 = vst.msk [vmem:[#allocation2 + $0x80] sm:$0xff] %vm589, %v1705
      %1742 = vst.msk [vmem:[#allocation2 + $0x88] sm:$0xff] %vm589, %v1706
      %1743 = vst.msk [vmem:[#allocation2 + $0x90] sm:$0xff] %vm589, %v1707
      %1744 = vst.msk [vmem:[#allocation2 + $0x98] sm:$0xff] %vm589, %v1708
      %1745 = vst.msk [vmem:[#allocation2 + $0xa0] sm:$0xff] %vm589, %v1709
      %1746 = vst.msk [vmem:[#allocation2 + $0xa8] sm:$0xff] %vm589, %v1710
      %1747 = vst.msk [vmem:[#allocation2 + $0xb0] sm:$0xff] %vm589, %v1711
      %1748 = vst.msk [vmem:[#allocation2 + $0xb8] sm:$0xff] %vm589, %v1712
      %1749 = vst.msk [vmem:[#allocation2 + $0xc0] sm:$0xff] %vm589, %v1713
      %1750 = vst.msk [vmem:[#allocation2 + $0xc8] sm:$0xff] %vm589, %v1714
      %1751 = vst.msk [vmem:[#allocation2 + $0xd0] sm:$0xff] %vm589, %v1715
      %1752 = vst.msk [vmem:[#allocation2 + $0xd8] sm:$0xff] %vm589, %v1716
      %1753 = vst.msk [vmem:[#allocation2 + $0xe0] sm:$0xff] %vm589, %v1717
      %1754 = vst.msk [vmem:[#allocation2 + $0xe8] sm:$0xff] %vm589, %v1718
      %1755 = vst.msk [vmem:[#allocation2 + $0xf0] sm:$0xff] %vm589, %v1719
      %1756 = vst.msk [vmem:[#allocation2 + $0xf8] sm:$0xff] %vm589, %v1720
      %1757 = vst.msk [vmem:[#allocation2 + $0x100] sm:$0xff] %vm589, %v1721
      %1758 = vst.msk [vmem:[#allocation2 + $0x108] sm:$0xff] %vm589, %v1722
      %1759 = vst.msk [vmem:[#allocation2 + $0x110] sm:$0xff] %vm589, %v1723
      %1760 = vst.msk [vmem:[#allocation2 + $0x118] sm:$0xff] %vm589, %v1724
      %v1761 = vld [vmem:[%s219 + $0x8] sm:$0xe]
      %v1762 = vld [vmem:[%s219 + $0xc] sm:$0xf]
      %v1763 = vld [vmem:[%s219 + $0x10] sm:$0xf]
      %v1764 = vld [vmem:[%s219 + $0x14] sm:$0xf]
      %v1765 = vld [vmem:[%s219 + $0x18] sm:$0xf]
      %v1766 = vld [vmem:[%s219 + $0x1c] sm:$0xf]
      %v1767 = vld [vmem:[%s219 + $0x20] sm:$0xf]
      %v1768 = vld [vmem:[%s219 + $0x24] sm:$0xf]
      %v1769 = vld [vmem:[%s219 + $0x28] sm:$0xf]
      %v1770 = vld [vmem:[%s219 + $0x2c] sm:$0xf]
      %v1771 = vld [vmem:[%s219 + $0x30] sm:$0xf]
      %v1772 = vld [vmem:[%s219 + $0x34] sm:$0xf]
      %v1773 = vld [vmem:[%s219 + $0x38] sm:$0xf]
      %v1774 = vld [vmem:[%s219 + $0x3c] sm:$0xf]
      %v1775 = vld [vmem:[%s219 + $0x40] sm:$0xf]
      %v1776 = vld [vmem:[%s219 + $0x44] sm:$0xf]
      %v1777 = vld [vmem:[%s219 + $0x48] sm:$0xf]
      %v1778 = vld [vmem:[%s219 + $0x4c] sm:$0xf]
      %v1779 = vld [vmem:[%s219 + $0x50] sm:$0xf]
      %v1780 = vld [vmem:[%s219 + $0x54] sm:$0xf]
      %v1781 = vld [vmem:[%s219 + $0x58] sm:$0xf]
      %v1782 = vld [vmem:[%s219 + $0x5c] sm:$0xf]
      %v1783 = vld [vmem:[%s219 + $0x60] sm:$0xf]
      %v1784 = vld [vmem:[%s219 + $0x64] sm:$0xf]
      %v1785 = vld [vmem:[%s219 + $0x68] sm:$0xf]
      %v1786 = vld [vmem:[%s219 + $0x6c] sm:$0xf]
      %v1787 = vld [vmem:[%s219 + $0x70] sm:$0xf]
      %v1788 = vld [vmem:[%s219 + $0x74] sm:$0xf]
      %v1789 = vld [vmem:[%s219 + $0x78] sm:$0xf]
      %v1790 = vld [vmem:[%s219 + $0x7c] sm:$0xf]
      %v1791 = vld [vmem:[%s219 + $0x80] sm:$0xf]
      %v1792 = vld [vmem:[%s219 + $0x84] sm:$0xf]
      %v1793 = vld [vmem:[%s219 + $0x88] sm:$0xf]
      %v1794 = vld [vmem:[%s219 + $0x8c] sm:$0xf]
      %v1795 = vld [vmem:[%s219 + $0x90] sm:$0xf]
      %v1796 = vld [vmem:[%s219 + $0x94] sm:$0xf]
      %v1797 = vld [vmem:[%s219 + $0x98] sm:$0x1]
      %s1798 = scalar_lea.vmem %s1, 12
      %v1799 = vld [vmem:[%s1798] sm:$0xf]
      %v1837 = vunpack.c.l.b16 %v1761
      %v1838 = vunpack.c.l.b16 %v1762
      %v1839 = vunpack.c.l.b16 %v1763
      %v1840 = vunpack.c.l.b16 %v1764
      %v1841 = vunpack.c.l.b16 %v1765
      %v1842 = vunpack.c.l.b16 %v1766
      %v1843 = vunpack.c.l.b16 %v1767
      %v1844 = vunpack.c.l.b16 %v1768
      %v1845 = vunpack.c.l.b16 %v1769
      %v1846 = vunpack.c.l.b16 %v1770
      %v1847 = vunpack.c.l.b16 %v1771
      %v1848 = vunpack.c.l.b16 %v1772
      %v1849 = vunpack.c.l.b16 %v1773
      %v1850 = vunpack.c.l.b16 %v1774
      %v1851 = vunpack.c.l.b16 %v1775
      %v1852 = vunpack.c.l.b16 %v1776
      %v1853 = vunpack.c.l.b16 %v1777
      %v1854 = vunpack.c.l.b16 %v1778
      %v1855 = vunpack.c.l.b16 %v1779
      %v1856 = vunpack.c.l.b16 %v1780
      %v1857 = vunpack.c.l.b16 %v1781
      %v1858 = vunpack.c.l.b16 %v1782
      %v1859 = vunpack.c.l.b16 %v1783
      %v1860 = vunpack.c.l.b16 %v1784
      %v1861 = vunpack.c.l.b16 %v1785
      %v1862 = vunpack.c.l.b16 %v1786
      %v1863 = vunpack.c.l.b16 %v1787
      %v1864 = vunpack.c.l.b16 %v1788
      %v1865 = vunpack.c.l.b16 %v1789
      %v1866 = vunpack.c.l.b16 %v1790
      %v1867 = vunpack.c.l.b16 %v1791
      %v1868 = vunpack.c.l.b16 %v1792
      %v1869 = vunpack.c.l.b16 %v1793
      %v1870 = vunpack.c.l.b16 %v1794
      %v1871 = vunpack.c.l.b16 %v1795
      %v1872 = vunpack.c.l.b16 %v1796
      %v1873 = vunpack.c.l.b16 %v1797
      %v1874 = vpack.c.b16 %v1838, %v1837
      %v1875 = vpack.c.b16 %v1840, %v1839
      %v1876 = vpack.c.b16 %v1842, %v1841
      %v1877 = vpack.c.b16 %v1844, %v1843
      %v1878 = vpack.c.b16 %v1846, %v1845
      %v1879 = vpack.c.b16 %v1848, %v1847
      %v1880 = vpack.c.b16 %v1850, %v1849
      %v1881 = vpack.c.b16 %v1852, %v1851
      %v1882 = vpack.c.b16 %v1854, %v1853
      %v1883 = vpack.c.b16 %v1856, %v1855
      %v1884 = vpack.c.b16 %v1858, %v1857
      %v1885 = vpack.c.b16 %v1860, %v1859
      %v1886 = vpack.c.b16 %v1862, %v1861
      %v1887 = vpack.c.b16 %v1864, %v1863
      %v1888 = vpack.c.b16 %v1866, %v1865
      %v1889 = vpack.c.b16 %v1868, %v1867
      %v1890 = vpack.c.b16 %v1870, %v1869
      %v1891 = vpack.c.b16 %v1872, %v1871
      %v1892 = vpack.c.b16 %v1873, %v1873
      %v1893 = vrot.slane %v1874, 1
      %v1894 = vrot.slane %v1875, 1
      %v1895 = vsel %vm1381, %v1893, %v1894
      %v1896 = vrot.slane %v1876, 1
      %v1897 = vsel %vm1381, %v1894, %v1896
      %v1898 = vrot.slane %v1877, 1
      %v1899 = vsel %vm1381, %v1896, %v1898
      %v1900 = vrot.slane %v1878, 1
      %v1901 = vsel %vm1381, %v1898, %v1900
      %v1902 = vrot.slane %v1879, 1
      %v1903 = vsel %vm1381, %v1900, %v1902
      %v1904 = vrot.slane %v1880, 1
      %v1905 = vsel %vm1381, %v1902, %v1904
      %v1906 = vrot.slane %v1881, 1
      %v1907 = vsel %vm1381, %v1904, %v1906
      %v1908 = vrot.slane %v1882, 1
      %v1909 = vsel %vm1381, %v1906, %v1908
      %v1910 = vrot.slane %v1883, 1
      %v1911 = vsel %vm1381, %v1908, %v1910
      %v1912 = vrot.slane %v1884, 1
      %v1913 = vsel %vm1381, %v1910, %v1912
      %v1914 = vrot.slane %v1885, 1
      %v1915 = vsel %vm1381, %v1912, %v1914
      %v1916 = vrot.slane %v1886, 1
      %v1917 = vsel %vm1381, %v1914, %v1916
      %v1918 = vrot.slane %v1887, 1
      %v1919 = vsel %vm1381, %v1916, %v1918
      %v1920 = vrot.slane %v1888, 1
      %v1921 = vsel %vm1381, %v1918, %v1920
      %v1922 = vrot.slane %v1889, 1
      %v1923 = vsel %vm1381, %v1920, %v1922
      %v1924 = vrot.slane %v1890, 1
      %v1925 = vsel %vm1381, %v1922, %v1924
      %v1926 = vrot.slane %v1891, 1
      %v1927 = vsel %vm1381, %v1924, %v1926
      %v1928 = vrot.slane %v1892, 1
      %v1929 = vsel %vm1381, %v1926, %v1928
      %v1931 = vsel %vm353, %v1895, 0
      %v1934 = vsel %vm353, %v1897, 0
      %v1937 = vsel %vm353, %v1899, 0
      %v1940 = vsel %vm353, %v1901, 0
      %v1943 = vsel %vm353, %v1903, 0
      %v1946 = vsel %vm353, %v1905, 0
      %v1949 = vsel %vm353, %v1907, 0
      %v1952 = vsel %vm353, %v1909, 0
      %v1955 = vsel %vm353, %v1911, 0
      %v1958 = vsel %vm353, %v1913, 0
      %v1961 = vsel %vm353, %v1915, 0
      %v1964 = vsel %vm353, %v1917, 0
      %v1967 = vsel %vm353, %v1919, 0
      %v1970 = vsel %vm353, %v1921, 0
      %v1973 = vsel %vm353, %v1923, 0
      %v1976 = vsel %vm353, %v1925, 0
      %v1979 = vsel %vm353, %v1927, 0
      %v1982 = vsel %vm353, %v1929, 0
      %v1985 = vsel %vm408, %v1799, 0
      %1987 = vmatprep.subr.bf16.mxu0 0
      %1988 = vmatpush1.bf16.msra.mxu0 0
      %1989 = vmatprep.subr.bf16.mxu0 0
      %1990 = vmatpush1.bf16.msra.mxu0 0
      %1991 = vmatprep.subr.bf16.mxu0 0
      %1992 = vmatpush1.bf16.msra.mxu0 0
      %1993 = vmatprep.subr.bf16.mxu0 0
      %1994 = vmatpush1.bf16.msra.mxu0 0
      %1995 = vmatprep.subr.bf16.mxu0 0
      %1996 = vmatpush1.bf16.msra.mxu0 0
      %1997 = vmatprep.subr.bf16.mxu0 0
      %1998 = vmatpush1.bf16.msra.mxu0 0
      %1999 = vmatprep.subr.bf16.mxu0 0
      %2000 = vmatpush1.bf16.msra.mxu0 0
      %2001 = vmatprep.subr.bf16.mxu0 0
      %2002 = vmatpush1.bf16.msra.mxu0 %v1985
      %2003 = vmatprep.subr.bf16.mxu0 0
      %2004 = vmatpush2.bf16.msra.mxu0 0
      %2005 = vmatprep.subr.bf16.mxu0 0
      %2006 = vmatpush2.bf16.msra.mxu0 0
      %2007 = vmatprep.subr.bf16.mxu0 0
      %2008 = vmatpush2.bf16.msra.mxu0 0
      %2009 = vmatprep.subr.bf16.mxu0 0
      %2010 = vmatpush2.bf16.msra.mxu0 0
      %2011 = vmatprep.subr.bf16.mxu0 0
      %2012 = vmatpush2.bf16.msra.mxu0 0
      %2013 = vmatprep.subr.bf16.mxu0 0
      %2014 = vmatpush2.bf16.msra.mxu0 0
      %2015 = vmatprep.subr.bf16.mxu0 0
      %2016 = vmatpush2.bf16.msra.mxu0 0
      %2017 = vmatprep.subr.bf16.mxu0 0
      %2018 = vmatpush2.bf16.msra.mxu0 0
      %2019 = vmatprep.mubr.bf16.mxu0 0
      %2020 = vmatmul.mubr.bf16.gmra.mxu0 %v1931
      %v2021 = vpop.f32.mrf.mxu0
      %v2022 = vadd.f32 0.0, %v2021
      %v2023 = vpop.f32.mrf.mxu0
      %v2024 = vpop.f32.mrf.mxu0
      %v2025 = vadd.f32 0.0, %v2024
      %v2026 = vpop.f32.mrf.mxu0
      %2027 = vmatprep.mubr.bf16.mxu0 0
      %2028 = vmatmul.mubr.bf16.gmra.mxu0 %v1934
      %v2029 = vpop.f32.mrf.mxu0
      %v2030 = vadd.f32 0.0, %v2029
      %v2031 = vpop.f32.mrf.mxu0
      %v2032 = vpop.f32.mrf.mxu0
      %v2033 = vadd.f32 0.0, %v2032
      %v2034 = vpop.f32.mrf.mxu0
      %2035 = vmatprep.mubr.bf16.mxu0 0
      %2036 = vmatmul.mubr.bf16.gmra.mxu0 %v1937
      %v2037 = vpop.f32.mrf.mxu0
      %v2038 = vadd.f32 0.0, %v2037
      %v2039 = vpop.f32.mrf.mxu0
      %v2040 = vpop.f32.mrf.mxu0
      %v2041 = vadd.f32 0.0, %v2040
      %v2042 = vpop.f32.mrf.mxu0
      %2043 = vmatprep.mubr.bf16.mxu0 0
      %2044 = vmatmul.mubr.bf16.gmra.mxu0 %v1940
      %v2045 = vpop.f32.mrf.mxu0
      %v2046 = vadd.f32 0.0, %v2045
      %v2047 = vpop.f32.mrf.mxu0
      %v2048 = vpop.f32.mrf.mxu0
      %v2049 = vadd.f32 0.0, %v2048
      %v2050 = vpop.f32.mrf.mxu0
      %2051 = vmatprep.mubr.bf16.mxu0 0
      %2052 = vmatmul.mubr.bf16.gmra.mxu0 %v1943
      %v2053 = vpop.f32.mrf.mxu0
      %v2054 = vadd.f32 0.0, %v2053
      %v2055 = vpop.f32.mrf.mxu0
      %v2056 = vpop.f32.mrf.mxu0
      %v2057 = vadd.f32 0.0, %v2056
      %v2058 = vpop.f32.mrf.mxu0
      %2059 = vmatprep.mubr.bf16.mxu0 0
      %2060 = vmatmul.mubr.bf16.gmra.mxu0 %v1946
      %v2061 = vpop.f32.mrf.mxu0
      %v2062 = vadd.f32 0.0, %v2061
      %v2063 = vpop.f32.mrf.mxu0
      %v2064 = vpop.f32.mrf.mxu0
      %v2065 = vadd.f32 0.0, %v2064
      %v2066 = vpop.f32.mrf.mxu0
      %2067 = vmatprep.mubr.bf16.mxu0 0
      %2068 = vmatmul.mubr.bf16.gmra.mxu0 %v1949
      %v2069 = vpop.f32.mrf.mxu0
      %v2070 = vadd.f32 0.0, %v2069
      %v2071 = vpop.f32.mrf.mxu0
      %v2072 = vpop.f32.mrf.mxu0
      %v2073 = vadd.f32 0.0, %v2072
      %v2074 = vpop.f32.mrf.mxu0
      %2075 = vmatprep.mubr.bf16.mxu0 0
      %2076 = vmatmul.mubr.bf16.gmra.mxu0 %v1952
      %v2077 = vpop.f32.mrf.mxu0
      %v2078 = vadd.f32 0.0, %v2077
      %v2079 = vpop.f32.mrf.mxu0
      %v2080 = vpop.f32.mrf.mxu0
      %v2081 = vadd.f32 0.0, %v2080
      %v2082 = vpop.f32.mrf.mxu0
      %2083 = vmatprep.mubr.bf16.mxu0 0
      %2084 = vmatmul.mubr.bf16.gmra.mxu0 %v1955
      %v2085 = vpop.f32.mrf.mxu0
      %v2086 = vadd.f32 0.0, %v2085
      %v2087 = vpop.f32.mrf.mxu0
      %v2088 = vpop.f32.mrf.mxu0
      %v2089 = vadd.f32 0.0, %v2088
      %v2090 = vpop.f32.mrf.mxu0
      %2091 = vmatprep.mubr.bf16.mxu0 0
      %2092 = vmatmul.mubr.bf16.gmra.mxu0 %v1958
      %v2093 = vpop.f32.mrf.mxu0
      %v2094 = vadd.f32 0.0, %v2093
      %v2095 = vpop.f32.mrf.mxu0
      %v2096 = vpop.f32.mrf.mxu0
      %v2097 = vadd.f32 0.0, %v2096
      %v2098 = vpop.f32.mrf.mxu0
      %2099 = vmatprep.mubr.bf16.mxu0 0
      %2100 = vmatmul.mubr.bf16.gmra.mxu0 %v1961
      %v2101 = vpop.f32.mrf.mxu0
      %v2102 = vadd.f32 0.0, %v2101
      %v2103 = vpop.f32.mrf.mxu0
      %v2104 = vpop.f32.mrf.mxu0
      %v2105 = vadd.f32 0.0, %v2104
      %v2106 = vpop.f32.mrf.mxu0
      %2107 = vmatprep.mubr.bf16.mxu0 0
      %2108 = vmatmul.mubr.bf16.gmra.mxu0 %v1964
      %v2109 = vpop.f32.mrf.mxu0
      %v2110 = vadd.f32 0.0, %v2109
      %v2111 = vpop.f32.mrf.mxu0
      %v2112 = vpop.f32.mrf.mxu0
      %v2113 = vadd.f32 0.0, %v2112
      %v2114 = vpop.f32.mrf.mxu0
      %2115 = vmatprep.mubr.bf16.mxu0 0
      %2116 = vmatmul.mubr.bf16.gmra.mxu0 %v1967
      %v2117 = vpop.f32.mrf.mxu0
      %v2118 = vadd.f32 0.0, %v2117
      %v2119 = vpop.f32.mrf.mxu0
      %v2120 = vpop.f32.mrf.mxu0
      %v2121 = vadd.f32 0.0, %v2120
      %v2122 = vpop.f32.mrf.mxu0
      %2123 = vmatprep.mubr.bf16.mxu0 0
      %2124 = vmatmul.mubr.bf16.gmra.mxu0 %v1970
      %v2125 = vpop.f32.mrf.mxu0
      %v2126 = vadd.f32 0.0, %v2125
      %v2127 = vpop.f32.mrf.mxu0
      %v2128 = vpop.f32.mrf.mxu0
      %v2129 = vadd.f32 0.0, %v2128
      %v2130 = vpop.f32.mrf.mxu0
      %2131 = vmatprep.mubr.bf16.mxu0 0
      %2132 = vmatmul.mubr.bf16.gmra.mxu0 %v1973
      %v2133 = vpop.f32.mrf.mxu0
      %v2134 = vadd.f32 0.0, %v2133
      %v2135 = vpop.f32.mrf.mxu0
      %v2136 = vpop.f32.mrf.mxu0
      %v2137 = vadd.f32 0.0, %v2136
      %v2138 = vpop.f32.mrf.mxu0
      %2139 = vmatprep.mubr.bf16.mxu0 0
      %2140 = vmatmul.mubr.bf16.gmra.mxu0 %v1976
      %v2141 = vpop.f32.mrf.mxu0
      %v2142 = vadd.f32 0.0, %v2141
      %v2143 = vpop.f32.mrf.mxu0
      %v2144 = vpop.f32.mrf.mxu0
      %v2145 = vadd.f32 0.0, %v2144
      %v2146 = vpop.f32.mrf.mxu0
      %2147 = vmatprep.mubr.bf16.mxu0 0
      %2148 = vmatmul.mubr.bf16.gmra.mxu0 %v1979
      %v2149 = vpop.f32.mrf.mxu0
      %v2150 = vadd.f32 0.0, %v2149
      %v2151 = vpop.f32.mrf.mxu0
      %v2152 = vpop.f32.mrf.mxu0
      %v2153 = vadd.f32 0.0, %v2152
      %v2154 = vpop.f32.mrf.mxu0
      %2155 = vmatprep.mubr.bf16.mxu0 0
      %2156 = vmatmul.mubr.bf16.gmra.mxu0 %v1982
      %v2157 = vpop.f32.mrf.mxu0
      %v2158 = vadd.f32 0.0, %v2157
      %v2159 = vpop.f32.mrf.mxu0
      %v2160 = vpop.f32.mrf.mxu0
      %v2161 = vadd.f32 0.0, %v2160
      %v2162 = vpop.f32.mrf.mxu0
      %2163 = vdwg.mxu0
      %v2164 = vld [vmem:[#allocation2] sm:$0xff]
      %v2165 = vld [vmem:[#allocation2 + $0x8] sm:$0xff]
      %v2166 = vld [vmem:[#allocation2 + $0x10] sm:$0xff]
      %v2167 = vld [vmem:[#allocation2 + $0x18] sm:$0xff]
      %v2168 = vld [vmem:[#allocation2 + $0x20] sm:$0xff]
      %v2169 = vld [vmem:[#allocation2 + $0x28] sm:$0xff]
      %v2170 = vld [vmem:[#allocation2 + $0x30] sm:$0xff]
      %v2171 = vld [vmem:[#allocation2 + $0x38] sm:$0xff]
      %v2172 = vld [vmem:[#allocation2 + $0x40] sm:$0xff]
      %v2173 = vld [vmem:[#allocation2 + $0x48] sm:$0xff]
      %v2174 = vld [vmem:[#allocation2 + $0x50] sm:$0xff]
      %v2175 = vld [vmem:[#allocation2 + $0x58] sm:$0xff]
      %v2176 = vld [vmem:[#allocation2 + $0x60] sm:$0xff]
      %v2177 = vld [vmem:[#allocation2 + $0x68] sm:$0xff]
      %v2178 = vld [vmem:[#allocation2 + $0x70] sm:$0xff]
      %v2179 = vld [vmem:[#allocation2 + $0x78] sm:$0xff]
      %v2180 = vld [vmem:[#allocation2 + $0x80] sm:$0xff]
      %v2181 = vld [vmem:[#allocation2 + $0x88] sm:$0xff]
      %v2182 = vld [vmem:[#allocation2 + $0x90] sm:$0xff]
      %v2183 = vld [vmem:[#allocation2 + $0x98] sm:$0xff]
      %v2184 = vld [vmem:[#allocation2 + $0xa0] sm:$0xff]
      %v2185 = vld [vmem:[#allocation2 + $0xa8] sm:$0xff]
      %v2186 = vld [vmem:[#allocation2 + $0xb0] sm:$0xff]
      %v2187 = vld [vmem:[#allocation2 + $0xb8] sm:$0xff]
      %v2188 = vld [vmem:[#allocation2 + $0xc0] sm:$0xff]
      %v2189 = vld [vmem:[#allocation2 + $0xc8] sm:$0xff]
      %v2190 = vld [vmem:[#allocation2 + $0xd0] sm:$0xff]
      %v2191 = vld [vmem:[#allocation2 + $0xd8] sm:$0xff]
      %v2192 = vld [vmem:[#allocation2 + $0xe0] sm:$0xff]
      %v2193 = vld [vmem:[#allocation2 + $0xe8] sm:$0xff]
      %v2194 = vld [vmem:[#allocation2 + $0xf0] sm:$0xff]
      %v2195 = vld [vmem:[#allocation2 + $0xf8] sm:$0xff]
      %v2196 = vld [vmem:[#allocation2 + $0x100] sm:$0xff]
      %v2197 = vld [vmem:[#allocation2 + $0x108] sm:$0xff]
      %v2198 = vld [vmem:[#allocation2 + $0x110] sm:$0xff]
      %v2199 = vld [vmem:[#allocation2 + $0x118] sm:$0xff]
      %v2200 = vadd.f32 %v2164, %v2022
      %v2201 = vadd.f32 %v2165, %v2025
      %v2202 = vadd.f32 %v2166, %v2030
      %v2203 = vadd.f32 %v2167, %v2033
      %v2204 = vadd.f32 %v2168, %v2038
      %v2205 = vadd.f32 %v2169, %v2041
      %v2206 = vadd.f32 %v2170, %v2046
      %v2207 = vadd.f32 %v2171, %v2049
      %v2208 = vadd.f32 %v2172, %v2054
      %v2209 = vadd.f32 %v2173, %v2057
      %v2210 = vadd.f32 %v2174, %v2062
      %v2211 = vadd.f32 %v2175, %v2065
      %v2212 = vadd.f32 %v2176, %v2070
      %v2213 = vadd.f32 %v2177, %v2073
      %v2214 = vadd.f32 %v2178, %v2078
      %v2215 = vadd.f32 %v2179, %v2081
      %v2216 = vadd.f32 %v2180, %v2086
      %v2217 = vadd.f32 %v2181, %v2089
      %v2218 = vadd.f32 %v2182, %v2094
      %v2219 = vadd.f32 %v2183, %v2097
      %v2220 = vadd.f32 %v2184, %v2102
      %v2221 = vadd.f32 %v2185, %v2105
      %v2222 = vadd.f32 %v2186, %v2110
      %v2223 = vadd.f32 %v2187, %v2113
      %v2224 = vadd.f32 %v2188, %v2118
      %v2225 = vadd.f32 %v2189, %v2121
      %v2226 = vadd.f32 %v2190, %v2126
      %v2227 = vadd.f32 %v2191, %v2129
      %v2228 = vadd.f32 %v2192, %v2134
      %v2229 = vadd.f32 %v2193, %v2137
      %v2230 = vadd.f32 %v2194, %v2142
      %v2231 = vadd.f32 %v2195, %v2145
      %v2232 = vadd.f32 %v2196, %v2150
      %v2233 = vadd.f32 %v2197, %v2153
      %v2234 = vadd.f32 %v2198, %v2158
      %v2235 = vadd.f32 %v2199, %v2161
      %2236 = vst.msk [vmem:[#allocation2] sm:$0xff] %vm589, %v2200
      %2237 = vst.msk [vmem:[#allocation2 + $0x8] sm:$0xff] %vm589, %v2201
      %2238 = vst.msk [vmem:[#allocation2 + $0x10] sm:$0xff] %vm589, %v2202
      %2239 = vst.msk [vmem:[#allocation2 + $0x18] sm:$0xff] %vm589, %v2203
      %2240 = vst.msk [vmem:[#allocation2 + $0x20] sm:$0xff] %vm589, %v2204
      %2241 = vst.msk [vmem:[#allocation2 + $0x28] sm:$0xff] %vm589, %v2205
      %2242 = vst.msk [vmem:[#allocation2 + $0x30] sm:$0xff] %vm589, %v2206
      %2243 = vst.msk [vmem:[#allocation2 + $0x38] sm:$0xff] %vm589, %v2207
      %2244 = vst.msk [vmem:[#allocation2 + $0x40] sm:$0xff] %vm589, %v2208
      %2245 = vst.msk [vmem:[#allocation2 + $0x48] sm:$0xff] %vm589, %v2209
      %2246 = vst.msk [vmem:[#allocation2 + $0x50] sm:$0xff] %vm589, %v2210
      %2247 = vst.msk [vmem:[#allocation2 + $0x58] sm:$0xff] %vm589, %v2211
      %2248 = vst.msk [vmem:[#allocation2 + $0x60] sm:$0xff] %vm589, %v2212
      %2249 = vst.msk [vmem:[#allocation2 + $0x68] sm:$0xff] %vm589, %v2213
      %2250 = vst.msk [vmem:[#allocation2 + $0x70] sm:$0xff] %vm589, %v2214
      %2251 = vst.msk [vmem:[#allocation2 + $0x78] sm:$0xff] %vm589, %v2215
      %2252 = vst.msk [vmem:[#allocation2 + $0x80] sm:$0xff] %vm589, %v2216
      %2253 = vst.msk [vmem:[#allocation2 + $0x88] sm:$0xff] %vm589, %v2217
      %2254 = vst.msk [vmem:[#allocation2 + $0x90] sm:$0xff] %vm589, %v2218
      %2255 = vst.msk [vmem:[#allocation2 + $0x98] sm:$0xff] %vm589, %v2219
      %2256 = vst.msk [vmem:[#allocation2 + $0xa0] sm:$0xff] %vm589, %v2220
      %2257 = vst.msk [vmem:[#allocation2 + $0xa8] sm:$0xff] %vm589, %v2221
      %2258 = vst.msk [vmem:[#allocation2 + $0xb0] sm:$0xff] %vm589, %v2222
      %2259 = vst.msk [vmem:[#allocation2 + $0xb8] sm:$0xff] %vm589, %v2223
      %2260 = vst.msk [vmem:[#allocation2 + $0xc0] sm:$0xff] %vm589, %v2224
      %2261 = vst.msk [vmem:[#allocation2 + $0xc8] sm:$0xff] %vm589, %v2225
      %2262 = vst.msk [vmem:[#allocation2 + $0xd0] sm:$0xff] %vm589, %v2226
      %2263 = vst.msk [vmem:[#allocation2 + $0xd8] sm:$0xff] %vm589, %v2227
      %2264 = vst.msk [vmem:[#allocation2 + $0xe0] sm:$0xff] %vm589, %v2228
      %2265 = vst.msk [vmem:[#allocation2 + $0xe8] sm:$0xff] %vm589, %v2229
      %2266 = vst.msk [vmem:[#allocation2 + $0xf0] sm:$0xff] %vm589, %v2230
      %2267 = vst.msk [vmem:[#allocation2 + $0xf8] sm:$0xff] %vm589, %v2231
      %2268 = vst.msk [vmem:[#allocation2 + $0x100] sm:$0xff] %vm589, %v2232
      %2269 = vst.msk [vmem:[#allocation2 + $0x108] sm:$0xff] %vm589, %v2233
      %2270 = vst.msk [vmem:[#allocation2 + $0x110] sm:$0xff] %vm589, %v2234
      %2271 = vst.msk [vmem:[#allocation2 + $0x118] sm:$0xff] %vm589, %v2235
      %v2272 = vld [vmem:[%s219 + $0x8] sm:$0xe]
      %v2273 = vld [vmem:[%s219 + $0xc] sm:$0xf]
      %v2274 = vld [vmem:[%s219 + $0x10] sm:$0xf]
      %v2275 = vld [vmem:[%s219 + $0x14] sm:$0xf]
      %v2276 = vld [vmem:[%s219 + $0x18] sm:$0xf]
      %v2277 = vld [vmem:[%s219 + $0x1c] sm:$0xf]
      %v2278 = vld [vmem:[%s219 + $0x20] sm:$0xf]
      %v2279 = vld [vmem:[%s219 + $0x24] sm:$0xf]
      %v2280 = vld [vmem:[%s219 + $0x28] sm:$0xf]
      %v2281 = vld [vmem:[%s219 + $0x2c] sm:$0xf]
      %v2282 = vld [vmem:[%s219 + $0x30] sm:$0xf]
      %v2283 = vld [vmem:[%s219 + $0x34] sm:$0xf]
      %v2284 = vld [vmem:[%s219 + $0x38] sm:$0xf]
      %v2285 = vld [vmem:[%s219 + $0x3c] sm:$0xf]
      %v2286 = vld [vmem:[%s219 + $0x40] sm:$0xf]
      %v2287 = vld [vmem:[%s219 + $0x44] sm:$0xf]
      %v2288 = vld [vmem:[%s219 + $0x48] sm:$0xf]
      %v2289 = vld [vmem:[%s219 + $0x4c] sm:$0xf]
      %v2290 = vld [vmem:[%s219 + $0x50] sm:$0xf]
      %v2291 = vld [vmem:[%s219 + $0x54] sm:$0xf]
      %v2292 = vld [vmem:[%s219 + $0x58] sm:$0xf]
      %v2293 = vld [vmem:[%s219 + $0x5c] sm:$0xf]
      %v2294 = vld [vmem:[%s219 + $0x60] sm:$0xf]
      %v2295 = vld [vmem:[%s219 + $0x64] sm:$0xf]
      %v2296 = vld [vmem:[%s219 + $0x68] sm:$0xf]
      %v2297 = vld [vmem:[%s219 + $0x6c] sm:$0xf]
      %v2298 = vld [vmem:[%s219 + $0x70] sm:$0xf]
      %v2299 = vld [vmem:[%s219 + $0x74] sm:$0xf]
      %v2300 = vld [vmem:[%s219 + $0x78] sm:$0xf]
      %v2301 = vld [vmem:[%s219 + $0x7c] sm:$0xf]
      %v2302 = vld [vmem:[%s219 + $0x80] sm:$0xf]
      %v2303 = vld [vmem:[%s219 + $0x84] sm:$0xf]
      %v2304 = vld [vmem:[%s219 + $0x88] sm:$0xf]
      %v2305 = vld [vmem:[%s219 + $0x8c] sm:$0xf]
      %v2306 = vld [vmem:[%s219 + $0x90] sm:$0xf]
      %v2307 = vld [vmem:[%s219 + $0x94] sm:$0xf]
      %v2308 = vld [vmem:[%s219 + $0x98] sm:$0x3]
      %s2309 = scalar_lea.vmem %s1, 16
      %v2310 = vld [vmem:[%s2309] sm:$0xf]
      %v2348 = vunpack.c.l.b16 %v2272
      %v2349 = vunpack.c.l.b16 %v2273
      %v2350 = vunpack.c.l.b16 %v2274
      %v2351 = vunpack.c.l.b16 %v2275
      %v2352 = vunpack.c.l.b16 %v2276
      %v2353 = vunpack.c.l.b16 %v2277
      %v2354 = vunpack.c.l.b16 %v2278
      %v2355 = vunpack.c.l.b16 %v2279
      %v2356 = vunpack.c.l.b16 %v2280
      %v2357 = vunpack.c.l.b16 %v2281
      %v2358 = vunpack.c.l.b16 %v2282
      %v2359 = vunpack.c.l.b16 %v2283
      %v2360 = vunpack.c.l.b16 %v2284
      %v2361 = vunpack.c.l.b16 %v2285
      %v2362 = vunpack.c.l.b16 %v2286
      %v2363 = vunpack.c.l.b16 %v2287
      %v2364 = vunpack.c.l.b16 %v2288
      %v2365 = vunpack.c.l.b16 %v2289
      %v2366 = vunpack.c.l.b16 %v2290
      %v2367 = vunpack.c.l.b16 %v2291
      %v2368 = vunpack.c.l.b16 %v2292
      %v2369 = vunpack.c.l.b16 %v2293
      %v2370 = vunpack.c.l.b16 %v2294
      %v2371 = vunpack.c.l.b16 %v2295
      %v2372 = vunpack.c.l.b16 %v2296
      %v2373 = vunpack.c.l.b16 %v2297
      %v2374 = vunpack.c.l.b16 %v2298
      %v2375 = vunpack.c.l.b16 %v2299
      %v2376 = vunpack.c.l.b16 %v2300
      %v2377 = vunpack.c.l.b16 %v2301
      %v2378 = vunpack.c.l.b16 %v2302
      %v2379 = vunpack.c.l.b16 %v2303
      %v2380 = vunpack.c.l.b16 %v2304
      %v2381 = vunpack.c.l.b16 %v2305
      %v2382 = vunpack.c.l.b16 %v2306
      %v2383 = vunpack.c.l.b16 %v2307
      %v2384 = vunpack.c.l.b16 %v2308
      %v2385 = vpack.c.b16 %v2349, %v2348
      %v2386 = vpack.c.b16 %v2351, %v2350
      %v2387 = vpack.c.b16 %v2353, %v2352
      %v2388 = vpack.c.b16 %v2355, %v2354
      %v2389 = vpack.c.b16 %v2357, %v2356
      %v2390 = vpack.c.b16 %v2359, %v2358
      %v2391 = vpack.c.b16 %v2361, %v2360
      %v2392 = vpack.c.b16 %v2363, %v2362
      %v2393 = vpack.c.b16 %v2365, %v2364
      %v2394 = vpack.c.b16 %v2367, %v2366
      %v2395 = vpack.c.b16 %v2369, %v2368
      %v2396 = vpack.c.b16 %v2371, %v2370
      %v2397 = vpack.c.b16 %v2373, %v2372
      %v2398 = vpack.c.b16 %v2375, %v2374
      %v2399 = vpack.c.b16 %v2377, %v2376
      %v2400 = vpack.c.b16 %v2379, %v2378
      %v2401 = vpack.c.b16 %v2381, %v2380
      %v2402 = vpack.c.b16 %v2383, %v2382
      %v2403 = vpack.c.b16 %v2384, %v2384
      %vm2404 = vsmask.f32 6400
      %v2406 = vshrl.u32 %v2385, 16
      %v2408 = vrot.slane %v2406, 1
      %v2409 = vshll.u32 %v2385, 16
      %v2411 = vrot.slane %v2409, 2
      %v2412 = vor.u32 %v2408, %v2411
      %v2414 = vshrl.u32 %v2386, 16
      %v2416 = vrot.slane %v2414, 1
      %v2417 = vshll.u32 %v2386, 16
      %v2419 = vrot.slane %v2417, 2
      %v2420 = vor.u32 %v2416, %v2419
      %v2421 = vsel %vm2404, %v2412, %v2420
      %v2423 = vshrl.u32 %v2387, 16
      %v2425 = vrot.slane %v2423, 1
      %v2426 = vshll.u32 %v2387, 16
      %v2428 = vrot.slane %v2426, 2
      %v2429 = vor.u32 %v2425, %v2428
      %v2430 = vsel %vm2404, %v2420, %v2429
      %v2432 = vshrl.u32 %v2388, 16
      %v2434 = vrot.slane %v2432, 1
      %v2435 = vshll.u32 %v2388, 16
      %v2437 = vrot.slane %v2435, 2
      %v2438 = vor.u32 %v2434, %v2437
      %v2439 = vsel %vm2404, %v2429, %v2438
      %v2441 = vshrl.u32 %v2389, 16
      %v2443 = vrot.slane %v2441, 1
      %v2444 = vshll.u32 %v2389, 16
      %v2446 = vrot.slane %v2444, 2
      %v2447 = vor.u32 %v2443, %v2446
      %v2448 = vsel %vm2404, %v2438, %v2447
      %v2450 = vshrl.u32 %v2390, 16
      %v2452 = vrot.slane %v2450, 1
      %v2453 = vshll.u32 %v2390, 16
      %v2455 = vrot.slane %v2453, 2
      %v2456 = vor.u32 %v2452, %v2455
      %v2457 = vsel %vm2404, %v2447, %v2456
      %v2459 = vshrl.u32 %v2391, 16
      %v2461 = vrot.slane %v2459, 1
      %v2462 = vshll.u32 %v2391, 16
      %v2464 = vrot.slane %v2462, 2
      %v2465 = vor.u32 %v2461, %v2464
      %v2466 = vsel %vm2404, %v2456, %v2465
      %v2468 = vshrl.u32 %v2392, 16
      %v2470 = vrot.slane %v2468, 1
      %v2471 = vshll.u32 %v2392, 16
      %v2473 = vrot.slane %v2471, 2
      %v2474 = vor.u32 %v2470, %v2473
      %v2475 = vsel %vm2404, %v2465, %v2474
      %v2477 = vshrl.u32 %v2393, 16
      %v2479 = vrot.slane %v2477, 1
      %v2480 = vshll.u32 %v2393, 16
      %v2482 = vrot.slane %v2480, 2
      %v2483 = vor.u32 %v2479, %v2482
      %v2484 = vsel %vm2404, %v2474, %v2483
      %v2486 = vshrl.u32 %v2394, 16
      %v2488 = vrot.slane %v2486, 1
      %v2489 = vshll.u32 %v2394, 16
      %v2491 = vrot.slane %v2489, 2
      %v2492 = vor.u32 %v2488, %v2491
      %v2493 = vsel %vm2404, %v2483, %v2492
      %v2495 = vshrl.u32 %v2395, 16
      %v2497 = vrot.slane %v2495, 1
      %v2498 = vshll.u32 %v2395, 16
      %v2500 = vrot.slane %v2498, 2
      %v2501 = vor.u32 %v2497, %v2500
      %v2502 = vsel %vm2404, %v2492, %v2501
      %v2504 = vshrl.u32 %v2396, 16
      %v2506 = vrot.slane %v2504, 1
      %v2507 = vshll.u32 %v2396, 16
      %v2509 = vrot.slane %v2507, 2
      %v2510 = vor.u32 %v2506, %v2509
      %v2511 = vsel %vm2404, %v2501, %v2510
      %v2513 = vshrl.u32 %v2397, 16
      %v2515 = vrot.slane %v2513, 1
      %v2516 = vshll.u32 %v2397, 16
      %v2518 = vrot.slane %v2516, 2
      %v2519 = vor.u32 %v2515, %v2518
      %v2520 = vsel %vm2404, %v2510, %v2519
      %v2522 = vshrl.u32 %v2398, 16
      %v2524 = vrot.slane %v2522, 1
      %v2525 = vshll.u32 %v2398, 16
      %v2527 = vrot.slane %v2525, 2
      %v2528 = vor.u32 %v2524, %v2527
      %v2529 = vsel %vm2404, %v2519, %v2528
      %v2531 = vshrl.u32 %v2399, 16
      %v2533 = vrot.slane %v2531, 1
      %v2534 = vshll.u32 %v2399, 16
      %v2536 = vrot.slane %v2534, 2
      %v2537 = vor.u32 %v2533, %v2536
      %v2538 = vsel %vm2404, %v2528, %v2537
      %v2540 = vshrl.u32 %v2400, 16
      %v2542 = vrot.slane %v2540, 1
      %v2543 = vshll.u32 %v2400, 16
      %v2545 = vrot.slane %v2543, 2
      %v2546 = vor.u32 %v2542, %v2545
      %v2547 = vsel %vm2404, %v2537, %v2546
      %v2549 = vshrl.u32 %v2401, 16
      %v2551 = vrot.slane %v2549, 1
      %v2552 = vshll.u32 %v2401, 16
      %v2554 = vrot.slane %v2552, 2
      %v2555 = vor.u32 %v2551, %v2554
      %v2556 = vsel %vm2404, %v2546, %v2555
      %v2558 = vshrl.u32 %v2402, 16
      %v2560 = vrot.slane %v2558, 1
      %v2561 = vshll.u32 %v2402, 16
      %v2563 = vrot.slane %v2561, 2
      %v2564 = vor.u32 %v2560, %v2563
      %v2565 = vsel %vm2404, %v2555, %v2564
      %v2567 = vshrl.u32 %v2403, 16
      %v2569 = vrot.slane %v2567, 1
      %v2570 = vshll.u32 %v2403, 16
      %v2572 = vrot.slane %v2570, 2
      %v2573 = vor.u32 %v2569, %v2572
      %v2574 = vsel %vm2404, %v2564, %v2573
      %v2576 = vsel %vm353, %v2421, 0
      %v2579 = vsel %vm353, %v2430, 0
      %v2582 = vsel %vm353, %v2439, 0
      %v2585 = vsel %vm353, %v2448, 0
      %v2588 = vsel %vm353, %v2457, 0
      %v2591 = vsel %vm353, %v2466, 0
      %v2594 = vsel %vm353, %v2475, 0
      %v2597 = vsel %vm353, %v2484, 0
      %v2600 = vsel %vm353, %v2493, 0
      %v2603 = vsel %vm353, %v2502, 0
      %v2606 = vsel %vm353, %v2511, 0
      %v2609 = vsel %vm353, %v2520, 0
      %v2612 = vsel %vm353, %v2529, 0
      %v2615 = vsel %vm353, %v2538, 0
      %v2618 = vsel %vm353, %v2547, 0
      %v2621 = vsel %vm353, %v2556, 0
      %v2624 = vsel %vm353, %v2565, 0
      %v2627 = vsel %vm353, %v2574, 0
      %v2630 = vsel %vm408, %v2310, 0
      %2632 = vmatprep.subr.bf16.mxu0 0
      %2633 = vmatpush1.bf16.msra.mxu0 0
      %2634 = vmatprep.subr.bf16.mxu0 0
      %2635 = vmatpush1.bf16.msra.mxu0 0
      %2636 = vmatprep.subr.bf16.mxu0 0
      %2637 = vmatpush1.bf16.msra.mxu0 0
      %2638 = vmatprep.subr.bf16.mxu0 0
      %2639 = vmatpush1.bf16.msra.mxu0 0
      %2640 = vmatprep.subr.bf16.mxu0 0
      %2641 = vmatpush1.bf16.msra.mxu0 0
      %2642 = vmatprep.subr.bf16.mxu0 0
      %2643 = vmatpush1.bf16.msra.mxu0 0
      %2644 = vmatprep.subr.bf16.mxu0 0
      %2645 = vmatpush1.bf16.msra.mxu0 0
      %2646 = vmatprep.subr.bf16.mxu0 0
      %2647 = vmatpush1.bf16.msra.mxu0 %v2630
      %2648 = vmatprep.subr.bf16.mxu0 0
      %2649 = vmatpush2.bf16.msra.mxu0 0
      %2650 = vmatprep.subr.bf16.mxu0 0
      %2651 = vmatpush2.bf16.msra.mxu0 0
      %2652 = vmatprep.subr.bf16.mxu0 0
      %2653 = vmatpush2.bf16.msra.mxu0 0
      %2654 = vmatprep.subr.bf16.mxu0 0
      %2655 = vmatpush2.bf16.msra.mxu0 0
      %2656 = vmatprep.subr.bf16.mxu0 0
      %2657 = vmatpush2.bf16.msra.mxu0 0
      %2658 = vmatprep.subr.bf16.mxu0 0
      %2659 = vmatpush2.bf16.msra.mxu0 0
      %2660 = vmatprep.subr.bf16.mxu0 0
      %2661 = vmatpush2.bf16.msra.mxu0 0
      %2662 = vmatprep.subr.bf16.mxu0 0
      %2663 = vmatpush2.bf16.msra.mxu0 0
      %2664 = vmatprep.mubr.bf16.mxu0 0
      %2665 = vmatmul.mubr.bf16.gmra.mxu0 %v2576
      %v2666 = vpop.f32.mrf.mxu0
      %v2667 = vadd.f32 0.0, %v2666
      %v2668 = vpop.f32.mrf.mxu0
      %v2669 = vpop.f32.mrf.mxu0
      %v2670 = vadd.f32 0.0, %v2669
      %v2671 = vpop.f32.mrf.mxu0
      %2672 = vmatprep.mubr.bf16.mxu0 0
      %2673 = vmatmul.mubr.bf16.gmra.mxu0 %v2579
      %v2674 = vpop.f32.mrf.mxu0
      %v2675 = vadd.f32 0.0, %v2674
      %v2676 = vpop.f32.mrf.mxu0
      %v2677 = vpop.f32.mrf.mxu0
      %v2678 = vadd.f32 0.0, %v2677
      %v2679 = vpop.f32.mrf.mxu0
      %2680 = vmatprep.mubr.bf16.mxu0 0
      %2681 = vmatmul.mubr.bf16.gmra.mxu0 %v2582
      %v2682 = vpop.f32.mrf.mxu0
      %v2683 = vadd.f32 0.0, %v2682
      %v2684 = vpop.f32.mrf.mxu0
      %v2685 = vpop.f32.mrf.mxu0
      %v2686 = vadd.f32 0.0, %v2685
      %v2687 = vpop.f32.mrf.mxu0
      %2688 = vmatprep.mubr.bf16.mxu0 0
      %2689 = vmatmul.mubr.bf16.gmra.mxu0 %v2585
      %v2690 = vpop.f32.mrf.mxu0
      %v2691 = vadd.f32 0.0, %v2690
      %v2692 = vpop.f32.mrf.mxu0
      %v2693 = vpop.f32.mrf.mxu0
      %v2694 = vadd.f32 0.0, %v2693
      %v2695 = vpop.f32.mrf.mxu0
      %2696 = vmatprep.mubr.bf16.mxu0 0
      %2697 = vmatmul.mubr.bf16.gmra.mxu0 %v2588
      %v2698 = vpop.f32.mrf.mxu0
      %v2699 = vadd.f32 0.0, %v2698
      %v2700 = vpop.f32.mrf.mxu0
      %v2701 = vpop.f32.mrf.mxu0
      %v2702 = vadd.f32 0.0, %v2701
      %v2703 = vpop.f32.mrf.mxu0
      %2704 = vmatprep.mubr.bf16.mxu0 0
      %2705 = vmatmul.mubr.bf16.gmra.mxu0 %v2591
      %v2706 = vpop.f32.mrf.mxu0
      %v2707 = vadd.f32 0.0, %v2706
      %v2708 = vpop.f32.mrf.mxu0
      %v2709 = vpop.f32.mrf.mxu0
      %v2710 = vadd.f32 0.0, %v2709
      %v2711 = vpop.f32.mrf.mxu0
      %2712 = vmatprep.mubr.bf16.mxu0 0
      %2713 = vmatmul.mubr.bf16.gmra.mxu0 %v2594
      %v2714 = vpop.f32.mrf.mxu0
      %v2715 = vadd.f32 0.0, %v2714
      %v2716 = vpop.f32.mrf.mxu0
      %v2717 = vpop.f32.mrf.mxu0
      %v2718 = vadd.f32 0.0, %v2717
      %v2719 = vpop.f32.mrf.mxu0
      %2720 = vmatprep.mubr.bf16.mxu0 0
      %2721 = vmatmul.mubr.bf16.gmra.mxu0 %v2597
      %v2722 = vpop.f32.mrf.mxu0
      %v2723 = vadd.f32 0.0, %v2722
      %v2724 = vpop.f32.mrf.mxu0
      %v2725 = vpop.f32.mrf.mxu0
      %v2726 = vadd.f32 0.0, %v2725
      %v2727 = vpop.f32.mrf.mxu0
      %2728 = vmatprep.mubr.bf16.mxu0 0
      %2729 = vmatmul.mubr.bf16.gmra.mxu0 %v2600
      %v2730 = vpop.f32.mrf.mxu0
      %v2731 = vadd.f32 0.0, %v2730
      %v2732 = vpop.f32.mrf.mxu0
      %v2733 = vpop.f32.mrf.mxu0
      %v2734 = vadd.f32 0.0, %v2733
      %v2735 = vpop.f32.mrf.mxu0
      %2736 = vmatprep.mubr.bf16.mxu0 0
      %2737 = vmatmul.mubr.bf16.gmra.mxu0 %v2603
      %v2738 = vpop.f32.mrf.mxu0
      %v2739 = vadd.f32 0.0, %v2738
      %v2740 = vpop.f32.mrf.mxu0
      %v2741 = vpop.f32.mrf.mxu0
      %v2742 = vadd.f32 0.0, %v2741
      %v2743 = vpop.f32.mrf.mxu0
      %2744 = vmatprep.mubr.bf16.mxu0 0
      %2745 = vmatmul.mubr.bf16.gmra.mxu0 %v2606
      %v2746 = vpop.f32.mrf.mxu0
      %v2747 = vadd.f32 0.0, %v2746
      %v2748 = vpop.f32.mrf.mxu0
      %v2749 = vpop.f32.mrf.mxu0
      %v2750 = vadd.f32 0.0, %v2749
      %v2751 = vpop.f32.mrf.mxu0
      %2752 = vmatprep.mubr.bf16.mxu0 0
      %2753 = vmatmul.mubr.bf16.gmra.mxu0 %v2609
      %v2754 = vpop.f32.mrf.mxu0
      %v2755 = vadd.f32 0.0, %v2754
      %v2756 = vpop.f32.mrf.mxu0
      %v2757 = vpop.f32.mrf.mxu0
      %v2758 = vadd.f32 0.0, %v2757
      %v2759 = vpop.f32.mrf.mxu0
      %2760 = vmatprep.mubr.bf16.mxu0 0
      %2761 = vmatmul.mubr.bf16.gmra.mxu0 %v2612
      %v2762 = vpop.f32.mrf.mxu0
      %v2763 = vadd.f32 0.0, %v2762
      %v2764 = vpop.f32.mrf.mxu0
      %v2765 = vpop.f32.mrf.mxu0
      %v2766 = vadd.f32 0.0, %v2765
      %v2767 = vpop.f32.mrf.mxu0
      %2768 = vmatprep.mubr.bf16.mxu0 0
      %2769 = vmatmul.mubr.bf16.gmra.mxu0 %v2615
      %v2770 = vpop.f32.mrf.mxu0
      %v2771 = vadd.f32 0.0, %v2770
      %v2772 = vpop.f32.mrf.mxu0
      %v2773 = vpop.f32.mrf.mxu0
      %v2774 = vadd.f32 0.0, %v2773
      %v2775 = vpop.f32.mrf.mxu0
      %2776 = vmatprep.mubr.bf16.mxu0 0
      %2777 = vmatmul.mubr.bf16.gmra.mxu0 %v2618
      %v2778 = vpop.f32.mrf.mxu0
      %v2779 = vadd.f32 0.0, %v2778
      %v2780 = vpop.f32.mrf.mxu0
      %v2781 = vpop.f32.mrf.mxu0
      %v2782 = vadd.f32 0.0, %v2781
      %v2783 = vpop.f32.mrf.mxu0
      %2784 = vmatprep.mubr.bf16.mxu0 0
      %2785 = vmatmul.mubr.bf16.gmra.mxu0 %v2621
      %v2786 = vpop.f32.mrf.mxu0
      %v2787 = vadd.f32 0.0, %v2786
      %v2788 = vpop.f32.mrf.mxu0
      %v2789 = vpop.f32.mrf.mxu0
      %v2790 = vadd.f32 0.0, %v2789
      %v2791 = vpop.f32.mrf.mxu0
      %2792 = vmatprep.mubr.bf16.mxu0 0
      %2793 = vmatmul.mubr.bf16.gmra.mxu0 %v2624
      %v2794 = vpop.f32.mrf.mxu0
      %v2795 = vadd.f32 0.0, %v2794
      %v2796 = vpop.f32.mrf.mxu0
      %v2797 = vpop.f32.mrf.mxu0
      %v2798 = vadd.f32 0.0, %v2797
      %v2799 = vpop.f32.mrf.mxu0
      %2800 = vmatprep.mubr.bf16.mxu0 0
      %2801 = vmatmul.mubr.bf16.gmra.mxu0 %v2627
      %v2802 = vpop.f32.mrf.mxu0
      %v2803 = vadd.f32 0.0, %v2802
      %v2804 = vpop.f32.mrf.mxu0
      %v2805 = vpop.f32.mrf.mxu0
      %v2806 = vadd.f32 0.0, %v2805
      %v2807 = vpop.f32.mrf.mxu0
      %2808 = vdwg.mxu0
      %v2809 = vld [vmem:[#allocation2] sm:$0xff]
      %v2810 = vld [vmem:[#allocation2 + $0x8] sm:$0xff]
      %v2811 = vld [vmem:[#allocation2 + $0x10] sm:$0xff]
      %v2812 = vld [vmem:[#allocation2 + $0x18] sm:$0xff]
      %v2813 = vld [vmem:[#allocation2 + $0x20] sm:$0xff]
      %v2814 = vld [vmem:[#allocation2 + $0x28] sm:$0xff]
      %v2815 = vld [vmem:[#allocation2 + $0x30] sm:$0xff]
      %v2816 = vld [vmem:[#allocation2 + $0x38] sm:$0xff]
      %v2817 = vld [vmem:[#allocation2 + $0x40] sm:$0xff]
      %v2818 = vld [vmem:[#allocation2 + $0x48] sm:$0xff]
      %v2819 = vld [vmem:[#allocation2 + $0x50] sm:$0xff]
      %v2820 = vld [vmem:[#allocation2 + $0x58] sm:$0xff]
      %v2821 = vld [vmem:[#allocation2 + $0x60] sm:$0xff]
      %v2822 = vld [vmem:[#allocation2 + $0x68] sm:$0xff]
      %v2823 = vld [vmem:[#allocation2 + $0x70] sm:$0xff]
      %v2824 = vld [vmem:[#allocation2 + $0x78] sm:$0xff]
      %v2825 = vld [vmem:[#allocation2 + $0x80] sm:$0xff]
      %v2826 = vld [vmem:[#allocation2 + $0x88] sm:$0xff]
      %v2827 = vld [vmem:[#allocation2 + $0x90] sm:$0xff]
      %v2828 = vld [vmem:[#allocation2 + $0x98] sm:$0xff]
      %v2829 = vld [vmem:[#allocation2 + $0xa0] sm:$0xff]
      %v2830 = vld [vmem:[#allocation2 + $0xa8] sm:$0xff]
      %v2831 = vld [vmem:[#allocation2 + $0xb0] sm:$0xff]
      %v2832 = vld [vmem:[#allocation2 + $0xb8] sm:$0xff]
      %v2833 = vld [vmem:[#allocation2 + $0xc0] sm:$0xff]
      %v2834 = vld [vmem:[#allocation2 + $0xc8] sm:$0xff]
      %v2835 = vld [vmem:[#allocation2 + $0xd0] sm:$0xff]
      %v2836 = vld [vmem:[#allocation2 + $0xd8] sm:$0xff]
      %v2837 = vld [vmem:[#allocation2 + $0xe0] sm:$0xff]
      %v2838 = vld [vmem:[#allocation2 + $0xe8] sm:$0xff]
      %v2839 = vld [vmem:[#allocation2 + $0xf0] sm:$0xff]
      %v2840 = vld [vmem:[#allocation2 + $0xf8] sm:$0xff]
      %v2841 = vld [vmem:[#allocation2 + $0x100] sm:$0xff]
      %v2842 = vld [vmem:[#allocation2 + $0x108] sm:$0xff]
      %v2843 = vld [vmem:[#allocation2 + $0x110] sm:$0xff]
      %v2844 = vld [vmem:[#allocation2 + $0x118] sm:$0xff]
      %v2845 = vadd.f32 %v2809, %v2667
      %v2846 = vadd.f32 %v2810, %v2670
      %v2847 = vadd.f32 %v2811, %v2675
      %v2848 = vadd.f32 %v2812, %v2678
      %v2849 = vadd.f32 %v2813, %v2683
      %v2850 = vadd.f32 %v2814, %v2686
      %v2851 = vadd.f32 %v2815, %v2691
      %v2852 = vadd.f32 %v2816, %v2694
      %v2853 = vadd.f32 %v2817, %v2699
      %v2854 = vadd.f32 %v2818, %v2702
      %v2855 = vadd.f32 %v2819, %v2707
      %v2856 = vadd.f32 %v2820, %v2710
      %v2857 = vadd.f32 %v2821, %v2715
      %v2858 = vadd.f32 %v2822, %v2718
      %v2859 = vadd.f32 %v2823, %v2723
      %v2860 = vadd.f32 %v2824, %v2726
      %v2861 = vadd.f32 %v2825, %v2731
      %v2862 = vadd.f32 %v2826, %v2734
      %v2863 = vadd.f32 %v2827, %v2739
      %v2864 = vadd.f32 %v2828, %v2742
      %v2865 = vadd.f32 %v2829, %v2747
      %v2866 = vadd.f32 %v2830, %v2750
      %v2867 = vadd.f32 %v2831, %v2755
      %v2868 = vadd.f32 %v2832, %v2758
      %v2869 = vadd.f32 %v2833, %v2763
      %v2870 = vadd.f32 %v2834, %v2766
      %v2871 = vadd.f32 %v2835, %v2771
      %v2872 = vadd.f32 %v2836, %v2774
      %v2873 = vadd.f32 %v2837, %v2779
      %v2874 = vadd.f32 %v2838, %v2782
      %v2875 = vadd.f32 %v2839, %v2787
      %v2876 = vadd.f32 %v2840, %v2790
      %v2877 = vadd.f32 %v2841, %v2795
      %v2878 = vadd.f32 %v2842, %v2798
      %v2879 = vadd.f32 %v2843, %v2803
      %v2880 = vadd.f32 %v2844, %v2806
      %2881 = vst.msk [vmem:[#allocation2] sm:$0xff] %vm589, %v2845
      %2882 = vst.msk [vmem:[#allocation2 + $0x8] sm:$0xff] %vm589, %v2846
      %2883 = vst.msk [vmem:[#allocation2 + $0x10] sm:$0xff] %vm589, %v2847
      %2884 = vst.msk [vmem:[#allocation2 + $0x18] sm:$0xff] %vm589, %v2848
      %2885 = vst.msk [vmem:[#allocation2 + $0x20] sm:$0xff] %vm589, %v2849
      %2886 = vst.msk [vmem:[#allocation2 + $0x28] sm:$0xff] %vm589, %v2850
      %2887 = vst.msk [vmem:[#allocation2 + $0x30] sm:$0xff] %vm589, %v2851
      %2888 = vst.msk [vmem:[#allocation2 + $0x38] sm:$0xff] %vm589, %v2852
      %2889 = vst.msk [vmem:[#allocation2 + $0x40] sm:$0xff] %vm589, %v2853
      %2890 = vst.msk [vmem:[#allocation2 + $0x48] sm:$0xff] %vm589, %v2854
      %2891 = vst.msk [vmem:[#allocation2 + $0x50] sm:$0xff] %vm589, %v2855
      %2892 = vst.msk [vmem:[#allocation2 + $0x58] sm:$0xff] %vm589, %v2856
      %2893 = vst.msk [vmem:[#allocation2 + $0x60] sm:$0xff] %vm589, %v2857
      %2894 = vst.msk [vmem:[#allocation2 + $0x68] sm:$0xff] %vm589, %v2858
      %2895 = vst.msk [vmem:[#allocation2 + $0x70] sm:$0xff] %vm589, %v2859
      %2896 = vst.msk [vmem:[#allocation2 + $0x78] sm:$0xff] %vm589, %v2860
      %2897 = vst.msk [vmem:[#allocation2 + $0x80] sm:$0xff] %vm589, %v2861
      %2898 = vst.msk [vmem:[#allocation2 + $0x88] sm:$0xff] %vm589, %v2862
      %2899 = vst.msk [vmem:[#allocation2 + $0x90] sm:$0xff] %vm589, %v2863
      %2900 = vst.msk [vmem:[#allocation2 + $0x98] sm:$0xff] %vm589, %v2864
      %2901 = vst.msk [vmem:[#allocation2 + $0xa0] sm:$0xff] %vm589, %v2865
      %2902 = vst.msk [vmem:[#allocation2 + $0xa8] sm:$0xff] %vm589, %v2866
      %2903 = vst.msk [vmem:[#allocation2 + $0xb0] sm:$0xff] %vm589, %v2867
      %2904 = vst.msk [vmem:[#allocation2 + $0xb8] sm:$0xff] %vm589, %v2868
      %2905 = vst.msk [vmem:[#allocation2 + $0xc0] sm:$0xff] %vm589, %v2869
      %2906 = vst.msk [vmem:[#allocation2 + $0xc8] sm:$0xff] %vm589, %v2870
      %2907 = vst.msk [vmem:[#allocation2 + $0xd0] sm:$0xff] %vm589, %v2871
      %2908 = vst.msk [vmem:[#allocation2 + $0xd8] sm:$0xff] %vm589, %v2872
      %2909 = vst.msk [vmem:[#allocation2 + $0xe0] sm:$0xff] %vm589, %v2873
      %2910 = vst.msk [vmem:[#allocation2 + $0xe8] sm:$0xff] %vm589, %v2874
      %2911 = vst.msk [vmem:[#allocation2 + $0xf0] sm:$0xff] %vm589, %v2875
      %2912 = vst.msk [vmem:[#allocation2 + $0xf8] sm:$0xff] %vm589, %v2876
      %2913 = vst.msk [vmem:[#allocation2 + $0x100] sm:$0xff] %vm589, %v2877
      %2914 = vst.msk [vmem:[#allocation2 + $0x108] sm:$0xff] %vm589, %v2878
      %2915 = vst.msk [vmem:[#allocation2 + $0x110] sm:$0xff] %vm589, %v2879
      %2916 = vst.msk [vmem:[#allocation2 + $0x118] sm:$0xff] %vm589, %v2880
      %v2917 = vld [vmem:[%s219 + $0x8] sm:$0xc]
      %v2918 = vld [vmem:[%s219 + $0xc] sm:$0xf]
      %v2919 = vld [vmem:[%s219 + $0x10] sm:$0xf]
      %v2920 = vld [vmem:[%s219 + $0x14] sm:$0xf]
      %v2921 = vld [vmem:[%s219 + $0x18] sm:$0xf]
      %v2922 = vld [vmem:[%s219 + $0x1c] sm:$0xf]
      %v2923 = vld [vmem:[%s219 + $0x20] sm:$0xf]
      %v2924 = vld [vmem:[%s219 + $0x24] sm:$0xf]
      %v2925 = vld [vmem:[%s219 + $0x28] sm:$0xf]
      %v2926 = vld [vmem:[%s219 + $0x2c] sm:$0xf]
      %v2927 = vld [vmem:[%s219 + $0x30] sm:$0xf]
      %v2928 = vld [vmem:[%s219 + $0x34] sm:$0xf]
      %v2929 = vld [vmem:[%s219 + $0x38] sm:$0xf]
      %v2930 = vld [vmem:[%s219 + $0x3c] sm:$0xf]
      %v2931 = vld [vmem:[%s219 + $0x40] sm:$0xf]
      %v2932 = vld [vmem:[%s219 + $0x44] sm:$0xf]
      %v2933 = vld [vmem:[%s219 + $0x48] sm:$0xf]
      %v2934 = vld [vmem:[%s219 + $0x4c] sm:$0xf]
      %v2935 = vld [vmem:[%s219 + $0x50] sm:$0xf]
      %v2936 = vld [vmem:[%s219 + $0x54] sm:$0xf]
      %v2937 = vld [vmem:[%s219 + $0x58] sm:$0xf]
      %v2938 = vld [vmem:[%s219 + $0x5c] sm:$0xf]
      %v2939 = vld [vmem:[%s219 + $0x60] sm:$0xf]
      %v2940 = vld [vmem:[%s219 + $0x64] sm:$0xf]
      %v2941 = vld [vmem:[%s219 + $0x68] sm:$0xf]
      %v2942 = vld [vmem:[%s219 + $0x6c] sm:$0xf]
      %v2943 = vld [vmem:[%s219 + $0x70] sm:$0xf]
      %v2944 = vld [vmem:[%s219 + $0x74] sm:$0xf]
      %v2945 = vld [vmem:[%s219 + $0x78] sm:$0xf]
      %v2946 = vld [vmem:[%s219 + $0x7c] sm:$0xf]
      %v2947 = vld [vmem:[%s219 + $0x80] sm:$0xf]
      %v2948 = vld [vmem:[%s219 + $0x84] sm:$0xf]
      %v2949 = vld [vmem:[%s219 + $0x88] sm:$0xf]
      %v2950 = vld [vmem:[%s219 + $0x8c] sm:$0xf]
      %v2951 = vld [vmem:[%s219 + $0x90] sm:$0xf]
      %v2952 = vld [vmem:[%s219 + $0x94] sm:$0xf]
      %v2953 = vld [vmem:[%s219 + $0x98] sm:$0x3]
      %s2954 = scalar_lea.vmem %s1, 20
      %v2955 = vld [vmem:[%s2954] sm:$0xf]
      %v2993 = vunpack.c.l.b16 %v2917
      %v2994 = vunpack.c.l.b16 %v2918
      %v2995 = vunpack.c.l.b16 %v2919
      %v2996 = vunpack.c.l.b16 %v2920
      %v2997 = vunpack.c.l.b16 %v2921
      %v2998 = vunpack.c.l.b16 %v2922
      %v2999 = vunpack.c.l.b16 %v2923
      %v3000 = vunpack.c.l.b16 %v2924
      %v3001 = vunpack.c.l.b16 %v2925
      %v3002 = vunpack.c.l.b16 %v2926
      %v3003 = vunpack.c.l.b16 %v2927
      %v3004 = vunpack.c.l.b16 %v2928
      %v3005 = vunpack.c.l.b16 %v2929
      %v3006 = vunpack.c.l.b16 %v2930
      %v3007 = vunpack.c.l.b16 %v2931
      %v3008 = vunpack.c.l.b16 %v2932
      %v3009 = vunpack.c.l.b16 %v2933
      %v3010 = vunpack.c.l.b16 %v2934
      %v3011 = vunpack.c.l.b16 %v2935
      %v3012 = vunpack.c.l.b16 %v2936
      %v3013 = vunpack.c.l.b16 %v2937
      %v3014 = vunpack.c.l.b16 %v2938
      %v3015 = vunpack.c.l.b16 %v2939
      %v3016 = vunpack.c.l.b16 %v2940
      %v3017 = vunpack.c.l.b16 %v2941
      %v3018 = vunpack.c.l.b16 %v2942
      %v3019 = vunpack.c.l.b16 %v2943
      %v3020 = vunpack.c.l.b16 %v2944
      %v3021 = vunpack.c.l.b16 %v2945
      %v3022 = vunpack.c.l.b16 %v2946
      %v3023 = vunpack.c.l.b16 %v2947
      %v3024 = vunpack.c.l.b16 %v2948
      %v3025 = vunpack.c.l.b16 %v2949
      %v3026 = vunpack.c.l.b16 %v2950
      %v3027 = vunpack.c.l.b16 %v2951
      %v3028 = vunpack.c.l.b16 %v2952
      %v3029 = vunpack.c.l.b16 %v2953
      %v3030 = vpack.c.b16 %v2994, %v2993
      %v3031 = vpack.c.b16 %v2996, %v2995
      %v3032 = vpack.c.b16 %v2998, %v2997
      %v3033 = vpack.c.b16 %v3000, %v2999
      %v3034 = vpack.c.b16 %v3002, %v3001
      %v3035 = vpack.c.b16 %v3004, %v3003
      %v3036 = vpack.c.b16 %v3006, %v3005
      %v3037 = vpack.c.b16 %v3008, %v3007
      %v3038 = vpack.c.b16 %v3010, %v3009
      %v3039 = vpack.c.b16 %v3012, %v3011
      %v3040 = vpack.c.b16 %v3014, %v3013
      %v3041 = vpack.c.b16 %v3016, %v3015
      %v3042 = vpack.c.b16 %v3018, %v3017
      %v3043 = vpack.c.b16 %v3020, %v3019
      %v3044 = vpack.c.b16 %v3022, %v3021
      %v3045 = vpack.c.b16 %v3024, %v3023
      %v3046 = vpack.c.b16 %v3026, %v3025
      %v3047 = vpack.c.b16 %v3028, %v3027
      %v3048 = vpack.c.b16 %v3029, %v3029
      %vm3049 = vcmask 1045504
      %v3050 = vrot.slane %v3030, 2
      %v3051 = vrot.slane %v3031, 2
      %v3052 = vsel %vm3049, %v3050, %v3051
      %v3053 = vrot.slane %v3032, 2
      %v3054 = vsel %vm3049, %v3051, %v3053
      %v3055 = vrot.slane %v3033, 2
      %v3056 = vsel %vm3049, %v3053, %v3055
      %v3057 = vrot.slane %v3034, 2
      %v3058 = vsel %vm3049, %v3055, %v3057
      %v3059 = vrot.slane %v3035, 2
      %v3060 = vsel %vm3049, %v3057, %v3059
      %v3061 = vrot.slane %v3036, 2
      %v3062 = vsel %vm3049, %v3059, %v3061
      %v3063 = vrot.slane %v3037, 2
      %v3064 = vsel %vm3049, %v3061, %v3063
      %v3065 = vrot.slane %v3038, 2
      %v3066 = vsel %vm3049, %v3063, %v3065
      %v3067 = vrot.slane %v3039, 2
      %v3068 = vsel %vm3049, %v3065, %v3067
      %v3069 = vrot.slane %v3040, 2
      %v3070 = vsel %vm3049, %v3067, %v3069
      %v3071 = vrot.slane %v3041, 2
      %v3072 = vsel %vm3049, %v3069, %v3071
      %v3073 = vrot.slane %v3042, 2
      %v3074 = vsel %vm3049, %v3071, %v3073
      %v3075 = vrot.slane %v3043, 2
      %v3076 = vsel %vm3049, %v3073, %v3075
      %v3077 = vrot.slane %v3044, 2
      %v3078 = vsel %vm3049, %v3075, %v3077
      %v3079 = vrot.slane %v3045, 2
      %v3080 = vsel %vm3049, %v3077, %v3079
      %v3081 = vrot.slane %v3046, 2
      %v3082 = vsel %vm3049, %v3079, %v3081
      %v3083 = vrot.slane %v3047, 2
      %v3084 = vsel %vm3049, %v3081, %v3083
      %v3085 = vrot.slane %v3048, 2
      %v3086 = vsel %vm3049, %v3083, %v3085
      %v3088 = vsel %vm353, %v3052, 0
      %v3091 = vsel %vm353, %v3054, 0
      %v3094 = vsel %vm353, %v3056, 0
      %v3097 = vsel %vm353, %v3058, 0
      %v3100 = vsel %vm353, %v3060, 0
      %v3103 = vsel %vm353, %v3062, 0
      %v3106 = vsel %vm353, %v3064, 0
      %v3109 = vsel %vm353, %v3066, 0
      %v3112 = vsel %vm353, %v3068, 0
      %v3115 = vsel %vm353, %v3070, 0
      %v3118 = vsel %vm353, %v3072, 0
      %v3121 = vsel %vm353, %v3074, 0
      %v3124 = vsel %vm353, %v3076, 0
      %v3127 = vsel %vm353, %v3078, 0
      %v3130 = vsel %vm353, %v3080, 0
      %v3133 = vsel %vm353, %v3082, 0
      %v3136 = vsel %vm353, %v3084, 0
      %v3139 = vsel %vm353, %v3086, 0
      %v3142 = vsel %vm408, %v2955, 0
      %3144 = vmatprep.subr.bf16.mxu0 0
      %3145 = vmatpush1.bf16.msra.mxu0 0
      %3146 = vmatprep.subr.bf16.mxu0 0
      %3147 = vmatpush1.bf16.msra.mxu0 0
      %3148 = vmatprep.subr.bf16.mxu0 0
      %3149 = vmatpush1.bf16.msra.mxu0 0
      %3150 = vmatprep.subr.bf16.mxu0 0
      %3151 = vmatpush1.bf16.msra.mxu0 0
      %3152 = vmatprep.subr.bf16.mxu0 0
      %3153 = vmatpush1.bf16.msra.mxu0 0
      %3154 = vmatprep.subr.bf16.mxu0 0
      %3155 = vmatpush1.bf16.msra.mxu0 0
      %3156 = vmatprep.subr.bf16.mxu0 0
      %3157 = vmatpush1.bf16.msra.mxu0 0
      %3158 = vmatprep.subr.bf16.mxu0 0
      %3159 = vmatpush1.bf16.msra.mxu0 %v3142
      %3160 = vmatprep.subr.bf16.mxu0 0
      %3161 = vmatpush2.bf16.msra.mxu0 0
      %3162 = vmatprep.subr.bf16.mxu0 0
      %3163 = vmatpush2.bf16.msra.mxu0 0
      %3164 = vmatprep.subr.bf16.mxu0 0
      %3165 = vmatpush2.bf16.msra.mxu0 0
      %3166 = vmatprep.subr.bf16.mxu0 0
      %3167 = vmatpush2.bf16.msra.mxu0 0
      %3168 = vmatprep.subr.bf16.mxu0 0
      %3169 = vmatpush2.bf16.msra.mxu0 0
      %3170 = vmatprep.subr.bf16.mxu0 0
      %3171 = vmatpush2.bf16.msra.mxu0 0
      %3172 = vmatprep.subr.bf16.mxu0 0
      %3173 = vmatpush2.bf16.msra.mxu0 0
      %3174 = vmatprep.subr.bf16.mxu0 0
      %3175 = vmatpush2.bf16.msra.mxu0 0
      %3176 = vmatprep.mubr.bf16.mxu0 0
      %3177 = vmatmul.mubr.bf16.gmra.mxu0 %v3088
      %v3178 = vpop.f32.mrf.mxu0
      %v3179 = vadd.f32 0.0, %v3178
      %v3180 = vpop.f32.mrf.mxu0
      %v3181 = vpop.f32.mrf.mxu0
      %v3182 = vadd.f32 0.0, %v3181
      %v3183 = vpop.f32.mrf.mxu0
      %3184 = vmatprep.mubr.bf16.mxu0 0
      %3185 = vmatmul.mubr.bf16.gmra.mxu0 %v3091
      %v3186 = vpop.f32.mrf.mxu0
      %v3187 = vadd.f32 0.0, %v3186
      %v3188 = vpop.f32.mrf.mxu0
      %v3189 = vpop.f32.mrf.mxu0
      %v3190 = vadd.f32 0.0, %v3189
      %v3191 = vpop.f32.mrf.mxu0
      %3192 = vmatprep.mubr.bf16.mxu0 0
      %3193 = vmatmul.mubr.bf16.gmra.mxu0 %v3094
      %v3194 = vpop.f32.mrf.mxu0
      %v3195 = vadd.f32 0.0, %v3194
      %v3196 = vpop.f32.mrf.mxu0
      %v3197 = vpop.f32.mrf.mxu0
      %v3198 = vadd.f32 0.0, %v3197
      %v3199 = vpop.f32.mrf.mxu0
      %3200 = vmatprep.mubr.bf16.mxu0 0
      %3201 = vmatmul.mubr.bf16.gmra.mxu0 %v3097
      %v3202 = vpop.f32.mrf.mxu0
      %v3203 = vadd.f32 0.0, %v3202
      %v3204 = vpop.f32.mrf.mxu0
      %v3205 = vpop.f32.mrf.mxu0
      %v3206 = vadd.f32 0.0, %v3205
      %v3207 = vpop.f32.mrf.mxu0
      %3208 = vmatprep.mubr.bf16.mxu0 0
      %3209 = vmatmul.mubr.bf16.gmra.mxu0 %v3100
      %v3210 = vpop.f32.mrf.mxu0
      %v3211 = vadd.f32 0.0, %v3210
      %v3212 = vpop.f32.mrf.mxu0
      %v3213 = vpop.f32.mrf.mxu0
      %v3214 = vadd.f32 0.0, %v3213
      %v3215 = vpop.f32.mrf.mxu0
      %3216 = vmatprep.mubr.bf16.mxu0 0
      %3217 = vmatmul.mubr.bf16.gmra.mxu0 %v3103
      %v3218 = vpop.f32.mrf.mxu0
      %v3219 = vadd.f32 0.0, %v3218
      %v3220 = vpop.f32.mrf.mxu0
      %v3221 = vpop.f32.mrf.mxu0
      %v3222 = vadd.f32 0.0, %v3221
      %v3223 = vpop.f32.mrf.mxu0
      %3224 = vmatprep.mubr.bf16.mxu0 0
      %3225 = vmatmul.mubr.bf16.gmra.mxu0 %v3106
      %v3226 = vpop.f32.mrf.mxu0
      %v3227 = vadd.f32 0.0, %v3226
      %v3228 = vpop.f32.mrf.mxu0
      %v3229 = vpop.f32.mrf.mxu0
      %v3230 = vadd.f32 0.0, %v3229
      %v3231 = vpop.f32.mrf.mxu0
      %3232 = vmatprep.mubr.bf16.mxu0 0
      %3233 = vmatmul.mubr.bf16.gmra.mxu0 %v3109
      %v3234 = vpop.f32.mrf.mxu0
      %v3235 = vadd.f32 0.0, %v3234
      %v3236 = vpop.f32.mrf.mxu0
      %v3237 = vpop.f32.mrf.mxu0
      %v3238 = vadd.f32 0.0, %v3237
      %v3239 = vpop.f32.mrf.mxu0
      %3240 = vmatprep.mubr.bf16.mxu0 0
      %3241 = vmatmul.mubr.bf16.gmra.mxu0 %v3112
      %v3242 = vpop.f32.mrf.mxu0
      %v3243 = vadd.f32 0.0, %v3242
      %v3244 = vpop.f32.mrf.mxu0
      %v3245 = vpop.f32.mrf.mxu0
      %v3246 = vadd.f32 0.0, %v3245
      %v3247 = vpop.f32.mrf.mxu0
      %3248 = vmatprep.mubr.bf16.mxu0 0
      %3249 = vmatmul.mubr.bf16.gmra.mxu0 %v3115
      %v3250 = vpop.f32.mrf.mxu0
      %v3251 = vadd.f32 0.0, %v3250
      %v3252 = vpop.f32.mrf.mxu0
      %v3253 = vpop.f32.mrf.mxu0
      %v3254 = vadd.f32 0.0, %v3253
      %v3255 = vpop.f32.mrf.mxu0
      %3256 = vmatprep.mubr.bf16.mxu0 0
      %3257 = vmatmul.mubr.bf16.gmra.mxu0 %v3118
      %v3258 = vpop.f32.mrf.mxu0
      %v3259 = vadd.f32 0.0, %v3258
      %v3260 = vpop.f32.mrf.mxu0
      %v3261 = vpop.f32.mrf.mxu0
      %v3262 = vadd.f32 0.0, %v3261
      %v3263 = vpop.f32.mrf.mxu0
      %3264 = vmatprep.mubr.bf16.mxu0 0
      %3265 = vmatmul.mubr.bf16.gmra.mxu0 %v3121
      %v3266 = vpop.f32.mrf.mxu0
      %v3267 = vadd.f32 0.0, %v3266
      %v3268 = vpop.f32.mrf.mxu0
      %v3269 = vpop.f32.mrf.mxu0
      %v3270 = vadd.f32 0.0, %v3269
      %v3271 = vpop.f32.mrf.mxu0
      %3272 = vmatprep.mubr.bf16.mxu0 0
      %3273 = vmatmul.mubr.bf16.gmra.mxu0 %v3124
      %v3274 = vpop.f32.mrf.mxu0
      %v3275 = vadd.f32 0.0, %v3274
      %v3276 = vpop.f32.mrf.mxu0
      %v3277 = vpop.f32.mrf.mxu0
      %v3278 = vadd.f32 0.0, %v3277
      %v3279 = vpop.f32.mrf.mxu0
      %3280 = vmatprep.mubr.bf16.mxu0 0
      %3281 = vmatmul.mubr.bf16.gmra.mxu0 %v3127
      %v3282 = vpop.f32.mrf.mxu0
      %v3283 = vadd.f32 0.0, %v3282
      %v3284 = vpop.f32.mrf.mxu0
      %v3285 = vpop.f32.mrf.mxu0
      %v3286 = vadd.f32 0.0, %v3285
      %v3287 = vpop.f32.mrf.mxu0
      %3288 = vmatprep.mubr.bf16.mxu0 0
      %3289 = vmatmul.mubr.bf16.gmra.mxu0 %v3130
      %v3290 = vpop.f32.mrf.mxu0
      %v3291 = vadd.f32 0.0, %v3290
      %v3292 = vpop.f32.mrf.mxu0
      %v3293 = vpop.f32.mrf.mxu0
      %v3294 = vadd.f32 0.0, %v3293
      %v3295 = vpop.f32.mrf.mxu0
      %3296 = vmatprep.mubr.bf16.mxu0 0
      %3297 = vmatmul.mubr.bf16.gmra.mxu0 %v3133
      %v3298 = vpop.f32.mrf.mxu0
      %v3299 = vadd.f32 0.0, %v3298
      %v3300 = vpop.f32.mrf.mxu0
      %v3301 = vpop.f32.mrf.mxu0
      %v3302 = vadd.f32 0.0, %v3301
      %v3303 = vpop.f32.mrf.mxu0
      %3304 = vmatprep.mubr.bf16.mxu0 0
      %3305 = vmatmul.mubr.bf16.gmra.mxu0 %v3136
      %v3306 = vpop.f32.mrf.mxu0
      %v3307 = vadd.f32 0.0, %v3306
      %v3308 = vpop.f32.mrf.mxu0
      %v3309 = vpop.f32.mrf.mxu0
      %v3310 = vadd.f32 0.0, %v3309
      %v3311 = vpop.f32.mrf.mxu0
      %3312 = vmatprep.mubr.bf16.mxu0 0
      %3313 = vmatmul.mubr.bf16.gmra.mxu0 %v3139
      %v3314 = vpop.f32.mrf.mxu0
      %v3315 = vadd.f32 0.0, %v3314
      %v3316 = vpop.f32.mrf.mxu0
      %v3317 = vpop.f32.mrf.mxu0
      %v3318 = vadd.f32 0.0, %v3317
      %v3319 = vpop.f32.mrf.mxu0
      %3320 = vdwg.mxu0
      %v3321 = vld [vmem:[#allocation2] sm:$0xff]
      %v3322 = vld [vmem:[#allocation2 + $0x8] sm:$0xff]
      %v3323 = vld [vmem:[#allocation2 + $0x10] sm:$0xff]
      %v3324 = vld [vmem:[#allocation2 + $0x18] sm:$0xff]
      %v3325 = vld [vmem:[#allocation2 + $0x20] sm:$0xff]
      %v3326 = vld [vmem:[#allocation2 + $0x28] sm:$0xff]
      %v3327 = vld [vmem:[#allocation2 + $0x30] sm:$0xff]
      %v3328 = vld [vmem:[#allocation2 + $0x38] sm:$0xff]
      %v3329 = vld [vmem:[#allocation2 + $0x40] sm:$0xff]
      %v3330 = vld [vmem:[#allocation2 + $0x48] sm:$0xff]
      %v3331 = vld [vmem:[#allocation2 + $0x50] sm:$0xff]
      %v3332 = vld [vmem:[#allocation2 + $0x58] sm:$0xff]
      %v3333 = vld [vmem:[#allocation2 + $0x60] sm:$0xff]
      %v3334 = vld [vmem:[#allocation2 + $0x68] sm:$0xff]
      %v3335 = vld [vmem:[#allocation2 + $0x70] sm:$0xff]
      %v3336 = vld [vmem:[#allocation2 + $0x78] sm:$0xff]
      %v3337 = vld [vmem:[#allocation2 + $0x80] sm:$0xff]
      %v3338 = vld [vmem:[#allocation2 + $0x88] sm:$0xff]
      %v3339 = vld [vmem:[#allocation2 + $0x90] sm:$0xff]
      %v3340 = vld [vmem:[#allocation2 + $0x98] sm:$0xff]
      %v3341 = vld [vmem:[#allocation2 + $0xa0] sm:$0xff]
      %v3342 = vld [vmem:[#allocation2 + $0xa8] sm:$0xff]
      %v3343 = vld [vmem:[#allocation2 + $0xb0] sm:$0xff]
      %v3344 = vld [vmem:[#allocation2 + $0xb8] sm:$0xff]
      %v3345 = vld [vmem:[#allocation2 + $0xc0] sm:$0xff]
      %v3346 = vld [vmem:[#allocation2 + $0xc8] sm:$0xff]
      %v3347 = vld [vmem:[#allocation2 + $0xd0] sm:$0xff]
      %v3348 = vld [vmem:[#allocation2 + $0xd8] sm:$0xff]
      %v3349 = vld [vmem:[#allocation2 + $0xe0] sm:$0xff]
      %v3350 = vld [vmem:[#allocation2 + $0xe8] sm:$0xff]
      %v3351 = vld [vmem:[#allocation2 + $0xf0] sm:$0xff]
      %v3352 = vld [vmem:[#allocation2 + $0xf8] sm:$0xff]
      %v3353 = vld [vmem:[#allocation2 + $0x100] sm:$0xff]
      %v3354 = vld [vmem:[#allocation2 + $0x108] sm:$0xff]
      %v3355 = vld [vmem:[#allocation2 + $0x110] sm:$0xff]
      %v3356 = vld [vmem:[#allocation2 + $0x118] sm:$0xff]
      %v3357 = vadd.f32 %v3321, %v3179
      %v3358 = vadd.f32 %v3322, %v3182
      %v3359 = vadd.f32 %v3323, %v3187
      %v3360 = vadd.f32 %v3324, %v3190
      %v3361 = vadd.f32 %v3325, %v3195
      %v3362 = vadd.f32 %v3326, %v3198
      %v3363 = vadd.f32 %v3327, %v3203
      %v3364 = vadd.f32 %v3328, %v3206
      %v3365 = vadd.f32 %v3329, %v3211
      %v3366 = vadd.f32 %v3330, %v3214
      %v3367 = vadd.f32 %v3331, %v3219
      %v3368 = vadd.f32 %v3332, %v3222
      %v3369 = vadd.f32 %v3333, %v3227
      %v3370 = vadd.f32 %v3334, %v3230
      %v3371 = vadd.f32 %v3335, %v3235
      %v3372 = vadd.f32 %v3336, %v3238
      %v3373 = vadd.f32 %v3337, %v3243
      %v3374 = vadd.f32 %v3338, %v3246
      %v3375 = vadd.f32 %v3339, %v3251
      %v3376 = vadd.f32 %v3340, %v3254
      %v3377 = vadd.f32 %v3341, %v3259
      %v3378 = vadd.f32 %v3342, %v3262
      %v3379 = vadd.f32 %v3343, %v3267
      %v3380 = vadd.f32 %v3344, %v3270
      %v3381 = vadd.f32 %v3345, %v3275
      %v3382 = vadd.f32 %v3346, %v3278
      %v3383 = vadd.f32 %v3347, %v3283
      %v3384 = vadd.f32 %v3348, %v3286
      %v3385 = vadd.f32 %v3349, %v3291
      %v3386 = vadd.f32 %v3350, %v3294
      %v3387 = vadd.f32 %v3351, %v3299
      %v3388 = vadd.f32 %v3352, %v3302
      %v3389 = vadd.f32 %v3353, %v3307
      %v3390 = vadd.f32 %v3354, %v3310
      %v3391 = vadd.f32 %v3355, %v3315
      %v3392 = vadd.f32 %v3356, %v3318
      %3393 = vst.msk [vmem:[#allocation2] sm:$0xff] %vm589, %v3357
      %3394 = vst.msk [vmem:[#allocation2 + $0x8] sm:$0xff] %vm589, %v3358
      %3395 = vst.msk [vmem:[#allocation2 + $0x10] sm:$0xff] %vm589, %v3359
      %3396 = vst.msk [vmem:[#allocation2 + $0x18] sm:$0xff] %vm589, %v3360
      %3397 = vst.msk [vmem:[#allocation2 + $0x20] sm:$0xff] %vm589, %v3361
      %3398 = vst.msk [vmem:[#allocation2 + $0x28] sm:$0xff] %vm589, %v3362
      %3399 = vst.msk [vmem:[#allocation2 + $0x30] sm:$0xff] %vm589, %v3363
      %3400 = vst.msk [vmem:[#allocation2 + $0x38] sm:$0xff] %vm589, %v3364
      %3401 = vst.msk [vmem:[#allocation2 + $0x40] sm:$0xff] %vm589, %v3365
      %3402 = vst.msk [vmem:[#allocation2 + $0x48] sm:$0xff] %vm589, %v3366
      %3403 = vst.msk [vmem:[#allocation2 + $0x50] sm:$0xff] %vm589, %v3367
      %3404 = vst.msk [vmem:[#allocation2 + $0x58] sm:$0xff] %vm589, %v3368
      %3405 = vst.msk [vmem:[#allocation2 + $0x60] sm:$0xff] %vm589, %v3369
      %3406 = vst.msk [vmem:[#allocation2 + $0x68] sm:$0xff] %vm589, %v3370
      %3407 = vst.msk [vmem:[#allocation2 + $0x70] sm:$0xff] %vm589, %v3371
      %3408 = vst.msk [vmem:[#allocation2 + $0x78] sm:$0xff] %vm589, %v3372
      %3409 = vst.msk [vmem:[#allocation2 + $0x80] sm:$0xff] %vm589, %v3373
      %3410 = vst.msk [vmem:[#allocation2 + $0x88] sm:$0xff] %vm589, %v3374
      %3411 = vst.msk [vmem:[#allocation2 + $0x90] sm:$0xff] %vm589, %v3375
      %3412 = vst.msk [vmem:[#allocation2 + $0x98] sm:$0xff] %vm589, %v3376
      %3413 = vst.msk [vmem:[#allocation2 + $0xa0] sm:$0xff] %vm589, %v3377
      %3414 = vst.msk [vmem:[#allocation2 + $0xa8] sm:$0xff] %vm589, %v3378
      %3415 = vst.msk [vmem:[#allocation2 + $0xb0] sm:$0xff] %vm589, %v3379
      %3416 = vst.msk [vmem:[#allocation2 + $0xb8] sm:$0xff] %vm589, %v3380
      %3417 = vst.msk [vmem:[#allocation2 + $0xc0] sm:$0xff] %vm589, %v3381
      %3418 = vst.msk [vmem:[#allocation2 + $0xc8] sm:$0xff] %vm589, %v3382
      %3419 = vst.msk [vmem:[#allocation2 + $0xd0] sm:$0xff] %vm589, %v3383
      %3420 = vst.msk [vmem:[#allocation2 + $0xd8] sm:$0xff] %vm589, %v3384
      %3421 = vst.msk [vmem:[#allocation2 + $0xe0] sm:$0xff] %vm589, %v3385
      %3422 = vst.msk [vmem:[#allocation2 + $0xe8] sm:$0xff] %vm589, %v3386
      %3423 = vst.msk [vmem:[#allocation2 + $0xf0] sm:$0xff] %vm589, %v3387
      %3424 = vst.msk [vmem:[#allocation2 + $0xf8] sm:$0xff] %vm589, %v3388
      %3425 = vst.msk [vmem:[#allocation2 + $0x100] sm:$0xff] %vm589, %v3389
      %3426 = vst.msk [vmem:[#allocation2 + $0x108] sm:$0xff] %vm589, %v3390
      %3427 = vst.msk [vmem:[#allocation2 + $0x110] sm:$0xff] %vm589, %v3391
      %3428 = vst.msk [vmem:[#allocation2 + $0x118] sm:$0xff] %vm589, %v3392
      %v3429 = vld [vmem:[%s219 + $0x10] sm:$0xc]
      %v3430 = vld [vmem:[%s219 + $0x14] sm:$0xf]
      %v3431 = vld [vmem:[%s219 + $0x18] sm:$0xf]
      %v3432 = vld [vmem:[%s219 + $0x1c] sm:$0xf]
      %v3433 = vld [vmem:[%s219 + $0x20] sm:$0xf]
      %v3434 = vld [vmem:[%s219 + $0x24] sm:$0xf]
      %v3435 = vld [vmem:[%s219 + $0x28] sm:$0xf]
      %v3436 = vld [vmem:[%s219 + $0x2c] sm:$0xf]
      %v3437 = vld [vmem:[%s219 + $0x30] sm:$0xf]
      %v3438 = vld [vmem:[%s219 + $0x34] sm:$0xf]
      %v3439 = vld [vmem:[%s219 + $0x38] sm:$0xf]
      %v3440 = vld [vmem:[%s219 + $0x3c] sm:$0xf]
      %v3441 = vld [vmem:[%s219 + $0x40] sm:$0xf]
      %v3442 = vld [vmem:[%s219 + $0x44] sm:$0xf]
      %v3443 = vld [vmem:[%s219 + $0x48] sm:$0xf]
      %v3444 = vld [vmem:[%s219 + $0x4c] sm:$0xf]
      %v3445 = vld [vmem:[%s219 + $0x50] sm:$0xf]
      %v3446 = vld [vmem:[%s219 + $0x54] sm:$0xf]
      %v3447 = vld [vmem:[%s219 + $0x58] sm:$0xf]
      %v3448 = vld [vmem:[%s219 + $0x5c] sm:$0xf]
      %v3449 = vld [vmem:[%s219 + $0x60] sm:$0xf]
      %v3450 = vld [vmem:[%s219 + $0x64] sm:$0xf]
      %v3451 = vld [vmem:[%s219 + $0x68] sm:$0xf]
      %v3452 = vld [vmem:[%s219 + $0x6c] sm:$0xf]
      %v3453 = vld [vmem:[%s219 + $0x70] sm:$0xf]
      %v3454 = vld [vmem:[%s219 + $0x74] sm:$0xf]
      %v3455 = vld [vmem:[%s219 + $0x78] sm:$0xf]
      %v3456 = vld [vmem:[%s219 + $0x7c] sm:$0xf]
      %v3457 = vld [vmem:[%s219 + $0x80] sm:$0xf]
      %v3458 = vld [vmem:[%s219 + $0x84] sm:$0xf]
      %v3459 = vld [vmem:[%s219 + $0x88] sm:$0xf]
      %v3460 = vld [vmem:[%s219 + $0x8c] sm:$0xf]
      %v3461 = vld [vmem:[%s219 + $0x90] sm:$0xf]
      %v3462 = vld [vmem:[%s219 + $0x94] sm:$0xf]
      %v3463 = vld [vmem:[%s219 + $0x98] sm:$0xf]
      %v3464 = vld [vmem:[%s219 + $0x9c] sm:$0xf]
      %v3465 = vld [vmem:[%s219 + $0xa0] sm:$0x3]
      %s3466 = scalar_lea.vmem %s1, 24
      %v3467 = vld [vmem:[%s3466] sm:$0xf]
      %v3505 = vunpack.c.l.b16 %v3429
      %v3506 = vunpack.c.l.b16 %v3430
      %v3507 = vunpack.c.l.b16 %v3431
      %v3508 = vunpack.c.l.b16 %v3432
      %v3509 = vunpack.c.l.b16 %v3433
      %v3510 = vunpack.c.l.b16 %v3434
      %v3511 = vunpack.c.l.b16 %v3435
      %v3512 = vunpack.c.l.b16 %v3436
      %v3513 = vunpack.c.l.b16 %v3437
      %v3514 = vunpack.c.l.b16 %v3438
      %v3515 = vunpack.c.l.b16 %v3439
      %v3516 = vunpack.c.l.b16 %v3440
      %v3517 = vunpack.c.l.b16 %v3441
      %v3518 = vunpack.c.l.b16 %v3442
      %v3519 = vunpack.c.l.b16 %v3443
      %v3520 = vunpack.c.l.b16 %v3444
      %v3521 = vunpack.c.l.b16 %v3445
      %v3522 = vunpack.c.l.b16 %v3446
      %v3523 = vunpack.c.l.b16 %v3447
      %v3524 = vunpack.c.l.b16 %v3448
      %v3525 = vunpack.c.l.b16 %v3449
      %v3526 = vunpack.c.l.b16 %v3450
      %v3527 = vunpack.c.l.b16 %v3451
      %v3528 = vunpack.c.l.b16 %v3452
      %v3529 = vunpack.c.l.b16 %v3453
      %v3530 = vunpack.c.l.b16 %v3454
      %v3531 = vunpack.c.l.b16 %v3455
      %v3532 = vunpack.c.l.b16 %v3456
      %v3533 = vunpack.c.l.b16 %v3457
      %v3534 = vunpack.c.l.b16 %v3458
      %v3535 = vunpack.c.l.b16 %v3459
      %v3536 = vunpack.c.l.b16 %v3460
      %v3537 = vunpack.c.l.b16 %v3461
      %v3538 = vunpack.c.l.b16 %v3462
      %v3539 = vunpack.c.l.b16 %v3463
      %v3540 = vunpack.c.l.b16 %v3464
      %v3541 = vunpack.c.l.b16 %v3465
      %v3542 = vpack.c.b16 %v3506, %v3505
      %v3543 = vpack.c.b16 %v3508, %v3507
      %v3544 = vpack.c.b16 %v3510, %v3509
      %v3545 = vpack.c.b16 %v3512, %v3511
      %v3546 = vpack.c.b16 %v3514, %v3513
      %v3547 = vpack.c.b16 %v3516, %v3515
      %v3548 = vpack.c.b16 %v3518, %v3517
      %v3549 = vpack.c.b16 %v3520, %v3519
      %v3550 = vpack.c.b16 %v3522, %v3521
      %v3551 = vpack.c.b16 %v3524, %v3523
      %v3552 = vpack.c.b16 %v3526, %v3525
      %v3553 = vpack.c.b16 %v3528, %v3527
      %v3554 = vpack.c.b16 %v3530, %v3529
      %v3555 = vpack.c.b16 %v3532, %v3531
      %v3556 = vpack.c.b16 %v3534, %v3533
      %v3557 = vpack.c.b16 %v3536, %v3535
      %v3558 = vpack.c.b16 %v3538, %v3537
      %v3559 = vpack.c.b16 %v3540, %v3539
      %v3560 = vpack.c.b16 %v3541, %v3541
      %v3561 = vrot.slane %v3542, 2
      %v3562 = vrot.slane %v3543, 2
      %v3563 = vsel %vm3049, %v3561, %v3562
      %v3564 = vrot.slane %v3544, 2
      %v3565 = vsel %vm3049, %v3562, %v3564
      %v3566 = vrot.slane %v3545, 2
      %v3567 = vsel %vm3049, %v3564, %v3566
      %v3568 = vrot.slane %v3546, 2
      %v3569 = vsel %vm3049, %v3566, %v3568
      %v3570 = vrot.slane %v3547, 2
      %v3571 = vsel %vm3049, %v3568, %v3570
      %v3572 = vrot.slane %v3548, 2
      %v3573 = vsel %vm3049, %v3570, %v3572
      %v3574 = vrot.slane %v3549, 2
      %v3575 = vsel %vm3049, %v3572, %v3574
      %v3576 = vrot.slane %v3550, 2
      %v3577 = vsel %vm3049, %v3574, %v3576
      %v3578 = vrot.slane %v3551, 2
      %v3579 = vsel %vm3049, %v3576, %v3578
      %v3580 = vrot.slane %v3552, 2
      %v3581 = vsel %vm3049, %v3578, %v3580
      %v3582 = vrot.slane %v3553, 2
      %v3583 = vsel %vm3049, %v3580, %v3582
      %v3584 = vrot.slane %v3554, 2
      %v3585 = vsel %vm3049, %v3582, %v3584
      %v3586 = vrot.slane %v3555, 2
      %v3587 = vsel %vm3049, %v3584, %v3586
      %v3588 = vrot.slane %v3556, 2
      %v3589 = vsel %vm3049, %v3586, %v3588
      %v3590 = vrot.slane %v3557, 2
      %v3591 = vsel %vm3049, %v3588, %v3590
      %v3592 = vrot.slane %v3558, 2
      %v3593 = vsel %vm3049, %v3590, %v3592
      %v3594 = vrot.slane %v3559, 2
      %v3595 = vsel %vm3049, %v3592, %v3594
      %v3596 = vrot.slane %v3560, 2
      %v3597 = vsel %vm3049, %v3594, %v3596
      %v3599 = vsel %vm353, %v3563, 0
      %v3602 = vsel %vm353, %v3565, 0
      %v3605 = vsel %vm353, %v3567, 0
      %v3608 = vsel %vm353, %v3569, 0
      %v3611 = vsel %vm353, %v3571, 0
      %v3614 = vsel %vm353, %v3573, 0
      %v3617 = vsel %vm353, %v3575, 0
      %v3620 = vsel %vm353, %v3577, 0
      %v3623 = vsel %vm353, %v3579, 0
      %v3626 = vsel %vm353, %v3581, 0
      %v3629 = vsel %vm353, %v3583, 0
      %v3632 = vsel %vm353, %v3585, 0
      %v3635 = vsel %vm353, %v3587, 0
      %v3638 = vsel %vm353, %v3589, 0
      %v3641 = vsel %vm353, %v3591, 0
      %v3644 = vsel %vm353, %v3593, 0
      %v3647 = vsel %vm353, %v3595, 0
      %v3650 = vsel %vm353, %v3597, 0
      %v3653 = vsel %vm408, %v3467, 0
      %3655 = vmatprep.subr.bf16.mxu0 0
      %3656 = vmatpush1.bf16.msra.mxu0 0
      %3657 = vmatprep.subr.bf16.mxu0 0
      %3658 = vmatpush1.bf16.msra.mxu0 0
      %3659 = vmatprep.subr.bf16.mxu0 0
      %3660 = vmatpush1.bf16.msra.mxu0 0
      %3661 = vmatprep.subr.bf16.mxu0 0
      %3662 = vmatpush1.bf16.msra.mxu0 0
      %3663 = vmatprep.subr.bf16.mxu0 0
      %3664 = vmatpush1.bf16.msra.mxu0 0
      %3665 = vmatprep.subr.bf16.mxu0 0
      %3666 = vmatpush1.bf16.msra.mxu0 0
      %3667 = vmatprep.subr.bf16.mxu0 0
      %3668 = vmatpush1.bf16.msra.mxu0 0
      %3669 = vmatprep.subr.bf16.mxu0 0
      %3670 = vmatpush1.bf16.msra.mxu0 %v3653
      %3671 = vmatprep.subr.bf16.mxu0 0
      %3672 = vmatpush2.bf16.msra.mxu0 0
      %3673 = vmatprep.subr.bf16.mxu0 0
      %3674 = vmatpush2.bf16.msra.mxu0 0
      %3675 = vmatprep.subr.bf16.mxu0 0
      %3676 = vmatpush2.bf16.msra.mxu0 0
      %3677 = vmatprep.subr.bf16.mxu0 0
      %3678 = vmatpush2.bf16.msra.mxu0 0
      %3679 = vmatprep.subr.bf16.mxu0 0
      %3680 = vmatpush2.bf16.msra.mxu0 0
      %3681 = vmatprep.subr.bf16.mxu0 0
      %3682 = vmatpush2.bf16.msra.mxu0 0
      %3683 = vmatprep.subr.bf16.mxu0 0
      %3684 = vmatpush2.bf16.msra.mxu0 0
      %3685 = vmatprep.subr.bf16.mxu0 0
      %3686 = vmatpush2.bf16.msra.mxu0 0
      %3687 = vmatprep.mubr.bf16.mxu0 0
      %3688 = vmatmul.mubr.bf16.gmra.mxu0 %v3599
      %v3689 = vpop.f32.mrf.mxu0
      %v3690 = vadd.f32 0.0, %v3689
      %v3691 = vpop.f32.mrf.mxu0
      %v3692 = vpop.f32.mrf.mxu0
      %v3693 = vadd.f32 0.0, %v3692
      %v3694 = vpop.f32.mrf.mxu0
      %3695 = vmatprep.mubr.bf16.mxu0 0
      %3696 = vmatmul.mubr.bf16.gmra.mxu0 %v3602
      %v3697 = vpop.f32.mrf.mxu0
      %v3698 = vadd.f32 0.0, %v3697
      %v3699 = vpop.f32.mrf.mxu0
      %v3700 = vpop.f32.mrf.mxu0
      %v3701 = vadd.f32 0.0, %v3700
      %v3702 = vpop.f32.mrf.mxu0
      %3703 = vmatprep.mubr.bf16.mxu0 0
      %3704 = vmatmul.mubr.bf16.gmra.mxu0 %v3605
      %v3705 = vpop.f32.mrf.mxu0
      %v3706 = vadd.f32 0.0, %v3705
      %v3707 = vpop.f32.mrf.mxu0
      %v3708 = vpop.f32.mrf.mxu0
      %v3709 = vadd.f32 0.0, %v3708
      %v3710 = vpop.f32.mrf.mxu0
      %3711 = vmatprep.mubr.bf16.mxu0 0
      %3712 = vmatmul.mubr.bf16.gmra.mxu0 %v3608
      %v3713 = vpop.f32.mrf.mxu0
      %v3714 = vadd.f32 0.0, %v3713
      %v3715 = vpop.f32.mrf.mxu0
      %v3716 = vpop.f32.mrf.mxu0
      %v3717 = vadd.f32 0.0, %v3716
      %v3718 = vpop.f32.mrf.mxu0
      %3719 = vmatprep.mubr.bf16.mxu0 0
      %3720 = vmatmul.mubr.bf16.gmra.mxu0 %v3611
      %v3721 = vpop.f32.mrf.mxu0
      %v3722 = vadd.f32 0.0, %v3721
      %v3723 = vpop.f32.mrf.mxu0
      %v3724 = vpop.f32.mrf.mxu0
      %v3725 = vadd.f32 0.0, %v3724
      %v3726 = vpop.f32.mrf.mxu0
      %3727 = vmatprep.mubr.bf16.mxu0 0
      %3728 = vmatmul.mubr.bf16.gmra.mxu0 %v3614
      %v3729 = vpop.f32.mrf.mxu0
      %v3730 = vadd.f32 0.0, %v3729
      %v3731 = vpop.f32.mrf.mxu0
      %v3732 = vpop.f32.mrf.mxu0
      %v3733 = vadd.f32 0.0, %v3732
      %v3734 = vpop.f32.mrf.mxu0
      %3735 = vmatprep.mubr.bf16.mxu0 0
      %3736 = vmatmul.mubr.bf16.gmra.mxu0 %v3617
      %v3737 = vpop.f32.mrf.mxu0
      %v3738 = vadd.f32 0.0, %v3737
      %v3739 = vpop.f32.mrf.mxu0
      %v3740 = vpop.f32.mrf.mxu0
      %v3741 = vadd.f32 0.0, %v3740
      %v3742 = vpop.f32.mrf.mxu0
      %3743 = vmatprep.mubr.bf16.mxu0 0
      %3744 = vmatmul.mubr.bf16.gmra.mxu0 %v3620
      %v3745 = vpop.f32.mrf.mxu0
      %v3746 = vadd.f32 0.0, %v3745
      %v3747 = vpop.f32.mrf.mxu0
      %v3748 = vpop.f32.mrf.mxu0
      %v3749 = vadd.f32 0.0, %v3748
      %v3750 = vpop.f32.mrf.mxu0
      %3751 = vmatprep.mubr.bf16.mxu0 0
      %3752 = vmatmul.mubr.bf16.gmra.mxu0 %v3623
      %v3753 = vpop.f32.mrf.mxu0
      %v3754 = vadd.f32 0.0, %v3753
      %v3755 = vpop.f32.mrf.mxu0
      %v3756 = vpop.f32.mrf.mxu0
      %v3757 = vadd.f32 0.0, %v3756
      %v3758 = vpop.f32.mrf.mxu0
      %3759 = vmatprep.mubr.bf16.mxu0 0
      %3760 = vmatmul.mubr.bf16.gmra.mxu0 %v3626
      %v3761 = vpop.f32.mrf.mxu0
      %v3762 = vadd.f32 0.0, %v3761
      %v3763 = vpop.f32.mrf.mxu0
      %v3764 = vpop.f32.mrf.mxu0
      %v3765 = vadd.f32 0.0, %v3764
      %v3766 = vpop.f32.mrf.mxu0
      %3767 = vmatprep.mubr.bf16.mxu0 0
      %3768 = vmatmul.mubr.bf16.gmra.mxu0 %v3629
      %v3769 = vpop.f32.mrf.mxu0
      %v3770 = vadd.f32 0.0, %v3769
      %v3771 = vpop.f32.mrf.mxu0
      %v3772 = vpop.f32.mrf.mxu0
      %v3773 = vadd.f32 0.0, %v3772
      %v3774 = vpop.f32.mrf.mxu0
      %3775 = vmatprep.mubr.bf16.mxu0 0
      %3776 = vmatmul.mubr.bf16.gmra.mxu0 %v3632
      %v3777 = vpop.f32.mrf.mxu0
      %v3778 = vadd.f32 0.0, %v3777
      %v3779 = vpop.f32.mrf.mxu0
      %v3780 = vpop.f32.mrf.mxu0
      %v3781 = vadd.f32 0.0, %v3780
      %v3782 = vpop.f32.mrf.mxu0
      %3783 = vmatprep.mubr.bf16.mxu0 0
      %3784 = vmatmul.mubr.bf16.gmra.mxu0 %v3635
      %v3785 = vpop.f32.mrf.mxu0
      %v3786 = vadd.f32 0.0, %v3785
      %v3787 = vpop.f32.mrf.mxu0
      %v3788 = vpop.f32.mrf.mxu0
      %v3789 = vadd.f32 0.0, %v3788
      %v3790 = vpop.f32.mrf.mxu0
      %3791 = vmatprep.mubr.bf16.mxu0 0
      %3792 = vmatmul.mubr.bf16.gmra.mxu0 %v3638
      %v3793 = vpop.f32.mrf.mxu0
      %v3794 = vadd.f32 0.0, %v3793
      %v3795 = vpop.f32.mrf.mxu0
      %v3796 = vpop.f32.mrf.mxu0
      %v3797 = vadd.f32 0.0, %v3796
      %v3798 = vpop.f32.mrf.mxu0
      %3799 = vmatprep.mubr.bf16.mxu0 0
      %3800 = vmatmul.mubr.bf16.gmra.mxu0 %v3641
      %v3801 = vpop.f32.mrf.mxu0
      %v3802 = vadd.f32 0.0, %v3801
      %v3803 = vpop.f32.mrf.mxu0
      %v3804 = vpop.f32.mrf.mxu0
      %v3805 = vadd.f32 0.0, %v3804
      %v3806 = vpop.f32.mrf.mxu0
      %3807 = vmatprep.mubr.bf16.mxu0 0
      %3808 = vmatmul.mubr.bf16.gmra.mxu0 %v3644
      %v3809 = vpop.f32.mrf.mxu0
      %v3810 = vadd.f32 0.0, %v3809
      %v3811 = vpop.f32.mrf.mxu0
      %v3812 = vpop.f32.mrf.mxu0
      %v3813 = vadd.f32 0.0, %v3812
      %v3814 = vpop.f32.mrf.mxu0
      %3815 = vmatprep.mubr.bf16.mxu0 0
      %3816 = vmatmul.mubr.bf16.gmra.mxu0 %v3647
      %v3817 = vpop.f32.mrf.mxu0
      %v3818 = vadd.f32 0.0, %v3817
      %v3819 = vpop.f32.mrf.mxu0
      %v3820 = vpop.f32.mrf.mxu0
      %v3821 = vadd.f32 0.0, %v3820
      %v3822 = vpop.f32.mrf.mxu0
      %3823 = vmatprep.mubr.bf16.mxu0 0
      %3824 = vmatmul.mubr.bf16.gmra.mxu0 %v3650
      %v3825 = vpop.f32.mrf.mxu0
      %v3826 = vadd.f32 0.0, %v3825
      %v3827 = vpop.f32.mrf.mxu0
      %v3828 = vpop.f32.mrf.mxu0
      %v3829 = vadd.f32 0.0, %v3828
      %v3830 = vpop.f32.mrf.mxu0
      %3831 = vdwg.mxu0
      %v3832 = vld [vmem:[#allocation2] sm:$0xff]
      %v3833 = vld [vmem:[#allocation2 + $0x8] sm:$0xff]
      %v3834 = vld [vmem:[#allocation2 + $0x10] sm:$0xff]
      %v3835 = vld [vmem:[#allocation2 + $0x18] sm:$0xff]
      %v3836 = vld [vmem:[#allocation2 + $0x20] sm:$0xff]
      %v3837 = vld [vmem:[#allocation2 + $0x28] sm:$0xff]
      %v3838 = vld [vmem:[#allocation2 + $0x30] sm:$0xff]
      %v3839 = vld [vmem:[#allocation2 + $0x38] sm:$0xff]
      %v3840 = vld [vmem:[#allocation2 + $0x40] sm:$0xff]
      %v3841 = vld [vmem:[#allocation2 + $0x48] sm:$0xff]
      %v3842 = vld [vmem:[#allocation2 + $0x50] sm:$0xff]
      %v3843 = vld [vmem:[#allocation2 + $0x58] sm:$0xff]
      %v3844 = vld [vmem:[#allocation2 + $0x60] sm:$0xff]
      %v3845 = vld [vmem:[#allocation2 + $0x68] sm:$0xff]
      %v3846 = vld [vmem:[#allocation2 + $0x70] sm:$0xff]
      %v3847 = vld [vmem:[#allocation2 + $0x78] sm:$0xff]
      %v3848 = vld [vmem:[#allocation2 + $0x80] sm:$0xff]
      %v3849 = vld [vmem:[#allocation2 + $0x88] sm:$0xff]
      %v3850 = vld [vmem:[#allocation2 + $0x90] sm:$0xff]
      %v3851 = vld [vmem:[#allocation2 + $0x98] sm:$0xff]
      %v3852 = vld [vmem:[#allocation2 + $0xa0] sm:$0xff]
      %v3853 = vld [vmem:[#allocation2 + $0xa8] sm:$0xff]
      %v3854 = vld [vmem:[#allocation2 + $0xb0] sm:$0xff]
      %v3855 = vld [vmem:[#allocation2 + $0xb8] sm:$0xff]
      %v3856 = vld [vmem:[#allocation2 + $0xc0] sm:$0xff]
      %v3857 = vld [vmem:[#allocation2 + $0xc8] sm:$0xff]
      %v3858 = vld [vmem:[#allocation2 + $0xd0] sm:$0xff]
      %v3859 = vld [vmem:[#allocation2 + $0xd8] sm:$0xff]
      %v3860 = vld [vmem:[#allocation2 + $0xe0] sm:$0xff]
      %v3861 = vld [vmem:[#allocation2 + $0xe8] sm:$0xff]
      %v3862 = vld [vmem:[#allocation2 + $0xf0] sm:$0xff]
      %v3863 = vld [vmem:[#allocation2 + $0xf8] sm:$0xff]
      %v3864 = vld [vmem:[#allocation2 + $0x100] sm:$0xff]
      %v3865 = vld [vmem:[#allocation2 + $0x108] sm:$0xff]
      %v3866 = vld [vmem:[#allocation2 + $0x110] sm:$0xff]
      %v3867 = vld [vmem:[#allocation2 + $0x118] sm:$0xff]
      %v3868 = vadd.f32 %v3832, %v3690
      %v3869 = vadd.f32 %v3833, %v3693
      %v3870 = vadd.f32 %v3834, %v3698
      %v3871 = vadd.f32 %v3835, %v3701
      %v3872 = vadd.f32 %v3836, %v3706
      %v3873 = vadd.f32 %v3837, %v3709
      %v3874 = vadd.f32 %v3838, %v3714
      %v3875 = vadd.f32 %v3839, %v3717
      %v3876 = vadd.f32 %v3840, %v3722
      %v3877 = vadd.f32 %v3841, %v3725
      %v3878 = vadd.f32 %v3842, %v3730
      %v3879 = vadd.f32 %v3843, %v3733
      %v3880 = vadd.f32 %v3844, %v3738
      %v3881 = vadd.f32 %v3845, %v3741
      %v3882 = vadd.f32 %v3846, %v3746
      %v3883 = vadd.f32 %v3847, %v3749
      %v3884 = vadd.f32 %v3848, %v3754
      %v3885 = vadd.f32 %v3849, %v3757
      %v3886 = vadd.f32 %v3850, %v3762
      %v3887 = vadd.f32 %v3851, %v3765
      %v3888 = vadd.f32 %v3852, %v3770
      %v3889 = vadd.f32 %v3853, %v3773
      %v3890 = vadd.f32 %v3854, %v3778
      %v3891 = vadd.f32 %v3855, %v3781
      %v3892 = vadd.f32 %v3856, %v3786
      %v3893 = vadd.f32 %v3857, %v3789
      %v3894 = vadd.f32 %v3858, %v3794
      %v3895 = vadd.f32 %v3859, %v3797
      %v3896 = vadd.f32 %v3860, %v3802
      %v3897 = vadd.f32 %v3861, %v3805
      %v3898 = vadd.f32 %v3862, %v3810
      %v3899 = vadd.f32 %v3863, %v3813
      %v3900 = vadd.f32 %v3864, %v3818
      %v3901 = vadd.f32 %v3865, %v3821
      %v3902 = vadd.f32 %v3866, %v3826
      %v3903 = vadd.f32 %v3867, %v3829
      %3904 = vst.msk [vmem:[#allocation2] sm:$0xff] %vm589, %v3868
      %3905 = vst.msk [vmem:[#allocation2 + $0x8] sm:$0xff] %vm589, %v3869
      %3906 = vst.msk [vmem:[#allocation2 + $0x10] sm:$0xff] %vm589, %v3870
      %3907 = vst.msk [vmem:[#allocation2 + $0x18] sm:$0xff] %vm589, %v3871
      %3908 = vst.msk [vmem:[#allocation2 + $0x20] sm:$0xff] %vm589, %v3872
      %3909 = vst.msk [vmem:[#allocation2 + $0x28] sm:$0xff] %vm589, %v3873
      %3910 = vst.msk [vmem:[#allocation2 + $0x30] sm:$0xff] %vm589, %v3874
      %3911 = vst.msk [vmem:[#allocation2 + $0x38] sm:$0xff] %vm589, %v3875
      %3912 = vst.msk [vmem:[#allocation2 + $0x40] sm:$0xff] %vm589, %v3876
      %3913 = vst.msk [vmem:[#allocation2 + $0x48] sm:$0xff] %vm589, %v3877
      %3914 = vst.msk [vmem:[#allocation2 + $0x50] sm:$0xff] %vm589, %v3878
      %3915 = vst.msk [vmem:[#allocation2 + $0x58] sm:$0xff] %vm589, %v3879
      %3916 = vst.msk [vmem:[#allocation2 + $0x60] sm:$0xff] %vm589, %v3880
      %3917 = vst.msk [vmem:[#allocation2 + $0x68] sm:$0xff] %vm589, %v3881
      %3918 = vst.msk [vmem:[#allocation2 + $0x70] sm:$0xff] %vm589, %v3882
      %3919 = vst.msk [vmem:[#allocation2 + $0x78] sm:$0xff] %vm589, %v3883
      %3920 = vst.msk [vmem:[#allocation2 + $0x80] sm:$0xff] %vm589, %v3884
      %3921 = vst.msk [vmem:[#allocation2 + $0x88] sm:$0xff] %vm589, %v3885
      %3922 = vst.msk [vmem:[#allocation2 + $0x90] sm:$0xff] %vm589, %v3886
      %3923 = vst.msk [vmem:[#allocation2 + $0x98] sm:$0xff] %vm589, %v3887
      %3924 = vst.msk [vmem:[#allocation2 + $0xa0] sm:$0xff] %vm589, %v3888
      %3925 = vst.msk [vmem:[#allocation2 + $0xa8] sm:$0xff] %vm589, %v3889
      %3926 = vst.msk [vmem:[#allocation2 + $0xb0] sm:$0xff] %vm589, %v3890
      %3927 = vst.msk [vmem:[#allocation2 + $0xb8] sm:$0xff] %vm589, %v3891
      %3928 = vst.msk [vmem:[#allocation2 + $0xc0] sm:$0xff] %vm589, %v3892
      %3929 = vst.msk [vmem:[#allocation2 + $0xc8] sm:$0xff] %vm589, %v3893
      %3930 = vst.msk [vmem:[#allocation2 + $0xd0] sm:$0xff] %vm589, %v3894
      %3931 = vst.msk [vmem:[#allocation2 + $0xd8] sm:$0xff] %vm589, %v3895
      %3932 = vst.msk [vmem:[#allocation2 + $0xe0] sm:$0xff] %vm589, %v3896
      %3933 = vst.msk [vmem:[#allocation2 + $0xe8] sm:$0xff] %vm589, %v3897
      %3934 = vst.msk [vmem:[#allocation2 + $0xf0] sm:$0xff] %vm589, %v3898
      %3935 = vst.msk [vmem:[#allocation2 + $0xf8] sm:$0xff] %vm589, %v3899
      %3936 = vst.msk [vmem:[#allocation2 + $0x100] sm:$0xff] %vm589, %v3900
      %3937 = vst.msk [vmem:[#allocation2 + $0x108] sm:$0xff] %vm589, %v3901
      %3938 = vst.msk [vmem:[#allocation2 + $0x110] sm:$0xff] %vm589, %v3902
      %3939 = vst.msk [vmem:[#allocation2 + $0x118] sm:$0xff] %vm589, %v3903
      %v3940 = vld [vmem:[%s219 + $0x10] sm:$0xc]
      %v3941 = vld [vmem:[%s219 + $0x14] sm:$0xf]
      %v3942 = vld [vmem:[%s219 + $0x18] sm:$0xf]
      %v3943 = vld [vmem:[%s219 + $0x1c] sm:$0xf]
      %v3944 = vld [vmem:[%s219 + $0x20] sm:$0xf]
      %v3945 = vld [vmem:[%s219 + $0x24] sm:$0xf]
      %v3946 = vld [vmem:[%s219 + $0x28] sm:$0xf]
      %v3947 = vld [vmem:[%s219 + $0x2c] sm:$0xf]
      %v3948 = vld [vmem:[%s219 + $0x30] sm:$0xf]
      %v3949 = vld [vmem:[%s219 + $0x34] sm:$0xf]
      %v3950 = vld [vmem:[%s219 + $0x38] sm:$0xf]
      %v3951 = vld [vmem:[%s219 + $0x3c] sm:$0xf]
      %v3952 = vld [vmem:[%s219 + $0x40] sm:$0xf]
      %v3953 = vld [vmem:[%s219 + $0x44] sm:$0xf]
      %v3954 = vld [vmem:[%s219 + $0x48] sm:$0xf]
      %v3955 = vld [vmem:[%s219 + $0x4c] sm:$0xf]
      %v3956 = vld [vmem:[%s219 + $0x50] sm:$0xf]
      %v3957 = vld [vmem:[%s219 + $0x54] sm:$0xf]
      %v3958 = vld [vmem:[%s219 + $0x58] sm:$0xf]
      %v3959 = vld [vmem:[%s219 + $0x5c] sm:$0xf]
      %v3960 = vld [vmem:[%s219 + $0x60] sm:$0xf]
      %v3961 = vld [vmem:[%s219 + $0x64] sm:$0xf]
      %v3962 = vld [vmem:[%s219 + $0x68] sm:$0xf]
      %v3963 = vld [vmem:[%s219 + $0x6c] sm:$0xf]
      %v3964 = vld [vmem:[%s219 + $0x70] sm:$0xf]
      %v3965 = vld [vmem:[%s219 + $0x74] sm:$0xf]
      %v3966 = vld [vmem:[%s219 + $0x78] sm:$0xf]
      %v3967 = vld [vmem:[%s219 + $0x7c] sm:$0xf]
      %v3968 = vld [vmem:[%s219 + $0x80] sm:$0xf]
      %v3969 = vld [vmem:[%s219 + $0x84] sm:$0xf]
      %v3970 = vld [vmem:[%s219 + $0x88] sm:$0xf]
      %v3971 = vld [vmem:[%s219 + $0x8c] sm:$0xf]
      %v3972 = vld [vmem:[%s219 + $0x90] sm:$0xf]
      %v3973 = vld [vmem:[%s219 + $0x94] sm:$0xf]
      %v3974 = vld [vmem:[%s219 + $0x98] sm:$0xf]
      %v3975 = vld [vmem:[%s219 + $0x9c] sm:$0xf]
      %v3976 = vld [vmem:[%s219 + $0xa0] sm:$0x7]
      %s3977 = scalar_lea.vmem %s1, 28
      %v3978 = vld [vmem:[%s3977] sm:$0xf]
      %v4016 = vunpack.c.l.b16 %v3940
      %v4017 = vunpack.c.l.b16 %v3941
      %v4018 = vunpack.c.l.b16 %v3942
      %v4019 = vunpack.c.l.b16 %v3943
      %v4020 = vunpack.c.l.b16 %v3944
      %v4021 = vunpack.c.l.b16 %v3945
      %v4022 = vunpack.c.l.b16 %v3946
      %v4023 = vunpack.c.l.b16 %v3947
      %v4024 = vunpack.c.l.b16 %v3948
      %v4025 = vunpack.c.l.b16 %v3949
      %v4026 = vunpack.c.l.b16 %v3950
      %v4027 = vunpack.c.l.b16 %v3951
      %v4028 = vunpack.c.l.b16 %v3952
      %v4029 = vunpack.c.l.b16 %v3953
      %v4030 = vunpack.c.l.b16 %v3954
      %v4031 = vunpack.c.l.b16 %v3955
      %v4032 = vunpack.c.l.b16 %v3956
      %v4033 = vunpack.c.l.b16 %v3957
      %v4034 = vunpack.c.l.b16 %v3958
      %v4035 = vunpack.c.l.b16 %v3959
      %v4036 = vunpack.c.l.b16 %v3960
      %v4037 = vunpack.c.l.b16 %v3961
      %v4038 = vunpack.c.l.b16 %v3962
      %v4039 = vunpack.c.l.b16 %v3963
      %v4040 = vunpack.c.l.b16 %v3964
      %v4041 = vunpack.c.l.b16 %v3965
      %v4042 = vunpack.c.l.b16 %v3966
      %v4043 = vunpack.c.l.b16 %v3967
      %v4044 = vunpack.c.l.b16 %v3968
      %v4045 = vunpack.c.l.b16 %v3969
      %v4046 = vunpack.c.l.b16 %v3970
      %v4047 = vunpack.c.l.b16 %v3971
      %v4048 = vunpack.c.l.b16 %v3972
      %v4049 = vunpack.c.l.b16 %v3973
      %v4050 = vunpack.c.l.b16 %v3974
      %v4051 = vunpack.c.l.b16 %v3975
      %v4052 = vunpack.c.l.b16 %v3976
      %v4053 = vpack.c.b16 %v4017, %v4016
      %v4054 = vpack.c.b16 %v4019, %v4018
      %v4055 = vpack.c.b16 %v4021, %v4020
      %v4056 = vpack.c.b16 %v4023, %v4022
      %v4057 = vpack.c.b16 %v4025, %v4024
      %v4058 = vpack.c.b16 %v4027, %v4026
      %v4059 = vpack.c.b16 %v4029, %v4028
      %v4060 = vpack.c.b16 %v4031, %v4030
      %v4061 = vpack.c.b16 %v4033, %v4032
      %v4062 = vpack.c.b16 %v4035, %v4034
      %v4063 = vpack.c.b16 %v4037, %v4036
      %v4064 = vpack.c.b16 %v4039, %v4038
      %v4065 = vpack.c.b16 %v4041, %v4040
      %v4066 = vpack.c.b16 %v4043, %v4042
      %v4067 = vpack.c.b16 %v4045, %v4044
      %v4068 = vpack.c.b16 %v4047, %v4046
      %v4069 = vpack.c.b16 %v4049, %v4048
      %v4070 = vpack.c.b16 %v4051, %v4050
      %v4071 = vpack.c.b16 %v4052, %v4052
      %vm4072 = vsmask.f32 5376
      %v4074 = vshrl.u32 %v4053, 16
      %v4076 = vrot.slane %v4074, 2
      %v4077 = vshll.u32 %v4053, 16
      %v4079 = vrot.slane %v4077, 3
      %v4080 = vor.u32 %v4076, %v4079
      %v4082 = vshrl.u32 %v4054, 16
      %v4084 = vrot.slane %v4082, 2
      %v4085 = vshll.u32 %v4054, 16
      %v4087 = vrot.slane %v4085, 3
      %v4088 = vor.u32 %v4084, %v4087
      %v4089 = vsel %vm4072, %v4080, %v4088
      %v4091 = vshrl.u32 %v4055, 16
      %v4093 = vrot.slane %v4091, 2
      %v4094 = vshll.u32 %v4055, 16
      %v4096 = vrot.slane %v4094, 3
      %v4097 = vor.u32 %v4093, %v4096
      %v4098 = vsel %vm4072, %v4088, %v4097
      %v4100 = vshrl.u32 %v4056, 16
      %v4102 = vrot.slane %v4100, 2
      %v4103 = vshll.u32 %v4056, 16
      %v4105 = vrot.slane %v4103, 3
      %v4106 = vor.u32 %v4102, %v4105
      %v4107 = vsel %vm4072, %v4097, %v4106
      %v4109 = vshrl.u32 %v4057, 16
      %v4111 = vrot.slane %v4109, 2
      %v4112 = vshll.u32 %v4057, 16
      %v4114 = vrot.slane %v4112, 3
      %v4115 = vor.u32 %v4111, %v4114
      %v4116 = vsel %vm4072, %v4106, %v4115
      %v4118 = vshrl.u32 %v4058, 16
      %v4120 = vrot.slane %v4118, 2
      %v4121 = vshll.u32 %v4058, 16
      %v4123 = vrot.slane %v4121, 3
      %v4124 = vor.u32 %v4120, %v4123
      %v4125 = vsel %vm4072, %v4115, %v4124
      %v4127 = vshrl.u32 %v4059, 16
      %v4129 = vrot.slane %v4127, 2
      %v4130 = vshll.u32 %v4059, 16
      %v4132 = vrot.slane %v4130, 3
      %v4133 = vor.u32 %v4129, %v4132
      %v4134 = vsel %vm4072, %v4124, %v4133
      %v4136 = vshrl.u32 %v4060, 16
      %v4138 = vrot.slane %v4136, 2
      %v4139 = vshll.u32 %v4060, 16
      %v4141 = vrot.slane %v4139, 3
      %v4142 = vor.u32 %v4138, %v4141
      %v4143 = vsel %vm4072, %v4133, %v4142
      %v4145 = vshrl.u32 %v4061, 16
      %v4147 = vrot.slane %v4145, 2
      %v4148 = vshll.u32 %v4061, 16
      %v4150 = vrot.slane %v4148, 3
      %v4151 = vor.u32 %v4147, %v4150
      %v4152 = vsel %vm4072, %v4142, %v4151
      %v4154 = vshrl.u32 %v4062, 16
      %v4156 = vrot.slane %v4154, 2
      %v4157 = vshll.u32 %v4062, 16
      %v4159 = vrot.slane %v4157, 3
      %v4160 = vor.u32 %v4156, %v4159
      %v4161 = vsel %vm4072, %v4151, %v4160
      %v4163 = vshrl.u32 %v4063, 16
      %v4165 = vrot.slane %v4163, 2
      %v4166 = vshll.u32 %v4063, 16
      %v4168 = vrot.slane %v4166, 3
      %v4169 = vor.u32 %v4165, %v4168
      %v4170 = vsel %vm4072, %v4160, %v4169
      %v4172 = vshrl.u32 %v4064, 16
      %v4174 = vrot.slane %v4172, 2
      %v4175 = vshll.u32 %v4064, 16
      %v4177 = vrot.slane %v4175, 3
      %v4178 = vor.u32 %v4174, %v4177
      %v4179 = vsel %vm4072, %v4169, %v4178
      %v4181 = vshrl.u32 %v4065, 16
      %v4183 = vrot.slane %v4181, 2
      %v4184 = vshll.u32 %v4065, 16
      %v4186 = vrot.slane %v4184, 3
      %v4187 = vor.u32 %v4183, %v4186
      %v4188 = vsel %vm4072, %v4178, %v4187
      %v4190 = vshrl.u32 %v4066, 16
      %v4192 = vrot.slane %v4190, 2
      %v4193 = vshll.u32 %v4066, 16
      %v4195 = vrot.slane %v4193, 3
      %v4196 = vor.u32 %v4192, %v4195
      %v4197 = vsel %vm4072, %v4187, %v4196
      %v4199 = vshrl.u32 %v4067, 16
      %v4201 = vrot.slane %v4199, 2
      %v4202 = vshll.u32 %v4067, 16
      %v4204 = vrot.slane %v4202, 3
      %v4205 = vor.u32 %v4201, %v4204
      %v4206 = vsel %vm4072, %v4196, %v4205
      %v4208 = vshrl.u32 %v4068, 16
      %v4210 = vrot.slane %v4208, 2
      %v4211 = vshll.u32 %v4068, 16
      %v4213 = vrot.slane %v4211, 3
      %v4214 = vor.u32 %v4210, %v4213
      %v4215 = vsel %vm4072, %v4205, %v4214
      %v4217 = vshrl.u32 %v4069, 16
      %v4219 = vrot.slane %v4217, 2
      %v4220 = vshll.u32 %v4069, 16
      %v4222 = vrot.slane %v4220, 3
      %v4223 = vor.u32 %v4219, %v4222
      %v4224 = vsel %vm4072, %v4214, %v4223
      %v4226 = vshrl.u32 %v4070, 16
      %v4228 = vrot.slane %v4226, 2
      %v4229 = vshll.u32 %v4070, 16
      %v4231 = vrot.slane %v4229, 3
      %v4232 = vor.u32 %v4228, %v4231
      %v4233 = vsel %vm4072, %v4223, %v4232
      %v4235 = vshrl.u32 %v4071, 16
      %v4237 = vrot.slane %v4235, 2
      %v4238 = vshll.u32 %v4071, 16
      %v4240 = vrot.slane %v4238, 3
      %v4241 = vor.u32 %v4237, %v4240
      %v4242 = vsel %vm4072, %v4232, %v4241
      %v4244 = vsel %vm353, %v4089, 0
      %v4247 = vsel %vm353, %v4098, 0
      %v4250 = vsel %vm353, %v4107, 0
      %v4253 = vsel %vm353, %v4116, 0
      %v4256 = vsel %vm353, %v4125, 0
      %v4259 = vsel %vm353, %v4134, 0
      %v4262 = vsel %vm353, %v4143, 0
      %v4265 = vsel %vm353, %v4152, 0
      %v4268 = vsel %vm353, %v4161, 0
      %v4271 = vsel %vm353, %v4170, 0
      %v4274 = vsel %vm353, %v4179, 0
      %v4277 = vsel %vm353, %v4188, 0
      %v4280 = vsel %vm353, %v4197, 0
      %v4283 = vsel %vm353, %v4206, 0
      %v4286 = vsel %vm353, %v4215, 0
      %v4289 = vsel %vm353, %v4224, 0
      %v4292 = vsel %vm353, %v4233, 0
      %v4295 = vsel %vm353, %v4242, 0
      %v4298 = vsel %vm408, %v3978, 0
      %4300 = vmatprep.subr.bf16.mxu0 0
      %4301 = vmatpush1.bf16.msra.mxu0 0
      %4302 = vmatprep.subr.bf16.mxu0 0
      %4303 = vmatpush1.bf16.msra.mxu0 0
      %4304 = vmatprep.subr.bf16.mxu0 0
      %4305 = vmatpush1.bf16.msra.mxu0 0
      %4306 = vmatprep.subr.bf16.mxu0 0
      %4307 = vmatpush1.bf16.msra.mxu0 0
      %4308 = vmatprep.subr.bf16.mxu0 0
      %4309 = vmatpush1.bf16.msra.mxu0 0
      %4310 = vmatprep.subr.bf16.mxu0 0
      %4311 = vmatpush1.bf16.msra.mxu0 0
      %4312 = vmatprep.subr.bf16.mxu0 0
      %4313 = vmatpush1.bf16.msra.mxu0 0
      %4314 = vmatprep.subr.bf16.mxu0 0
      %4315 = vmatpush1.bf16.msra.mxu0 %v4298
      %4316 = vmatprep.subr.bf16.mxu0 0
      %4317 = vmatpush2.bf16.msra.mxu0 0
      %4318 = vmatprep.subr.bf16.mxu0 0
      %4319 = vmatpush2.bf16.msra.mxu0 0
      %4320 = vmatprep.subr.bf16.mxu0 0
      %4321 = vmatpush2.bf16.msra.mxu0 0
      %4322 = vmatprep.subr.bf16.mxu0 0
      %4323 = vmatpush2.bf16.msra.mxu0 0
      %4324 = vmatprep.subr.bf16.mxu0 0
      %4325 = vmatpush2.bf16.msra.mxu0 0
      %4326 = vmatprep.subr.bf16.mxu0 0
      %4327 = vmatpush2.bf16.msra.mxu0 0
      %4328 = vmatprep.subr.bf16.mxu0 0
      %4329 = vmatpush2.bf16.msra.mxu0 0
      %4330 = vmatprep.subr.bf16.mxu0 0
      %4331 = vmatpush2.bf16.msra.mxu0 0
      %4332 = vmatprep.mubr.bf16.mxu0 0
      %4333 = vmatmul.mubr.bf16.gmra.mxu0 %v4244
      %v4334 = vpop.f32.mrf.mxu0
      %v4335 = vadd.f32 0.0, %v4334
      %v4336 = vpop.f32.mrf.mxu0
      %v4337 = vpop.f32.mrf.mxu0
      %v4338 = vadd.f32 0.0, %v4337
      %v4339 = vpop.f32.mrf.mxu0
      %4340 = vmatprep.mubr.bf16.mxu0 0
      %4341 = vmatmul.mubr.bf16.gmra.mxu0 %v4247
      %v4342 = vpop.f32.mrf.mxu0
      %v4343 = vadd.f32 0.0, %v4342
      %v4344 = vpop.f32.mrf.mxu0
      %v4345 = vpop.f32.mrf.mxu0
      %v4346 = vadd.f32 0.0, %v4345
      %v4347 = vpop.f32.mrf.mxu0
      %4348 = vmatprep.mubr.bf16.mxu0 0
      %4349 = vmatmul.mubr.bf16.gmra.mxu0 %v4250
      %v4350 = vpop.f32.mrf.mxu0
      %v4351 = vadd.f32 0.0, %v4350
      %v4352 = vpop.f32.mrf.mxu0
      %v4353 = vpop.f32.mrf.mxu0
      %v4354 = vadd.f32 0.0, %v4353
      %v4355 = vpop.f32.mrf.mxu0
      %4356 = vmatprep.mubr.bf16.mxu0 0
      %4357 = vmatmul.mubr.bf16.gmra.mxu0 %v4253
      %v4358 = vpop.f32.mrf.mxu0
      %v4359 = vadd.f32 0.0, %v4358
      %v4360 = vpop.f32.mrf.mxu0
      %v4361 = vpop.f32.mrf.mxu0
      %v4362 = vadd.f32 0.0, %v4361
      %v4363 = vpop.f32.mrf.mxu0
      %4364 = vmatprep.mubr.bf16.mxu0 0
      %4365 = vmatmul.mubr.bf16.gmra.mxu0 %v4256
      %v4366 = vpop.f32.mrf.mxu0
      %v4367 = vadd.f32 0.0, %v4366
      %v4368 = vpop.f32.mrf.mxu0
      %v4369 = vpop.f32.mrf.mxu0
      %v4370 = vadd.f32 0.0, %v4369
      %v4371 = vpop.f32.mrf.mxu0
      %4372 = vmatprep.mubr.bf16.mxu0 0
      %4373 = vmatmul.mubr.bf16.gmra.mxu0 %v4259
      %v4374 = vpop.f32.mrf.mxu0
      %v4375 = vadd.f32 0.0, %v4374
      %v4376 = vpop.f32.mrf.mxu0
      %v4377 = vpop.f32.mrf.mxu0
      %v4378 = vadd.f32 0.0, %v4377
      %v4379 = vpop.f32.mrf.mxu0
      %4380 = vmatprep.mubr.bf16.mxu0 0
      %4381 = vmatmul.mubr.bf16.gmra.mxu0 %v4262
      %v4382 = vpop.f32.mrf.mxu0
      %v4383 = vadd.f32 0.0, %v4382
      %v4384 = vpop.f32.mrf.mxu0
      %v4385 = vpop.f32.mrf.mxu0
      %v4386 = vadd.f32 0.0, %v4385
      %v4387 = vpop.f32.mrf.mxu0
      %4388 = vmatprep.mubr.bf16.mxu0 0
      %4389 = vmatmul.mubr.bf16.gmra.mxu0 %v4265
      %v4390 = vpop.f32.mrf.mxu0
      %v4391 = vadd.f32 0.0, %v4390
      %v4392 = vpop.f32.mrf.mxu0
      %v4393 = vpop.f32.mrf.mxu0
      %v4394 = vadd.f32 0.0, %v4393
      %v4395 = vpop.f32.mrf.mxu0
      %4396 = vmatprep.mubr.bf16.mxu0 0
      %4397 = vmatmul.mubr.bf16.gmra.mxu0 %v4268
      %v4398 = vpop.f32.mrf.mxu0
      %v4399 = vadd.f32 0.0, %v4398
      %v4400 = vpop.f32.mrf.mxu0
      %v4401 = vpop.f32.mrf.mxu0
      %v4402 = vadd.f32 0.0, %v4401
      %v4403 = vpop.f32.mrf.mxu0
      %4404 = vmatprep.mubr.bf16.mxu0 0
      %4405 = vmatmul.mubr.bf16.gmra.mxu0 %v4271
      %v4406 = vpop.f32.mrf.mxu0
      %v4407 = vadd.f32 0.0, %v4406
      %v4408 = vpop.f32.mrf.mxu0
      %v4409 = vpop.f32.mrf.mxu0
      %v4410 = vadd.f32 0.0, %v4409
      %v4411 = vpop.f32.mrf.mxu0
      %4412 = vmatprep.mubr.bf16.mxu0 0
      %4413 = vmatmul.mubr.bf16.gmra.mxu0 %v4274
      %v4414 = vpop.f32.mrf.mxu0
      %v4415 = vadd.f32 0.0, %v4414
      %v4416 = vpop.f32.mrf.mxu0
      %v4417 = vpop.f32.mrf.mxu0
      %v4418 = vadd.f32 0.0, %v4417
      %v4419 = vpop.f32.mrf.mxu0
      %4420 = vmatprep.mubr.bf16.mxu0 0
      %4421 = vmatmul.mubr.bf16.gmra.mxu0 %v4277
      %v4422 = vpop.f32.mrf.mxu0
      %v4423 = vadd.f32 0.0, %v4422
      %v4424 = vpop.f32.mrf.mxu0
      %v4425 = vpop.f32.mrf.mxu0
      %v4426 = vadd.f32 0.0, %v4425
      %v4427 = vpop.f32.mrf.mxu0
      %4428 = vmatprep.mubr.bf16.mxu0 0
      %4429 = vmatmul.mubr.bf16.gmra.mxu0 %v4280
      %v4430 = vpop.f32.mrf.mxu0
      %v4431 = vadd.f32 0.0, %v4430
      %v4432 = vpop.f32.mrf.mxu0
      %v4433 = vpop.f32.mrf.mxu0
      %v4434 = vadd.f32 0.0, %v4433
      %v4435 = vpop.f32.mrf.mxu0
      %4436 = vmatprep.mubr.bf16.mxu0 0
      %4437 = vmatmul.mubr.bf16.gmra.mxu0 %v4283
      %v4438 = vpop.f32.mrf.mxu0
      %v4439 = vadd.f32 0.0, %v4438
      %v4440 = vpop.f32.mrf.mxu0
      %v4441 = vpop.f32.mrf.mxu0
      %v4442 = vadd.f32 0.0, %v4441
      %v4443 = vpop.f32.mrf.mxu0
      %4444 = vmatprep.mubr.bf16.mxu0 0
      %4445 = vmatmul.mubr.bf16.gmra.mxu0 %v4286
      %v4446 = vpop.f32.mrf.mxu0
      %v4447 = vadd.f32 0.0, %v4446
      %v4448 = vpop.f32.mrf.mxu0
      %v4449 = vpop.f32.mrf.mxu0
      %v4450 = vadd.f32 0.0, %v4449
      %v4451 = vpop.f32.mrf.mxu0
      %4452 = vmatprep.mubr.bf16.mxu0 0
      %4453 = vmatmul.mubr.bf16.gmra.mxu0 %v4289
      %v4454 = vpop.f32.mrf.mxu0
      %v4455 = vadd.f32 0.0, %v4454
      %v4456 = vpop.f32.mrf.mxu0
      %v4457 = vpop.f32.mrf.mxu0
      %v4458 = vadd.f32 0.0, %v4457
      %v4459 = vpop.f32.mrf.mxu0
      %4460 = vmatprep.mubr.bf16.mxu0 0
      %4461 = vmatmul.mubr.bf16.gmra.mxu0 %v4292
      %v4462 = vpop.f32.mrf.mxu0
      %v4463 = vadd.f32 0.0, %v4462
      %v4464 = vpop.f32.mrf.mxu0
      %v4465 = vpop.f32.mrf.mxu0
      %v4466 = vadd.f32 0.0, %v4465
      %v4467 = vpop.f32.mrf.mxu0
      %4468 = vmatprep.mubr.bf16.mxu0 0
      %4469 = vmatmul.mubr.bf16.gmra.mxu0 %v4295
      %v4470 = vpop.f32.mrf.mxu0
      %v4471 = vadd.f32 0.0, %v4470
      %v4472 = vpop.f32.mrf.mxu0
      %v4473 = vpop.f32.mrf.mxu0
      %v4474 = vadd.f32 0.0, %v4473
      %v4475 = vpop.f32.mrf.mxu0
      %4476 = vdwg.mxu0
      %v4477 = vld [vmem:[#allocation2] sm:$0xff]
      %v4478 = vld [vmem:[#allocation2 + $0x8] sm:$0xff]
      %v4479 = vld [vmem:[#allocation2 + $0x10] sm:$0xff]
      %v4480 = vld [vmem:[#allocation2 + $0x18] sm:$0xff]
      %v4481 = vld [vmem:[#allocation2 + $0x20] sm:$0xff]
      %v4482 = vld [vmem:[#allocation2 + $0x28] sm:$0xff]
      %v4483 = vld [vmem:[#allocation2 + $0x30] sm:$0xff]
      %v4484 = vld [vmem:[#allocation2 + $0x38] sm:$0xff]
      %v4485 = vld [vmem:[#allocation2 + $0x40] sm:$0xff]
      %v4486 = vld [vmem:[#allocation2 + $0x48] sm:$0xff]
      %v4487 = vld [vmem:[#allocation2 + $0x50] sm:$0xff]
      %v4488 = vld [vmem:[#allocation2 + $0x58] sm:$0xff]
      %v4489 = vld [vmem:[#allocation2 + $0x60] sm:$0xff]
      %v4490 = vld [vmem:[#allocation2 + $0x68] sm:$0xff]
      %v4491 = vld [vmem:[#allocation2 + $0x70] sm:$0xff]
      %v4492 = vld [vmem:[#allocation2 + $0x78] sm:$0xff]
      %v4493 = vld [vmem:[#allocation2 + $0x80] sm:$0xff]
      %v4494 = vld [vmem:[#allocation2 + $0x88] sm:$0xff]
      %v4495 = vld [vmem:[#allocation2 + $0x90] sm:$0xff]
      %v4496 = vld [vmem:[#allocation2 + $0x98] sm:$0xff]
      %v4497 = vld [vmem:[#allocation2 + $0xa0] sm:$0xff]
      %v4498 = vld [vmem:[#allocation2 + $0xa8] sm:$0xff]
      %v4499 = vld [vmem:[#allocation2 + $0xb0] sm:$0xff]
      %v4500 = vld [vmem:[#allocation2 + $0xb8] sm:$0xff]
      %v4501 = vld [vmem:[#allocation2 + $0xc0] sm:$0xff]
      %v4502 = vld [vmem:[#allocation2 + $0xc8] sm:$0xff]
      %v4503 = vld [vmem:[#allocation2 + $0xd0] sm:$0xff]
      %v4504 = vld [vmem:[#allocation2 + $0xd8] sm:$0xff]
      %v4505 = vld [vmem:[#allocation2 + $0xe0] sm:$0xff]
      %v4506 = vld [vmem:[#allocation2 + $0xe8] sm:$0xff]
      %v4507 = vld [vmem:[#allocation2 + $0xf0] sm:$0xff]
      %v4508 = vld [vmem:[#allocation2 + $0xf8] sm:$0xff]
      %v4509 = vld [vmem:[#allocation2 + $0x100] sm:$0xff]
      %v4510 = vld [vmem:[#allocation2 + $0x108] sm:$0xff]
      %v4511 = vld [vmem:[#allocation2 + $0x110] sm:$0xff]
      %v4512 = vld [vmem:[#allocation2 + $0x118] sm:$0xff]
      %v4513 = vadd.f32 %v4477, %v4335
      %v4514 = vadd.f32 %v4478, %v4338
      %v4515 = vadd.f32 %v4479, %v4343
      %v4516 = vadd.f32 %v4480, %v4346
      %v4517 = vadd.f32 %v4481, %v4351
      %v4518 = vadd.f32 %v4482, %v4354
      %v4519 = vadd.f32 %v4483, %v4359
      %v4520 = vadd.f32 %v4484, %v4362
      %v4521 = vadd.f32 %v4485, %v4367
      %v4522 = vadd.f32 %v4486, %v4370
      %v4523 = vadd.f32 %v4487, %v4375
      %v4524 = vadd.f32 %v4488, %v4378
      %v4525 = vadd.f32 %v4489, %v4383
      %v4526 = vadd.f32 %v4490, %v4386
      %v4527 = vadd.f32 %v4491, %v4391
      %v4528 = vadd.f32 %v4492, %v4394
      %v4529 = vadd.f32 %v4493, %v4399
      %v4530 = vadd.f32 %v4494, %v4402
      %v4531 = vadd.f32 %v4495, %v4407
      %v4532 = vadd.f32 %v4496, %v4410
      %v4533 = vadd.f32 %v4497, %v4415
      %v4534 = vadd.f32 %v4498, %v4418
      %v4535 = vadd.f32 %v4499, %v4423
      %v4536 = vadd.f32 %v4500, %v4426
      %v4537 = vadd.f32 %v4501, %v4431
      %v4538 = vadd.f32 %v4502, %v4434
      %v4539 = vadd.f32 %v4503, %v4439
      %v4540 = vadd.f32 %v4504, %v4442
      %v4541 = vadd.f32 %v4505, %v4447
      %v4542 = vadd.f32 %v4506, %v4450
      %v4543 = vadd.f32 %v4507, %v4455
      %v4544 = vadd.f32 %v4508, %v4458
      %v4545 = vadd.f32 %v4509, %v4463
      %v4546 = vadd.f32 %v4510, %v4466
      %v4547 = vadd.f32 %v4511, %v4471
      %v4548 = vadd.f32 %v4512, %v4474
      %4549 = vst.msk [vmem:[#allocation2] sm:$0xff] %vm589, %v4513
      %4550 = vst.msk [vmem:[#allocation2 + $0x8] sm:$0xff] %vm589, %v4514
      %4551 = vst.msk [vmem:[#allocation2 + $0x10] sm:$0xff] %vm589, %v4515
      %4552 = vst.msk [vmem:[#allocation2 + $0x18] sm:$0xff] %vm589, %v4516
      %4553 = vst.msk [vmem:[#allocation2 + $0x20] sm:$0xff] %vm589, %v4517
      %4554 = vst.msk [vmem:[#allocation2 + $0x28] sm:$0xff] %vm589, %v4518
      %4555 = vst.msk [vmem:[#allocation2 + $0x30] sm:$0xff] %vm589, %v4519
      %4556 = vst.msk [vmem:[#allocation2 + $0x38] sm:$0xff] %vm589, %v4520
      %4557 = vst.msk [vmem:[#allocation2 + $0x40] sm:$0xff] %vm589, %v4521
      %4558 = vst.msk [vmem:[#allocation2 + $0x48] sm:$0xff] %vm589, %v4522
      %4559 = vst.msk [vmem:[#allocation2 + $0x50] sm:$0xff] %vm589, %v4523
      %4560 = vst.msk [vmem:[#allocation2 + $0x58] sm:$0xff] %vm589, %v4524
      %4561 = vst.msk [vmem:[#allocation2 + $0x60] sm:$0xff] %vm589, %v4525
      %4562 = vst.msk [vmem:[#allocation2 + $0x68] sm:$0xff] %vm589, %v4526
      %4563 = vst.msk [vmem:[#allocation2 + $0x70] sm:$0xff] %vm589, %v4527
      %4564 = vst.msk [vmem:[#allocation2 + $0x78] sm:$0xff] %vm589, %v4528
      %4565 = vst.msk [vmem:[#allocation2 + $0x80] sm:$0xff] %vm589, %v4529
      %4566 = vst.msk [vmem:[#allocation2 + $0x88] sm:$0xff] %vm589, %v4530
      %4567 = vst.msk [vmem:[#allocation2 + $0x90] sm:$0xff] %vm589, %v4531
      %4568 = vst.msk [vmem:[#allocation2 + $0x98] sm:$0xff] %vm589, %v4532
      %4569 = vst.msk [vmem:[#allocation2 + $0xa0] sm:$0xff] %vm589, %v4533
      %4570 = vst.msk [vmem:[#allocation2 + $0xa8] sm:$0xff] %vm589, %v4534
      %4571 = vst.msk [vmem:[#allocation2 + $0xb0] sm:$0xff] %vm589, %v4535
      %4572 = vst.msk [vmem:[#allocation2 + $0xb8] sm:$0xff] %vm589, %v4536
      %4573 = vst.msk [vmem:[#allocation2 + $0xc0] sm:$0xff] %vm589, %v4537
      %4574 = vst.msk [vmem:[#allocation2 + $0xc8] sm:$0xff] %vm589, %v4538
      %4575 = vst.msk [vmem:[#allocation2 + $0xd0] sm:$0xff] %vm589, %v4539
      %4576 = vst.msk [vmem:[#allocation2 + $0xd8] sm:$0xff] %vm589, %v4540
      %4577 = vst.msk [vmem:[#allocation2 + $0xe0] sm:$0xff] %vm589, %v4541
      %4578 = vst.msk [vmem:[#allocation2 + $0xe8] sm:$0xff] %vm589, %v4542
      %4579 = vst.msk [vmem:[#allocation2 + $0xf0] sm:$0xff] %vm589, %v4543
      %4580 = vst.msk [vmem:[#allocation2 + $0xf8] sm:$0xff] %vm589, %v4544
      %4581 = vst.msk [vmem:[#allocation2 + $0x100] sm:$0xff] %vm589, %v4545
      %4582 = vst.msk [vmem:[#allocation2 + $0x108] sm:$0xff] %vm589, %v4546
      %4583 = vst.msk [vmem:[#allocation2 + $0x110] sm:$0xff] %vm589, %v4547
      %4584 = vst.msk [vmem:[#allocation2 + $0x118] sm:$0xff] %vm589, %v4548
      %v4585 = vld [vmem:[%s219 + $0x10] sm:$0x8]
      %v4586 = vld [vmem:[%s219 + $0x14] sm:$0xf]
      %v4587 = vld [vmem:[%s219 + $0x18] sm:$0xf]
      %v4588 = vld [vmem:[%s219 + $0x1c] sm:$0xf]
      %v4589 = vld [vmem:[%s219 + $0x20] sm:$0xf]
      %v4590 = vld [vmem:[%s219 + $0x24] sm:$0xf]
      %v4591 = vld [vmem:[%s219 + $0x28] sm:$0xf]
      %v4592 = vld [vmem:[%s219 + $0x2c] sm:$0xf]
      %v4593 = vld [vmem:[%s219 + $0x30] sm:$0xf]
      %v4594 = vld [vmem:[%s219 + $0x34] sm:$0xf]
      %v4595 = vld [vmem:[%s219 + $0x38] sm:$0xf]
      %v4596 = vld [vmem:[%s219 + $0x3c] sm:$0xf]
      %v4597 = vld [vmem:[%s219 + $0x40] sm:$0xf]
      %v4598 = vld [vmem:[%s219 + $0x44] sm:$0xf]
      %v4599 = vld [vmem:[%s219 + $0x48] sm:$0xf]
      %v4600 = vld [vmem:[%s219 + $0x4c] sm:$0xf]
      %v4601 = vld [vmem:[%s219 + $0x50] sm:$0xf]
      %v4602 = vld [vmem:[%s219 + $0x54] sm:$0xf]
      %v4603 = vld [vmem:[%s219 + $0x58] sm:$0xf]
      %v4604 = vld [vmem:[%s219 + $0x5c] sm:$0xf]
      %v4605 = vld [vmem:[%s219 + $0x60] sm:$0xf]
      %v4606 = vld [vmem:[%s219 + $0x64] sm:$0xf]
      %v4607 = vld [vmem:[%s219 + $0x68] sm:$0xf]
      %v4608 = vld [vmem:[%s219 + $0x6c] sm:$0xf]
      %v4609 = vld [vmem:[%s219 + $0x70] sm:$0xf]
      %v4610 = vld [vmem:[%s219 + $0x74] sm:$0xf]
      %v4611 = vld [vmem:[%s219 + $0x78] sm:$0xf]
      %v4612 = vld [vmem:[%s219 + $0x7c] sm:$0xf]
      %v4613 = vld [vmem:[%s219 + $0x80] sm:$0xf]
      %v4614 = vld [vmem:[%s219 + $0x84] sm:$0xf]
      %v4615 = vld [vmem:[%s219 + $0x88] sm:$0xf]
      %v4616 = vld [vmem:[%s219 + $0x8c] sm:$0xf]
      %v4617 = vld [vmem:[%s219 + $0x90] sm:$0xf]
      %v4618 = vld [vmem:[%s219 + $0x94] sm:$0xf]
      %v4619 = vld [vmem:[%s219 + $0x98] sm:$0xf]
      %v4620 = vld [vmem:[%s219 + $0x9c] sm:$0xf]
      %v4621 = vld [vmem:[%s219 + $0xa0] sm:$0x7]
      %s4622 = scalar_lea.vmem %s1, 32
      %v4623 = vld [vmem:[%s4622] sm:$0xf]
      %v4661 = vunpack.c.l.b16 %v4585
      %v4662 = vunpack.c.l.b16 %v4586
      %v4663 = vunpack.c.l.b16 %v4587
      %v4664 = vunpack.c.l.b16 %v4588
      %v4665 = vunpack.c.l.b16 %v4589
      %v4666 = vunpack.c.l.b16 %v4590
      %v4667 = vunpack.c.l.b16 %v4591
      %v4668 = vunpack.c.l.b16 %v4592
      %v4669 = vunpack.c.l.b16 %v4593
      %v4670 = vunpack.c.l.b16 %v4594
      %v4671 = vunpack.c.l.b16 %v4595
      %v4672 = vunpack.c.l.b16 %v4596
      %v4673 = vunpack.c.l.b16 %v4597
      %v4674 = vunpack.c.l.b16 %v4598
      %v4675 = vunpack.c.l.b16 %v4599
      %v4676 = vunpack.c.l.b16 %v4600
      %v4677 = vunpack.c.l.b16 %v4601
      %v4678 = vunpack.c.l.b16 %v4602
      %v4679 = vunpack.c.l.b16 %v4603
      %v4680 = vunpack.c.l.b16 %v4604
      %v4681 = vunpack.c.l.b16 %v4605
      %v4682 = vunpack.c.l.b16 %v4606
      %v4683 = vunpack.c.l.b16 %v4607
      %v4684 = vunpack.c.l.b16 %v4608
      %v4685 = vunpack.c.l.b16 %v4609
      %v4686 = vunpack.c.l.b16 %v4610
      %v4687 = vunpack.c.l.b16 %v4611
      %v4688 = vunpack.c.l.b16 %v4612
      %v4689 = vunpack.c.l.b16 %v4613
      %v4690 = vunpack.c.l.b16 %v4614
      %v4691 = vunpack.c.l.b16 %v4615
      %v4692 = vunpack.c.l.b16 %v4616
      %v4693 = vunpack.c.l.b16 %v4617
      %v4694 = vunpack.c.l.b16 %v4618
      %v4695 = vunpack.c.l.b16 %v4619
      %v4696 = vunpack.c.l.b16 %v4620
      %v4697 = vunpack.c.l.b16 %v4621
      %v4698 = vpack.c.b16 %v4662, %v4661
      %v4699 = vpack.c.b16 %v4664, %v4663
      %v4700 = vpack.c.b16 %v4666, %v4665
      %v4701 = vpack.c.b16 %v4668, %v4667
      %v4702 = vpack.c.b16 %v4670, %v4669
      %v4703 = vpack.c.b16 %v4672, %v4671
      %v4704 = vpack.c.b16 %v4674, %v4673
      %v4705 = vpack.c.b16 %v4676, %v4675
      %v4706 = vpack.c.b16 %v4678, %v4677
      %v4707 = vpack.c.b16 %v4680, %v4679
      %v4708 = vpack.c.b16 %v4682, %v4681
      %v4709 = vpack.c.b16 %v4684, %v4683
      %v4710 = vpack.c.b16 %v4686, %v4685
      %v4711 = vpack.c.b16 %v4688, %v4687
      %v4712 = vpack.c.b16 %v4690, %v4689
      %v4713 = vpack.c.b16 %v4692, %v4691
      %v4714 = vpack.c.b16 %v4694, %v4693
      %v4715 = vpack.c.b16 %v4696, %v4695
      %v4716 = vpack.c.b16 %v4697, %v4697
      %vm4717 = vcmask 1044480
      %v4718 = vrot.slane %v4698, 3
      %v4719 = vrot.slane %v4699, 3
      %v4720 = vsel %vm4717, %v4718, %v4719
      %v4721 = vrot.slane %v4700, 3
      %v4722 = vsel %vm4717, %v4719, %v4721
      %v4723 = vrot.slane %v4701, 3
      %v4724 = vsel %vm4717, %v4721, %v4723
      %v4725 = vrot.slane %v4702, 3
      %v4726 = vsel %vm4717, %v4723, %v4725
      %v4727 = vrot.slane %v4703, 3
      %v4728 = vsel %vm4717, %v4725, %v4727
      %v4729 = vrot.slane %v4704, 3
      %v4730 = vsel %vm4717, %v4727, %v4729
      %v4731 = vrot.slane %v4705, 3
      %v4732 = vsel %vm4717, %v4729, %v4731
      %v4733 = vrot.slane %v4706, 3
      %v4734 = vsel %vm4717, %v4731, %v4733
      %v4735 = vrot.slane %v4707, 3
      %v4736 = vsel %vm4717, %v4733, %v4735
      %v4737 = vrot.slane %v4708, 3
      %v4738 = vsel %vm4717, %v4735, %v4737
      %v4739 = vrot.slane %v4709, 3
      %v4740 = vsel %vm4717, %v4737, %v4739
      %v4741 = vrot.slane %v4710, 3
      %v4742 = vsel %vm4717, %v4739, %v4741
      %v4743 = vrot.slane %v4711, 3
      %v4744 = vsel %vm4717, %v4741, %v4743
      %v4745 = vrot.slane %v4712, 3
      %v4746 = vsel %vm4717, %v4743, %v4745
      %v4747 = vrot.slane %v4713, 3
      %v4748 = vsel %vm4717, %v4745, %v4747
      %v4749 = vrot.slane %v4714, 3
      %v4750 = vsel %vm4717, %v4747, %v4749
      %v4751 = vrot.slane %v4715, 3
      %v4752 = vsel %vm4717, %v4749, %v4751
      %v4753 = vrot.slane %v4716, 3
      %v4754 = vsel %vm4717, %v4751, %v4753
      %v4756 = vsel %vm353, %v4720, 0
      %v4759 = vsel %vm353, %v4722, 0
      %v4762 = vsel %vm353, %v4724, 0
      %v4765 = vsel %vm353, %v4726, 0
      %v4768 = vsel %vm353, %v4728, 0
      %v4771 = vsel %vm353, %v4730, 0
      %v4774 = vsel %vm353, %v4732, 0
      %v4777 = vsel %vm353, %v4734, 0
      %v4780 = vsel %vm353, %v4736, 0
      %v4783 = vsel %vm353, %v4738, 0
      %v4786 = vsel %vm353, %v4740, 0
      %v4789 = vsel %vm353, %v4742, 0
      %v4792 = vsel %vm353, %v4744, 0
      %v4795 = vsel %vm353, %v4746, 0
      %v4798 = vsel %vm353, %v4748, 0
      %v4801 = vsel %vm353, %v4750, 0
      %v4804 = vsel %vm353, %v4752, 0
      %v4807 = vsel %vm353, %v4754, 0
      %v4810 = vsel %vm408, %v4623, 0
      %4812 = vmatprep.subr.bf16.mxu0 0
      %4813 = vmatpush1.bf16.msra.mxu0 0
      %4814 = vmatprep.subr.bf16.mxu0 0
      %4815 = vmatpush1.bf16.msra.mxu0 0
      %4816 = vmatprep.subr.bf16.mxu0 0
      %4817 = vmatpush1.bf16.msra.mxu0 0
      %4818 = vmatprep.subr.bf16.mxu0 0
      %4819 = vmatpush1.bf16.msra.mxu0 0
      %4820 = vmatprep.subr.bf16.mxu0 0
      %4821 = vmatpush1.bf16.msra.mxu0 0
      %4822 = vmatprep.subr.bf16.mxu0 0
      %4823 = vmatpush1.bf16.msra.mxu0 0
      %4824 = vmatprep.subr.bf16.mxu0 0
      %4825 = vmatpush1.bf16.msra.mxu0 0
      %4826 = vmatprep.subr.bf16.mxu0 0
      %4827 = vmatpush1.bf16.msra.mxu0 %v4810
      %4828 = vmatprep.subr.bf16.mxu0 0
      %4829 = vmatpush2.bf16.msra.mxu0 0
      %4830 = vmatprep.subr.bf16.mxu0 0
      %4831 = vmatpush2.bf16.msra.mxu0 0
      %4832 = vmatprep.subr.bf16.mxu0 0
      %4833 = vmatpush2.bf16.msra.mxu0 0
      %4834 = vmatprep.subr.bf16.mxu0 0
      %4835 = vmatpush2.bf16.msra.mxu0 0
      %4836 = vmatprep.subr.bf16.mxu0 0
      %4837 = vmatpush2.bf16.msra.mxu0 0
      %4838 = vmatprep.subr.bf16.mxu0 0
      %4839 = vmatpush2.bf16.msra.mxu0 0
      %4840 = vmatprep.subr.bf16.mxu0 0
      %4841 = vmatpush2.bf16.msra.mxu0 0
      %4842 = vmatprep.subr.bf16.mxu0 0
      %4843 = vmatpush2.bf16.msra.mxu0 0
      %4844 = vmatprep.mubr.bf16.mxu0 0
      %4845 = vmatmul.mubr.bf16.gmra.mxu0 %v4756
      %v4846 = vpop.f32.mrf.mxu0
      %v4847 = vadd.f32 0.0, %v4846
      %v4848 = vpop.f32.mrf.mxu0
      %v4849 = vpop.f32.mrf.mxu0
      %v4850 = vadd.f32 0.0, %v4849
      %v4851 = vpop.f32.mrf.mxu0
      %4852 = vmatprep.mubr.bf16.mxu0 0
      %4853 = vmatmul.mubr.bf16.gmra.mxu0 %v4759
      %v4854 = vpop.f32.mrf.mxu0
      %v4855 = vadd.f32 0.0, %v4854
      %v4856 = vpop.f32.mrf.mxu0
      %v4857 = vpop.f32.mrf.mxu0
      %v4858 = vadd.f32 0.0, %v4857
      %v4859 = vpop.f32.mrf.mxu0
      %4860 = vmatprep.mubr.bf16.mxu0 0
      %4861 = vmatmul.mubr.bf16.gmra.mxu0 %v4762
      %v4862 = vpop.f32.mrf.mxu0
      %v4863 = vadd.f32 0.0, %v4862
      %v4864 = vpop.f32.mrf.mxu0
      %v4865 = vpop.f32.mrf.mxu0
      %v4866 = vadd.f32 0.0, %v4865
      %v4867 = vpop.f32.mrf.mxu0
      %4868 = vmatprep.mubr.bf16.mxu0 0
      %4869 = vmatmul.mubr.bf16.gmra.mxu0 %v4765
      %v4870 = vpop.f32.mrf.mxu0
      %v4871 = vadd.f32 0.0, %v4870
      %v4872 = vpop.f32.mrf.mxu0
      %v4873 = vpop.f32.mrf.mxu0
      %v4874 = vadd.f32 0.0, %v4873
      %v4875 = vpop.f32.mrf.mxu0
      %4876 = vmatprep.mubr.bf16.mxu0 0
      %4877 = vmatmul.mubr.bf16.gmra.mxu0 %v4768
      %v4878 = vpop.f32.mrf.mxu0
      %v4879 = vadd.f32 0.0, %v4878
      %v4880 = vpop.f32.mrf.mxu0
      %v4881 = vpop.f32.mrf.mxu0
      %v4882 = vadd.f32 0.0, %v4881
      %v4883 = vpop.f32.mrf.mxu0
      %4884 = vmatprep.mubr.bf16.mxu0 0
      %4885 = vmatmul.mubr.bf16.gmra.mxu0 %v4771
      %v4886 = vpop.f32.mrf.mxu0
      %v4887 = vadd.f32 0.0, %v4886
      %v4888 = vpop.f32.mrf.mxu0
      %v4889 = vpop.f32.mrf.mxu0
      %v4890 = vadd.f32 0.0, %v4889
      %v4891 = vpop.f32.mrf.mxu0
      %4892 = vmatprep.mubr.bf16.mxu0 0
      %4893 = vmatmul.mubr.bf16.gmra.mxu0 %v4774
      %v4894 = vpop.f32.mrf.mxu0
      %v4895 = vadd.f32 0.0, %v4894
      %v4896 = vpop.f32.mrf.mxu0
      %v4897 = vpop.f32.mrf.mxu0
      %v4898 = vadd.f32 0.0, %v4897
      %v4899 = vpop.f32.mrf.mxu0
      %4900 = vmatprep.mubr.bf16.mxu0 0
      %4901 = vmatmul.mubr.bf16.gmra.mxu0 %v4777
      %v4902 = vpop.f32.mrf.mxu0
      %v4903 = vadd.f32 0.0, %v4902
      %v4904 = vpop.f32.mrf.mxu0
      %v4905 = vpop.f32.mrf.mxu0
      %v4906 = vadd.f32 0.0, %v4905
      %v4907 = vpop.f32.mrf.mxu0
      %4908 = vmatprep.mubr.bf16.mxu0 0
      %4909 = vmatmul.mubr.bf16.gmra.mxu0 %v4780
      %v4910 = vpop.f32.mrf.mxu0
      %v4911 = vadd.f32 0.0, %v4910
      %v4912 = vpop.f32.mrf.mxu0
      %v4913 = vpop.f32.mrf.mxu0
      %v4914 = vadd.f32 0.0, %v4913
      %v4915 = vpop.f32.mrf.mxu0
      %4916 = vmatprep.mubr.bf16.mxu0 0
      %4917 = vmatmul.mubr.bf16.gmra.mxu0 %v4783
      %v4918 = vpop.f32.mrf.mxu0
      %v4919 = vadd.f32 0.0, %v4918
      %v4920 = vpop.f32.mrf.mxu0
      %v4921 = vpop.f32.mrf.mxu0
      %v4922 = vadd.f32 0.0, %v4921
      %v4923 = vpop.f32.mrf.mxu0
      %4924 = vmatprep.mubr.bf16.mxu0 0
      %4925 = vmatmul.mubr.bf16.gmra.mxu0 %v4786
      %v4926 = vpop.f32.mrf.mxu0
      %v4927 = vadd.f32 0.0, %v4926
      %v4928 = vpop.f32.mrf.mxu0
      %v4929 = vpop.f32.mrf.mxu0
      %v4930 = vadd.f32 0.0, %v4929
      %v4931 = vpop.f32.mrf.mxu0
      %4932 = vmatprep.mubr.bf16.mxu0 0
      %4933 = vmatmul.mubr.bf16.gmra.mxu0 %v4789
      %v4934 = vpop.f32.mrf.mxu0
      %v4935 = vadd.f32 0.0, %v4934
      %v4936 = vpop.f32.mrf.mxu0
      %v4937 = vpop.f32.mrf.mxu0
      %v4938 = vadd.f32 0.0, %v4937
      %v4939 = vpop.f32.mrf.mxu0
      %4940 = vmatprep.mubr.bf16.mxu0 0
      %4941 = vmatmul.mubr.bf16.gmra.mxu0 %v4792
      %v4942 = vpop.f32.mrf.mxu0
      %v4943 = vadd.f32 0.0, %v4942
      %v4944 = vpop.f32.mrf.mxu0
      %v4945 = vpop.f32.mrf.mxu0
      %v4946 = vadd.f32 0.0, %v4945
      %v4947 = vpop.f32.mrf.mxu0
      %4948 = vmatprep.mubr.bf16.mxu0 0
      %4949 = vmatmul.mubr.bf16.gmra.mxu0 %v4795
      %v4950 = vpop.f32.mrf.mxu0
      %v4951 = vadd.f32 0.0, %v4950
      %v4952 = vpop.f32.mrf.mxu0
      %v4953 = vpop.f32.mrf.mxu0
      %v4954 = vadd.f32 0.0, %v4953
      %v4955 = vpop.f32.mrf.mxu0
      %4956 = vmatprep.mubr.bf16.mxu0 0
      %4957 = vmatmul.mubr.bf16.gmra.mxu0 %v4798
      %v4958 = vpop.f32.mrf.mxu0
      %v4959 = vadd.f32 0.0, %v4958
      %v4960 = vpop.f32.mrf.mxu0
      %v4961 = vpop.f32.mrf.mxu0
      %v4962 = vadd.f32 0.0, %v4961
      %v4963 = vpop.f32.mrf.mxu0
      %4964 = vmatprep.mubr.bf16.mxu0 0
      %4965 = vmatmul.mubr.bf16.gmra.mxu0 %v4801
      %v4966 = vpop.f32.mrf.mxu0
      %v4967 = vadd.f32 0.0, %v4966
      %v4968 = vpop.f32.mrf.mxu0
      %v4969 = vpop.f32.mrf.mxu0
      %v4970 = vadd.f32 0.0, %v4969
      %v4971 = vpop.f32.mrf.mxu0
      %4972 = vmatprep.mubr.bf16.mxu0 0
      %4973 = vmatmul.mubr.bf16.gmra.mxu0 %v4804
      %v4974 = vpop.f32.mrf.mxu0
      %v4975 = vadd.f32 0.0, %v4974
      %v4976 = vpop.f32.mrf.mxu0
      %v4977 = vpop.f32.mrf.mxu0
      %v4978 = vadd.f32 0.0, %v4977
      %v4979 = vpop.f32.mrf.mxu0
      %4980 = vmatprep.mubr.bf16.mxu0 0
      %4981 = vmatmul.mubr.bf16.gmra.mxu0 %v4807
      %v4982 = vpop.f32.mrf.mxu0
      %v4983 = vadd.f32 0.0, %v4982
      %v4984 = vpop.f32.mrf.mxu0
      %v4985 = vpop.f32.mrf.mxu0
      %v4986 = vadd.f32 0.0, %v4985
      %v4987 = vpop.f32.mrf.mxu0
      %4988 = vdwg.mxu0
      %v4989 = vld [vmem:[#allocation2] sm:$0xff]
      %v4990 = vld [vmem:[#allocation2 + $0x8] sm:$0xff]
      %v4991 = vld [vmem:[#allocation2 + $0x10] sm:$0xff]
      %v4992 = vld [vmem:[#allocation2 + $0x18] sm:$0xff]
      %v4993 = vld [vmem:[#allocation2 + $0x20] sm:$0xff]
      %v4994 = vld [vmem:[#allocation2 + $0x28] sm:$0xff]
      %v4995 = vld [vmem:[#allocation2 + $0x30] sm:$0xff]
      %v4996 = vld [vmem:[#allocation2 + $0x38] sm:$0xff]
      %v4997 = vld [vmem:[#allocation2 + $0x40] sm:$0xff]
      %v4998 = vld [vmem:[#allocation2 + $0x48] sm:$0xff]
      %v4999 = vld [vmem:[#allocation2 + $0x50] sm:$0xff]
      %v5000 = vld [vmem:[#allocation2 + $0x58] sm:$0xff]
      %v5001 = vld [vmem:[#allocation2 + $0x60] sm:$0xff]
      %v5002 = vld [vmem:[#allocation2 + $0x68] sm:$0xff]
      %v5003 = vld [vmem:[#allocation2 + $0x70] sm:$0xff]
      %v5004 = vld [vmem:[#allocation2 + $0x78] sm:$0xff]
      %v5005 = vld [vmem:[#allocation2 + $0x80] sm:$0xff]
      %v5006 = vld [vmem:[#allocation2 + $0x88] sm:$0xff]
      %v5007 = vld [vmem:[#allocation2 + $0x90] sm:$0xff]
      %v5008 = vld [vmem:[#allocation2 + $0x98] sm:$0xff]
      %v5009 = vld [vmem:[#allocation2 + $0xa0] sm:$0xff]
      %v5010 = vld [vmem:[#allocation2 + $0xa8] sm:$0xff]
      %v5011 = vld [vmem:[#allocation2 + $0xb0] sm:$0xff]
      %v5012 = vld [vmem:[#allocation2 + $0xb8] sm:$0xff]
      %v5013 = vld [vmem:[#allocation2 + $0xc0] sm:$0xff]
      %v5014 = vld [vmem:[#allocation2 + $0xc8] sm:$0xff]
      %v5015 = vld [vmem:[#allocation2 + $0xd0] sm:$0xff]
      %v5016 = vld [vmem:[#allocation2 + $0xd8] sm:$0xff]
      %v5017 = vld [vmem:[#allocation2 + $0xe0] sm:$0xff]
      %v5018 = vld [vmem:[#allocation2 + $0xe8] sm:$0xff]
      %v5019 = vld [vmem:[#allocation2 + $0xf0] sm:$0xff]
      %v5020 = vld [vmem:[#allocation2 + $0xf8] sm:$0xff]
      %v5021 = vld [vmem:[#allocation2 + $0x100] sm:$0xff]
      %v5022 = vld [vmem:[#allocation2 + $0x108] sm:$0xff]
      %v5023 = vld [vmem:[#allocation2 + $0x110] sm:$0xff]
      %v5024 = vld [vmem:[#allocation2 + $0x118] sm:$0xff]
      %v5025 = vadd.f32 %v4989, %v4847
      %v5026 = vadd.f32 %v4990, %v4850
      %v5027 = vadd.f32 %v4991, %v4855
      %v5028 = vadd.f32 %v4992, %v4858
      %v5029 = vadd.f32 %v4993, %v4863
      %v5030 = vadd.f32 %v4994, %v4866
      %v5031 = vadd.f32 %v4995, %v4871
      %v5032 = vadd.f32 %v4996, %v4874
      %v5033 = vadd.f32 %v4997, %v4879
      %v5034 = vadd.f32 %v4998, %v4882
      %v5035 = vadd.f32 %v4999, %v4887
      %v5036 = vadd.f32 %v5000, %v4890
      %v5037 = vadd.f32 %v5001, %v4895
      %v5038 = vadd.f32 %v5002, %v4898
      %v5039 = vadd.f32 %v5003, %v4903
      %v5040 = vadd.f32 %v5004, %v4906
      %v5041 = vadd.f32 %v5005, %v4911
      %v5042 = vadd.f32 %v5006, %v4914
      %v5043 = vadd.f32 %v5007, %v4919
      %v5044 = vadd.f32 %v5008, %v4922
      %v5045 = vadd.f32 %v5009, %v4927
      %v5046 = vadd.f32 %v5010, %v4930
      %v5047 = vadd.f32 %v5011, %v4935
      %v5048 = vadd.f32 %v5012, %v4938
      %v5049 = vadd.f32 %v5013, %v4943
      %v5050 = vadd.f32 %v5014, %v4946
      %v5051 = vadd.f32 %v5015, %v4951
      %v5052 = vadd.f32 %v5016, %v4954
      %v5053 = vadd.f32 %v5017, %v4959
      %v5054 = vadd.f32 %v5018, %v4962
      %v5055 = vadd.f32 %v5019, %v4967
      %v5056 = vadd.f32 %v5020, %v4970
      %v5057 = vadd.f32 %v5021, %v4975
      %v5058 = vadd.f32 %v5022, %v4978
      %v5059 = vadd.f32 %v5023, %v4983
      %v5060 = vadd.f32 %v5024, %v4986
      %5061 = vst.msk [vmem:[#allocation2] sm:$0xff] %vm589, %v5025
      %5062 = vst.msk [vmem:[#allocation2 + $0x8] sm:$0xff] %vm589, %v5026
      %5063 = vst.msk [vmem:[#allocation2 + $0x10] sm:$0xff] %vm589, %v5027
      %5064 = vst.msk [vmem:[#allocation2 + $0x18] sm:$0xff] %vm589, %v5028
      %5065 = vst.msk [vmem:[#allocation2 + $0x20] sm:$0xff] %vm589, %v5029
      %5066 = vst.msk [vmem:[#allocation2 + $0x28] sm:$0xff] %vm589, %v5030
      %5067 = vst.msk [vmem:[#allocation2 + $0x30] sm:$0xff] %vm589, %v5031
      %5068 = vst.msk [vmem:[#allocation2 + $0x38] sm:$0xff] %vm589, %v5032
      %5069 = vst.msk [vmem:[#allocation2 + $0x40] sm:$0xff] %vm589, %v5033
      %5070 = vst.msk [vmem:[#allocation2 + $0x48] sm:$0xff] %vm589, %v5034
      %5071 = vst.msk [vmem:[#allocation2 + $0x50] sm:$0xff] %vm589, %v5035
      %5072 = vst.msk [vmem:[#allocation2 + $0x58] sm:$0xff] %vm589, %v5036
      %5073 = vst.msk [vmem:[#allocation2 + $0x60] sm:$0xff] %vm589, %v5037
      %5074 = vst.msk [vmem:[#allocation2 + $0x68] sm:$0xff] %vm589, %v5038
      %5075 = vst.msk [vmem:[#allocation2 + $0x70] sm:$0xff] %vm589, %v5039
      %5076 = vst.msk [vmem:[#allocation2 + $0x78] sm:$0xff] %vm589, %v5040
      %5077 = vst.msk [vmem:[#allocation2 + $0x80] sm:$0xff] %vm589, %v5041
      %5078 = vst.msk [vmem:[#allocation2 + $0x88] sm:$0xff] %vm589, %v5042
      %5079 = vst.msk [vmem:[#allocation2 + $0x90] sm:$0xff] %vm589, %v5043
      %5080 = vst.msk [vmem:[#allocation2 + $0x98] sm:$0xff] %vm589, %v5044
      %5081 = vst.msk [vmem:[#allocation2 + $0xa0] sm:$0xff] %vm589, %v5045
      %5082 = vst.msk [vmem:[#allocation2 + $0xa8] sm:$0xff] %vm589, %v5046
      %5083 = vst.msk [vmem:[#allocation2 + $0xb0] sm:$0xff] %vm589, %v5047
      %5084 = vst.msk [vmem:[#allocation2 + $0xb8] sm:$0xff] %vm589, %v5048
      %5085 = vst.msk [vmem:[#allocation2 + $0xc0] sm:$0xff] %vm589, %v5049
      %5086 = vst.msk [vmem:[#allocation2 + $0xc8] sm:$0xff] %vm589, %v5050
      %5087 = vst.msk [vmem:[#allocation2 + $0xd0] sm:$0xff] %vm589, %v5051
      %5088 = vst.msk [vmem:[#allocation2 + $0xd8] sm:$0xff] %vm589, %v5052
      %5089 = vst.msk [vmem:[#allocation2 + $0xe0] sm:$0xff] %vm589, %v5053
      %5090 = vst.msk [vmem:[#allocation2 + $0xe8] sm:$0xff] %vm589, %v5054
      %5091 = vst.msk [vmem:[#allocation2 + $0xf0] sm:$0xff] %vm589, %v5055
      %5092 = vst.msk [vmem:[#allocation2 + $0xf8] sm:$0xff] %vm589, %v5056
      %5093 = vst.msk [vmem:[#allocation2 + $0x100] sm:$0xff] %vm589, %v5057
      %5094 = vst.msk [vmem:[#allocation2 + $0x108] sm:$0xff] %vm589, %v5058
      %5095 = vst.msk [vmem:[#allocation2 + $0x110] sm:$0xff] %vm589, %v5059
      %5096 = vst.msk [vmem:[#allocation2 + $0x118] sm:$0xff] %vm589, %v5060
      %v5097 = vlaneseq
      %v5098 = vshrl.u32 %v5097, 7
      %v5099 = vadd.s32 %v5098, 8
      %v5100 = vadd.s32 %v5098, 16
      %v5101 = vadd.s32 %v5098, 24
      %v5102 = vadd.s32 %v5098, 32
      %v5103 = vadd.s32 %v5098, 40
      %v5104 = vadd.s32 %v5098, 48
      %v5105 = vadd.s32 %v5098, 56
      %v5106 = vadd.s32 %v5098, 64
      %v5107 = vadd.s32 %v5098, 72
      %v5108 = vadd.s32 %v5098, 80
      %v5109 = vadd.s32 %v5098, 88
      %v5110 = vadd.s32 %v5098, 96
      %v5111 = vadd.s32 %v5098, 104
      %v5112 = vadd.s32 %v5098, 112
      %v5113 = vadd.s32 %v5098, 120
      %v5114 = vadd.s32 %v5098, 128
      %v5115 = vadd.s32 %v5098, 136
      %v5116 = vadd.s32 %v5098, 144
      %v5117 = vadd.s32 %v5098, 152
      %v5118 = vadd.s32 %v5098, 160
      %v5119 = vadd.s32 %v5098, 168
      %v5120 = vadd.s32 %v5098, 176
      %v5121 = vadd.s32 %v5098, 184
      %v5122 = vadd.s32 %v5098, 192
      %v5123 = vadd.s32 %v5098, 200
      %v5124 = vadd.s32 %v5098, 208
      %v5125 = vadd.s32 %v5098, 216
      %v5126 = vadd.s32 %v5098, 224
      %v5127 = vadd.s32 %v5098, 232
      %v5128 = vadd.s32 %v5098, 240
      %v5129 = vadd.s32 %v5098, 248
      %v5130 = vadd.s32 %v5098, 256
      %v5131 = vadd.s32 %v5098, 264
      %v5132 = vadd.s32 %v5098, 272
      %v5133 = vadd.s32 %v5098, 280
      %vm5134 = vcmp.lt.s32.totalorder %v5098, 0
      %v5135 = vsub.s32 0, %v5098
      %v5136 = vsel %vm5134, %v5135, %v5098
      %v5137 = vmul.u32.u64.compose %v5136, 3817748708
      %v5138 = vextract.low.u32 %v5137
      %v5139 = vextract.high.u32 %v5137
      %v5140 = vshrl.u32 %v5139, 4
      %v5141 = vmul.u32 %v5140, 18
      %v5142 = vsub.s32 %v5136, %v5141
      %v5143 = vsub.s32 0, %v5142
      %v5144 = vsel %vm5134, %v5143, %v5142
      %vm5145 = vcmp.lt.s32.totalorder %v5099, 0
      %v5146 = vsub.s32 0, %v5099
      %v5147 = vsel %vm5145, %v5146, %v5099
      %v5148 = vmul.u32.u64.compose %v5147, 3817748708
      %v5149 = vextract.low.u32 %v5148
      %v5150 = vextract.high.u32 %v5148
      %v5151 = vshrl.u32 %v5150, 4
      %v5152 = vmul.u32 %v5151, 18
      %v5153 = vsub.s32 %v5147, %v5152
      %v5154 = vsub.s32 0, %v5153
      %v5155 = vsel %vm5145, %v5154, %v5153
      %vm5156 = vcmp.lt.s32.totalorder %v5100, 0
      %v5157 = vsub.s32 0, %v5100
      %v5158 = vsel %vm5156, %v5157, %v5100
      %v5159 = vmul.u32.u64.compose %v5158, 3817748708
      %v5160 = vextract.low.u32 %v5159
      %v5161 = vextract.high.u32 %v5159
      %v5162 = vshrl.u32 %v5161, 4
      %v5163 = vmul.u32 %v5162, 18
      %v5164 = vsub.s32 %v5158, %v5163
      %v5165 = vsub.s32 0, %v5164
      %v5166 = vsel %vm5156, %v5165, %v5164
      %vm5167 = vcmp.lt.s32.totalorder %v5101, 0
      %v5168 = vsub.s32 0, %v5101
      %v5169 = vsel %vm5167, %v5168, %v5101
      %v5170 = vmul.u32.u64.compose %v5169, 3817748708
      %v5171 = vextract.low.u32 %v5170
      %v5172 = vextract.high.u32 %v5170
      %v5173 = vshrl.u32 %v5172, 4
      %v5174 = vmul.u32 %v5173, 18
      %v5175 = vsub.s32 %v5169, %v5174
      %v5176 = vsub.s32 0, %v5175
      %v5177 = vsel %vm5167, %v5176, %v5175
      %vm5178 = vcmp.lt.s32.totalorder %v5102, 0
      %v5179 = vsub.s32 0, %v5102
      %v5180 = vsel %vm5178, %v5179, %v5102
      %v5181 = vmul.u32.u64.compose %v5180, 3817748708
      %v5182 = vextract.low.u32 %v5181
      %v5183 = vextract.high.u32 %v5181
      %v5184 = vshrl.u32 %v5183, 4
      %v5185 = vmul.u32 %v5184, 18
      %v5186 = vsub.s32 %v5180, %v5185
      %v5187 = vsub.s32 0, %v5186
      %v5188 = vsel %vm5178, %v5187, %v5186
      %vm5189 = vcmp.lt.s32.totalorder %v5103, 0
      %v5190 = vsub.s32 0, %v5103
      %v5191 = vsel %vm5189, %v5190, %v5103
      %v5192 = vmul.u32.u64.compose %v5191, 3817748708
      %v5193 = vextract.low.u32 %v5192
      %v5194 = vextract.high.u32 %v5192
      %v5195 = vshrl.u32 %v5194, 4
      %v5196 = vmul.u32 %v5195, 18
      %v5197 = vsub.s32 %v5191, %v5196
      %v5198 = vsub.s32 0, %v5197
      %v5199 = vsel %vm5189, %v5198, %v5197
      %vm5200 = vcmp.lt.s32.totalorder %v5104, 0
      %v5201 = vsub.s32 0, %v5104
      %v5202 = vsel %vm5200, %v5201, %v5104
      %v5203 = vmul.u32.u64.compose %v5202, 3817748708
      %v5204 = vextract.low.u32 %v5203
      %v5205 = vextract.high.u32 %v5203
      %v5206 = vshrl.u32 %v5205, 4
      %v5207 = vmul.u32 %v5206, 18
      %v5208 = vsub.s32 %v5202, %v5207
      %v5209 = vsub.s32 0, %v5208
      %v5210 = vsel %vm5200, %v5209, %v5208
      %vm5211 = vcmp.lt.s32.totalorder %v5105, 0
      %v5212 = vsub.s32 0, %v5105
      %v5213 = vsel %vm5211, %v5212, %v5105
      %v5214 = vmul.u32.u64.compose %v5213, 3817748708
      %v5215 = vextract.low.u32 %v5214
      %v5216 = vextract.high.u32 %v5214
      %v5217 = vshrl.u32 %v5216, 4
      %v5218 = vmul.u32 %v5217, 18
      %v5219 = vsub.s32 %v5213, %v5218
      %v5220 = vsub.s32 0, %v5219
      %v5221 = vsel %vm5211, %v5220, %v5219
      %vm5222 = vcmp.lt.s32.totalorder %v5106, 0
      %v5223 = vsub.s32 0, %v5106
      %v5224 = vsel %vm5222, %v5223, %v5106
      %v5225 = vmul.u32.u64.compose %v5224, 3817748708
      %v5226 = vextract.low.u32 %v5225
      %v5227 = vextract.high.u32 %v5225
      %v5228 = vshrl.u32 %v5227, 4
      %v5229 = vmul.u32 %v5228, 18
      %v5230 = vsub.s32 %v5224, %v5229
      %v5231 = vsub.s32 0, %v5230
      %v5232 = vsel %vm5222, %v5231, %v5230
      %vm5233 = vcmp.lt.s32.totalorder %v5107, 0
      %v5234 = vsub.s32 0, %v5107
      %v5235 = vsel %vm5233, %v5234, %v5107
      %v5236 = vmul.u32.u64.compose %v5235, 3817748708
      %v5237 = vextract.low.u32 %v5236
      %v5238 = vextract.high.u32 %v5236
      %v5239 = vshrl.u32 %v5238, 4
      %v5240 = vmul.u32 %v5239, 18
      %v5241 = vsub.s32 %v5235, %v5240
      %v5242 = vsub.s32 0, %v5241
      %v5243 = vsel %vm5233, %v5242, %v5241
      %vm5244 = vcmp.lt.s32.totalorder %v5108, 0
      %v5245 = vsub.s32 0, %v5108
      %v5246 = vsel %vm5244, %v5245, %v5108
      %v5247 = vmul.u32.u64.compose %v5246, 3817748708
      %v5248 = vextract.low.u32 %v5247
      %v5249 = vextract.high.u32 %v5247
      %v5250 = vshrl.u32 %v5249, 4
      %v5251 = vmul.u32 %v5250, 18
      %v5252 = vsub.s32 %v5246, %v5251
      %v5253 = vsub.s32 0, %v5252
      %v5254 = vsel %vm5244, %v5253, %v5252
      %vm5255 = vcmp.lt.s32.totalorder %v5109, 0
      %v5256 = vsub.s32 0, %v5109
      %v5257 = vsel %vm5255, %v5256, %v5109
      %v5258 = vmul.u32.u64.compose %v5257, 3817748708
      %v5259 = vextract.low.u32 %v5258
      %v5260 = vextract.high.u32 %v5258
      %v5261 = vshrl.u32 %v5260, 4
      %v5262 = vmul.u32 %v5261, 18
      %v5263 = vsub.s32 %v5257, %v5262
      %v5264 = vsub.s32 0, %v5263
      %v5265 = vsel %vm5255, %v5264, %v5263
      %vm5266 = vcmp.lt.s32.totalorder %v5110, 0
      %v5267 = vsub.s32 0, %v5110
      %v5268 = vsel %vm5266, %v5267, %v5110
      %v5269 = vmul.u32.u64.compose %v5268, 3817748708
      %v5270 = vextract.low.u32 %v5269
      %v5271 = vextract.high.u32 %v5269
      %v5272 = vshrl.u32 %v5271, 4
      %v5273 = vmul.u32 %v5272, 18
      %v5274 = vsub.s32 %v5268, %v5273
      %v5275 = vsub.s32 0, %v5274
      %v5276 = vsel %vm5266, %v5275, %v5274
      %vm5277 = vcmp.lt.s32.totalorder %v5111, 0
      %v5278 = vsub.s32 0, %v5111
      %v5279 = vsel %vm5277, %v5278, %v5111
      %v5280 = vmul.u32.u64.compose %v5279, 3817748708
      %v5281 = vextract.low.u32 %v5280
      %v5282 = vextract.high.u32 %v5280
      %v5283 = vshrl.u32 %v5282, 4
      %v5284 = vmul.u32 %v5283, 18
      %v5285 = vsub.s32 %v5279, %v5284
      %v5286 = vsub.s32 0, %v5285
      %v5287 = vsel %vm5277, %v5286, %v5285
      %vm5288 = vcmp.lt.s32.totalorder %v5112, 0
      %v5289 = vsub.s32 0, %v5112
      %v5290 = vsel %vm5288, %v5289, %v5112
      %v5291 = vmul.u32.u64.compose %v5290, 3817748708
      %v5292 = vextract.low.u32 %v5291
      %v5293 = vextract.high.u32 %v5291
      %v5294 = vshrl.u32 %v5293, 4
      %v5295 = vmul.u32 %v5294, 18
      %v5296 = vsub.s32 %v5290, %v5295
      %v5297 = vsub.s32 0, %v5296
      %v5298 = vsel %vm5288, %v5297, %v5296
      %vm5299 = vcmp.lt.s32.totalorder %v5113, 0
      %v5300 = vsub.s32 0, %v5113
      %v5301 = vsel %vm5299, %v5300, %v5113
      %v5302 = vmul.u32.u64.compose %v5301, 3817748708
      %v5303 = vextract.low.u32 %v5302
      %v5304 = vextract.high.u32 %v5302
      %v5305 = vshrl.u32 %v5304, 4
      %v5306 = vmul.u32 %v5305, 18
      %v5307 = vsub.s32 %v5301, %v5306
      %v5308 = vsub.s32 0, %v5307
      %v5309 = vsel %vm5299, %v5308, %v5307
      %vm5310 = vcmp.lt.s32.totalorder %v5114, 0
      %v5311 = vsub.s32 0, %v5114
      %v5312 = vsel %vm5310, %v5311, %v5114
      %v5313 = vmul.u32.u64.compose %v5312, 3817748708
      %v5314 = vextract.low.u32 %v5313
      %v5315 = vextract.high.u32 %v5313
      %v5316 = vshrl.u32 %v5315, 4
      %v5317 = vmul.u32 %v5316, 18
      %v5318 = vsub.s32 %v5312, %v5317
      %v5319 = vsub.s32 0, %v5318
      %v5320 = vsel %vm5310, %v5319, %v5318
      %vm5321 = vcmp.lt.s32.totalorder %v5115, 0
      %v5322 = vsub.s32 0, %v5115
      %v5323 = vsel %vm5321, %v5322, %v5115
      %v5324 = vmul.u32.u64.compose %v5323, 3817748708
      %v5325 = vextract.low.u32 %v5324
      %v5326 = vextract.high.u32 %v5324
      %v5327 = vshrl.u32 %v5326, 4
      %v5328 = vmul.u32 %v5327, 18
      %v5329 = vsub.s32 %v5323, %v5328
      %v5330 = vsub.s32 0, %v5329
      %v5331 = vsel %vm5321, %v5330, %v5329
      %vm5332 = vcmp.lt.s32.totalorder %v5116, 0
      %v5333 = vsub.s32 0, %v5116
      %v5334 = vsel %vm5332, %v5333, %v5116
      %v5335 = vmul.u32.u64.compose %v5334, 3817748708
      %v5336 = vextract.low.u32 %v5335
      %v5337 = vextract.high.u32 %v5335
      %v5338 = vshrl.u32 %v5337, 4
      %v5339 = vmul.u32 %v5338, 18
      %v5340 = vsub.s32 %v5334, %v5339
      %v5341 = vsub.s32 0, %v5340
      %v5342 = vsel %vm5332, %v5341, %v5340
      %vm5343 = vcmp.lt.s32.totalorder %v5117, 0
      %v5344 = vsub.s32 0, %v5117
      %v5345 = vsel %vm5343, %v5344, %v5117
      %v5346 = vmul.u32.u64.compose %v5345, 3817748708
      %v5347 = vextract.low.u32 %v5346
      %v5348 = vextract.high.u32 %v5346
      %v5349 = vshrl.u32 %v5348, 4
      %v5350 = vmul.u32 %v5349, 18
      %v5351 = vsub.s32 %v5345, %v5350
      %v5352 = vsub.s32 0, %v5351
      %v5353 = vsel %vm5343, %v5352, %v5351
      %vm5354 = vcmp.lt.s32.totalorder %v5118, 0
      %v5355 = vsub.s32 0, %v5118
      %v5356 = vsel %vm5354, %v5355, %v5118
      %v5357 = vmul.u32.u64.compose %v5356, 3817748708
      %v5358 = vextract.low.u32 %v5357
      %v5359 = vextract.high.u32 %v5357
      %v5360 = vshrl.u32 %v5359, 4
      %v5361 = vmul.u32 %v5360, 18
      %v5362 = vsub.s32 %v5356, %v5361
      %v5363 = vsub.s32 0, %v5362
      %v5364 = vsel %vm5354, %v5363, %v5362
      %vm5365 = vcmp.lt.s32.totalorder %v5119, 0
      %v5366 = vsub.s32 0, %v5119
      %v5367 = vsel %vm5365, %v5366, %v5119
      %v5368 = vmul.u32.u64.compose %v5367, 3817748708
      %v5369 = vextract.low.u32 %v5368
      %v5370 = vextract.high.u32 %v5368
      %v5371 = vshrl.u32 %v5370, 4
      %v5372 = vmul.u32 %v5371, 18
      %v5373 = vsub.s32 %v5367, %v5372
      %v5374 = vsub.s32 0, %v5373
      %v5375 = vsel %vm5365, %v5374, %v5373
      %vm5376 = vcmp.lt.s32.totalorder %v5120, 0
      %v5377 = vsub.s32 0, %v5120
      %v5378 = vsel %vm5376, %v5377, %v5120
      %v5379 = vmul.u32.u64.compose %v5378, 3817748708
      %v5380 = vextract.low.u32 %v5379
      %v5381 = vextract.high.u32 %v5379
      %v5382 = vshrl.u32 %v5381, 4
      %v5383 = vmul.u32 %v5382, 18
      %v5384 = vsub.s32 %v5378, %v5383
      %v5385 = vsub.s32 0, %v5384
      %v5386 = vsel %vm5376, %v5385, %v5384
      %vm5387 = vcmp.lt.s32.totalorder %v5121, 0
      %v5388 = vsub.s32 0, %v5121
      %v5389 = vsel %vm5387, %v5388, %v5121
      %v5390 = vmul.u32.u64.compose %v5389, 3817748708
      %v5391 = vextract.low.u32 %v5390
      %v5392 = vextract.high.u32 %v5390
      %v5393 = vshrl.u32 %v5392, 4
      %v5394 = vmul.u32 %v5393, 18
      %v5395 = vsub.s32 %v5389, %v5394
      %v5396 = vsub.s32 0, %v5395
      %v5397 = vsel %vm5387, %v5396, %v5395
      %vm5398 = vcmp.lt.s32.totalorder %v5122, 0
      %v5399 = vsub.s32 0, %v5122
      %v5400 = vsel %vm5398, %v5399, %v5122
      %v5401 = vmul.u32.u64.compose %v5400, 3817748708
      %v5402 = vextract.low.u32 %v5401
      %v5403 = vextract.high.u32 %v5401
      %v5404 = vshrl.u32 %v5403, 4
      %v5405 = vmul.u32 %v5404, 18
      %v5406 = vsub.s32 %v5400, %v5405
      %v5407 = vsub.s32 0, %v5406
      %v5408 = vsel %vm5398, %v5407, %v5406
      %vm5409 = vcmp.lt.s32.totalorder %v5123, 0
      %v5410 = vsub.s32 0, %v5123
      %v5411 = vsel %vm5409, %v5410, %v5123
      %v5412 = vmul.u32.u64.compose %v5411, 3817748708
      %v5413 = vextract.low.u32 %v5412
      %v5414 = vextract.high.u32 %v5412
      %v5415 = vshrl.u32 %v5414, 4
      %v5416 = vmul.u32 %v5415, 18
      %v5417 = vsub.s32 %v5411, %v5416
      %v5418 = vsub.s32 0, %v5417
      %v5419 = vsel %vm5409, %v5418, %v5417
      %vm5420 = vcmp.lt.s32.totalorder %v5124, 0
      %v5421 = vsub.s32 0, %v5124
      %v5422 = vsel %vm5420, %v5421, %v5124
      %v5423 = vmul.u32.u64.compose %v5422, 3817748708
      %v5424 = vextract.low.u32 %v5423
      %v5425 = vextract.high.u32 %v5423
      %v5426 = vshrl.u32 %v5425, 4
      %v5427 = vmul.u32 %v5426, 18
      %v5428 = vsub.s32 %v5422, %v5427
      %v5429 = vsub.s32 0, %v5428
      %v5430 = vsel %vm5420, %v5429, %v5428
      %vm5431 = vcmp.lt.s32.totalorder %v5125, 0
      %v5432 = vsub.s32 0, %v5125
      %v5433 = vsel %vm5431, %v5432, %v5125
      %v5434 = vmul.u32.u64.compose %v5433, 3817748708
      %v5435 = vextract.low.u32 %v5434
      %v5436 = vextract.high.u32 %v5434
      %v5437 = vshrl.u32 %v5436, 4
      %v5438 = vmul.u32 %v5437, 18
      %v5439 = vsub.s32 %v5433, %v5438
      %v5440 = vsub.s32 0, %v5439
      %v5441 = vsel %vm5431, %v5440, %v5439
      %vm5442 = vcmp.lt.s32.totalorder %v5126, 0
      %v5443 = vsub.s32 0, %v5126
      %v5444 = vsel %vm5442, %v5443, %v5126
      %v5445 = vmul.u32.u64.compose %v5444, 3817748708
      %v5446 = vextract.low.u32 %v5445
      %v5447 = vextract.high.u32 %v5445
      %v5448 = vshrl.u32 %v5447, 4
      %v5449 = vmul.u32 %v5448, 18
      %v5450 = vsub.s32 %v5444, %v5449
      %v5451 = vsub.s32 0, %v5450
      %v5452 = vsel %vm5442, %v5451, %v5450
      %vm5453 = vcmp.lt.s32.totalorder %v5127, 0
      %v5454 = vsub.s32 0, %v5127
      %v5455 = vsel %vm5453, %v5454, %v5127
      %v5456 = vmul.u32.u64.compose %v5455, 3817748708
      %v5457 = vextract.low.u32 %v5456
      %v5458 = vextract.high.u32 %v5456
      %v5459 = vshrl.u32 %v5458, 4
      %v5460 = vmul.u32 %v5459, 18
      %v5461 = vsub.s32 %v5455, %v5460
      %v5462 = vsub.s32 0, %v5461
      %v5463 = vsel %vm5453, %v5462, %v5461
      %vm5464 = vcmp.lt.s32.totalorder %v5128, 0
      %v5465 = vsub.s32 0, %v5128
      %v5466 = vsel %vm5464, %v5465, %v5128
      %v5467 = vmul.u32.u64.compose %v5466, 3817748708
      %v5468 = vextract.low.u32 %v5467
      %v5469 = vextract.high.u32 %v5467
      %v5470 = vshrl.u32 %v5469, 4
      %v5471 = vmul.u32 %v5470, 18
      %v5472 = vsub.s32 %v5466, %v5471
      %v5473 = vsub.s32 0, %v5472
      %v5474 = vsel %vm5464, %v5473, %v5472
      %vm5475 = vcmp.lt.s32.totalorder %v5129, 0
      %v5476 = vsub.s32 0, %v5129
      %v5477 = vsel %vm5475, %v5476, %v5129
      %v5478 = vmul.u32.u64.compose %v5477, 3817748708
      %v5479 = vextract.low.u32 %v5478
      %v5480 = vextract.high.u32 %v5478
      %v5481 = vshrl.u32 %v5480, 4
      %v5482 = vmul.u32 %v5481, 18
      %v5483 = vsub.s32 %v5477, %v5482
      %v5484 = vsub.s32 0, %v5483
      %v5485 = vsel %vm5475, %v5484, %v5483
      %vm5486 = vcmp.lt.s32.totalorder %v5130, 0
      %v5487 = vsub.s32 0, %v5130
      %v5488 = vsel %vm5486, %v5487, %v5130
      %v5489 = vmul.u32.u64.compose %v5488, 3817748708
      %v5490 = vextract.low.u32 %v5489
      %v5491 = vextract.high.u32 %v5489
      %v5492 = vshrl.u32 %v5491, 4
      %v5493 = vmul.u32 %v5492, 18
      %v5494 = vsub.s32 %v5488, %v5493
      %v5495 = vsub.s32 0, %v5494
      %v5496 = vsel %vm5486, %v5495, %v5494
      %vm5497 = vcmp.lt.s32.totalorder %v5131, 0
      %v5498 = vsub.s32 0, %v5131
      %v5499 = vsel %vm5497, %v5498, %v5131
      %v5500 = vmul.u32.u64.compose %v5499, 3817748708
      %v5501 = vextract.low.u32 %v5500
      %v5502 = vextract.high.u32 %v5500
      %v5503 = vshrl.u32 %v5502, 4
      %v5504 = vmul.u32 %v5503, 18
      %v5505 = vsub.s32 %v5499, %v5504
      %v5506 = vsub.s32 0, %v5505
      %v5507 = vsel %vm5497, %v5506, %v5505
      %vm5508 = vcmp.lt.s32.totalorder %v5132, 0
      %v5509 = vsub.s32 0, %v5132
      %v5510 = vsel %vm5508, %v5509, %v5132
      %v5511 = vmul.u32.u64.compose %v5510, 3817748708
      %v5512 = vextract.low.u32 %v5511
      %v5513 = vextract.high.u32 %v5511
      %v5514 = vshrl.u32 %v5513, 4
      %v5515 = vmul.u32 %v5514, 18
      %v5516 = vsub.s32 %v5510, %v5515
      %v5517 = vsub.s32 0, %v5516
      %v5518 = vsel %vm5508, %v5517, %v5516
      %vm5519 = vcmp.lt.s32.totalorder %v5133, 0
      %v5520 = vsub.s32 0, %v5133
      %v5521 = vsel %vm5519, %v5520, %v5133
      %v5522 = vmul.u32.u64.compose %v5521, 3817748708
      %v5523 = vextract.low.u32 %v5522
      %v5524 = vextract.high.u32 %v5522
      %v5525 = vshrl.u32 %v5524, 4
      %v5526 = vmul.u32 %v5525, 18
      %v5527 = vsub.s32 %v5521, %v5526
      %v5528 = vsub.s32 0, %v5527
      %v5529 = vsel %vm5519, %v5528, %v5527
      %vm5530 = vcmp.ne.s32.totalorder %v5144, 0
      %vm5531 = vcmp.ne.s32.totalorder %v5155, 0
      %vm5532 = vcmp.ne.s32.totalorder %v5166, 0
      %vm5533 = vcmp.ne.s32.totalorder %v5177, 0
      %vm5534 = vcmp.ne.s32.totalorder %v5188, 0
      %vm5535 = vcmp.ne.s32.totalorder %v5199, 0
      %vm5536 = vcmp.ne.s32.totalorder %v5210, 0
      %vm5537 = vcmp.ne.s32.totalorder %v5221, 0
      %vm5538 = vcmp.ne.s32.totalorder %v5232, 0
      %vm5539 = vcmp.ne.s32.totalorder %v5243, 0
      %vm5540 = vcmp.ne.s32.totalorder %v5254, 0
      %vm5541 = vcmp.ne.s32.totalorder %v5265, 0
      %vm5542 = vcmp.ne.s32.totalorder %v5276, 0
      %vm5543 = vcmp.ne.s32.totalorder %v5287, 0
      %vm5544 = vcmp.ne.s32.totalorder %v5298, 0
      %vm5545 = vcmp.ne.s32.totalorder %v5309, 0
      %vm5546 = vcmp.ne.s32.totalorder %v5320, 0
      %vm5547 = vcmp.ne.s32.totalorder %v5331, 0
      %vm5548 = vcmp.ne.s32.totalorder %v5342, 0
      %vm5549 = vcmp.ne.s32.totalorder %v5353, 0
      %vm5550 = vcmp.ne.s32.totalorder %v5364, 0
      %vm5551 = vcmp.ne.s32.totalorder %v5375, 0
      %vm5552 = vcmp.ne.s32.totalorder %v5386, 0
      %vm5553 = vcmp.ne.s32.totalorder %v5397, 0
      %vm5554 = vcmp.ne.s32.totalorder %v5408, 0
      %vm5555 = vcmp.ne.s32.totalorder %v5419, 0
      %vm5556 = vcmp.ne.s32.totalorder %v5430, 0
      %vm5557 = vcmp.ne.s32.totalorder %v5441, 0
      %vm5558 = vcmp.ne.s32.totalorder %v5452, 0
      %vm5559 = vcmp.ne.s32.totalorder %v5463, 0
      %vm5560 = vcmp.ne.s32.totalorder %v5474, 0
      %vm5561 = vcmp.ne.s32.totalorder %v5485, 0
      %vm5562 = vcmp.ne.s32.totalorder %v5496, 0
      %vm5563 = vcmp.ne.s32.totalorder %v5507, 0
      %vm5564 = vcmp.ne.s32.totalorder %v5518, 0
      %vm5565 = vcmp.ne.s32.totalorder %v5529, 0
      %vm5566 = vcmp.lt.s32.totalorder %v5144, 0
      %vm5567 = vcmp.lt.s32.totalorder %v5155, 0
      %vm5568 = vcmp.lt.s32.totalorder %v5166, 0
      %vm5569 = vcmp.lt.s32.totalorder %v5177, 0
      %vm5570 = vcmp.lt.s32.totalorder %v5188, 0
      %vm5571 = vcmp.lt.s32.totalorder %v5199, 0
      %vm5572 = vcmp.lt.s32.totalorder %v5210, 0
      %vm5573 = vcmp.lt.s32.totalorder %v5221, 0
      %vm5574 = vcmp.lt.s32.totalorder %v5232, 0
      %vm5575 = vcmp.lt.s32.totalorder %v5243, 0
      %vm5576 = vcmp.lt.s32.totalorder %v5254, 0
      %vm5577 = vcmp.lt.s32.totalorder %v5265, 0
      %vm5578 = vcmp.lt.s32.totalorder %v5276, 0
      %vm5579 = vcmp.lt.s32.totalorder %v5287, 0
      %vm5580 = vcmp.lt.s32.totalorder %v5298, 0
      %vm5581 = vcmp.lt.s32.totalorder %v5309, 0
      %vm5582 = vcmp.lt.s32.totalorder %v5320, 0
      %vm5583 = vcmp.lt.s32.totalorder %v5331, 0
      %vm5584 = vcmp.lt.s32.totalorder %v5342, 0
      %vm5585 = vcmp.lt.s32.totalorder %v5353, 0
      %vm5586 = vcmp.lt.s32.totalorder %v5364, 0
      %vm5587 = vcmp.lt.s32.totalorder %v5375, 0
      %vm5588 = vcmp.lt.s32.totalorder %v5386, 0
      %vm5589 = vcmp.lt.s32.totalorder %v5397, 0
      %vm5590 = vcmp.lt.s32.totalorder %v5408, 0
      %vm5591 = vcmp.lt.s32.totalorder %v5419, 0
      %vm5592 = vcmp.lt.s32.totalorder %v5430, 0
      %vm5593 = vcmp.lt.s32.totalorder %v5441, 0
      %vm5594 = vcmp.lt.s32.totalorder %v5452, 0
      %vm5595 = vcmp.lt.s32.totalorder %v5463, 0
      %vm5596 = vcmp.lt.s32.totalorder %v5474, 0
      %vm5597 = vcmp.lt.s32.totalorder %v5485, 0
      %vm5598 = vcmp.lt.s32.totalorder %v5496, 0
      %vm5599 = vcmp.lt.s32.totalorder %v5507, 0
      %vm5600 = vcmp.lt.s32.totalorder %v5518, 0
      %vm5601 = vcmp.lt.s32.totalorder %v5529, 0
      %vm5602 = vmand %vm5566, %vm5530
      %vm5603 = vmand %vm5567, %vm5531
      %vm5604 = vmand %vm5568, %vm5532
      %vm5605 = vmand %vm5569, %vm5533
      %vm5606 = vmand %vm5570, %vm5534
      %vm5607 = vmand %vm5571, %vm5535
      %vm5608 = vmand %vm5572, %vm5536
      %vm5609 = vmand %vm5573, %vm5537
      %vm5610 = vmand %vm5574, %vm5538
      %vm5611 = vmand %vm5575, %vm5539
      %vm5612 = vmand %vm5576, %vm5540
      %vm5613 = vmand %vm5577, %vm5541
      %vm5614 = vmand %vm5578, %vm5542
      %vm5615 = vmand %vm5579, %vm5543
      %vm5616 = vmand %vm5580, %vm5544
      %vm5617 = vmand %vm5581, %vm5545
      %vm5618 = vmand %vm5582, %vm5546
      %vm5619 = vmand %vm5583, %vm5547
      %vm5620 = vmand %vm5584, %vm5548
      %vm5621 = vmand %vm5585, %vm5549
      %vm5622 = vmand %vm5586, %vm5550
      %vm5623 = vmand %vm5587, %vm5551
      %vm5624 = vmand %vm5588, %vm5552
      %vm5625 = vmand %vm5589, %vm5553
      %vm5626 = vmand %vm5590, %vm5554
      %vm5627 = vmand %vm5591, %vm5555
      %vm5628 = vmand %vm5592, %vm5556
      %vm5629 = vmand %vm5593, %vm5557
      %vm5630 = vmand %vm5594, %vm5558
      %vm5631 = vmand %vm5595, %vm5559
      %vm5632 = vmand %vm5596, %vm5560
      %vm5633 = vmand %vm5597, %vm5561
      %vm5634 = vmand %vm5598, %vm5562
      %vm5635 = vmand %vm5599, %vm5563
      %vm5636 = vmand %vm5600, %vm5564
      %vm5637 = vmand %vm5601, %vm5565
      %v5638 = vadd.s32 %v5144, 18
      %v5639 = vadd.s32 %v5155, 18
      %v5640 = vadd.s32 %v5166, 18
      %v5641 = vadd.s32 %v5177, 18
      %v5642 = vadd.s32 %v5188, 18
      %v5643 = vadd.s32 %v5199, 18
      %v5644 = vadd.s32 %v5210, 18
      %v5645 = vadd.s32 %v5221, 18
      %v5646 = vadd.s32 %v5232, 18
      %v5647 = vadd.s32 %v5243, 18
      %v5648 = vadd.s32 %v5254, 18
      %v5649 = vadd.s32 %v5265, 18
      %v5650 = vadd.s32 %v5276, 18
      %v5651 = vadd.s32 %v5287, 18
      %v5652 = vadd.s32 %v5298, 18
      %v5653 = vadd.s32 %v5309, 18
      %v5654 = vadd.s32 %v5320, 18
      %v5655 = vadd.s32 %v5331, 18
      %v5656 = vadd.s32 %v5342, 18
      %v5657 = vadd.s32 %v5353, 18
      %v5658 = vadd.s32 %v5364, 18
      %v5659 = vadd.s32 %v5375, 18
      %v5660 = vadd.s32 %v5386, 18
      %v5661 = vadd.s32 %v5397, 18
      %v5662 = vadd.s32 %v5408, 18
      %v5663 = vadd.s32 %v5419, 18
      %v5664 = vadd.s32 %v5430, 18
      %v5665 = vadd.s32 %v5441, 18
      %v5666 = vadd.s32 %v5452, 18
      %v5667 = vadd.s32 %v5463, 18
      %v5668 = vadd.s32 %v5474, 18
      %v5669 = vadd.s32 %v5485, 18
      %v5670 = vadd.s32 %v5496, 18
      %v5671 = vadd.s32 %v5507, 18
      %v5672 = vadd.s32 %v5518, 18
      %v5673 = vadd.s32 %v5529, 18
      %v5674 = vsel %vm5602, %v5638, %v5144
      %v5675 = vsel %vm5603, %v5639, %v5155
      %v5676 = vsel %vm5604, %v5640, %v5166
      %v5677 = vsel %vm5605, %v5641, %v5177
      %v5678 = vsel %vm5606, %v5642, %v5188
      %v5679 = vsel %vm5607, %v5643, %v5199
      %v5680 = vsel %vm5608, %v5644, %v5210
      %v5681 = vsel %vm5609, %v5645, %v5221
      %v5682 = vsel %vm5610, %v5646, %v5232
      %v5683 = vsel %vm5611, %v5647, %v5243
      %v5684 = vsel %vm5612, %v5648, %v5254
      %v5685 = vsel %vm5613, %v5649, %v5265
      %v5686 = vsel %vm5614, %v5650, %v5276
      %v5687 = vsel %vm5615, %v5651, %v5287
      %v5688 = vsel %vm5616, %v5652, %v5298
      %v5689 = vsel %vm5617, %v5653, %v5309
      %v5690 = vsel %vm5618, %v5654, %v5320
      %v5691 = vsel %vm5619, %v5655, %v5331
      %v5692 = vsel %vm5620, %v5656, %v5342
      %v5693 = vsel %vm5621, %v5657, %v5353
      %v5694 = vsel %vm5622, %v5658, %v5364
      %v5695 = vsel %vm5623, %v5659, %v5375
      %v5696 = vsel %vm5624, %v5660, %v5386
      %v5697 = vsel %vm5625, %v5661, %v5397
      %v5698 = vsel %vm5626, %v5662, %v5408
      %v5699 = vsel %vm5627, %v5663, %v5419
      %v5700 = vsel %vm5628, %v5664, %v5430
      %v5701 = vsel %vm5629, %v5665, %v5441
      %v5702 = vsel %vm5630, %v5666, %v5452
      %v5703 = vsel %vm5631, %v5667, %v5463
      %v5704 = vsel %vm5632, %v5668, %v5474
      %v5705 = vsel %vm5633, %v5669, %v5485
      %v5706 = vsel %vm5634, %v5670, %v5496
      %v5707 = vsel %vm5635, %v5671, %v5507
      %v5708 = vsel %vm5636, %v5672, %v5518
      %v5709 = vsel %vm5637, %v5673, %v5529
      %v5710 = vld [vmem:[#allocation2] sm:$0xff]
      %v5711 = vld [vmem:[#allocation2 + $0x8] sm:$0xff]
      %v5712 = vld [vmem:[#allocation2 + $0x10] sm:$0xff]
      %v5713 = vld [vmem:[#allocation2 + $0x18] sm:$0xff]
      %v5714 = vld [vmem:[#allocation2 + $0x20] sm:$0xff]
      %v5715 = vld [vmem:[#allocation2 + $0x28] sm:$0xff]
      %v5716 = vld [vmem:[#allocation2 + $0x30] sm:$0xff]
      %v5717 = vld [vmem:[#allocation2 + $0x38] sm:$0xff]
      %v5718 = vld [vmem:[#allocation2 + $0x40] sm:$0xff]
      %v5719 = vld [vmem:[#allocation2 + $0x48] sm:$0xff]
      %v5720 = vld [vmem:[#allocation2 + $0x50] sm:$0xff]
      %v5721 = vld [vmem:[#allocation2 + $0x58] sm:$0xff]
      %v5722 = vld [vmem:[#allocation2 + $0x60] sm:$0xff]
      %v5723 = vld [vmem:[#allocation2 + $0x68] sm:$0xff]
      %v5724 = vld [vmem:[#allocation2 + $0x70] sm:$0xff]
      %v5725 = vld [vmem:[#allocation2 + $0x78] sm:$0xff]
      %v5726 = vld [vmem:[#allocation2 + $0x80] sm:$0xff]
      %v5727 = vld [vmem:[#allocation2 + $0x88] sm:$0xff]
      %v5728 = vld [vmem:[#allocation2 + $0x90] sm:$0xff]
      %v5729 = vld [vmem:[#allocation2 + $0x98] sm:$0xff]
      %v5730 = vld [vmem:[#allocation2 + $0xa0] sm:$0xff]
      %v5731 = vld [vmem:[#allocation2 + $0xa8] sm:$0xff]
      %v5732 = vld [vmem:[#allocation2 + $0xb0] sm:$0xff]
      %v5733 = vld [vmem:[#allocation2 + $0xb8] sm:$0xff]
      %v5734 = vld [vmem:[#allocation2 + $0xc0] sm:$0xff]
      %v5735 = vld [vmem:[#allocation2 + $0xc8] sm:$0xff]
      %v5736 = vld [vmem:[#allocation2 + $0xd0] sm:$0xff]
      %v5737 = vld [vmem:[#allocation2 + $0xd8] sm:$0xff]
      %v5738 = vld [vmem:[#allocation2 + $0xe0] sm:$0xff]
      %v5739 = vld [vmem:[#allocation2 + $0xe8] sm:$0xff]
      %v5740 = vld [vmem:[#allocation2 + $0xf0] sm:$0xff]
      %v5741 = vld [vmem:[#allocation2 + $0xf8] sm:$0xff]
      %v5742 = vld [vmem:[#allocation2 + $0x100] sm:$0xff]
      %v5743 = vld [vmem:[#allocation2 + $0x108] sm:$0xff]
      %v5744 = vld [vmem:[#allocation2 + $0x110] sm:$0xff]
      %v5745 = vld [vmem:[#allocation2 + $0x118] sm:$0xff]
      %v5746 = vld [vmem:[%s2] sm:$0x1]
      %v5748 = vlaneseq
      %v5749 = vshrl.u32 %v5748, 7
      %v5750 = vsub.s32 0, %v5749
      %v5751 = vrot.slane %v5746, %v5750
      %v5753 = vadd.f32 %v5710, %v5751
      %v5754 = vadd.f32 %v5711, %v5751
      %v5755 = vadd.f32 %v5712, %v5751
      %v5756 = vadd.f32 %v5713, %v5751
      %v5757 = vadd.f32 %v5714, %v5751
      %v5758 = vadd.f32 %v5715, %v5751
      %v5759 = vadd.f32 %v5716, %v5751
      %v5760 = vadd.f32 %v5717, %v5751
      %v5761 = vadd.f32 %v5718, %v5751
      %v5762 = vadd.f32 %v5719, %v5751
      %v5763 = vadd.f32 %v5720, %v5751
      %v5764 = vadd.f32 %v5721, %v5751
      %v5765 = vadd.f32 %v5722, %v5751
      %v5766 = vadd.f32 %v5723, %v5751
      %v5767 = vadd.f32 %v5724, %v5751
      %v5768 = vadd.f32 %v5725, %v5751
      %v5769 = vadd.f32 %v5726, %v5751
      %v5770 = vadd.f32 %v5727, %v5751
      %v5771 = vadd.f32 %v5728, %v5751
      %v5772 = vadd.f32 %v5729, %v5751
      %v5773 = vadd.f32 %v5730, %v5751
      %v5774 = vadd.f32 %v5731, %v5751
      %v5775 = vadd.f32 %v5732, %v5751
      %v5776 = vadd.f32 %v5733, %v5751
      %v5777 = vadd.f32 %v5734, %v5751
      %v5778 = vadd.f32 %v5735, %v5751
      %v5779 = vadd.f32 %v5736, %v5751
      %v5780 = vadd.f32 %v5737, %v5751
      %v5781 = vadd.f32 %v5738, %v5751
      %v5782 = vadd.f32 %v5739, %v5751
      %v5783 = vadd.f32 %v5740, %v5751
      %v5784 = vadd.f32 %v5741, %v5751
      %v5785 = vadd.f32 %v5742, %v5751
      %v5786 = vadd.f32 %v5743, %v5751
      %v5787 = vadd.f32 %v5744, %v5751
      %v5788 = vadd.f32 %v5745, %v5751
      %v5789 = vmax.f32 %v5753, 0.0
      %v5790 = vmax.f32 %v5754, 0.0
      %v5791 = vmax.f32 %v5755, 0.0
      %v5792 = vmax.f32 %v5756, 0.0
      %v5793 = vmax.f32 %v5757, 0.0
      %v5794 = vmax.f32 %v5758, 0.0
      %v5795 = vmax.f32 %v5759, 0.0
      %v5796 = vmax.f32 %v5760, 0.0
      %v5797 = vmax.f32 %v5761, 0.0
      %v5798 = vmax.f32 %v5762, 0.0
      %v5799 = vmax.f32 %v5763, 0.0
      %v5800 = vmax.f32 %v5764, 0.0
      %v5801 = vmax.f32 %v5765, 0.0
      %v5802 = vmax.f32 %v5766, 0.0
      %v5803 = vmax.f32 %v5767, 0.0
      %v5804 = vmax.f32 %v5768, 0.0
      %v5805 = vmax.f32 %v5769, 0.0
      %v5806 = vmax.f32 %v5770, 0.0
      %v5807 = vmax.f32 %v5771, 0.0
      %v5808 = vmax.f32 %v5772, 0.0
      %v5809 = vmax.f32 %v5773, 0.0
      %v5810 = vmax.f32 %v5774, 0.0
      %v5811 = vmax.f32 %v5775, 0.0
      %v5812 = vmax.f32 %v5776, 0.0
      %v5813 = vmax.f32 %v5777, 0.0
      %v5814 = vmax.f32 %v5778, 0.0
      %v5815 = vmax.f32 %v5779, 0.0
      %v5816 = vmax.f32 %v5780, 0.0
      %v5817 = vmax.f32 %v5781, 0.0
      %v5818 = vmax.f32 %v5782, 0.0
      %v5819 = vmax.f32 %v5783, 0.0
      %v5820 = vmax.f32 %v5784, 0.0
      %v5821 = vmax.f32 %v5785, 0.0
      %v5822 = vmax.f32 %v5786, 0.0
      %v5823 = vmax.f32 %v5787, 0.0
      %v5824 = vmax.f32 %v5788, 0.0
      %vm5825 = vcmp.lt.s32.totalorder %v5674, 16
      %vm5826 = vcmp.lt.s32.totalorder %v5675, 16
      %vm5827 = vcmp.lt.s32.totalorder %v5676, 16
      %vm5828 = vcmp.lt.s32.totalorder %v5677, 16
      %vm5829 = vcmp.lt.s32.totalorder %v5678, 16
      %vm5830 = vcmp.lt.s32.totalorder %v5679, 16
      %vm5831 = vcmp.lt.s32.totalorder %v5680, 16
      %vm5832 = vcmp.lt.s32.totalorder %v5681, 16
      %vm5833 = vcmp.lt.s32.totalorder %v5682, 16
      %vm5834 = vcmp.lt.s32.totalorder %v5683, 16
      %vm5835 = vcmp.lt.s32.totalorder %v5684, 16
      %vm5836 = vcmp.lt.s32.totalorder %v5685, 16
      %vm5837 = vcmp.lt.s32.totalorder %v5686, 16
      %vm5838 = vcmp.lt.s32.totalorder %v5687, 16
      %vm5839 = vcmp.lt.s32.totalorder %v5688, 16
      %vm5840 = vcmp.lt.s32.totalorder %v5689, 16
      %vm5841 = vcmp.lt.s32.totalorder %v5690, 16
      %vm5842 = vcmp.lt.s32.totalorder %v5691, 16
      %vm5843 = vcmp.lt.s32.totalorder %v5692, 16
      %vm5844 = vcmp.lt.s32.totalorder %v5693, 16
      %vm5845 = vcmp.lt.s32.totalorder %v5694, 16
      %vm5846 = vcmp.lt.s32.totalorder %v5695, 16
      %vm5847 = vcmp.lt.s32.totalorder %v5696, 16
      %vm5848 = vcmp.lt.s32.totalorder %v5697, 16
      %vm5849 = vcmp.lt.s32.totalorder %v5698, 16
      %vm5850 = vcmp.lt.s32.totalorder %v5699, 16
      %vm5851 = vcmp.lt.s32.totalorder %v5700, 16
      %vm5852 = vcmp.lt.s32.totalorder %v5701, 16
      %vm5853 = vcmp.lt.s32.totalorder %v5702, 16
      %vm5854 = vcmp.lt.s32.totalorder %v5703, 16
      %vm5855 = vcmp.lt.s32.totalorder %v5704, 16
      %vm5856 = vcmp.lt.s32.totalorder %v5705, 16
      %vm5857 = vcmp.lt.s32.totalorder %v5706, 16
      %vm5858 = vcmp.lt.s32.totalorder %v5707, 16
      %vm5859 = vcmp.lt.s32.totalorder %v5708, 16
      %vm5860 = vcmp.lt.s32.totalorder %v5709, 16
      %v5861 = vsel %vm5825, 1, 0
      %v5862 = vsel %vm5826, 1, 0
      %v5863 = vsel %vm5827, 1, 0
      %v5864 = vsel %vm5828, 1, 0
      %v5865 = vsel %vm5829, 1, 0
      %v5866 = vsel %vm5830, 1, 0
      %v5867 = vsel %vm5831, 1, 0
      %v5868 = vsel %vm5832, 1, 0
      %v5869 = vsel %vm5833, 1, 0
      %v5870 = vsel %vm5834, 1, 0
      %v5871 = vsel %vm5835, 1, 0
      %v5872 = vsel %vm5836, 1, 0
      %v5873 = vsel %vm5837, 1, 0
      %v5874 = vsel %vm5838, 1, 0
      %v5875 = vsel %vm5839, 1, 0
      %v5876 = vsel %vm5840, 1, 0
      %v5877 = vsel %vm5841, 1, 0
      %v5878 = vsel %vm5842, 1, 0
      %v5879 = vsel %vm5843, 1, 0
      %v5880 = vsel %vm5844, 1, 0
      %v5881 = vsel %vm5845, 1, 0
      %v5882 = vsel %vm5846, 1, 0
      %v5883 = vsel %vm5847, 1, 0
      %v5884 = vsel %vm5848, 1, 0
      %v5885 = vsel %vm5849, 1, 0
      %v5886 = vsel %vm5850, 1, 0
      %v5887 = vsel %vm5851, 1, 0
      %v5888 = vsel %vm5852, 1, 0
      %v5889 = vsel %vm5853, 1, 0
      %v5890 = vsel %vm5854, 1, 0
      %v5891 = vsel %vm5855, 1, 0
      %v5892 = vsel %vm5856, 1, 0
      %v5893 = vsel %vm5857, 1, 0
      %v5894 = vsel %vm5858, 1, 0
      %v5895 = vsel %vm5859, 1, 0
      %v5896 = vsel %vm5860, 1, 0
      %vm5897 = vcmp.eq.s32.totalorder %v5861, 1
      %vm5898 = vcmp.eq.s32.totalorder %v5862, 1
      %vm5899 = vcmp.eq.s32.totalorder %v5863, 1
      %vm5900 = vcmp.eq.s32.totalorder %v5864, 1
      %vm5901 = vcmp.eq.s32.totalorder %v5865, 1
      %vm5902 = vcmp.eq.s32.totalorder %v5866, 1
      %vm5903 = vcmp.eq.s32.totalorder %v5867, 1
      %vm5904 = vcmp.eq.s32.totalorder %v5868, 1
      %vm5905 = vcmp.eq.s32.totalorder %v5869, 1
      %vm5906 = vcmp.eq.s32.totalorder %v5870, 1
      %vm5907 = vcmp.eq.s32.totalorder %v5871, 1
      %vm5908 = vcmp.eq.s32.totalorder %v5872, 1
      %vm5909 = vcmp.eq.s32.totalorder %v5873, 1
      %vm5910 = vcmp.eq.s32.totalorder %v5874, 1
      %vm5911 = vcmp.eq.s32.totalorder %v5875, 1
      %vm5912 = vcmp.eq.s32.totalorder %v5876, 1
      %vm5913 = vcmp.eq.s32.totalorder %v5877, 1
      %vm5914 = vcmp.eq.s32.totalorder %v5878, 1
      %vm5915 = vcmp.eq.s32.totalorder %v5879, 1
      %vm5916 = vcmp.eq.s32.totalorder %v5880, 1
      %vm5917 = vcmp.eq.s32.totalorder %v5881, 1
      %vm5918 = vcmp.eq.s32.totalorder %v5882, 1
      %vm5919 = vcmp.eq.s32.totalorder %v5883, 1
      %vm5920 = vcmp.eq.s32.totalorder %v5884, 1
      %vm5921 = vcmp.eq.s32.totalorder %v5885, 1
      %vm5922 = vcmp.eq.s32.totalorder %v5886, 1
      %vm5923 = vcmp.eq.s32.totalorder %v5887, 1
      %vm5924 = vcmp.eq.s32.totalorder %v5888, 1
      %vm5925 = vcmp.eq.s32.totalorder %v5889, 1
      %vm5926 = vcmp.eq.s32.totalorder %v5890, 1
      %vm5927 = vcmp.eq.s32.totalorder %v5891, 1
      %vm5928 = vcmp.eq.s32.totalorder %v5892, 1
      %vm5929 = vcmp.eq.s32.totalorder %v5893, 1
      %vm5930 = vcmp.eq.s32.totalorder %v5894, 1
      %vm5931 = vcmp.eq.s32.totalorder %v5895, 1
      %vm5932 = vcmp.eq.s32.totalorder %v5896, 1
      %v5933 = vsel %vm5897, %v5789, 0.0
      %v5934 = vsel %vm5898, %v5790, 0.0
      %v5935 = vsel %vm5899, %v5791, 0.0
      %v5936 = vsel %vm5900, %v5792, 0.0
      %v5937 = vsel %vm5901, %v5793, 0.0
      %v5938 = vsel %vm5902, %v5794, 0.0
      %v5939 = vsel %vm5903, %v5795, 0.0
      %v5940 = vsel %vm5904, %v5796, 0.0
      %v5941 = vsel %vm5905, %v5797, 0.0
      %v5942 = vsel %vm5906, %v5798, 0.0
      %v5943 = vsel %vm5907, %v5799, 0.0
      %v5944 = vsel %vm5908, %v5800, 0.0
      %v5945 = vsel %vm5909, %v5801, 0.0
      %v5946 = vsel %vm5910, %v5802, 0.0
      %v5947 = vsel %vm5911, %v5803, 0.0
      %v5948 = vsel %vm5912, %v5804, 0.0
      %v5949 = vsel %vm5913, %v5805, 0.0
      %v5950 = vsel %vm5914, %v5806, 0.0
      %v5951 = vsel %vm5915, %v5807, 0.0
      %v5952 = vsel %vm5916, %v5808, 0.0
      %v5953 = vsel %vm5917, %v5809, 0.0
      %v5954 = vsel %vm5918, %v5810, 0.0
      %v5955 = vsel %vm5919, %v5811, 0.0
      %v5956 = vsel %vm5920, %v5812, 0.0
      %v5957 = vsel %vm5921, %v5813, 0.0
      %v5958 = vsel %vm5922, %v5814, 0.0
      %v5959 = vsel %vm5923, %v5815, 0.0
      %v5960 = vsel %vm5924, %v5816, 0.0
      %v5961 = vsel %vm5925, %v5817, 0.0
      %v5962 = vsel %vm5926, %v5818, 0.0
      %v5963 = vsel %vm5927, %v5819, 0.0
      %v5964 = vsel %vm5928, %v5820, 0.0
      %v5965 = vsel %vm5929, %v5821, 0.0
      %v5966 = vsel %vm5930, %v5822, 0.0
      %v5967 = vsel %vm5931, %v5823, 0.0
      %v5968 = vsel %vm5932, %v5824, 0.0
      %5969 = vst.msk [vmem:[#allocation3] sm:$0xff] %vm589, 0.0
      %5970 = vst.msk [vmem:[#allocation3 + $0x8] sm:$0xff] %vm589, 0.0
      %vm5971 = vcmask 26624
      %5972 = vst.msk [vmem:[#allocation3 + $0x10] sm:$0x7] %vm5971, 0.0
      %5973 = vst.msk [vmem:[#allocation3 + $0x133] sm:$0xff] %vm589, 0.0
      %5974 = vst.msk [vmem:[#allocation3 + $0x13b] sm:$0xff] %vm589, 0.0
      %5975 = vst.msk [vmem:[#allocation3 + $0x143] sm:$0xff] %vm589, 0.0
      %5976 = vst.msk [vmem:[#allocation3 + $0x14b] sm:$0xff] %vm589, 0.0
      %5977 = vst.msk [vmem:[#allocation3 + $0x153] sm:$0x7] %vm5971, 0.0
      %5978 = vst.msk [vmem:[#allocation3 + $0x13] sm:$0xff] %vm589, %v5933
      %5979 = vst.msk [vmem:[#allocation3 + $0x1b] sm:$0xff] %vm589, %v5934
      %5980 = vst.msk [vmem:[#allocation3 + $0x23] sm:$0xff] %vm589, %v5935
      %5981 = vst.msk [vmem:[#allocation3 + $0x2b] sm:$0xff] %vm589, %v5936
      %5982 = vst.msk [vmem:[#allocation3 + $0x33] sm:$0xff] %vm589, %v5937
      %5983 = vst.msk [vmem:[#allocation3 + $0x3b] sm:$0xff] %vm589, %v5938
      %5984 = vst.msk [vmem:[#allocation3 + $0x43] sm:$0xff] %vm589, %v5939
      %5985 = vst.msk [vmem:[#allocation3 + $0x4b] sm:$0xff] %vm589, %v5940
      %5986 = vst.msk [vmem:[#allocation3 + $0x53] sm:$0xff] %vm589, %v5941
      %5987 = vst.msk [vmem:[#allocation3 + $0x5b] sm:$0xff] %vm589, %v5942
      %5988 = vst.msk [vmem:[#allocation3 + $0x63] sm:$0xff] %vm589, %v5943
      %5989 = vst.msk [vmem:[#allocation3 + $0x6b] sm:$0xff] %vm589, %v5944
      %5990 = vst.msk [vmem:[#allocation3 + $0x73] sm:$0xff] %vm589, %v5945
      %5991 = vst.msk [vmem:[#allocation3 + $0x7b] sm:$0xff] %vm589, %v5946
      %5992 = vst.msk [vmem:[#allocation3 + $0x83] sm:$0xff] %vm589, %v5947
      %5993 = vst.msk [vmem:[#allocation3 + $0x8b] sm:$0xff] %vm589, %v5948
      %5994 = vst.msk [vmem:[#allocation3 + $0x93] sm:$0xff] %vm589, %v5949
      %5995 = vst.msk [vmem:[#allocation3 + $0x9b] sm:$0xff] %vm589, %v5950
      %5996 = vst.msk [vmem:[#allocation3 + $0xa3] sm:$0xff] %vm589, %v5951
      %5997 = vst.msk [vmem:[#allocation3 + $0xab] sm:$0xff] %vm589, %v5952
      %5998 = vst.msk [vmem:[#allocation3 + $0xb3] sm:$0xff] %vm589, %v5953
      %5999 = vst.msk [vmem:[#allocation3 + $0xbb] sm:$0xff] %vm589, %v5954
      %6000 = vst.msk [vmem:[#allocation3 + $0xc3] sm:$0xff] %vm589, %v5955
      %6001 = vst.msk [vmem:[#allocation3 + $0xcb] sm:$0xff] %vm589, %v5956
      %6002 = vst.msk [vmem:[#allocation3 + $0xd3] sm:$0xff] %vm589, %v5957
      %6003 = vst.msk [vmem:[#allocation3 + $0xdb] sm:$0xff] %vm589, %v5958
      %6004 = vst.msk [vmem:[#allocation3 + $0xe3] sm:$0xff] %vm589, %v5959
      %6005 = vst.msk [vmem:[#allocation3 + $0xeb] sm:$0xff] %vm589, %v5960
      %6006 = vst.msk [vmem:[#allocation3 + $0xf3] sm:$0xff] %vm589, %v5961
      %6007 = vst.msk [vmem:[#allocation3 + $0xfb] sm:$0xff] %vm589, %v5962
      %6008 = vst.msk [vmem:[#allocation3 + $0x103] sm:$0xff] %vm589, %v5963
      %6009 = vst.msk [vmem:[#allocation3 + $0x10b] sm:$0xff] %vm589, %v5964
      %6010 = vst.msk [vmem:[#allocation3 + $0x113] sm:$0xff] %vm589, %v5965
      %6011 = vst.msk [vmem:[#allocation3 + $0x11b] sm:$0xff] %vm589, %v5966
      %6012 = vst.msk [vmem:[#allocation3 + $0x123] sm:$0xff] %vm589, %v5967
      %6013 = vst.msk [vmem:[#allocation3 + $0x12b] sm:$0xff] %vm589, %v5968
      %v6014 = vld [vmem:[#allocation3] sm:$0xff]
      %v6015 = vld [vmem:[#allocation3 + $0x8] sm:$0xff]
      %v6016 = vld [vmem:[#allocation3 + $0x10] sm:$0xff]
      %v6017 = vld [vmem:[#allocation3 + $0x18] sm:$0xff]
      %v6018 = vld [vmem:[#allocation3 + $0x20] sm:$0xff]
      %v6019 = vld [vmem:[#allocation3 + $0x28] sm:$0xff]
      %v6020 = vld [vmem:[#allocation3 + $0x30] sm:$0xff]
      %v6021 = vld [vmem:[#allocation3 + $0x38] sm:$0xff]
      %v6022 = vld [vmem:[#allocation3 + $0x40] sm:$0xff]
      %v6023 = vld [vmem:[#allocation3 + $0x48] sm:$0xff]
      %v6024 = vld [vmem:[#allocation3 + $0x50] sm:$0xff]
      %v6025 = vld [vmem:[#allocation3 + $0x58] sm:$0xff]
      %v6026 = vld [vmem:[#allocation3 + $0x60] sm:$0xff]
      %v6027 = vld [vmem:[#allocation3 + $0x68] sm:$0xff]
      %v6028 = vld [vmem:[#allocation3 + $0x70] sm:$0xff]
      %v6029 = vld [vmem:[#allocation3 + $0x78] sm:$0xff]
      %v6030 = vld [vmem:[#allocation3 + $0x80] sm:$0xff]
      %v6031 = vld [vmem:[#allocation3 + $0x88] sm:$0xff]
      %v6032 = vld [vmem:[#allocation3 + $0x90] sm:$0xff]
      %v6033 = vld [vmem:[#allocation3 + $0x98] sm:$0xff]
      %v6034 = vld [vmem:[#allocation3 + $0xa0] sm:$0xff]
      %v6035 = vld [vmem:[#allocation3 + $0xa8] sm:$0xff]
      %v6036 = vld [vmem:[#allocation3 + $0xb0] sm:$0xff]
      %v6037 = vld [vmem:[#allocation3 + $0xb8] sm:$0xff]
      %v6038 = vld [vmem:[#allocation3 + $0xc0] sm:$0xff]
      %v6039 = vld [vmem:[#allocation3 + $0xc8] sm:$0xff]
      %v6040 = vld [vmem:[#allocation3 + $0xd0] sm:$0xff]
      %v6041 = vld [vmem:[#allocation3 + $0xd8] sm:$0xff]
      %v6042 = vld [vmem:[#allocation3 + $0xe0] sm:$0xff]
      %v6043 = vld [vmem:[#allocation3 + $0xe8] sm:$0xff]
      %v6044 = vld [vmem:[#allocation3 + $0xf0] sm:$0xff]
      %v6045 = vld [vmem:[#allocation3 + $0xf8] sm:$0xff]
      %v6046 = vld [vmem:[#allocation3 + $0x100] sm:$0xff]
      %v6047 = vld [vmem:[#allocation3 + $0x108] sm:$0xff]
      %v6048 = vld [vmem:[#allocation3 + $0x110] sm:$0xff]
      %v6049 = vld [vmem:[#allocation3 + $0x118] sm:$0xff]
      %v6050 = vpack.c.bf16 %v6015, %v6014
      %v6051 = vpack.c.bf16 %v6017, %v6016
      %v6052 = vpack.c.bf16 %v6019, %v6018
      %v6053 = vpack.c.bf16 %v6021, %v6020
      %v6054 = vpack.c.bf16 %v6023, %v6022
      %v6055 = vpack.c.bf16 %v6025, %v6024
      %v6056 = vpack.c.bf16 %v6027, %v6026
      %v6057 = vpack.c.bf16 %v6029, %v6028
      %v6058 = vpack.c.bf16 %v6031, %v6030
      %v6059 = vpack.c.bf16 %v6033, %v6032
      %v6060 = vpack.c.bf16 %v6035, %v6034
      %v6061 = vpack.c.bf16 %v6037, %v6036
      %v6062 = vpack.c.bf16 %v6039, %v6038
      %v6063 = vpack.c.bf16 %v6041, %v6040
      %v6064 = vpack.c.bf16 %v6043, %v6042
      %v6065 = vpack.c.bf16 %v6045, %v6044
      %v6066 = vpack.c.bf16 %v6047, %v6046
      %v6067 = vpack.c.bf16 %v6049, %v6048
      %v6068 = vld [vmem:[%s3] sm:$0x3]
      %v6070 = vsel %vm589, %v6050, 0
      %v6073 = vsel %vm589, %v6051, 0
      %v6076 = vsel %vm589, %v6052, 0
      %v6079 = vsel %vm589, %v6053, 0
      %v6082 = vsel %vm589, %v6054, 0
      %v6085 = vsel %vm589, %v6055, 0
      %v6088 = vsel %vm589, %v6056, 0
      %v6091 = vsel %vm589, %v6057, 0
      %v6094 = vsel %vm589, %v6058, 0
      %v6097 = vsel %vm589, %v6059, 0
      %v6100 = vsel %vm589, %v6060, 0
      %v6103 = vsel %vm589, %v6061, 0
      %v6106 = vsel %vm589, %v6062, 0
      %v6109 = vsel %vm589, %v6063, 0
      %v6112 = vsel %vm589, %v6064, 0
      %v6115 = vsel %vm589, %v6065, 0
      %v6118 = vsel %vm589, %v6066, 0
      %v6121 = vsel %vm589, %v6067, 0
      %vm6123 = vcmask 1041408
      %v6125 = vsel %vm6123, %v6068, 0
      %6127 = vmatprep.subr.bf16.mxu0 0
      %6128 = vmatpush1.bf16.msra.mxu0 0
      %6129 = vmatprep.subr.bf16.mxu0 0
      %6130 = vmatpush1.bf16.msra.mxu0 0
      %6131 = vmatprep.subr.bf16.mxu0 0
      %6132 = vmatpush1.bf16.msra.mxu0 0
      %6133 = vmatprep.subr.bf16.mxu0 0
      %6134 = vmatpush1.bf16.msra.mxu0 0
      %6135 = vmatprep.subr.bf16.mxu0 0
      %6136 = vmatpush1.bf16.msra.mxu0 0
      %6137 = vmatprep.subr.bf16.mxu0 0
      %6138 = vmatpush1.bf16.msra.mxu0 0
      %6139 = vmatprep.subr.bf16.mxu0 0
      %6140 = vmatpush1.bf16.msra.mxu0 0
      %6141 = vmatprep.subr.bf16.mxu0 0
      %6142 = vmatpush1.bf16.msra.mxu0 %v6125
      %6143 = vmatprep.subr.bf16.mxu0 0
      %6144 = vmatpush2.bf16.msra.mxu0 0
      %6145 = vmatprep.subr.bf16.mxu0 0
      %6146 = vmatpush2.bf16.msra.mxu0 0
      %6147 = vmatprep.subr.bf16.mxu0 0
      %6148 = vmatpush2.bf16.msra.mxu0 0
      %6149 = vmatprep.subr.bf16.mxu0 0
      %6150 = vmatpush2.bf16.msra.mxu0 0
      %6151 = vmatprep.subr.bf16.mxu0 0
      %6152 = vmatpush2.bf16.msra.mxu0 0
      %6153 = vmatprep.subr.bf16.mxu0 0
      %6154 = vmatpush2.bf16.msra.mxu0 0
      %6155 = vmatprep.subr.bf16.mxu0 0
      %6156 = vmatpush2.bf16.msra.mxu0 0
      %6157 = vmatprep.subr.bf16.mxu0 0
      %6158 = vmatpush2.bf16.msra.mxu0 0
      %6159 = vmatprep.mubr.bf16.mxu0 0
      %6160 = vmatmul.mubr.bf16.gmra.mxu0 %v6070
      %v6161 = vpop.f32.mrf.mxu0
      %v6162 = vadd.f32 0.0, %v6161
      %v6163 = vpop.f32.mrf.mxu0
      %v6164 = vpop.f32.mrf.mxu0
      %v6165 = vadd.f32 0.0, %v6164
      %v6166 = vpop.f32.mrf.mxu0
      %6167 = vmatprep.mubr.bf16.mxu0 0
      %6168 = vmatmul.mubr.bf16.gmra.mxu0 %v6073
      %v6169 = vpop.f32.mrf.mxu0
      %v6170 = vadd.f32 0.0, %v6169
      %v6171 = vpop.f32.mrf.mxu0
      %v6172 = vpop.f32.mrf.mxu0
      %v6173 = vadd.f32 0.0, %v6172
      %v6174 = vpop.f32.mrf.mxu0
      %6175 = vmatprep.mubr.bf16.mxu0 0
      %6176 = vmatmul.mubr.bf16.gmra.mxu0 %v6076
      %v6177 = vpop.f32.mrf.mxu0
      %v6178 = vadd.f32 0.0, %v6177
      %v6179 = vpop.f32.mrf.mxu0
      %v6180 = vpop.f32.mrf.mxu0
      %v6181 = vadd.f32 0.0, %v6180
      %v6182 = vpop.f32.mrf.mxu0
      %6183 = vmatprep.mubr.bf16.mxu0 0
      %6184 = vmatmul.mubr.bf16.gmra.mxu0 %v6079
      %v6185 = vpop.f32.mrf.mxu0
      %v6186 = vadd.f32 0.0, %v6185
      %v6187 = vpop.f32.mrf.mxu0
      %v6188 = vpop.f32.mrf.mxu0
      %v6189 = vadd.f32 0.0, %v6188
      %v6190 = vpop.f32.mrf.mxu0
      %6191 = vmatprep.mubr.bf16.mxu0 0
      %6192 = vmatmul.mubr.bf16.gmra.mxu0 %v6082
      %v6193 = vpop.f32.mrf.mxu0
      %v6194 = vadd.f32 0.0, %v6193
      %v6195 = vpop.f32.mrf.mxu0
      %v6196 = vpop.f32.mrf.mxu0
      %v6197 = vadd.f32 0.0, %v6196
      %v6198 = vpop.f32.mrf.mxu0
      %6199 = vmatprep.mubr.bf16.mxu0 0
      %6200 = vmatmul.mubr.bf16.gmra.mxu0 %v6085
      %v6201 = vpop.f32.mrf.mxu0
      %v6202 = vadd.f32 0.0, %v6201
      %v6203 = vpop.f32.mrf.mxu0
      %v6204 = vpop.f32.mrf.mxu0
      %v6205 = vadd.f32 0.0, %v6204
      %v6206 = vpop.f32.mrf.mxu0
      %6207 = vmatprep.mubr.bf16.mxu0 0
      %6208 = vmatmul.mubr.bf16.gmra.mxu0 %v6088
      %v6209 = vpop.f32.mrf.mxu0
      %v6210 = vadd.f32 0.0, %v6209
      %v6211 = vpop.f32.mrf.mxu0
      %v6212 = vpop.f32.mrf.mxu0
      %v6213 = vadd.f32 0.0, %v6212
      %v6214 = vpop.f32.mrf.mxu0
      %6215 = vmatprep.mubr.bf16.mxu0 0
      %6216 = vmatmul.mubr.bf16.gmra.mxu0 %v6091
      %v6217 = vpop.f32.mrf.mxu0
      %v6218 = vadd.f32 0.0, %v6217
      %v6219 = vpop.f32.mrf.mxu0
      %v6220 = vpop.f32.mrf.mxu0
      %v6221 = vadd.f32 0.0, %v6220
      %v6222 = vpop.f32.mrf.mxu0
      %6223 = vmatprep.mubr.bf16.mxu0 0
      %6224 = vmatmul.mubr.bf16.gmra.mxu0 %v6094
      %v6225 = vpop.f32.mrf.mxu0
      %v6226 = vadd.f32 0.0, %v6225
      %v6227 = vpop.f32.mrf.mxu0
      %v6228 = vpop.f32.mrf.mxu0
      %v6229 = vadd.f32 0.0, %v6228
      %v6230 = vpop.f32.mrf.mxu0
      %6231 = vmatprep.mubr.bf16.mxu0 0
      %6232 = vmatmul.mubr.bf16.gmra.mxu0 %v6097
      %v6233 = vpop.f32.mrf.mxu0
      %v6234 = vadd.f32 0.0, %v6233
      %v6235 = vpop.f32.mrf.mxu0
      %v6236 = vpop.f32.mrf.mxu0
      %v6237 = vadd.f32 0.0, %v6236
      %v6238 = vpop.f32.mrf.mxu0
      %6239 = vmatprep.mubr.bf16.mxu0 0
      %6240 = vmatmul.mubr.bf16.gmra.mxu0 %v6100
      %v6241 = vpop.f32.mrf.mxu0
      %v6242 = vadd.f32 0.0, %v6241
      %v6243 = vpop.f32.mrf.mxu0
      %v6244 = vpop.f32.mrf.mxu0
      %v6245 = vadd.f32 0.0, %v6244
      %v6246 = vpop.f32.mrf.mxu0
      %6247 = vmatprep.mubr.bf16.mxu0 0
      %6248 = vmatmul.mubr.bf16.gmra.mxu0 %v6103
      %v6249 = vpop.f32.mrf.mxu0
      %v6250 = vadd.f32 0.0, %v6249
      %v6251 = vpop.f32.mrf.mxu0
      %v6252 = vpop.f32.mrf.mxu0
      %v6253 = vadd.f32 0.0, %v6252
      %v6254 = vpop.f32.mrf.mxu0
      %6255 = vmatprep.mubr.bf16.mxu0 0
      %6256 = vmatmul.mubr.bf16.gmra.mxu0 %v6106
      %v6257 = vpop.f32.mrf.mxu0
      %v6258 = vadd.f32 0.0, %v6257
      %v6259 = vpop.f32.mrf.mxu0
      %v6260 = vpop.f32.mrf.mxu0
      %v6261 = vadd.f32 0.0, %v6260
      %v6262 = vpop.f32.mrf.mxu0
      %6263 = vmatprep.mubr.bf16.mxu0 0
      %6264 = vmatmul.mubr.bf16.gmra.mxu0 %v6109
      %v6265 = vpop.f32.mrf.mxu0
      %v6266 = vadd.f32 0.0, %v6265
      %v6267 = vpop.f32.mrf.mxu0
      %v6268 = vpop.f32.mrf.mxu0
      %v6269 = vadd.f32 0.0, %v6268
      %v6270 = vpop.f32.mrf.mxu0
      %6271 = vmatprep.mubr.bf16.mxu0 0
      %6272 = vmatmul.mubr.bf16.gmra.mxu0 %v6112
      %v6273 = vpop.f32.mrf.mxu0
      %v6274 = vadd.f32 0.0, %v6273
      %v6275 = vpop.f32.mrf.mxu0
      %v6276 = vpop.f32.mrf.mxu0
      %v6277 = vadd.f32 0.0, %v6276
      %v6278 = vpop.f32.mrf.mxu0
      %6279 = vmatprep.mubr.bf16.mxu0 0
      %6280 = vmatmul.mubr.bf16.gmra.mxu0 %v6115
      %v6281 = vpop.f32.mrf.mxu0
      %v6282 = vadd.f32 0.0, %v6281
      %v6283 = vpop.f32.mrf.mxu0
      %v6284 = vpop.f32.mrf.mxu0
      %v6285 = vadd.f32 0.0, %v6284
      %v6286 = vpop.f32.mrf.mxu0
      %6287 = vmatprep.mubr.bf16.mxu0 0
      %6288 = vmatmul.mubr.bf16.gmra.mxu0 %v6118
      %v6289 = vpop.f32.mrf.mxu0
      %v6290 = vadd.f32 0.0, %v6289
      %v6291 = vpop.f32.mrf.mxu0
      %v6292 = vpop.f32.mrf.mxu0
      %v6293 = vadd.f32 0.0, %v6292
      %v6294 = vpop.f32.mrf.mxu0
      %6295 = vmatprep.mubr.bf16.mxu0 0
      %6296 = vmatmul.mubr.bf16.gmra.mxu0 %v6121
      %v6297 = vpop.f32.mrf.mxu0
      %v6298 = vadd.f32 0.0, %v6297
      %v6299 = vpop.f32.mrf.mxu0
      %v6300 = vpop.f32.mrf.mxu0
      %v6301 = vadd.f32 0.0, %v6300
      %v6302 = vpop.f32.mrf.mxu0
      %6303 = vdwg.mxu0
      %6304 = vst.msk [vmem:[#allocation4] sm:$0xff] %vm589, %v6162
      %6305 = vst.msk [vmem:[#allocation4 + $0x8] sm:$0xff] %vm589, %v6165
      %6306 = vst.msk [vmem:[#allocation4 + $0x10] sm:$0xff] %vm589, %v6170
      %6307 = vst.msk [vmem:[#allocation4 + $0x18] sm:$0xff] %vm589, %v6173
      %6308 = vst.msk [vmem:[#allocation4 + $0x20] sm:$0xff] %vm589, %v6178
      %6309 = vst.msk [vmem:[#allocation4 + $0x28] sm:$0xff] %vm589, %v6181
      %6310 = vst.msk [vmem:[#allocation4 + $0x30] sm:$0xff] %vm589, %v6186
      %6311 = vst.msk [vmem:[#allocation4 + $0x38] sm:$0xff] %vm589, %v6189
      %6312 = vst.msk [vmem:[#allocation4 + $0x40] sm:$0xff] %vm589, %v6194
      %6313 = vst.msk [vmem:[#allocation4 + $0x48] sm:$0xff] %vm589, %v6197
      %6314 = vst.msk [vmem:[#allocation4 + $0x50] sm:$0xff] %vm589, %v6202
      %6315 = vst.msk [vmem:[#allocation4 + $0x58] sm:$0xff] %vm589, %v6205
      %6316 = vst.msk [vmem:[#allocation4 + $0x60] sm:$0xff] %vm589, %v6210
      %6317 = vst.msk [vmem:[#allocation4 + $0x68] sm:$0xff] %vm589, %v6213
      %6318 = vst.msk [vmem:[#allocation4 + $0x70] sm:$0xff] %vm589, %v6218
      %6319 = vst.msk [vmem:[#allocation4 + $0x78] sm:$0xff] %vm589, %v6221
      %6320 = vst.msk [vmem:[#allocation4 + $0x80] sm:$0xff] %vm589, %v6226
      %6321 = vst.msk [vmem:[#allocation4 + $0x88] sm:$0xff] %vm589, %v6229
      %6322 = vst.msk [vmem:[#allocation4 + $0x90] sm:$0xff] %vm589, %v6234
      %6323 = vst.msk [vmem:[#allocation4 + $0x98] sm:$0xff] %vm589, %v6237
      %6324 = vst.msk [vmem:[#allocation4 + $0xa0] sm:$0xff] %vm589, %v6242
      %6325 = vst.msk [vmem:[#allocation4 + $0xa8] sm:$0xff] %vm589, %v6245
      %6326 = vst.msk [vmem:[#allocation4 + $0xb0] sm:$0xff] %vm589, %v6250
      %6327 = vst.msk [vmem:[#allocation4 + $0xb8] sm:$0xff] %vm589, %v6253
      %6328 = vst.msk [vmem:[#allocation4 + $0xc0] sm:$0xff] %vm589, %v6258
      %6329 = vst.msk [vmem:[#allocation4 + $0xc8] sm:$0xff] %vm589, %v6261
      %6330 = vst.msk [vmem:[#allocation4 + $0xd0] sm:$0xff] %vm589, %v6266
      %6331 = vst.msk [vmem:[#allocation4 + $0xd8] sm:$0xff] %vm589, %v6269
      %6332 = vst.msk [vmem:[#allocation4 + $0xe0] sm:$0xff] %vm589, %v6274
      %6333 = vst.msk [vmem:[#allocation4 + $0xe8] sm:$0xff] %vm589, %v6277
      %6334 = vst.msk [vmem:[#allocation4 + $0xf0] sm:$0xff] %vm589, %v6282
      %6335 = vst.msk [vmem:[#allocation4 + $0xf8] sm:$0xff] %vm589, %v6285
      %6336 = vst.msk [vmem:[#allocation4 + $0x100] sm:$0xff] %vm589, %v6290
      %6337 = vst.msk [vmem:[#allocation4 + $0x108] sm:$0xff] %vm589, %v6293
      %6338 = vst.msk [vmem:[#allocation4 + $0x110] sm:$0xff] %vm589, %v6298
      %6339 = vst.msk [vmem:[#allocation4 + $0x118] sm:$0xff] %vm589, %v6301
      %v6340 = vld [vmem:[#allocation3 + $0x1] sm:$0xff]
      %v6341 = vld [vmem:[#allocation3 + $0x9] sm:$0xff]
      %v6342 = vld [vmem:[#allocation3 + $0x11] sm:$0xff]
      %v6343 = vld [vmem:[#allocation3 + $0x19] sm:$0xff]
      %v6344 = vld [vmem:[#allocation3 + $0x21] sm:$0xff]
      %v6345 = vld [vmem:[#allocation3 + $0x29] sm:$0xff]
      %v6346 = vld [vmem:[#allocation3 + $0x31] sm:$0xff]
      %v6347 = vld [vmem:[#allocation3 + $0x39] sm:$0xff]
      %v6348 = vld [vmem:[#allocation3 + $0x41] sm:$0xff]
      %v6349 = vld [vmem:[#allocation3 + $0x49] sm:$0xff]
      %v6350 = vld [vmem:[#allocation3 + $0x51] sm:$0xff]
      %v6351 = vld [vmem:[#allocation3 + $0x59] sm:$0xff]
      %v6352 = vld [vmem:[#allocation3 + $0x61] sm:$0xff]
      %v6353 = vld [vmem:[#allocation3 + $0x69] sm:$0xff]
      %v6354 = vld [vmem:[#allocation3 + $0x71] sm:$0xff]
      %v6355 = vld [vmem:[#allocation3 + $0x79] sm:$0xff]
      %v6356 = vld [vmem:[#allocation3 + $0x81] sm:$0xff]
      %v6357 = vld [vmem:[#allocation3 + $0x89] sm:$0xff]
      %v6358 = vld [vmem:[#allocation3 + $0x91] sm:$0xff]
      %v6359 = vld [vmem:[#allocation3 + $0x99] sm:$0xff]
      %v6360 = vld [vmem:[#allocation3 + $0xa1] sm:$0xff]
      %v6361 = vld [vmem:[#allocation3 + $0xa9] sm:$0xff]
      %v6362 = vld [vmem:[#allocation3 + $0xb1] sm:$0xff]
      %v6363 = vld [vmem:[#allocation3 + $0xb9] sm:$0xff]
      %v6364 = vld [vmem:[#allocation3 + $0xc1] sm:$0xff]
      %v6365 = vld [vmem:[#allocation3 + $0xc9] sm:$0xff]
      %v6366 = vld [vmem:[#allocation3 + $0xd1] sm:$0xff]
      %v6367 = vld [vmem:[#allocation3 + $0xd9] sm:$0xff]
      %v6368 = vld [vmem:[#allocation3 + $0xe1] sm:$0xff]
      %v6369 = vld [vmem:[#allocation3 + $0xe9] sm:$0xff]
      %v6370 = vld [vmem:[#allocation3 + $0xf1] sm:$0xff]
      %v6371 = vld [vmem:[#allocation3 + $0xf9] sm:$0xff]
      %v6372 = vld [vmem:[#allocation3 + $0x101] sm:$0xff]
      %v6373 = vld [vmem:[#allocation3 + $0x109] sm:$0xff]
      %v6374 = vld [vmem:[#allocation3 + $0x111] sm:$0xff]
      %v6375 = vld [vmem:[#allocation3 + $0x119] sm:$0xff]
      %v6376 = vpack.c.bf16 %v6341, %v6340
      %v6377 = vpack.c.bf16 %v6343, %v6342
      %v6378 = vpack.c.bf16 %v6345, %v6344
      %v6379 = vpack.c.bf16 %v6347, %v6346
      %v6380 = vpack.c.bf16 %v6349, %v6348
      %v6381 = vpack.c.bf16 %v6351, %v6350
      %v6382 = vpack.c.bf16 %v6353, %v6352
      %v6383 = vpack.c.bf16 %v6355, %v6354
      %v6384 = vpack.c.bf16 %v6357, %v6356
      %v6385 = vpack.c.bf16 %v6359, %v6358
      %v6386 = vpack.c.bf16 %v6361, %v6360
      %v6387 = vpack.c.bf16 %v6363, %v6362
      %v6388 = vpack.c.bf16 %v6365, %v6364
      %v6389 = vpack.c.bf16 %v6367, %v6366
      %v6390 = vpack.c.bf16 %v6369, %v6368
      %v6391 = vpack.c.bf16 %v6371, %v6370
      %v6392 = vpack.c.bf16 %v6373, %v6372
      %v6393 = vpack.c.bf16 %v6375, %v6374
      %s6394 = scalar_lea.vmem %s3, 2
      %v6395 = vld [vmem:[%s6394] sm:$0x3]
      %v6397 = vsel %vm589, %v6376, 0
      %v6400 = vsel %vm589, %v6377, 0
      %v6403 = vsel %vm589, %v6378, 0
      %v6406 = vsel %vm589, %v6379, 0
      %v6409 = vsel %vm589, %v6380, 0
      %v6412 = vsel %vm589, %v6381, 0
      %v6415 = vsel %vm589, %v6382, 0
      %v6418 = vsel %vm589, %v6383, 0
      %v6421 = vsel %vm589, %v6384, 0
      %v6424 = vsel %vm589, %v6385, 0
      %v6427 = vsel %vm589, %v6386, 0
      %v6430 = vsel %vm589, %v6387, 0
      %v6433 = vsel %vm589, %v6388, 0
      %v6436 = vsel %vm589, %v6389, 0
      %v6439 = vsel %vm589, %v6390, 0
      %v6442 = vsel %vm589, %v6391, 0
      %v6445 = vsel %vm589, %v6392, 0
      %v6448 = vsel %vm589, %v6393, 0
      %v6451 = vsel %vm6123, %v6395, 0
      %6453 = vmatprep.subr.bf16.mxu0 0
      %6454 = vmatpush1.bf16.msra.mxu0 0
      %6455 = vmatprep.subr.bf16.mxu0 0
      %6456 = vmatpush1.bf16.msra.mxu0 0
      %6457 = vmatprep.subr.bf16.mxu0 0
      %6458 = vmatpush1.bf16.msra.mxu0 0
      %6459 = vmatprep.subr.bf16.mxu0 0
      %6460 = vmatpush1.bf16.msra.mxu0 0
      %6461 = vmatprep.subr.bf16.mxu0 0
      %6462 = vmatpush1.bf16.msra.mxu0 0
      %6463 = vmatprep.subr.bf16.mxu0 0
      %6464 = vmatpush1.bf16.msra.mxu0 0
      %6465 = vmatprep.subr.bf16.mxu0 0
      %6466 = vmatpush1.bf16.msra.mxu0 0
      %6467 = vmatprep.subr.bf16.mxu0 0
      %6468 = vmatpush1.bf16.msra.mxu0 %v6451
      %6469 = vmatprep.subr.bf16.mxu0 0
      %6470 = vmatpush2.bf16.msra.mxu0 0
      %6471 = vmatprep.subr.bf16.mxu0 0
      %6472 = vmatpush2.bf16.msra.mxu0 0
      %6473 = vmatprep.subr.bf16.mxu0 0
      %6474 = vmatpush2.bf16.msra.mxu0 0
      %6475 = vmatprep.subr.bf16.mxu0 0
      %6476 = vmatpush2.bf16.msra.mxu0 0
      %6477 = vmatprep.subr.bf16.mxu0 0
      %6478 = vmatpush2.bf16.msra.mxu0 0
      %6479 = vmatprep.subr.bf16.mxu0 0
      %6480 = vmatpush2.bf16.msra.mxu0 0
      %6481 = vmatprep.subr.bf16.mxu0 0
      %6482 = vmatpush2.bf16.msra.mxu0 0
      %6483 = vmatprep.subr.bf16.mxu0 0
      %6484 = vmatpush2.bf16.msra.mxu0 0
      %6485 = vmatprep.mubr.bf16.mxu0 0
      %6486 = vmatmul.mubr.bf16.gmra.mxu0 %v6397
      %v6487 = vpop.f32.mrf.mxu0
      %v6488 = vadd.f32 0.0, %v6487
      %v6489 = vpop.f32.mrf.mxu0
      %v6490 = vpop.f32.mrf.mxu0
      %v6491 = vadd.f32 0.0, %v6490
      %v6492 = vpop.f32.mrf.mxu0
      %6493 = vmatprep.mubr.bf16.mxu0 0
      %6494 = vmatmul.mubr.bf16.gmra.mxu0 %v6400
      %v6495 = vpop.f32.mrf.mxu0
      %v6496 = vadd.f32 0.0, %v6495
      %v6497 = vpop.f32.mrf.mxu0
      %v6498 = vpop.f32.mrf.mxu0
      %v6499 = vadd.f32 0.0, %v6498
      %v6500 = vpop.f32.mrf.mxu0
      %6501 = vmatprep.mubr.bf16.mxu0 0
      %6502 = vmatmul.mubr.bf16.gmra.mxu0 %v6403
      %v6503 = vpop.f32.mrf.mxu0
      %v6504 = vadd.f32 0.0, %v6503
      %v6505 = vpop.f32.mrf.mxu0
      %v6506 = vpop.f32.mrf.mxu0
      %v6507 = vadd.f32 0.0, %v6506
      %v6508 = vpop.f32.mrf.mxu0
      %6509 = vmatprep.mubr.bf16.mxu0 0
      %6510 = vmatmul.mubr.bf16.gmra.mxu0 %v6406
      %v6511 = vpop.f32.mrf.mxu0
      %v6512 = vadd.f32 0.0, %v6511
      %v6513 = vpop.f32.mrf.mxu0
      %v6514 = vpop.f32.mrf.mxu0
      %v6515 = vadd.f32 0.0, %v6514
      %v6516 = vpop.f32.mrf.mxu0
      %6517 = vmatprep.mubr.bf16.mxu0 0
      %6518 = vmatmul.mubr.bf16.gmra.mxu0 %v6409
      %v6519 = vpop.f32.mrf.mxu0
      %v6520 = vadd.f32 0.0, %v6519
      %v6521 = vpop.f32.mrf.mxu0
      %v6522 = vpop.f32.mrf.mxu0
      %v6523 = vadd.f32 0.0, %v6522
      %v6524 = vpop.f32.mrf.mxu0
      %6525 = vmatprep.mubr.bf16.mxu0 0
      %6526 = vmatmul.mubr.bf16.gmra.mxu0 %v6412
      %v6527 = vpop.f32.mrf.mxu0
      %v6528 = vadd.f32 0.0, %v6527
      %v6529 = vpop.f32.mrf.mxu0
      %v6530 = vpop.f32.mrf.mxu0
      %v6531 = vadd.f32 0.0, %v6530
      %v6532 = vpop.f32.mrf.mxu0
      %6533 = vmatprep.mubr.bf16.mxu0 0
      %6534 = vmatmul.mubr.bf16.gmra.mxu0 %v6415
      %v6535 = vpop.f32.mrf.mxu0
      %v6536 = vadd.f32 0.0, %v6535
      %v6537 = vpop.f32.mrf.mxu0
      %v6538 = vpop.f32.mrf.mxu0
      %v6539 = vadd.f32 0.0, %v6538
      %v6540 = vpop.f32.mrf.mxu0
      %6541 = vmatprep.mubr.bf16.mxu0 0
      %6542 = vmatmul.mubr.bf16.gmra.mxu0 %v6418
      %v6543 = vpop.f32.mrf.mxu0
      %v6544 = vadd.f32 0.0, %v6543
      %v6545 = vpop.f32.mrf.mxu0
      %v6546 = vpop.f32.mrf.mxu0
      %v6547 = vadd.f32 0.0, %v6546
      %v6548 = vpop.f32.mrf.mxu0
      %6549 = vmatprep.mubr.bf16.mxu0 0
      %6550 = vmatmul.mubr.bf16.gmra.mxu0 %v6421
      %v6551 = vpop.f32.mrf.mxu0
      %v6552 = vadd.f32 0.0, %v6551
      %v6553 = vpop.f32.mrf.mxu0
      %v6554 = vpop.f32.mrf.mxu0
      %v6555 = vadd.f32 0.0, %v6554
      %v6556 = vpop.f32.mrf.mxu0
      %6557 = vmatprep.mubr.bf16.mxu0 0
      %6558 = vmatmul.mubr.bf16.gmra.mxu0 %v6424
      %v6559 = vpop.f32.mrf.mxu0
      %v6560 = vadd.f32 0.0, %v6559
      %v6561 = vpop.f32.mrf.mxu0
      %v6562 = vpop.f32.mrf.mxu0
      %v6563 = vadd.f32 0.0, %v6562
      %v6564 = vpop.f32.mrf.mxu0
      %6565 = vmatprep.mubr.bf16.mxu0 0
      %6566 = vmatmul.mubr.bf16.gmra.mxu0 %v6427
      %v6567 = vpop.f32.mrf.mxu0
      %v6568 = vadd.f32 0.0, %v6567
      %v6569 = vpop.f32.mrf.mxu0
      %v6570 = vpop.f32.mrf.mxu0
      %v6571 = vadd.f32 0.0, %v6570
      %v6572 = vpop.f32.mrf.mxu0
      %6573 = vmatprep.mubr.bf16.mxu0 0
      %6574 = vmatmul.mubr.bf16.gmra.mxu0 %v6430
      %v6575 = vpop.f32.mrf.mxu0
      %v6576 = vadd.f32 0.0, %v6575
      %v6577 = vpop.f32.mrf.mxu0
      %v6578 = vpop.f32.mrf.mxu0
      %v6579 = vadd.f32 0.0, %v6578
      %v6580 = vpop.f32.mrf.mxu0
      %6581 = vmatprep.mubr.bf16.mxu0 0
      %6582 = vmatmul.mubr.bf16.gmra.mxu0 %v6433
      %v6583 = vpop.f32.mrf.mxu0
      %v6584 = vadd.f32 0.0, %v6583
      %v6585 = vpop.f32.mrf.mxu0
      %v6586 = vpop.f32.mrf.mxu0
      %v6587 = vadd.f32 0.0, %v6586
      %v6588 = vpop.f32.mrf.mxu0
      %6589 = vmatprep.mubr.bf16.mxu0 0
      %6590 = vmatmul.mubr.bf16.gmra.mxu0 %v6436
      %v6591 = vpop.f32.mrf.mxu0
      %v6592 = vadd.f32 0.0, %v6591
      %v6593 = vpop.f32.mrf.mxu0
      %v6594 = vpop.f32.mrf.mxu0
      %v6595 = vadd.f32 0.0, %v6594
      %v6596 = vpop.f32.mrf.mxu0
      %6597 = vmatprep.mubr.bf16.mxu0 0
      %6598 = vmatmul.mubr.bf16.gmra.mxu0 %v6439
      %v6599 = vpop.f32.mrf.mxu0
      %v6600 = vadd.f32 0.0, %v6599
      %v6601 = vpop.f32.mrf.mxu0
      %v6602 = vpop.f32.mrf.mxu0
      %v6603 = vadd.f32 0.0, %v6602
      %v6604 = vpop.f32.mrf.mxu0
      %6605 = vmatprep.mubr.bf16.mxu0 0
      %6606 = vmatmul.mubr.bf16.gmra.mxu0 %v6442
      %v6607 = vpop.f32.mrf.mxu0
      %v6608 = vadd.f32 0.0, %v6607
      %v6609 = vpop.f32.mrf.mxu0
      %v6610 = vpop.f32.mrf.mxu0
      %v6611 = vadd.f32 0.0, %v6610
      %v6612 = vpop.f32.mrf.mxu0
      %6613 = vmatprep.mubr.bf16.mxu0 0
      %6614 = vmatmul.mubr.bf16.gmra.mxu0 %v6445
      %v6615 = vpop.f32.mrf.mxu0
      %v6616 = vadd.f32 0.0, %v6615
      %v6617 = vpop.f32.mrf.mxu0
      %v6618 = vpop.f32.mrf.mxu0
      %v6619 = vadd.f32 0.0, %v6618
      %v6620 = vpop.f32.mrf.mxu0
      %6621 = vmatprep.mubr.bf16.mxu0 0
      %6622 = vmatmul.mubr.bf16.gmra.mxu0 %v6448
      %v6623 = vpop.f32.mrf.mxu0
      %v6624 = vadd.f32 0.0, %v6623
      %v6625 = vpop.f32.mrf.mxu0
      %v6626 = vpop.f32.mrf.mxu0
      %v6627 = vadd.f32 0.0, %v6626
      %v6628 = vpop.f32.mrf.mxu0
      %6629 = vdwg.mxu0
      %v6630 = vld [vmem:[#allocation4] sm:$0xff]
      %v6631 = vld [vmem:[#allocation4 + $0x8] sm:$0xff]
      %v6632 = vld [vmem:[#allocation4 + $0x10] sm:$0xff]
      %v6633 = vld [vmem:[#allocation4 + $0x18] sm:$0xff]
      %v6634 = vld [vmem:[#allocation4 + $0x20] sm:$0xff]
      %v6635 = vld [vmem:[#allocation4 + $0x28] sm:$0xff]
      %v6636 = vld [vmem:[#allocation4 + $0x30] sm:$0xff]
      %v6637 = vld [vmem:[#allocation4 + $0x38] sm:$0xff]
      %v6638 = vld [vmem:[#allocation4 + $0x40] sm:$0xff]
      %v6639 = vld [vmem:[#allocation4 + $0x48] sm:$0xff]
      %v6640 = vld [vmem:[#allocation4 + $0x50] sm:$0xff]
      %v6641 = vld [vmem:[#allocation4 + $0x58] sm:$0xff]
      %v6642 = vld [vmem:[#allocation4 + $0x60] sm:$0xff]
      %v6643 = vld [vmem:[#allocation4 + $0x68] sm:$0xff]
      %v6644 = vld [vmem:[#allocation4 + $0x70] sm:$0xff]
      %v6645 = vld [vmem:[#allocation4 + $0x78] sm:$0xff]
      %v6646 = vld [vmem:[#allocation4 + $0x80] sm:$0xff]
      %v6647 = vld [vmem:[#allocation4 + $0x88] sm:$0xff]
      %v6648 = vld [vmem:[#allocation4 + $0x90] sm:$0xff]
      %v6649 = vld [vmem:[#allocation4 + $0x98] sm:$0xff]
      %v6650 = vld [vmem:[#allocation4 + $0xa0] sm:$0xff]
      %v6651 = vld [vmem:[#allocation4 + $0xa8] sm:$0xff]
      %v6652 = vld [vmem:[#allocation4 + $0xb0] sm:$0xff]
      %v6653 = vld [vmem:[#allocation4 + $0xb8] sm:$0xff]
      %v6654 = vld [vmem:[#allocation4 + $0xc0] sm:$0xff]
      %v6655 = vld [vmem:[#allocation4 + $0xc8] sm:$0xff]
      %v6656 = vld [vmem:[#allocation4 + $0xd0] sm:$0xff]
      %v6657 = vld [vmem:[#allocation4 + $0xd8] sm:$0xff]
      %v6658 = vld [vmem:[#allocation4 + $0xe0] sm:$0xff]
      %v6659 = vld [vmem:[#allocation4 + $0xe8] sm:$0xff]
      %v6660 = vld [vmem:[#allocation4 + $0xf0] sm:$0xff]
      %v6661 = vld [vmem:[#allocation4 + $0xf8] sm:$0xff]
      %v6662 = vld [vmem:[#allocation4 + $0x100] sm:$0xff]
      %v6663 = vld [vmem:[#allocation4 + $0x108] sm:$0xff]
      %v6664 = vld [vmem:[#allocation4 + $0x110] sm:$0xff]
      %v6665 = vld [vmem:[#allocation4 + $0x118] sm:$0xff]
      %v6666 = vadd.f32 %v6630, %v6488
      %v6667 = vadd.f32 %v6631, %v6491
      %v6668 = vadd.f32 %v6632, %v6496
      %v6669 = vadd.f32 %v6633, %v6499
      %v6670 = vadd.f32 %v6634, %v6504
      %v6671 = vadd.f32 %v6635, %v6507
      %v6672 = vadd.f32 %v6636, %v6512
      %v6673 = vadd.f32 %v6637, %v6515
      %v6674 = vadd.f32 %v6638, %v6520
      %v6675 = vadd.f32 %v6639, %v6523
      %v6676 = vadd.f32 %v6640, %v6528
      %v6677 = vadd.f32 %v6641, %v6531
      %v6678 = vadd.f32 %v6642, %v6536
      %v6679 = vadd.f32 %v6643, %v6539
      %v6680 = vadd.f32 %v6644, %v6544
      %v6681 = vadd.f32 %v6645, %v6547
      %v6682 = vadd.f32 %v6646, %v6552
      %v6683 = vadd.f32 %v6647, %v6555
      %v6684 = vadd.f32 %v6648, %v6560
      %v6685 = vadd.f32 %v6649, %v6563
      %v6686 = vadd.f32 %v6650, %v6568
      %v6687 = vadd.f32 %v6651, %v6571
      %v6688 = vadd.f32 %v6652, %v6576
      %v6689 = vadd.f32 %v6653, %v6579
      %v6690 = vadd.f32 %v6654, %v6584
      %v6691 = vadd.f32 %v6655, %v6587
      %v6692 = vadd.f32 %v6656, %v6592
      %v6693 = vadd.f32 %v6657, %v6595
      %v6694 = vadd.f32 %v6658, %v6600
      %v6695 = vadd.f32 %v6659, %v6603
      %v6696 = vadd.f32 %v6660, %v6608
      %v6697 = vadd.f32 %v6661, %v6611
      %v6698 = vadd.f32 %v6662, %v6616
      %v6699 = vadd.f32 %v6663, %v6619
      %v6700 = vadd.f32 %v6664, %v6624
      %v6701 = vadd.f32 %v6665, %v6627
      %6702 = vst.msk [vmem:[#allocation4] sm:$0xff] %vm589, %v6666
      %6703 = vst.msk [vmem:[#allocation4 + $0x8] sm:$0xff] %vm589, %v6667
      %6704 = vst.msk [vmem:[#allocation4 + $0x10] sm:$0xff] %vm589, %v6668
      %6705 = vst.msk [vmem:[#allocation4 + $0x18] sm:$0xff] %vm589, %v6669
      %6706 = vst.msk [vmem:[#allocation4 + $0x20] sm:$0xff] %vm589, %v6670
      %6707 = vst.msk [vmem:[#allocation4 + $0x28] sm:$0xff] %vm589, %v6671
      %6708 = vst.msk [vmem:[#allocation4 + $0x30] sm:$0xff] %vm589, %v6672
      %6709 = vst.msk [vmem:[#allocation4 + $0x38] sm:$0xff] %vm589, %v6673
      %6710 = vst.msk [vmem:[#allocation4 + $0x40] sm:$0xff] %vm589, %v6674
      %6711 = vst.msk [vmem:[#allocation4 + $0x48] sm:$0xff] %vm589, %v6675
      %6712 = vst.msk [vmem:[#allocation4 + $0x50] sm:$0xff] %vm589, %v6676
      %6713 = vst.msk [vmem:[#allocation4 + $0x58] sm:$0xff] %vm589, %v6677
      %6714 = vst.msk [vmem:[#allocation4 + $0x60] sm:$0xff] %vm589, %v6678
      %6715 = vst.msk [vmem:[#allocation4 + $0x68] sm:$0xff] %vm589, %v6679
      %6716 = vst.msk [vmem:[#allocation4 + $0x70] sm:$0xff] %vm589, %v6680
      %6717 = vst.msk [vmem:[#allocation4 + $0x78] sm:$0xff] %vm589, %v6681
      %6718 = vst.msk [vmem:[#allocation4 + $0x80] sm:$0xff] %vm589, %v6682
      %6719 = vst.msk [vmem:[#allocation4 + $0x88] sm:$0xff] %vm589, %v6683
      %6720 = vst.msk [vmem:[#allocation4 + $0x90] sm:$0xff] %vm589, %v6684
      %6721 = vst.msk [vmem:[#allocation4 + $0x98] sm:$0xff] %vm589, %v6685
      %6722 = vst.msk [vmem:[#allocation4 + $0xa0] sm:$0xff] %vm589, %v6686
      %6723 = vst.msk [vmem:[#allocation4 + $0xa8] sm:$0xff] %vm589, %v6687
      %6724 = vst.msk [vmem:[#allocation4 + $0xb0] sm:$0xff] %vm589, %v6688
      %6725 = vst.msk [vmem:[#allocation4 + $0xb8] sm:$0xff] %vm589, %v6689
      %6726 = vst.msk [vmem:[#allocation4 + $0xc0] sm:$0xff] %vm589, %v6690
      %6727 = vst.msk [vmem:[#allocation4 + $0xc8] sm:$0xff] %vm589, %v6691
      %6728 = vst.msk [vmem:[#allocation4 + $0xd0] sm:$0xff] %vm589, %v6692
      %6729 = vst.msk [vmem:[#allocation4 + $0xd8] sm:$0xff] %vm589, %v6693
      %6730 = vst.msk [vmem:[#allocation4 + $0xe0] sm:$0xff] %vm589, %v6694
      %6731 = vst.msk [vmem:[#allocation4 + $0xe8] sm:$0xff] %vm589, %v6695
      %6732 = vst.msk [vmem:[#allocation4 + $0xf0] sm:$0xff] %vm589, %v6696
      %6733 = vst.msk [vmem:[#allocation4 + $0xf8] sm:$0xff] %vm589, %v6697
      %6734 = vst.msk [vmem:[#allocation4 + $0x100] sm:$0xff] %vm589, %v6698
      %6735 = vst.msk [vmem:[#allocation4 + $0x108] sm:$0xff] %vm589, %v6699
      %6736 = vst.msk [vmem:[#allocation4 + $0x110] sm:$0xff] %vm589, %v6700
      %6737 = vst.msk [vmem:[#allocation4 + $0x118] sm:$0xff] %vm589, %v6701
      %v6738 = vld [vmem:[#allocation3 + $0x2] sm:$0xff]
      %v6739 = vld [vmem:[#allocation3 + $0xa] sm:$0xff]
      %v6740 = vld [vmem:[#allocation3 + $0x12] sm:$0xff]
      %v6741 = vld [vmem:[#allocation3 + $0x1a] sm:$0xff]
      %v6742 = vld [vmem:[#allocation3 + $0x22] sm:$0xff]
      %v6743 = vld [vmem:[#allocation3 + $0x2a] sm:$0xff]
      %v6744 = vld [vmem:[#allocation3 + $0x32] sm:$0xff]
      %v6745 = vld [vmem:[#allocation3 + $0x3a] sm:$0xff]
      %v6746 = vld [vmem:[#allocation3 + $0x42] sm:$0xff]
      %v6747 = vld [vmem:[#allocation3 + $0x4a] sm:$0xff]
      %v6748 = vld [vmem:[#allocation3 + $0x52] sm:$0xff]
      %v6749 = vld [vmem:[#allocation3 + $0x5a] sm:$0xff]
      %v6750 = vld [vmem:[#allocation3 + $0x62] sm:$0xff]
      %v6751 = vld [vmem:[#allocation3 + $0x6a] sm:$0xff]
      %v6752 = vld [vmem:[#allocation3 + $0x72] sm:$0xff]
      %v6753 = vld [vmem:[#allocation3 + $0x7a] sm:$0xff]
      %v6754 = vld [vmem:[#allocation3 + $0x82] sm:$0xff]
      %v6755 = vld [vmem:[#allocation3 + $0x8a] sm:$0xff]
      %v6756 = vld [vmem:[#allocation3 + $0x92] sm:$0xff]
      %v6757 = vld [vmem:[#allocation3 + $0x9a] sm:$0xff]
      %v6758 = vld [vmem:[#allocation3 + $0xa2] sm:$0xff]
      %v6759 = vld [vmem:[#allocation3 + $0xaa] sm:$0xff]
      %v6760 = vld [vmem:[#allocation3 + $0xb2] sm:$0xff]
      %v6761 = vld [vmem:[#allocation3 + $0xba] sm:$0xff]
      %v6762 = vld [vmem:[#allocation3 + $0xc2] sm:$0xff]
      %v6763 = vld [vmem:[#allocation3 + $0xca] sm:$0xff]
      %v6764 = vld [vmem:[#allocation3 + $0xd2] sm:$0xff]
      %v6765 = vld [vmem:[#allocation3 + $0xda] sm:$0xff]
      %v6766 = vld [vmem:[#allocation3 + $0xe2] sm:$0xff]
      %v6767 = vld [vmem:[#allocation3 + $0xea] sm:$0xff]
      %v6768 = vld [vmem:[#allocation3 + $0xf2] sm:$0xff]
      %v6769 = vld [vmem:[#allocation3 + $0xfa] sm:$0xff]
      %v6770 = vld [vmem:[#allocation3 + $0x102] sm:$0xff]
      %v6771 = vld [vmem:[#allocation3 + $0x10a] sm:$0xff]
      %v6772 = vld [vmem:[#allocation3 + $0x112] sm:$0xff]
      %v6773 = vld [vmem:[#allocation3 + $0x11a] sm:$0xff]
      %v6774 = vpack.c.bf16 %v6739, %v6738
      %v6775 = vpack.c.bf16 %v6741, %v6740
      %v6776 = vpack.c.bf16 %v6743, %v6742
      %v6777 = vpack.c.bf16 %v6745, %v6744
      %v6778 = vpack.c.bf16 %v6747, %v6746
      %v6779 = vpack.c.bf16 %v6749, %v6748
      %v6780 = vpack.c.bf16 %v6751, %v6750
      %v6781 = vpack.c.bf16 %v6753, %v6752
      %v6782 = vpack.c.bf16 %v6755, %v6754
      %v6783 = vpack.c.bf16 %v6757, %v6756
      %v6784 = vpack.c.bf16 %v6759, %v6758
      %v6785 = vpack.c.bf16 %v6761, %v6760
      %v6786 = vpack.c.bf16 %v6763, %v6762
      %v6787 = vpack.c.bf16 %v6765, %v6764
      %v6788 = vpack.c.bf16 %v6767, %v6766
      %v6789 = vpack.c.bf16 %v6769, %v6768
      %v6790 = vpack.c.bf16 %v6771, %v6770
      %v6791 = vpack.c.bf16 %v6773, %v6772
      %s6792 = scalar_lea.vmem %s3, 4
      %v6793 = vld [vmem:[%s6792] sm:$0x3]
      %v6795 = vsel %vm589, %v6774, 0
      %v6798 = vsel %vm589, %v6775, 0
      %v6801 = vsel %vm589, %v6776, 0
      %v6804 = vsel %vm589, %v6777, 0
      %v6807 = vsel %vm589, %v6778, 0
      %v6810 = vsel %vm589, %v6779, 0
      %v6813 = vsel %vm589, %v6780, 0
      %v6816 = vsel %vm589, %v6781, 0
      %v6819 = vsel %vm589, %v6782, 0
      %v6822 = vsel %vm589, %v6783, 0
      %v6825 = vsel %vm589, %v6784, 0
      %v6828 = vsel %vm589, %v6785, 0
      %v6831 = vsel %vm589, %v6786, 0
      %v6834 = vsel %vm589, %v6787, 0
      %v6837 = vsel %vm589, %v6788, 0
      %v6840 = vsel %vm589, %v6789, 0
      %v6843 = vsel %vm589, %v6790, 0
      %v6846 = vsel %vm589, %v6791, 0
      %v6849 = vsel %vm6123, %v6793, 0
      %6851 = vmatprep.subr.bf16.mxu0 0
      %6852 = vmatpush1.bf16.msra.mxu0 0
      %6853 = vmatprep.subr.bf16.mxu0 0
      %6854 = vmatpush1.bf16.msra.mxu0 0
      %6855 = vmatprep.subr.bf16.mxu0 0
      %6856 = vmatpush1.bf16.msra.mxu0 0
      %6857 = vmatprep.subr.bf16.mxu0 0
      %6858 = vmatpush1.bf16.msra.mxu0 0
      %6859 = vmatprep.subr.bf16.mxu0 0
      %6860 = vmatpush1.bf16.msra.mxu0 0
      %6861 = vmatprep.subr.bf16.mxu0 0
      %6862 = vmatpush1.bf16.msra.mxu0 0
      %6863 = vmatprep.subr.bf16.mxu0 0
      %6864 = vmatpush1.bf16.msra.mxu0 0
      %6865 = vmatprep.subr.bf16.mxu0 0
      %6866 = vmatpush1.bf16.msra.mxu0 %v6849
      %6867 = vmatprep.subr.bf16.mxu0 0
      %6868 = vmatpush2.bf16.msra.mxu0 0
      %6869 = vmatprep.subr.bf16.mxu0 0
      %6870 = vmatpush2.bf16.msra.mxu0 0
      %6871 = vmatprep.subr.bf16.mxu0 0
      %6872 = vmatpush2.bf16.msra.mxu0 0
      %6873 = vmatprep.subr.bf16.mxu0 0
      %6874 = vmatpush2.bf16.msra.mxu0 0
      %6875 = vmatprep.subr.bf16.mxu0 0
      %6876 = vmatpush2.bf16.msra.mxu0 0
      %6877 = vmatprep.subr.bf16.mxu0 0
      %6878 = vmatpush2.bf16.msra.mxu0 0
      %6879 = vmatprep.subr.bf16.mxu0 0
      %6880 = vmatpush2.bf16.msra.mxu0 0
      %6881 = vmatprep.subr.bf16.mxu0 0
      %6882 = vmatpush2.bf16.msra.mxu0 0
      %6883 = vmatprep.mubr.bf16.mxu0 0
      %6884 = vmatmul.mubr.bf16.gmra.mxu0 %v6795
      %v6885 = vpop.f32.mrf.mxu0
      %v6886 = vadd.f32 0.0, %v6885
      %v6887 = vpop.f32.mrf.mxu0
      %v6888 = vpop.f32.mrf.mxu0
      %v6889 = vadd.f32 0.0, %v6888
      %v6890 = vpop.f32.mrf.mxu0
      %6891 = vmatprep.mubr.bf16.mxu0 0
      %6892 = vmatmul.mubr.bf16.gmra.mxu0 %v6798
      %v6893 = vpop.f32.mrf.mxu0
      %v6894 = vadd.f32 0.0, %v6893
      %v6895 = vpop.f32.mrf.mxu0
      %v6896 = vpop.f32.mrf.mxu0
      %v6897 = vadd.f32 0.0, %v6896
      %v6898 = vpop.f32.mrf.mxu0
      %6899 = vmatprep.mubr.bf16.mxu0 0
      %6900 = vmatmul.mubr.bf16.gmra.mxu0 %v6801
      %v6901 = vpop.f32.mrf.mxu0
      %v6902 = vadd.f32 0.0, %v6901
      %v6903 = vpop.f32.mrf.mxu0
      %v6904 = vpop.f32.mrf.mxu0
      %v6905 = vadd.f32 0.0, %v6904
      %v6906 = vpop.f32.mrf.mxu0
      %6907 = vmatprep.mubr.bf16.mxu0 0
      %6908 = vmatmul.mubr.bf16.gmra.mxu0 %v6804
      %v6909 = vpop.f32.mrf.mxu0
      %v6910 = vadd.f32 0.0, %v6909
      %v6911 = vpop.f32.mrf.mxu0
      %v6912 = vpop.f32.mrf.mxu0
      %v6913 = vadd.f32 0.0, %v6912
      %v6914 = vpop.f32.mrf.mxu0
      %6915 = vmatprep.mubr.bf16.mxu0 0
      %6916 = vmatmul.mubr.bf16.gmra.mxu0 %v6807
      %v6917 = vpop.f32.mrf.mxu0
      %v6918 = vadd.f32 0.0, %v6917
      %v6919 = vpop.f32.mrf.mxu0
      %v6920 = vpop.f32.mrf.mxu0
      %v6921 = vadd.f32 0.0, %v6920
      %v6922 = vpop.f32.mrf.mxu0
      %6923 = vmatprep.mubr.bf16.mxu0 0
      %6924 = vmatmul.mubr.bf16.gmra.mxu0 %v6810
      %v6925 = vpop.f32.mrf.mxu0
      %v6926 = vadd.f32 0.0, %v6925
      %v6927 = vpop.f32.mrf.mxu0
      %v6928 = vpop.f32.mrf.mxu0
      %v6929 = vadd.f32 0.0, %v6928
      %v6930 = vpop.f32.mrf.mxu0
      %6931 = vmatprep.mubr.bf16.mxu0 0
      %6932 = vmatmul.mubr.bf16.gmra.mxu0 %v6813
      %v6933 = vpop.f32.mrf.mxu0
      %v6934 = vadd.f32 0.0, %v6933
      %v6935 = vpop.f32.mrf.mxu0
      %v6936 = vpop.f32.mrf.mxu0
      %v6937 = vadd.f32 0.0, %v6936
      %v6938 = vpop.f32.mrf.mxu0
      %6939 = vmatprep.mubr.bf16.mxu0 0
      %6940 = vmatmul.mubr.bf16.gmra.mxu0 %v6816
      %v6941 = vpop.f32.mrf.mxu0
      %v6942 = vadd.f32 0.0, %v6941
      %v6943 = vpop.f32.mrf.mxu0
      %v6944 = vpop.f32.mrf.mxu0
      %v6945 = vadd.f32 0.0, %v6944
      %v6946 = vpop.f32.mrf.mxu0
      %6947 = vmatprep.mubr.bf16.mxu0 0
      %6948 = vmatmul.mubr.bf16.gmra.mxu0 %v6819
      %v6949 = vpop.f32.mrf.mxu0
      %v6950 = vadd.f32 0.0, %v6949
      %v6951 = vpop.f32.mrf.mxu0
      %v6952 = vpop.f32.mrf.mxu0
      %v6953 = vadd.f32 0.0, %v6952
      %v6954 = vpop.f32.mrf.mxu0
      %6955 = vmatprep.mubr.bf16.mxu0 0
      %6956 = vmatmul.mubr.bf16.gmra.mxu0 %v6822
      %v6957 = vpop.f32.mrf.mxu0
      %v6958 = vadd.f32 0.0, %v6957
      %v6959 = vpop.f32.mrf.mxu0
      %v6960 = vpop.f32.mrf.mxu0
      %v6961 = vadd.f32 0.0, %v6960
      %v6962 = vpop.f32.mrf.mxu0
      %6963 = vmatprep.mubr.bf16.mxu0 0
      %6964 = vmatmul.mubr.bf16.gmra.mxu0 %v6825
      %v6965 = vpop.f32.mrf.mxu0
      %v6966 = vadd.f32 0.0, %v6965
      %v6967 = vpop.f32.mrf.mxu0
      %v6968 = vpop.f32.mrf.mxu0
      %v6969 = vadd.f32 0.0, %v6968
      %v6970 = vpop.f32.mrf.mxu0
      %6971 = vmatprep.mubr.bf16.mxu0 0
      %6972 = vmatmul.mubr.bf16.gmra.mxu0 %v6828
      %v6973 = vpop.f32.mrf.mxu0
      %v6974 = vadd.f32 0.0, %v6973
      %v6975 = vpop.f32.mrf.mxu0
      %v6976 = vpop.f32.mrf.mxu0
      %v6977 = vadd.f32 0.0, %v6976
      %v6978 = vpop.f32.mrf.mxu0
      %6979 = vmatprep.mubr.bf16.mxu0 0
      %6980 = vmatmul.mubr.bf16.gmra.mxu0 %v6831
      %v6981 = vpop.f32.mrf.mxu0
      %v6982 = vadd.f32 0.0, %v6981
      %v6983 = vpop.f32.mrf.mxu0
      %v6984 = vpop.f32.mrf.mxu0
      %v6985 = vadd.f32 0.0, %v6984
      %v6986 = vpop.f32.mrf.mxu0
      %6987 = vmatprep.mubr.bf16.mxu0 0
      %6988 = vmatmul.mubr.bf16.gmra.mxu0 %v6834
      %v6989 = vpop.f32.mrf.mxu0
      %v6990 = vadd.f32 0.0, %v6989
      %v6991 = vpop.f32.mrf.mxu0
      %v6992 = vpop.f32.mrf.mxu0
      %v6993 = vadd.f32 0.0, %v6992
      %v6994 = vpop.f32.mrf.mxu0
      %6995 = vmatprep.mubr.bf16.mxu0 0
      %6996 = vmatmul.mubr.bf16.gmra.mxu0 %v6837
      %v6997 = vpop.f32.mrf.mxu0
      %v6998 = vadd.f32 0.0, %v6997
      %v6999 = vpop.f32.mrf.mxu0
      %v7000 = vpop.f32.mrf.mxu0
      %v7001 = vadd.f32 0.0, %v7000
      %v7002 = vpop.f32.mrf.mxu0
      %7003 = vmatprep.mubr.bf16.mxu0 0
      %7004 = vmatmul.mubr.bf16.gmra.mxu0 %v6840
      %v7005 = vpop.f32.mrf.mxu0
      %v7006 = vadd.f32 0.0, %v7005
      %v7007 = vpop.f32.mrf.mxu0
      %v7008 = vpop.f32.mrf.mxu0
      %v7009 = vadd.f32 0.0, %v7008
      %v7010 = vpop.f32.mrf.mxu0
      %7011 = vmatprep.mubr.bf16.mxu0 0
      %7012 = vmatmul.mubr.bf16.gmra.mxu0 %v6843
      %v7013 = vpop.f32.mrf.mxu0
      %v7014 = vadd.f32 0.0, %v7013
      %v7015 = vpop.f32.mrf.mxu0
      %v7016 = vpop.f32.mrf.mxu0
      %v7017 = vadd.f32 0.0, %v7016
      %v7018 = vpop.f32.mrf.mxu0
      %7019 = vmatprep.mubr.bf16.mxu0 0
      %7020 = vmatmul.mubr.bf16.gmra.mxu0 %v6846
      %v7021 = vpop.f32.mrf.mxu0
      %v7022 = vadd.f32 0.0, %v7021
      %v7023 = vpop.f32.mrf.mxu0
      %v7024 = vpop.f32.mrf.mxu0
      %v7025 = vadd.f32 0.0, %v7024
      %v7026 = vpop.f32.mrf.mxu0
      %7027 = vdwg.mxu0
      %v7028 = vld [vmem:[#allocation4] sm:$0xff]
      %v7029 = vld [vmem:[#allocation4 + $0x8] sm:$0xff]
      %v7030 = vld [vmem:[#allocation4 + $0x10] sm:$0xff]
      %v7031 = vld [vmem:[#allocation4 + $0x18] sm:$0xff]
      %v7032 = vld [vmem:[#allocation4 + $0x20] sm:$0xff]
      %v7033 = vld [vmem:[#allocation4 + $0x28] sm:$0xff]
      %v7034 = vld [vmem:[#allocation4 + $0x30] sm:$0xff]
      %v7035 = vld [vmem:[#allocation4 + $0x38] sm:$0xff]
      %v7036 = vld [vmem:[#allocation4 + $0x40] sm:$0xff]
      %v7037 = vld [vmem:[#allocation4 + $0x48] sm:$0xff]
      %v7038 = vld [vmem:[#allocation4 + $0x50] sm:$0xff]
      %v7039 = vld [vmem:[#allocation4 + $0x58] sm:$0xff]
      %v7040 = vld [vmem:[#allocation4 + $0x60] sm:$0xff]
      %v7041 = vld [vmem:[#allocation4 + $0x68] sm:$0xff]
      %v7042 = vld [vmem:[#allocation4 + $0x70] sm:$0xff]
      %v7043 = vld [vmem:[#allocation4 + $0x78] sm:$0xff]
      %v7044 = vld [vmem:[#allocation4 + $0x80] sm:$0xff]
      %v7045 = vld [vmem:[#allocation4 + $0x88] sm:$0xff]
      %v7046 = vld [vmem:[#allocation4 + $0x90] sm:$0xff]
      %v7047 = vld [vmem:[#allocation4 + $0x98] sm:$0xff]
      %v7048 = vld [vmem:[#allocation4 + $0xa0] sm:$0xff]
      %v7049 = vld [vmem:[#allocation4 + $0xa8] sm:$0xff]
      %v7050 = vld [vmem:[#allocation4 + $0xb0] sm:$0xff]
      %v7051 = vld [vmem:[#allocation4 + $0xb8] sm:$0xff]
      %v7052 = vld [vmem:[#allocation4 + $0xc0] sm:$0xff]
      %v7053 = vld [vmem:[#allocation4 + $0xc8] sm:$0xff]
      %v7054 = vld [vmem:[#allocation4 + $0xd0] sm:$0xff]
      %v7055 = vld [vmem:[#allocation4 + $0xd8] sm:$0xff]
      %v7056 = vld [vmem:[#allocation4 + $0xe0] sm:$0xff]
      %v7057 = vld [vmem:[#allocation4 + $0xe8] sm:$0xff]
      %v7058 = vld [vmem:[#allocation4 + $0xf0] sm:$0xff]
      %v7059 = vld [vmem:[#allocation4 + $0xf8] sm:$0xff]
      %v7060 = vld [vmem:[#allocation4 + $0x100] sm:$0xff]
      %v7061 = vld [vmem:[#allocation4 + $0x108] sm:$0xff]
      %v7062 = vld [vmem:[#allocation4 + $0x110] sm:$0xff]
      %v7063 = vld [vmem:[#allocation4 + $0x118] sm:$0xff]
      %v7064 = vadd.f32 %v7028, %v6886
      %v7065 = vadd.f32 %v7029, %v6889
      %v7066 = vadd.f32 %v7030, %v6894
      %v7067 = vadd.f32 %v7031, %v6897
      %v7068 = vadd.f32 %v7032, %v6902
      %v7069 = vadd.f32 %v7033, %v6905
      %v7070 = vadd.f32 %v7034, %v6910
      %v7071 = vadd.f32 %v7035, %v6913
      %v7072 = vadd.f32 %v7036, %v6918
      %v7073 = vadd.f32 %v7037, %v6921
      %v7074 = vadd.f32 %v7038, %v6926
      %v7075 = vadd.f32 %v7039, %v6929
      %v7076 = vadd.f32 %v7040, %v6934
      %v7077 = vadd.f32 %v7041, %v6937
      %v7078 = vadd.f32 %v7042, %v6942
      %v7079 = vadd.f32 %v7043, %v6945
      %v7080 = vadd.f32 %v7044, %v6950
      %v7081 = vadd.f32 %v7045, %v6953
      %v7082 = vadd.f32 %v7046, %v6958
      %v7083 = vadd.f32 %v7047, %v6961
      %v7084 = vadd.f32 %v7048, %v6966
      %v7085 = vadd.f32 %v7049, %v6969
      %v7086 = vadd.f32 %v7050, %v6974
      %v7087 = vadd.f32 %v7051, %v6977
      %v7088 = vadd.f32 %v7052, %v6982
      %v7089 = vadd.f32 %v7053, %v6985
      %v7090 = vadd.f32 %v7054, %v6990
      %v7091 = vadd.f32 %v7055, %v6993
      %v7092 = vadd.f32 %v7056, %v6998
      %v7093 = vadd.f32 %v7057, %v7001
      %v7094 = vadd.f32 %v7058, %v7006
      %v7095 = vadd.f32 %v7059, %v7009
      %v7096 = vadd.f32 %v7060, %v7014
      %v7097 = vadd.f32 %v7061, %v7017
      %v7098 = vadd.f32 %v7062, %v7022
      %v7099 = vadd.f32 %v7063, %v7025
      %7100 = vst.msk [vmem:[#allocation4] sm:$0xff] %vm589, %v7064
      %7101 = vst.msk [vmem:[#allocation4 + $0x8] sm:$0xff] %vm589, %v7065
      %7102 = vst.msk [vmem:[#allocation4 + $0x10] sm:$0xff] %vm589, %v7066
      %7103 = vst.msk [vmem:[#allocation4 + $0x18] sm:$0xff] %vm589, %v7067
      %7104 = vst.msk [vmem:[#allocation4 + $0x20] sm:$0xff] %vm589, %v7068
      %7105 = vst.msk [vmem:[#allocation4 + $0x28] sm:$0xff] %vm589, %v7069
      %7106 = vst.msk [vmem:[#allocation4 + $0x30] sm:$0xff] %vm589, %v7070
      %7107 = vst.msk [vmem:[#allocation4 + $0x38] sm:$0xff] %vm589, %v7071
      %7108 = vst.msk [vmem:[#allocation4 + $0x40] sm:$0xff] %vm589, %v7072
      %7109 = vst.msk [vmem:[#allocation4 + $0x48] sm:$0xff] %vm589, %v7073
      %7110 = vst.msk [vmem:[#allocation4 + $0x50] sm:$0xff] %vm589, %v7074
      %7111 = vst.msk [vmem:[#allocation4 + $0x58] sm:$0xff] %vm589, %v7075
      %7112 = vst.msk [vmem:[#allocation4 + $0x60] sm:$0xff] %vm589, %v7076
      %7113 = vst.msk [vmem:[#allocation4 + $0x68] sm:$0xff] %vm589, %v7077
      %7114 = vst.msk [vmem:[#allocation4 + $0x70] sm:$0xff] %vm589, %v7078
      %7115 = vst.msk [vmem:[#allocation4 + $0x78] sm:$0xff] %vm589, %v7079
      %7116 = vst.msk [vmem:[#allocation4 + $0x80] sm:$0xff] %vm589, %v7080
      %7117 = vst.msk [vmem:[#allocation4 + $0x88] sm:$0xff] %vm589, %v7081
      %7118 = vst.msk [vmem:[#allocation4 + $0x90] sm:$0xff] %vm589, %v7082
      %7119 = vst.msk [vmem:[#allocation4 + $0x98] sm:$0xff] %vm589, %v7083
      %7120 = vst.msk [vmem:[#allocation4 + $0xa0] sm:$0xff] %vm589, %v7084
      %7121 = vst.msk [vmem:[#allocation4 + $0xa8] sm:$0xff] %vm589, %v7085
      %7122 = vst.msk [vmem:[#allocation4 + $0xb0] sm:$0xff] %vm589, %v7086
      %7123 = vst.msk [vmem:[#allocation4 + $0xb8] sm:$0xff] %vm589, %v7087
      %7124 = vst.msk [vmem:[#allocation4 + $0xc0] sm:$0xff] %vm589, %v7088
      %7125 = vst.msk [vmem:[#allocation4 + $0xc8] sm:$0xff] %vm589, %v7089
      %7126 = vst.msk [vmem:[#allocation4 + $0xd0] sm:$0xff] %vm589, %v7090
      %7127 = vst.msk [vmem:[#allocation4 + $0xd8] sm:$0xff] %vm589, %v7091
      %7128 = vst.msk [vmem:[#allocation4 + $0xe0] sm:$0xff] %vm589, %v7092
      %7129 = vst.msk [vmem:[#allocation4 + $0xe8] sm:$0xff] %vm589, %v7093
      %7130 = vst.msk [vmem:[#allocation4 + $0xf0] sm:$0xff] %vm589, %v7094
      %7131 = vst.msk [vmem:[#allocation4 + $0xf8] sm:$0xff] %vm589, %v7095
      %7132 = vst.msk [vmem:[#allocation4 + $0x100] sm:$0xff] %vm589, %v7096
      %7133 = vst.msk [vmem:[#allocation4 + $0x108] sm:$0xff] %vm589, %v7097
      %7134 = vst.msk [vmem:[#allocation4 + $0x110] sm:$0xff] %vm589, %v7098
      %7135 = vst.msk [vmem:[#allocation4 + $0x118] sm:$0xff] %vm589, %v7099
      %v7136 = vld [vmem:[#allocation3 + $0x12] sm:$0xff]
      %v7137 = vld [vmem:[#allocation3 + $0x1a] sm:$0xff]
      %v7138 = vld [vmem:[#allocation3 + $0x22] sm:$0xff]
      %v7139 = vld [vmem:[#allocation3 + $0x2a] sm:$0xff]
      %v7140 = vld [vmem:[#allocation3 + $0x32] sm:$0xff]
      %v7141 = vld [vmem:[#allocation3 + $0x3a] sm:$0xff]
      %v7142 = vld [vmem:[#allocation3 + $0x42] sm:$0xff]
      %v7143 = vld [vmem:[#allocation3 + $0x4a] sm:$0xff]
      %v7144 = vld [vmem:[#allocation3 + $0x52] sm:$0xff]
      %v7145 = vld [vmem:[#allocation3 + $0x5a] sm:$0xff]
      %v7146 = vld [vmem:[#allocation3 + $0x62] sm:$0xff]
      %v7147 = vld [vmem:[#allocation3 + $0x6a] sm:$0xff]
      %v7148 = vld [vmem:[#allocation3 + $0x72] sm:$0xff]
      %v7149 = vld [vmem:[#allocation3 + $0x7a] sm:$0xff]
      %v7150 = vld [vmem:[#allocation3 + $0x82] sm:$0xff]
      %v7151 = vld [vmem:[#allocation3 + $0x8a] sm:$0xff]
      %v7152 = vld [vmem:[#allocation3 + $0x92] sm:$0xff]
      %v7153 = vld [vmem:[#allocation3 + $0x9a] sm:$0xff]
      %v7154 = vld [vmem:[#allocation3 + $0xa2] sm:$0xff]
      %v7155 = vld [vmem:[#allocation3 + $0xaa] sm:$0xff]
      %v7156 = vld [vmem:[#allocation3 + $0xb2] sm:$0xff]
      %v7157 = vld [vmem:[#allocation3 + $0xba] sm:$0xff]
      %v7158 = vld [vmem:[#allocation3 + $0xc2] sm:$0xff]
      %v7159 = vld [vmem:[#allocation3 + $0xca] sm:$0xff]
      %v7160 = vld [vmem:[#allocation3 + $0xd2] sm:$0xff]
      %v7161 = vld [vmem:[#allocation3 + $0xda] sm:$0xff]
      %v7162 = vld [vmem:[#allocation3 + $0xe2] sm:$0xff]
      %v7163 = vld [vmem:[#allocation3 + $0xea] sm:$0xff]
      %v7164 = vld [vmem:[#allocation3 + $0xf2] sm:$0xff]
      %v7165 = vld [vmem:[#allocation3 + $0xfa] sm:$0xff]
      %v7166 = vld [vmem:[#allocation3 + $0x102] sm:$0xff]
      %v7167 = vld [vmem:[#allocation3 + $0x10a] sm:$0xff]
      %v7168 = vld [vmem:[#allocation3 + $0x112] sm:$0xff]
      %v7169 = vld [vmem:[#allocation3 + $0x11a] sm:$0xff]
      %v7170 = vld [vmem:[#allocation3 + $0x122] sm:$0xff]
      %v7171 = vld [vmem:[#allocation3 + $0x12a] sm:$0xff]
      %v7172 = vpack.c.bf16 %v7137, %v7136
      %v7173 = vpack.c.bf16 %v7139, %v7138
      %v7174 = vpack.c.bf16 %v7141, %v7140
      %v7175 = vpack.c.bf16 %v7143, %v7142
      %v7176 = vpack.c.bf16 %v7145, %v7144
      %v7177 = vpack.c.bf16 %v7147, %v7146
      %v7178 = vpack.c.bf16 %v7149, %v7148
      %v7179 = vpack.c.bf16 %v7151, %v7150
      %v7180 = vpack.c.bf16 %v7153, %v7152
      %v7181 = vpack.c.bf16 %v7155, %v7154
      %v7182 = vpack.c.bf16 %v7157, %v7156
      %v7183 = vpack.c.bf16 %v7159, %v7158
      %v7184 = vpack.c.bf16 %v7161, %v7160
      %v7185 = vpack.c.bf16 %v7163, %v7162
      %v7186 = vpack.c.bf16 %v7165, %v7164
      %v7187 = vpack.c.bf16 %v7167, %v7166
      %v7188 = vpack.c.bf16 %v7169, %v7168
      %v7189 = vpack.c.bf16 %v7171, %v7170
      %s7190 = scalar_lea.vmem %s3, 6
      %v7191 = vld [vmem:[%s7190] sm:$0x3]
      %v7193 = vsel %vm589, %v7172, 0
      %v7196 = vsel %vm589, %v7173, 0
      %v7199 = vsel %vm589, %v7174, 0
      %v7202 = vsel %vm589, %v7175, 0
      %v7205 = vsel %vm589, %v7176, 0
      %v7208 = vsel %vm589, %v7177, 0
      %v7211 = vsel %vm589, %v7178, 0
      %v7214 = vsel %vm589, %v7179, 0
      %v7217 = vsel %vm589, %v7180, 0
      %v7220 = vsel %vm589, %v7181, 0
      %v7223 = vsel %vm589, %v7182, 0
      %v7226 = vsel %vm589, %v7183, 0
      %v7229 = vsel %vm589, %v7184, 0
      %v7232 = vsel %vm589, %v7185, 0
      %v7235 = vsel %vm589, %v7186, 0
      %v7238 = vsel %vm589, %v7187, 0
      %v7241 = vsel %vm589, %v7188, 0
      %v7244 = vsel %vm589, %v7189, 0
      %v7247 = vsel %vm6123, %v7191, 0
      %7249 = vmatprep.subr.bf16.mxu0 0
      %7250 = vmatpush1.bf16.msra.mxu0 0
      %7251 = vmatprep.subr.bf16.mxu0 0
      %7252 = vmatpush1.bf16.msra.mxu0 0
      %7253 = vmatprep.subr.bf16.mxu0 0
      %7254 = vmatpush1.bf16.msra.mxu0 0
      %7255 = vmatprep.subr.bf16.mxu0 0
      %7256 = vmatpush1.bf16.msra.mxu0 0
      %7257 = vmatprep.subr.bf16.mxu0 0
      %7258 = vmatpush1.bf16.msra.mxu0 0
      %7259 = vmatprep.subr.bf16.mxu0 0
      %7260 = vmatpush1.bf16.msra.mxu0 0
      %7261 = vmatprep.subr.bf16.mxu0 0
      %7262 = vmatpush1.bf16.msra.mxu0 0
      %7263 = vmatprep.subr.bf16.mxu0 0
      %7264 = vmatpush1.bf16.msra.mxu0 %v7247
      %7265 = vmatprep.subr.bf16.mxu0 0
      %7266 = vmatpush2.bf16.msra.mxu0 0
      %7267 = vmatprep.subr.bf16.mxu0 0
      %7268 = vmatpush2.bf16.msra.mxu0 0
      %7269 = vmatprep.subr.bf16.mxu0 0
      %7270 = vmatpush2.bf16.msra.mxu0 0
      %7271 = vmatprep.subr.bf16.mxu0 0
      %7272 = vmatpush2.bf16.msra.mxu0 0
      %7273 = vmatprep.subr.bf16.mxu0 0
      %7274 = vmatpush2.bf16.msra.mxu0 0
      %7275 = vmatprep.subr.bf16.mxu0 0
      %7276 = vmatpush2.bf16.msra.mxu0 0
      %7277 = vmatprep.subr.bf16.mxu0 0
      %7278 = vmatpush2.bf16.msra.mxu0 0
      %7279 = vmatprep.subr.bf16.mxu0 0
      %7280 = vmatpush2.bf16.msra.mxu0 0
      %7281 = vmatprep.mubr.bf16.mxu0 0
      %7282 = vmatmul.mubr.bf16.gmra.mxu0 %v7193
      %v7283 = vpop.f32.mrf.mxu0
      %v7284 = vadd.f32 0.0, %v7283
      %v7285 = vpop.f32.mrf.mxu0
      %v7286 = vpop.f32.mrf.mxu0
      %v7287 = vadd.f32 0.0, %v7286
      %v7288 = vpop.f32.mrf.mxu0
      %7289 = vmatprep.mubr.bf16.mxu0 0
      %7290 = vmatmul.mubr.bf16.gmra.mxu0 %v7196
      %v7291 = vpop.f32.mrf.mxu0
      %v7292 = vadd.f32 0.0, %v7291
      %v7293 = vpop.f32.mrf.mxu0
      %v7294 = vpop.f32.mrf.mxu0
      %v7295 = vadd.f32 0.0, %v7294
      %v7296 = vpop.f32.mrf.mxu0
      %7297 = vmatprep.mubr.bf16.mxu0 0
      %7298 = vmatmul.mubr.bf16.gmra.mxu0 %v7199
      %v7299 = vpop.f32.mrf.mxu0
      %v7300 = vadd.f32 0.0, %v7299
      %v7301 = vpop.f32.mrf.mxu0
      %v7302 = vpop.f32.mrf.mxu0
      %v7303 = vadd.f32 0.0, %v7302
      %v7304 = vpop.f32.mrf.mxu0
      %7305 = vmatprep.mubr.bf16.mxu0 0
      %7306 = vmatmul.mubr.bf16.gmra.mxu0 %v7202
      %v7307 = vpop.f32.mrf.mxu0
      %v7308 = vadd.f32 0.0, %v7307
      %v7309 = vpop.f32.mrf.mxu0
      %v7310 = vpop.f32.mrf.mxu0
      %v7311 = vadd.f32 0.0, %v7310
      %v7312 = vpop.f32.mrf.mxu0
      %7313 = vmatprep.mubr.bf16.mxu0 0
      %7314 = vmatmul.mubr.bf16.gmra.mxu0 %v7205
      %v7315 = vpop.f32.mrf.mxu0
      %v7316 = vadd.f32 0.0, %v7315
      %v7317 = vpop.f32.mrf.mxu0
      %v7318 = vpop.f32.mrf.mxu0
      %v7319 = vadd.f32 0.0, %v7318
      %v7320 = vpop.f32.mrf.mxu0
      %7321 = vmatprep.mubr.bf16.mxu0 0
      %7322 = vmatmul.mubr.bf16.gmra.mxu0 %v7208
      %v7323 = vpop.f32.mrf.mxu0
      %v7324 = vadd.f32 0.0, %v7323
      %v7325 = vpop.f32.mrf.mxu0
      %v7326 = vpop.f32.mrf.mxu0
      %v7327 = vadd.f32 0.0, %v7326
      %v7328 = vpop.f32.mrf.mxu0
      %7329 = vmatprep.mubr.bf16.mxu0 0
      %7330 = vmatmul.mubr.bf16.gmra.mxu0 %v7211
      %v7331 = vpop.f32.mrf.mxu0
      %v7332 = vadd.f32 0.0, %v7331
      %v7333 = vpop.f32.mrf.mxu0
      %v7334 = vpop.f32.mrf.mxu0
      %v7335 = vadd.f32 0.0, %v7334
      %v7336 = vpop.f32.mrf.mxu0
      %7337 = vmatprep.mubr.bf16.mxu0 0
      %7338 = vmatmul.mubr.bf16.gmra.mxu0 %v7214
      %v7339 = vpop.f32.mrf.mxu0
      %v7340 = vadd.f32 0.0, %v7339
      %v7341 = vpop.f32.mrf.mxu0
      %v7342 = vpop.f32.mrf.mxu0
      %v7343 = vadd.f32 0.0, %v7342
      %v7344 = vpop.f32.mrf.mxu0
      %7345 = vmatprep.mubr.bf16.mxu0 0
      %7346 = vmatmul.mubr.bf16.gmra.mxu0 %v7217
      %v7347 = vpop.f32.mrf.mxu0
      %v7348 = vadd.f32 0.0, %v7347
      %v7349 = vpop.f32.mrf.mxu0
      %v7350 = vpop.f32.mrf.mxu0
      %v7351 = vadd.f32 0.0, %v7350
      %v7352 = vpop.f32.mrf.mxu0
      %7353 = vmatprep.mubr.bf16.mxu0 0
      %7354 = vmatmul.mubr.bf16.gmra.mxu0 %v7220
      %v7355 = vpop.f32.mrf.mxu0
      %v7356 = vadd.f32 0.0, %v7355
      %v7357 = vpop.f32.mrf.mxu0
      %v7358 = vpop.f32.mrf.mxu0
      %v7359 = vadd.f32 0.0, %v7358
      %v7360 = vpop.f32.mrf.mxu0
      %7361 = vmatprep.mubr.bf16.mxu0 0
      %7362 = vmatmul.mubr.bf16.gmra.mxu0 %v7223
      %v7363 = vpop.f32.mrf.mxu0
      %v7364 = vadd.f32 0.0, %v7363
      %v7365 = vpop.f32.mrf.mxu0
      %v7366 = vpop.f32.mrf.mxu0
      %v7367 = vadd.f32 0.0, %v7366
      %v7368 = vpop.f32.mrf.mxu0
      %7369 = vmatprep.mubr.bf16.mxu0 0
      %7370 = vmatmul.mubr.bf16.gmra.mxu0 %v7226
      %v7371 = vpop.f32.mrf.mxu0
      %v7372 = vadd.f32 0.0, %v7371
      %v7373 = vpop.f32.mrf.mxu0
      %v7374 = vpop.f32.mrf.mxu0
      %v7375 = vadd.f32 0.0, %v7374
      %v7376 = vpop.f32.mrf.mxu0
      %7377 = vmatprep.mubr.bf16.mxu0 0
      %7378 = vmatmul.mubr.bf16.gmra.mxu0 %v7229
      %v7379 = vpop.f32.mrf.mxu0
      %v7380 = vadd.f32 0.0, %v7379
      %v7381 = vpop.f32.mrf.mxu0
      %v7382 = vpop.f32.mrf.mxu0
      %v7383 = vadd.f32 0.0, %v7382
      %v7384 = vpop.f32.mrf.mxu0
      %7385 = vmatprep.mubr.bf16.mxu0 0
      %7386 = vmatmul.mubr.bf16.gmra.mxu0 %v7232
      %v7387 = vpop.f32.mrf.mxu0
      %v7388 = vadd.f32 0.0, %v7387
      %v7389 = vpop.f32.mrf.mxu0
      %v7390 = vpop.f32.mrf.mxu0
      %v7391 = vadd.f32 0.0, %v7390
      %v7392 = vpop.f32.mrf.mxu0
      %7393 = vmatprep.mubr.bf16.mxu0 0
      %7394 = vmatmul.mubr.bf16.gmra.mxu0 %v7235
      %v7395 = vpop.f32.mrf.mxu0
      %v7396 = vadd.f32 0.0, %v7395
      %v7397 = vpop.f32.mrf.mxu0
      %v7398 = vpop.f32.mrf.mxu0
      %v7399 = vadd.f32 0.0, %v7398
      %v7400 = vpop.f32.mrf.mxu0
      %7401 = vmatprep.mubr.bf16.mxu0 0
      %7402 = vmatmul.mubr.bf16.gmra.mxu0 %v7238
      %v7403 = vpop.f32.mrf.mxu0
      %v7404 = vadd.f32 0.0, %v7403
      %v7405 = vpop.f32.mrf.mxu0
      %v7406 = vpop.f32.mrf.mxu0
      %v7407 = vadd.f32 0.0, %v7406
      %v7408 = vpop.f32.mrf.mxu0
      %7409 = vmatprep.mubr.bf16.mxu0 0
      %7410 = vmatmul.mubr.bf16.gmra.mxu0 %v7241
      %v7411 = vpop.f32.mrf.mxu0
      %v7412 = vadd.f32 0.0, %v7411
      %v7413 = vpop.f32.mrf.mxu0
      %v7414 = vpop.f32.mrf.mxu0
      %v7415 = vadd.f32 0.0, %v7414
      %v7416 = vpop.f32.mrf.mxu0
      %7417 = vmatprep.mubr.bf16.mxu0 0
      %7418 = vmatmul.mubr.bf16.gmra.mxu0 %v7244
      %v7419 = vpop.f32.mrf.mxu0
      %v7420 = vadd.f32 0.0, %v7419
      %v7421 = vpop.f32.mrf.mxu0
      %v7422 = vpop.f32.mrf.mxu0
      %v7423 = vadd.f32 0.0, %v7422
      %v7424 = vpop.f32.mrf.mxu0
      %7425 = vdwg.mxu0
      %v7426 = vld [vmem:[#allocation4] sm:$0xff]
      %v7427 = vld [vmem:[#allocation4 + $0x8] sm:$0xff]
      %v7428 = vld [vmem:[#allocation4 + $0x10] sm:$0xff]
      %v7429 = vld [vmem:[#allocation4 + $0x18] sm:$0xff]
      %v7430 = vld [vmem:[#allocation4 + $0x20] sm:$0xff]
      %v7431 = vld [vmem:[#allocation4 + $0x28] sm:$0xff]
      %v7432 = vld [vmem:[#allocation4 + $0x30] sm:$0xff]
      %v7433 = vld [vmem:[#allocation4 + $0x38] sm:$0xff]
      %v7434 = vld [vmem:[#allocation4 + $0x40] sm:$0xff]
      %v7435 = vld [vmem:[#allocation4 + $0x48] sm:$0xff]
      %v7436 = vld [vmem:[#allocation4 + $0x50] sm:$0xff]
      %v7437 = vld [vmem:[#allocation4 + $0x58] sm:$0xff]
      %v7438 = vld [vmem:[#allocation4 + $0x60] sm:$0xff]
      %v7439 = vld [vmem:[#allocation4 + $0x68] sm:$0xff]
      %v7440 = vld [vmem:[#allocation4 + $0x70] sm:$0xff]
      %v7441 = vld [vmem:[#allocation4 + $0x78] sm:$0xff]
      %v7442 = vld [vmem:[#allocation4 + $0x80] sm:$0xff]
      %v7443 = vld [vmem:[#allocation4 + $0x88] sm:$0xff]
      %v7444 = vld [vmem:[#allocation4 + $0x90] sm:$0xff]
      %v7445 = vld [vmem:[#allocation4 + $0x98] sm:$0xff]
      %v7446 = vld [vmem:[#allocation4 + $0xa0] sm:$0xff]
      %v7447 = vld [vmem:[#allocation4 + $0xa8] sm:$0xff]
      %v7448 = vld [vmem:[#allocation4 + $0xb0] sm:$0xff]
      %v7449 = vld [vmem:[#allocation4 + $0xb8] sm:$0xff]
      %v7450 = vld [vmem:[#allocation4 + $0xc0] sm:$0xff]
      %v7451 = vld [vmem:[#allocation4 + $0xc8] sm:$0xff]
      %v7452 = vld [vmem:[#allocation4 + $0xd0] sm:$0xff]
      %v7453 = vld [vmem:[#allocation4 + $0xd8] sm:$0xff]
      %v7454 = vld [vmem:[#allocation4 + $0xe0] sm:$0xff]
      %v7455 = vld [vmem:[#allocation4 + $0xe8] sm:$0xff]
      %v7456 = vld [vmem:[#allocation4 + $0xf0] sm:$0xff]
      %v7457 = vld [vmem:[#allocation4 + $0xf8] sm:$0xff]
      %v7458 = vld [vmem:[#allocation4 + $0x100] sm:$0xff]
      %v7459 = vld [vmem:[#allocation4 + $0x108] sm:$0xff]
      %v7460 = vld [vmem:[#allocation4 + $0x110] sm:$0xff]
      %v7461 = vld [vmem:[#allocation4 + $0x118] sm:$0xff]
      %v7462 = vadd.f32 %v7426, %v7284
      %v7463 = vadd.f32 %v7427, %v7287
      %v7464 = vadd.f32 %v7428, %v7292
      %v7465 = vadd.f32 %v7429, %v7295
      %v7466 = vadd.f32 %v7430, %v7300
      %v7467 = vadd.f32 %v7431, %v7303
      %v7468 = vadd.f32 %v7432, %v7308
      %v7469 = vadd.f32 %v7433, %v7311
      %v7470 = vadd.f32 %v7434, %v7316
      %v7471 = vadd.f32 %v7435, %v7319
      %v7472 = vadd.f32 %v7436, %v7324
      %v7473 = vadd.f32 %v7437, %v7327
      %v7474 = vadd.f32 %v7438, %v7332
      %v7475 = vadd.f32 %v7439, %v7335
      %v7476 = vadd.f32 %v7440, %v7340
      %v7477 = vadd.f32 %v7441, %v7343
      %v7478 = vadd.f32 %v7442, %v7348
      %v7479 = vadd.f32 %v7443, %v7351
      %v7480 = vadd.f32 %v7444, %v7356
      %v7481 = vadd.f32 %v7445, %v7359
      %v7482 = vadd.f32 %v7446, %v7364
      %v7483 = vadd.f32 %v7447, %v7367
      %v7484 = vadd.f32 %v7448, %v7372
      %v7485 = vadd.f32 %v7449, %v7375
      %v7486 = vadd.f32 %v7450, %v7380
      %v7487 = vadd.f32 %v7451, %v7383
      %v7488 = vadd.f32 %v7452, %v7388
      %v7489 = vadd.f32 %v7453, %v7391
      %v7490 = vadd.f32 %v7454, %v7396
      %v7491 = vadd.f32 %v7455, %v7399
      %v7492 = vadd.f32 %v7456, %v7404
      %v7493 = vadd.f32 %v7457, %v7407
      %v7494 = vadd.f32 %v7458, %v7412
      %v7495 = vadd.f32 %v7459, %v7415
      %v7496 = vadd.f32 %v7460, %v7420
      %v7497 = vadd.f32 %v7461, %v7423
      %7498 = vst.msk [vmem:[#allocation4] sm:$0xff] %vm589, %v7462
      %7499 = vst.msk [vmem:[#allocation4 + $0x8] sm:$0xff] %vm589, %v7463
      %7500 = vst.msk [vmem:[#allocation4 + $0x10] sm:$0xff] %vm589, %v7464
      %7501 = vst.msk [vmem:[#allocation4 + $0x18] sm:$0xff] %vm589, %v7465
      %7502 = vst.msk [vmem:[#allocation4 + $0x20] sm:$0xff] %vm589, %v7466
      %7503 = vst.msk [vmem:[#allocation4 + $0x28] sm:$0xff] %vm589, %v7467
      %7504 = vst.msk [vmem:[#allocation4 + $0x30] sm:$0xff] %vm589, %v7468
      %7505 = vst.msk [vmem:[#allocation4 + $0x38] sm:$0xff] %vm589, %v7469
      %7506 = vst.msk [vmem:[#allocation4 + $0x40] sm:$0xff] %vm589, %v7470
      %7507 = vst.msk [vmem:[#allocation4 + $0x48] sm:$0xff] %vm589, %v7471
      %7508 = vst.msk [vmem:[#allocation4 + $0x50] sm:$0xff] %vm589, %v7472
      %7509 = vst.msk [vmem:[#allocation4 + $0x58] sm:$0xff] %vm589, %v7473
      %7510 = vst.msk [vmem:[#allocation4 + $0x60] sm:$0xff] %vm589, %v7474
      %7511 = vst.msk [vmem:[#allocation4 + $0x68] sm:$0xff] %vm589, %v7475
      %7512 = vst.msk [vmem:[#allocation4 + $0x70] sm:$0xff] %vm589, %v7476
      %7513 = vst.msk [vmem:[#allocation4 + $0x78] sm:$0xff] %vm589, %v7477
      %7514 = vst.msk [vmem:[#allocation4 + $0x80] sm:$0xff] %vm589, %v7478
      %7515 = vst.msk [vmem:[#allocation4 + $0x88] sm:$0xff] %vm589, %v7479
      %7516 = vst.msk [vmem:[#allocation4 + $0x90] sm:$0xff] %vm589, %v7480
      %7517 = vst.msk [vmem:[#allocation4 + $0x98] sm:$0xff] %vm589, %v7481
      %7518 = vst.msk [vmem:[#allocation4 + $0xa0] sm:$0xff] %vm589, %v7482
      %7519 = vst.msk [vmem:[#allocation4 + $0xa8] sm:$0xff] %vm589, %v7483
      %7520 = vst.msk [vmem:[#allocation4 + $0xb0] sm:$0xff] %vm589, %v7484
      %7521 = vst.msk [vmem:[#allocation4 + $0xb8] sm:$0xff] %vm589, %v7485
      %7522 = vst.msk [vmem:[#allocation4 + $0xc0] sm:$0xff] %vm589, %v7486
      %7523 = vst.msk [vmem:[#allocation4 + $0xc8] sm:$0xff] %vm589, %v7487
      %7524 = vst.msk [vmem:[#allocation4 + $0xd0] sm:$0xff] %vm589, %v7488
      %7525 = vst.msk [vmem:[#allocation4 + $0xd8] sm:$0xff] %vm589, %v7489
      %7526 = vst.msk [vmem:[#allocation4 + $0xe0] sm:$0xff] %vm589, %v7490
      %7527 = vst.msk [vmem:[#allocation4 + $0xe8] sm:$0xff] %vm589, %v7491
      %7528 = vst.msk [vmem:[#allocation4 + $0xf0] sm:$0xff] %vm589, %v7492
      %7529 = vst.msk [vmem:[#allocation4 + $0xf8] sm:$0xff] %vm589, %v7493
      %7530 = vst.msk [vmem:[#allocation4 + $0x100] sm:$0xff] %vm589, %v7494
      %7531 = vst.msk [vmem:[#allocation4 + $0x108] sm:$0xff] %vm589, %v7495
      %7532 = vst.msk [vmem:[#allocation4 + $0x110] sm:$0xff] %vm589, %v7496
      %7533 = vst.msk [vmem:[#allocation4 + $0x118] sm:$0xff] %vm589, %v7497
      %v7534 = vld [vmem:[#allocation3 + $0x13] sm:$0xff]
      %v7535 = vld [vmem:[#allocation3 + $0x1b] sm:$0xff]
      %v7536 = vld [vmem:[#allocation3 + $0x23] sm:$0xff]
      %v7537 = vld [vmem:[#allocation3 + $0x2b] sm:$0xff]
      %v7538 = vld [vmem:[#allocation3 + $0x33] sm:$0xff]
      %v7539 = vld [vmem:[#allocation3 + $0x3b] sm:$0xff]
      %v7540 = vld [vmem:[#allocation3 + $0x43] sm:$0xff]
      %v7541 = vld [vmem:[#allocation3 + $0x4b] sm:$0xff]
      %v7542 = vld [vmem:[#allocation3 + $0x53] sm:$0xff]
      %v7543 = vld [vmem:[#allocation3 + $0x5b] sm:$0xff]
      %v7544 = vld [vmem:[#allocation3 + $0x63] sm:$0xff]
      %v7545 = vld [vmem:[#allocation3 + $0x6b] sm:$0xff]
      %v7546 = vld [vmem:[#allocation3 + $0x73] sm:$0xff]
      %v7547 = vld [vmem:[#allocation3 + $0x7b] sm:$0xff]
      %v7548 = vld [vmem:[#allocation3 + $0x83] sm:$0xff]
      %v7549 = vld [vmem:[#allocation3 + $0x8b] sm:$0xff]
      %v7550 = vld [vmem:[#allocation3 + $0x93] sm:$0xff]
      %v7551 = vld [vmem:[#allocation3 + $0x9b] sm:$0xff]
      %v7552 = vld [vmem:[#allocation3 + $0xa3] sm:$0xff]
      %v7553 = vld [vmem:[#allocation3 + $0xab] sm:$0xff]
      %v7554 = vld [vmem:[#allocation3 + $0xb3] sm:$0xff]
      %v7555 = vld [vmem:[#allocation3 + $0xbb] sm:$0xff]
      %v7556 = vld [vmem:[#allocation3 + $0xc3] sm:$0xff]
      %v7557 = vld [vmem:[#allocation3 + $0xcb] sm:$0xff]
      %v7558 = vld [vmem:[#allocation3 + $0xd3] sm:$0xff]
      %v7559 = vld [vmem:[#allocation3 + $0xdb] sm:$0xff]
      %v7560 = vld [vmem:[#allocation3 + $0xe3] sm:$0xff]
      %v7561 = vld [vmem:[#allocation3 + $0xeb] sm:$0xff]
      %v7562 = vld [vmem:[#allocation3 + $0xf3] sm:$0xff]
      %v7563 = vld [vmem:[#allocation3 + $0xfb] sm:$0xff]
      %v7564 = vld [vmem:[#allocation3 + $0x103] sm:$0xff]
      %v7565 = vld [vmem:[#allocation3 + $0x10b] sm:$0xff]
      %v7566 = vld [vmem:[#allocation3 + $0x113] sm:$0xff]
      %v7567 = vld [vmem:[#allocation3 + $0x11b] sm:$0xff]
      %v7568 = vld [vmem:[#allocation3 + $0x123] sm:$0xff]
      %v7569 = vld [vmem:[#allocation3 + $0x12b] sm:$0xff]
      %v7570 = vpack.c.bf16 %v7535, %v7534
      %v7571 = vpack.c.bf16 %v7537, %v7536
      %v7572 = vpack.c.bf16 %v7539, %v7538
      %v7573 = vpack.c.bf16 %v7541, %v7540
      %v7574 = vpack.c.bf16 %v7543, %v7542
      %v7575 = vpack.c.bf16 %v7545, %v7544
      %v7576 = vpack.c.bf16 %v7547, %v7546
      %v7577 = vpack.c.bf16 %v7549, %v7548
      %v7578 = vpack.c.bf16 %v7551, %v7550
      %v7579 = vpack.c.bf16 %v7553, %v7552
      %v7580 = vpack.c.bf16 %v7555, %v7554
      %v7581 = vpack.c.bf16 %v7557, %v7556
      %v7582 = vpack.c.bf16 %v7559, %v7558
      %v7583 = vpack.c.bf16 %v7561, %v7560
      %v7584 = vpack.c.bf16 %v7563, %v7562
      %v7585 = vpack.c.bf16 %v7565, %v7564
      %v7586 = vpack.c.bf16 %v7567, %v7566
      %v7587 = vpack.c.bf16 %v7569, %v7568
      %s7588 = scalar_lea.vmem %s3, 8
      %v7589 = vld [vmem:[%s7588] sm:$0x3]
      %v7591 = vsel %vm589, %v7570, 0
      %v7594 = vsel %vm589, %v7571, 0
      %v7597 = vsel %vm589, %v7572, 0
      %v7600 = vsel %vm589, %v7573, 0
      %v7603 = vsel %vm589, %v7574, 0
      %v7606 = vsel %vm589, %v7575, 0
      %v7609 = vsel %vm589, %v7576, 0
      %v7612 = vsel %vm589, %v7577, 0
      %v7615 = vsel %vm589, %v7578, 0
      %v7618 = vsel %vm589, %v7579, 0
      %v7621 = vsel %vm589, %v7580, 0
      %v7624 = vsel %vm589, %v7581, 0
      %v7627 = vsel %vm589, %v7582, 0
      %v7630 = vsel %vm589, %v7583, 0
      %v7633 = vsel %vm589, %v7584, 0
      %v7636 = vsel %vm589, %v7585, 0
      %v7639 = vsel %vm589, %v7586, 0
      %v7642 = vsel %vm589, %v7587, 0
      %v7645 = vsel %vm6123, %v7589, 0
      %7647 = vmatprep.subr.bf16.mxu0 0
      %7648 = vmatpush1.bf16.msra.mxu0 0
      %7649 = vmatprep.subr.bf16.mxu0 0
      %7650 = vmatpush1.bf16.msra.mxu0 0
      %7651 = vmatprep.subr.bf16.mxu0 0
      %7652 = vmatpush1.bf16.msra.mxu0 0
      %7653 = vmatprep.subr.bf16.mxu0 0
      %7654 = vmatpush1.bf16.msra.mxu0 0
      %7655 = vmatprep.subr.bf16.mxu0 0
      %7656 = vmatpush1.bf16.msra.mxu0 0
      %7657 = vmatprep.subr.bf16.mxu0 0
      %7658 = vmatpush1.bf16.msra.mxu0 0
      %7659 = vmatprep.subr.bf16.mxu0 0
      %7660 = vmatpush1.bf16.msra.mxu0 0
      %7661 = vmatprep.subr.bf16.mxu0 0
      %7662 = vmatpush1.bf16.msra.mxu0 %v7645
      %7663 = vmatprep.subr.bf16.mxu0 0
      %7664 = vmatpush2.bf16.msra.mxu0 0
      %7665 = vmatprep.subr.bf16.mxu0 0
      %7666 = vmatpush2.bf16.msra.mxu0 0
      %7667 = vmatprep.subr.bf16.mxu0 0
      %7668 = vmatpush2.bf16.msra.mxu0 0
      %7669 = vmatprep.subr.bf16.mxu0 0
      %7670 = vmatpush2.bf16.msra.mxu0 0
      %7671 = vmatprep.subr.bf16.mxu0 0
      %7672 = vmatpush2.bf16.msra.mxu0 0
      %7673 = vmatprep.subr.bf16.mxu0 0
      %7674 = vmatpush2.bf16.msra.mxu0 0
      %7675 = vmatprep.subr.bf16.mxu0 0
      %7676 = vmatpush2.bf16.msra.mxu0 0
      %7677 = vmatprep.subr.bf16.mxu0 0
      %7678 = vmatpush2.bf16.msra.mxu0 0
      %7679 = vmatprep.mubr.bf16.mxu0 0
      %7680 = vmatmul.mubr.bf16.gmra.mxu0 %v7591
      %v7681 = vpop.f32.mrf.mxu0
      %v7682 = vadd.f32 0.0, %v7681
      %v7683 = vpop.f32.mrf.mxu0
      %v7684 = vpop.f32.mrf.mxu0
      %v7685 = vadd.f32 0.0, %v7684
      %v7686 = vpop.f32.mrf.mxu0
      %7687 = vmatprep.mubr.bf16.mxu0 0
      %7688 = vmatmul.mubr.bf16.gmra.mxu0 %v7594
      %v7689 = vpop.f32.mrf.mxu0
      %v7690 = vadd.f32 0.0, %v7689
      %v7691 = vpop.f32.mrf.mxu0
      %v7692 = vpop.f32.mrf.mxu0
      %v7693 = vadd.f32 0.0, %v7692
      %v7694 = vpop.f32.mrf.mxu0
      %7695 = vmatprep.mubr.bf16.mxu0 0
      %7696 = vmatmul.mubr.bf16.gmra.mxu0 %v7597
      %v7697 = vpop.f32.mrf.mxu0
      %v7698 = vadd.f32 0.0, %v7697
      %v7699 = vpop.f32.mrf.mxu0
      %v7700 = vpop.f32.mrf.mxu0
      %v7701 = vadd.f32 0.0, %v7700
      %v7702 = vpop.f32.mrf.mxu0
      %7703 = vmatprep.mubr.bf16.mxu0 0
      %7704 = vmatmul.mubr.bf16.gmra.mxu0 %v7600
      %v7705 = vpop.f32.mrf.mxu0
      %v7706 = vadd.f32 0.0, %v7705
      %v7707 = vpop.f32.mrf.mxu0
      %v7708 = vpop.f32.mrf.mxu0
      %v7709 = vadd.f32 0.0, %v7708
      %v7710 = vpop.f32.mrf.mxu0
      %7711 = vmatprep.mubr.bf16.mxu0 0
      %7712 = vmatmul.mubr.bf16.gmra.mxu0 %v7603
      %v7713 = vpop.f32.mrf.mxu0
      %v7714 = vadd.f32 0.0, %v7713
      %v7715 = vpop.f32.mrf.mxu0
      %v7716 = vpop.f32.mrf.mxu0
      %v7717 = vadd.f32 0.0, %v7716
      %v7718 = vpop.f32.mrf.mxu0
      %7719 = vmatprep.mubr.bf16.mxu0 0
      %7720 = vmatmul.mubr.bf16.gmra.mxu0 %v7606
      %v7721 = vpop.f32.mrf.mxu0
      %v7722 = vadd.f32 0.0, %v7721
      %v7723 = vpop.f32.mrf.mxu0
      %v7724 = vpop.f32.mrf.mxu0
      %v7725 = vadd.f32 0.0, %v7724
      %v7726 = vpop.f32.mrf.mxu0
      %7727 = vmatprep.mubr.bf16.mxu0 0
      %7728 = vmatmul.mubr.bf16.gmra.mxu0 %v7609
      %v7729 = vpop.f32.mrf.mxu0
      %v7730 = vadd.f32 0.0, %v7729
      %v7731 = vpop.f32.mrf.mxu0
      %v7732 = vpop.f32.mrf.mxu0
      %v7733 = vadd.f32 0.0, %v7732
      %v7734 = vpop.f32.mrf.mxu0
      %7735 = vmatprep.mubr.bf16.mxu0 0
      %7736 = vmatmul.mubr.bf16.gmra.mxu0 %v7612
      %v7737 = vpop.f32.mrf.mxu0
      %v7738 = vadd.f32 0.0, %v7737
      %v7739 = vpop.f32.mrf.mxu0
      %v7740 = vpop.f32.mrf.mxu0
      %v7741 = vadd.f32 0.0, %v7740
      %v7742 = vpop.f32.mrf.mxu0
      %7743 = vmatprep.mubr.bf16.mxu0 0
      %7744 = vmatmul.mubr.bf16.gmra.mxu0 %v7615
      %v7745 = vpop.f32.mrf.mxu0
      %v7746 = vadd.f32 0.0, %v7745
      %v7747 = vpop.f32.mrf.mxu0
      %v7748 = vpop.f32.mrf.mxu0
      %v7749 = vadd.f32 0.0, %v7748
      %v7750 = vpop.f32.mrf.mxu0
      %7751 = vmatprep.mubr.bf16.mxu0 0
      %7752 = vmatmul.mubr.bf16.gmra.mxu0 %v7618
      %v7753 = vpop.f32.mrf.mxu0
      %v7754 = vadd.f32 0.0, %v7753
      %v7755 = vpop.f32.mrf.mxu0
      %v7756 = vpop.f32.mrf.mxu0
      %v7757 = vadd.f32 0.0, %v7756
      %v7758 = vpop.f32.mrf.mxu0
      %7759 = vmatprep.mubr.bf16.mxu0 0
      %7760 = vmatmul.mubr.bf16.gmra.mxu0 %v7621
      %v7761 = vpop.f32.mrf.mxu0
      %v7762 = vadd.f32 0.0, %v7761
      %v7763 = vpop.f32.mrf.mxu0
      %v7764 = vpop.f32.mrf.mxu0
      %v7765 = vadd.f32 0.0, %v7764
      %v7766 = vpop.f32.mrf.mxu0
      %7767 = vmatprep.mubr.bf16.mxu0 0
      %7768 = vmatmul.mubr.bf16.gmra.mxu0 %v7624
      %v7769 = vpop.f32.mrf.mxu0
      %v7770 = vadd.f32 0.0, %v7769
      %v7771 = vpop.f32.mrf.mxu0
      %v7772 = vpop.f32.mrf.mxu0
      %v7773 = vadd.f32 0.0, %v7772
      %v7774 = vpop.f32.mrf.mxu0
      %7775 = vmatprep.mubr.bf16.mxu0 0
      %7776 = vmatmul.mubr.bf16.gmra.mxu0 %v7627
      %v7777 = vpop.f32.mrf.mxu0
      %v7778 = vadd.f32 0.0, %v7777
      %v7779 = vpop.f32.mrf.mxu0
      %v7780 = vpop.f32.mrf.mxu0
      %v7781 = vadd.f32 0.0, %v7780
      %v7782 = vpop.f32.mrf.mxu0
      %7783 = vmatprep.mubr.bf16.mxu0 0
      %7784 = vmatmul.mubr.bf16.gmra.mxu0 %v7630
      %v7785 = vpop.f32.mrf.mxu0
      %v7786 = vadd.f32 0.0, %v7785
      %v7787 = vpop.f32.mrf.mxu0
      %v7788 = vpop.f32.mrf.mxu0
      %v7789 = vadd.f32 0.0, %v7788
      %v7790 = vpop.f32.mrf.mxu0
      %7791 = vmatprep.mubr.bf16.mxu0 0
      %7792 = vmatmul.mubr.bf16.gmra.mxu0 %v7633
      %v7793 = vpop.f32.mrf.mxu0
      %v7794 = vadd.f32 0.0, %v7793
      %v7795 = vpop.f32.mrf.mxu0
      %v7796 = vpop.f32.mrf.mxu0
      %v7797 = vadd.f32 0.0, %v7796
      %v7798 = vpop.f32.mrf.mxu0
      %7799 = vmatprep.mubr.bf16.mxu0 0
      %7800 = vmatmul.mubr.bf16.gmra.mxu0 %v7636
      %v7801 = vpop.f32.mrf.mxu0
      %v7802 = vadd.f32 0.0, %v7801
      %v7803 = vpop.f32.mrf.mxu0
      %v7804 = vpop.f32.mrf.mxu0
      %v7805 = vadd.f32 0.0, %v7804
      %v7806 = vpop.f32.mrf.mxu0
      %7807 = vmatprep.mubr.bf16.mxu0 0
      %7808 = vmatmul.mubr.bf16.gmra.mxu0 %v7639
      %v7809 = vpop.f32.mrf.mxu0
      %v7810 = vadd.f32 0.0, %v7809
      %v7811 = vpop.f32.mrf.mxu0
      %v7812 = vpop.f32.mrf.mxu0
      %v7813 = vadd.f32 0.0, %v7812
      %v7814 = vpop.f32.mrf.mxu0
      %7815 = vmatprep.mubr.bf16.mxu0 0
      %7816 = vmatmul.mubr.bf16.gmra.mxu0 %v7642
      %v7817 = vpop.f32.mrf.mxu0
      %v7818 = vadd.f32 0.0, %v7817
      %v7819 = vpop.f32.mrf.mxu0
      %v7820 = vpop.f32.mrf.mxu0
      %v7821 = vadd.f32 0.0, %v7820
      %v7822 = vpop.f32.mrf.mxu0
      %7823 = vdwg.mxu0
      %v7824 = vld [vmem:[#allocation4] sm:$0xff]
      %v7825 = vld [vmem:[#allocation4 + $0x8] sm:$0xff]
      %v7826 = vld [vmem:[#allocation4 + $0x10] sm:$0xff]
      %v7827 = vld [vmem:[#allocation4 + $0x18] sm:$0xff]
      %v7828 = vld [vmem:[#allocation4 + $0x20] sm:$0xff]
      %v7829 = vld [vmem:[#allocation4 + $0x28] sm:$0xff]
      %v7830 = vld [vmem:[#allocation4 + $0x30] sm:$0xff]
      %v7831 = vld [vmem:[#allocation4 + $0x38] sm:$0xff]
      %v7832 = vld [vmem:[#allocation4 + $0x40] sm:$0xff]
      %v7833 = vld [vmem:[#allocation4 + $0x48] sm:$0xff]
      %v7834 = vld [vmem:[#allocation4 + $0x50] sm:$0xff]
      %v7835 = vld [vmem:[#allocation4 + $0x58] sm:$0xff]
      %v7836 = vld [vmem:[#allocation4 + $0x60] sm:$0xff]
      %v7837 = vld [vmem:[#allocation4 + $0x68] sm:$0xff]
      %v7838 = vld [vmem:[#allocation4 + $0x70] sm:$0xff]
      %v7839 = vld [vmem:[#allocation4 + $0x78] sm:$0xff]
      %v7840 = vld [vmem:[#allocation4 + $0x80] sm:$0xff]
      %v7841 = vld [vmem:[#allocation4 + $0x88] sm:$0xff]
      %v7842 = vld [vmem:[#allocation4 + $0x90] sm:$0xff]
      %v7843 = vld [vmem:[#allocation4 + $0x98] sm:$0xff]
      %v7844 = vld [vmem:[#allocation4 + $0xa0] sm:$0xff]
      %v7845 = vld [vmem:[#allocation4 + $0xa8] sm:$0xff]
      %v7846 = vld [vmem:[#allocation4 + $0xb0] sm:$0xff]
      %v7847 = vld [vmem:[#allocation4 + $0xb8] sm:$0xff]
      %v7848 = vld [vmem:[#allocation4 + $0xc0] sm:$0xff]
      %v7849 = vld [vmem:[#allocation4 + $0xc8] sm:$0xff]
      %v7850 = vld [vmem:[#allocation4 + $0xd0] sm:$0xff]
      %v7851 = vld [vmem:[#allocation4 + $0xd8] sm:$0xff]
      %v7852 = vld [vmem:[#allocation4 + $0xe0] sm:$0xff]
      %v7853 = vld [vmem:[#allocation4 + $0xe8] sm:$0xff]
      %v7854 = vld [vmem:[#allocation4 + $0xf0] sm:$0xff]
      %v7855 = vld [vmem:[#allocation4 + $0xf8] sm:$0xff]
      %v7856 = vld [vmem:[#allocation4 + $0x100] sm:$0xff]
      %v7857 = vld [vmem:[#allocation4 + $0x108] sm:$0xff]
      %v7858 = vld [vmem:[#allocation4 + $0x110] sm:$0xff]
      %v7859 = vld [vmem:[#allocation4 + $0x118] sm:$0xff]
      %v7860 = vadd.f32 %v7824, %v7682
      %v7861 = vadd.f32 %v7825, %v7685
      %v7862 = vadd.f32 %v7826, %v7690
      %v7863 = vadd.f32 %v7827, %v7693
      %v7864 = vadd.f32 %v7828, %v7698
      %v7865 = vadd.f32 %v7829, %v7701
      %v7866 = vadd.f32 %v7830, %v7706
      %v7867 = vadd.f32 %v7831, %v7709
      %v7868 = vadd.f32 %v7832, %v7714
      %v7869 = vadd.f32 %v7833, %v7717
      %v7870 = vadd.f32 %v7834, %v7722
      %v7871 = vadd.f32 %v7835, %v7725
      %v7872 = vadd.f32 %v7836, %v7730
      %v7873 = vadd.f32 %v7837, %v7733
      %v7874 = vadd.f32 %v7838, %v7738
      %v7875 = vadd.f32 %v7839, %v7741
      %v7876 = vadd.f32 %v7840, %v7746
      %v7877 = vadd.f32 %v7841, %v7749
      %v7878 = vadd.f32 %v7842, %v7754
      %v7879 = vadd.f32 %v7843, %v7757
      %v7880 = vadd.f32 %v7844, %v7762
      %v7881 = vadd.f32 %v7845, %v7765
      %v7882 = vadd.f32 %v7846, %v7770
      %v7883 = vadd.f32 %v7847, %v7773
      %v7884 = vadd.f32 %v7848, %v7778
      %v7885 = vadd.f32 %v7849, %v7781
      %v7886 = vadd.f32 %v7850, %v7786
      %v7887 = vadd.f32 %v7851, %v7789
      %v7888 = vadd.f32 %v7852, %v7794
      %v7889 = vadd.f32 %v7853, %v7797
      %v7890 = vadd.f32 %v7854, %v7802
      %v7891 = vadd.f32 %v7855, %v7805
      %v7892 = vadd.f32 %v7856, %v7810
      %v7893 = vadd.f32 %v7857, %v7813
      %v7894 = vadd.f32 %v7858, %v7818
      %v7895 = vadd.f32 %v7859, %v7821
      %7896 = vst.msk [vmem:[#allocation4] sm:$0xff] %vm589, %v7860
      %7897 = vst.msk [vmem:[#allocation4 + $0x8] sm:$0xff] %vm589, %v7861
      %7898 = vst.msk [vmem:[#allocation4 + $0x10] sm:$0xff] %vm589, %v7862
      %7899 = vst.msk [vmem:[#allocation4 + $0x18] sm:$0xff] %vm589, %v7863
      %7900 = vst.msk [vmem:[#allocation4 + $0x20] sm:$0xff] %vm589, %v7864
      %7901 = vst.msk [vmem:[#allocation4 + $0x28] sm:$0xff] %vm589, %v7865
      %7902 = vst.msk [vmem:[#allocation4 + $0x30] sm:$0xff] %vm589, %v7866
      %7903 = vst.msk [vmem:[#allocation4 + $0x38] sm:$0xff] %vm589, %v7867
      %7904 = vst.msk [vmem:[#allocation4 + $0x40] sm:$0xff] %vm589, %v7868
      %7905 = vst.msk [vmem:[#allocation4 + $0x48] sm:$0xff] %vm589, %v7869
      %7906 = vst.msk [vmem:[#allocation4 + $0x50] sm:$0xff] %vm589, %v7870
      %7907 = vst.msk [vmem:[#allocation4 + $0x58] sm:$0xff] %vm589, %v7871
      %7908 = vst.msk [vmem:[#allocation4 + $0x60] sm:$0xff] %vm589, %v7872
      %7909 = vst.msk [vmem:[#allocation4 + $0x68] sm:$0xff] %vm589, %v7873
      %7910 = vst.msk [vmem:[#allocation4 + $0x70] sm:$0xff] %vm589, %v7874
      %7911 = vst.msk [vmem:[#allocation4 + $0x78] sm:$0xff] %vm589, %v7875
      %7912 = vst.msk [vmem:[#allocation4 + $0x80] sm:$0xff] %vm589, %v7876
      %7913 = vst.msk [vmem:[#allocation4 + $0x88] sm:$0xff] %vm589, %v7877
      %7914 = vst.msk [vmem:[#allocation4 + $0x90] sm:$0xff] %vm589, %v7878
      %7915 = vst.msk [vmem:[#allocation4 + $0x98] sm:$0xff] %vm589, %v7879
      %7916 = vst.msk [vmem:[#allocation4 + $0xa0] sm:$0xff] %vm589, %v7880
      %7917 = vst.msk [vmem:[#allocation4 + $0xa8] sm:$0xff] %vm589, %v7881
      %7918 = vst.msk [vmem:[#allocation4 + $0xb0] sm:$0xff] %vm589, %v7882
      %7919 = vst.msk [vmem:[#allocation4 + $0xb8] sm:$0xff] %vm589, %v7883
      %7920 = vst.msk [vmem:[#allocation4 + $0xc0] sm:$0xff] %vm589, %v7884
      %7921 = vst.msk [vmem:[#allocation4 + $0xc8] sm:$0xff] %vm589, %v7885
      %7922 = vst.msk [vmem:[#allocation4 + $0xd0] sm:$0xff] %vm589, %v7886
      %7923 = vst.msk [vmem:[#allocation4 + $0xd8] sm:$0xff] %vm589, %v7887
      %7924 = vst.msk [vmem:[#allocation4 + $0xe0] sm:$0xff] %vm589, %v7888
      %7925 = vst.msk [vmem:[#allocation4 + $0xe8] sm:$0xff] %vm589, %v7889
      %7926 = vst.msk [vmem:[#allocation4 + $0xf0] sm:$0xff] %vm589, %v7890
      %7927 = vst.msk [vmem:[#allocation4 + $0xf8] sm:$0xff] %vm589, %v7891
      %7928 = vst.msk [vmem:[#allocation4 + $0x100] sm:$0xff] %vm589, %v7892
      %7929 = vst.msk [vmem:[#allocation4 + $0x108] sm:$0xff] %vm589, %v7893
      %7930 = vst.msk [vmem:[#allocation4 + $0x110] sm:$0xff] %vm589, %v7894
      %7931 = vst.msk [vmem:[#allocation4 + $0x118] sm:$0xff] %vm589, %v7895
      %v7932 = vld [vmem:[#allocation3 + $0x14] sm:$0xff]
      %v7933 = vld [vmem:[#allocation3 + $0x1c] sm:$0xff]
      %v7934 = vld [vmem:[#allocation3 + $0x24] sm:$0xff]
      %v7935 = vld [vmem:[#allocation3 + $0x2c] sm:$0xff]
      %v7936 = vld [vmem:[#allocation3 + $0x34] sm:$0xff]
      %v7937 = vld [vmem:[#allocation3 + $0x3c] sm:$0xff]
      %v7938 = vld [vmem:[#allocation3 + $0x44] sm:$0xff]
      %v7939 = vld [vmem:[#allocation3 + $0x4c] sm:$0xff]
      %v7940 = vld [vmem:[#allocation3 + $0x54] sm:$0xff]
      %v7941 = vld [vmem:[#allocation3 + $0x5c] sm:$0xff]
      %v7942 = vld [vmem:[#allocation3 + $0x64] sm:$0xff]
      %v7943 = vld [vmem:[#allocation3 + $0x6c] sm:$0xff]
      %v7944 = vld [vmem:[#allocation3 + $0x74] sm:$0xff]
      %v7945 = vld [vmem:[#allocation3 + $0x7c] sm:$0xff]
      %v7946 = vld [vmem:[#allocation3 + $0x84] sm:$0xff]
      %v7947 = vld [vmem:[#allocation3 + $0x8c] sm:$0xff]
      %v7948 = vld [vmem:[#allocation3 + $0x94] sm:$0xff]
      %v7949 = vld [vmem:[#allocation3 + $0x9c] sm:$0xff]
      %v7950 = vld [vmem:[#allocation3 + $0xa4] sm:$0xff]
      %v7951 = vld [vmem:[#allocation3 + $0xac] sm:$0xff]
      %v7952 = vld [vmem:[#allocation3 + $0xb4] sm:$0xff]
      %v7953 = vld [vmem:[#allocation3 + $0xbc] sm:$0xff]
      %v7954 = vld [vmem:[#allocation3 + $0xc4] sm:$0xff]
      %v7955 = vld [vmem:[#allocation3 + $0xcc] sm:$0xff]
      %v7956 = vld [vmem:[#allocation3 + $0xd4] sm:$0xff]
      %v7957 = vld [vmem:[#allocation3 + $0xdc] sm:$0xff]
      %v7958 = vld [vmem:[#allocation3 + $0xe4] sm:$0xff]
      %v7959 = vld [vmem:[#allocation3 + $0xec] sm:$0xff]
      %v7960 = vld [vmem:[#allocation3 + $0xf4] sm:$0xff]
      %v7961 = vld [vmem:[#allocation3 + $0xfc] sm:$0xff]
      %v7962 = vld [vmem:[#allocation3 + $0x104] sm:$0xff]
      %v7963 = vld [vmem:[#allocation3 + $0x10c] sm:$0xff]
      %v7964 = vld [vmem:[#allocation3 + $0x114] sm:$0xff]
      %v7965 = vld [vmem:[#allocation3 + $0x11c] sm:$0xff]
      %v7966 = vld [vmem:[#allocation3 + $0x124] sm:$0xff]
      %v7967 = vld [vmem:[#allocation3 + $0x12c] sm:$0xff]
      %v7968 = vpack.c.bf16 %v7933, %v7932
      %v7969 = vpack.c.bf16 %v7935, %v7934
      %v7970 = vpack.c.bf16 %v7937, %v7936
      %v7971 = vpack.c.bf16 %v7939, %v7938
      %v7972 = vpack.c.bf16 %v7941, %v7940
      %v7973 = vpack.c.bf16 %v7943, %v7942
      %v7974 = vpack.c.bf16 %v7945, %v7944
      %v7975 = vpack.c.bf16 %v7947, %v7946
      %v7976 = vpack.c.bf16 %v7949, %v7948
      %v7977 = vpack.c.bf16 %v7951, %v7950
      %v7978 = vpack.c.bf16 %v7953, %v7952
      %v7979 = vpack.c.bf16 %v7955, %v7954
      %v7980 = vpack.c.bf16 %v7957, %v7956
      %v7981 = vpack.c.bf16 %v7959, %v7958
      %v7982 = vpack.c.bf16 %v7961, %v7960
      %v7983 = vpack.c.bf16 %v7963, %v7962
      %v7984 = vpack.c.bf16 %v7965, %v7964
      %v7985 = vpack.c.bf16 %v7967, %v7966
      %s7986 = scalar_lea.vmem %s3, 10
      %v7987 = vld [vmem:[%s7986] sm:$0x3]
      %v7989 = vsel %vm589, %v7968, 0
      %v7992 = vsel %vm589, %v7969, 0
      %v7995 = vsel %vm589, %v7970, 0
      %v7998 = vsel %vm589, %v7971, 0
      %v8001 = vsel %vm589, %v7972, 0
      %v8004 = vsel %vm589, %v7973, 0
      %v8007 = vsel %vm589, %v7974, 0
      %v8010 = vsel %vm589, %v7975, 0
      %v8013 = vsel %vm589, %v7976, 0
      %v8016 = vsel %vm589, %v7977, 0
      %v8019 = vsel %vm589, %v7978, 0
      %v8022 = vsel %vm589, %v7979, 0
      %v8025 = vsel %vm589, %v7980, 0
      %v8028 = vsel %vm589, %v7981, 0
      %v8031 = vsel %vm589, %v7982, 0
      %v8034 = vsel %vm589, %v7983, 0
      %v8037 = vsel %vm589, %v7984, 0
      %v8040 = vsel %vm589, %v7985, 0
      %v8043 = vsel %vm6123, %v7987, 0
      %8045 = vmatprep.subr.bf16.mxu0 0
      %8046 = vmatpush1.bf16.msra.mxu0 0
      %8047 = vmatprep.subr.bf16.mxu0 0
      %8048 = vmatpush1.bf16.msra.mxu0 0
      %8049 = vmatprep.subr.bf16.mxu0 0
      %8050 = vmatpush1.bf16.msra.mxu0 0
      %8051 = vmatprep.subr.bf16.mxu0 0
      %8052 = vmatpush1.bf16.msra.mxu0 0
      %8053 = vmatprep.subr.bf16.mxu0 0
      %8054 = vmatpush1.bf16.msra.mxu0 0
      %8055 = vmatprep.subr.bf16.mxu0 0
      %8056 = vmatpush1.bf16.msra.mxu0 0
      %8057 = vmatprep.subr.bf16.mxu0 0
      %8058 = vmatpush1.bf16.msra.mxu0 0
      %8059 = vmatprep.subr.bf16.mxu0 0
      %8060 = vmatpush1.bf16.msra.mxu0 %v8043
      %8061 = vmatprep.subr.bf16.mxu0 0
      %8062 = vmatpush2.bf16.msra.mxu0 0
      %8063 = vmatprep.subr.bf16.mxu0 0
      %8064 = vmatpush2.bf16.msra.mxu0 0
      %8065 = vmatprep.subr.bf16.mxu0 0
      %8066 = vmatpush2.bf16.msra.mxu0 0
      %8067 = vmatprep.subr.bf16.mxu0 0
      %8068 = vmatpush2.bf16.msra.mxu0 0
      %8069 = vmatprep.subr.bf16.mxu0 0
      %8070 = vmatpush2.bf16.msra.mxu0 0
      %8071 = vmatprep.subr.bf16.mxu0 0
      %8072 = vmatpush2.bf16.msra.mxu0 0
      %8073 = vmatprep.subr.bf16.mxu0 0
      %8074 = vmatpush2.bf16.msra.mxu0 0
      %8075 = vmatprep.subr.bf16.mxu0 0
      %8076 = vmatpush2.bf16.msra.mxu0 0
      %8077 = vmatprep.mubr.bf16.mxu0 0
      %8078 = vmatmul.mubr.bf16.gmra.mxu0 %v7989
      %v8079 = vpop.f32.mrf.mxu0
      %v8080 = vadd.f32 0.0, %v8079
      %v8081 = vpop.f32.mrf.mxu0
      %v8082 = vpop.f32.mrf.mxu0
      %v8083 = vadd.f32 0.0, %v8082
      %v8084 = vpop.f32.mrf.mxu0
      %8085 = vmatprep.mubr.bf16.mxu0 0
      %8086 = vmatmul.mubr.bf16.gmra.mxu0 %v7992
      %v8087 = vpop.f32.mrf.mxu0
      %v8088 = vadd.f32 0.0, %v8087
      %v8089 = vpop.f32.mrf.mxu0
      %v8090 = vpop.f32.mrf.mxu0
      %v8091 = vadd.f32 0.0, %v8090
      %v8092 = vpop.f32.mrf.mxu0
      %8093 = vmatprep.mubr.bf16.mxu0 0
      %8094 = vmatmul.mubr.bf16.gmra.mxu0 %v7995
      %v8095 = vpop.f32.mrf.mxu0
      %v8096 = vadd.f32 0.0, %v8095
      %v8097 = vpop.f32.mrf.mxu0
      %v8098 = vpop.f32.mrf.mxu0
      %v8099 = vadd.f32 0.0, %v8098
      %v8100 = vpop.f32.mrf.mxu0
      %8101 = vmatprep.mubr.bf16.mxu0 0
      %8102 = vmatmul.mubr.bf16.gmra.mxu0 %v7998
      %v8103 = vpop.f32.mrf.mxu0
      %v8104 = vadd.f32 0.0, %v8103
      %v8105 = vpop.f32.mrf.mxu0
      %v8106 = vpop.f32.mrf.mxu0
      %v8107 = vadd.f32 0.0, %v8106
      %v8108 = vpop.f32.mrf.mxu0
      %8109 = vmatprep.mubr.bf16.mxu0 0
      %8110 = vmatmul.mubr.bf16.gmra.mxu0 %v8001
      %v8111 = vpop.f32.mrf.mxu0
      %v8112 = vadd.f32 0.0, %v8111
      %v8113 = vpop.f32.mrf.mxu0
      %v8114 = vpop.f32.mrf.mxu0
      %v8115 = vadd.f32 0.0, %v8114
      %v8116 = vpop.f32.mrf.mxu0
      %8117 = vmatprep.mubr.bf16.mxu0 0
      %8118 = vmatmul.mubr.bf16.gmra.mxu0 %v8004
      %v8119 = vpop.f32.mrf.mxu0
      %v8120 = vadd.f32 0.0, %v8119
      %v8121 = vpop.f32.mrf.mxu0
      %v8122 = vpop.f32.mrf.mxu0
      %v8123 = vadd.f32 0.0, %v8122
      %v8124 = vpop.f32.mrf.mxu0
      %8125 = vmatprep.mubr.bf16.mxu0 0
      %8126 = vmatmul.mubr.bf16.gmra.mxu0 %v8007
      %v8127 = vpop.f32.mrf.mxu0
      %v8128 = vadd.f32 0.0, %v8127
      %v8129 = vpop.f32.mrf.mxu0
      %v8130 = vpop.f32.mrf.mxu0
      %v8131 = vadd.f32 0.0, %v8130
      %v8132 = vpop.f32.mrf.mxu0
      %8133 = vmatprep.mubr.bf16.mxu0 0
      %8134 = vmatmul.mubr.bf16.gmra.mxu0 %v8010
      %v8135 = vpop.f32.mrf.mxu0
      %v8136 = vadd.f32 0.0, %v8135
      %v8137 = vpop.f32.mrf.mxu0
      %v8138 = vpop.f32.mrf.mxu0
      %v8139 = vadd.f32 0.0, %v8138
      %v8140 = vpop.f32.mrf.mxu0
      %8141 = vmatprep.mubr.bf16.mxu0 0
      %8142 = vmatmul.mubr.bf16.gmra.mxu0 %v8013
      %v8143 = vpop.f32.mrf.mxu0
      %v8144 = vadd.f32 0.0, %v8143
      %v8145 = vpop.f32.mrf.mxu0
      %v8146 = vpop.f32.mrf.mxu0
      %v8147 = vadd.f32 0.0, %v8146
      %v8148 = vpop.f32.mrf.mxu0
      %8149 = vmatprep.mubr.bf16.mxu0 0
      %8150 = vmatmul.mubr.bf16.gmra.mxu0 %v8016
      %v8151 = vpop.f32.mrf.mxu0
      %v8152 = vadd.f32 0.0, %v8151
      %v8153 = vpop.f32.mrf.mxu0
      %v8154 = vpop.f32.mrf.mxu0
      %v8155 = vadd.f32 0.0, %v8154
      %v8156 = vpop.f32.mrf.mxu0
      %8157 = vmatprep.mubr.bf16.mxu0 0
      %8158 = vmatmul.mubr.bf16.gmra.mxu0 %v8019
      %v8159 = vpop.f32.mrf.mxu0
      %v8160 = vadd.f32 0.0, %v8159
      %v8161 = vpop.f32.mrf.mxu0
      %v8162 = vpop.f32.mrf.mxu0
      %v8163 = vadd.f32 0.0, %v8162
      %v8164 = vpop.f32.mrf.mxu0
      %8165 = vmatprep.mubr.bf16.mxu0 0
      %8166 = vmatmul.mubr.bf16.gmra.mxu0 %v8022
      %v8167 = vpop.f32.mrf.mxu0
      %v8168 = vadd.f32 0.0, %v8167
      %v8169 = vpop.f32.mrf.mxu0
      %v8170 = vpop.f32.mrf.mxu0
      %v8171 = vadd.f32 0.0, %v8170
      %v8172 = vpop.f32.mrf.mxu0
      %8173 = vmatprep.mubr.bf16.mxu0 0
      %8174 = vmatmul.mubr.bf16.gmra.mxu0 %v8025
      %v8175 = vpop.f32.mrf.mxu0
      %v8176 = vadd.f32 0.0, %v8175
      %v8177 = vpop.f32.mrf.mxu0
      %v8178 = vpop.f32.mrf.mxu0
      %v8179 = vadd.f32 0.0, %v8178
      %v8180 = vpop.f32.mrf.mxu0
      %8181 = vmatprep.mubr.bf16.mxu0 0
      %8182 = vmatmul.mubr.bf16.gmra.mxu0 %v8028
      %v8183 = vpop.f32.mrf.mxu0
      %v8184 = vadd.f32 0.0, %v8183
      %v8185 = vpop.f32.mrf.mxu0
      %v8186 = vpop.f32.mrf.mxu0
      %v8187 = vadd.f32 0.0, %v8186
      %v8188 = vpop.f32.mrf.mxu0
      %8189 = vmatprep.mubr.bf16.mxu0 0
      %8190 = vmatmul.mubr.bf16.gmra.mxu0 %v8031
      %v8191 = vpop.f32.mrf.mxu0
      %v8192 = vadd.f32 0.0, %v8191
      %v8193 = vpop.f32.mrf.mxu0
      %v8194 = vpop.f32.mrf.mxu0
      %v8195 = vadd.f32 0.0, %v8194
      %v8196 = vpop.f32.mrf.mxu0
      %8197 = vmatprep.mubr.bf16.mxu0 0
      %8198 = vmatmul.mubr.bf16.gmra.mxu0 %v8034
      %v8199 = vpop.f32.mrf.mxu0
      %v8200 = vadd.f32 0.0, %v8199
      %v8201 = vpop.f32.mrf.mxu0
      %v8202 = vpop.f32.mrf.mxu0
      %v8203 = vadd.f32 0.0, %v8202
      %v8204 = vpop.f32.mrf.mxu0
      %8205 = vmatprep.mubr.bf16.mxu0 0
      %8206 = vmatmul.mubr.bf16.gmra.mxu0 %v8037
      %v8207 = vpop.f32.mrf.mxu0
      %v8208 = vadd.f32 0.0, %v8207
      %v8209 = vpop.f32.mrf.mxu0
      %v8210 = vpop.f32.mrf.mxu0
      %v8211 = vadd.f32 0.0, %v8210
      %v8212 = vpop.f32.mrf.mxu0
      %8213 = vmatprep.mubr.bf16.mxu0 0
      %8214 = vmatmul.mubr.bf16.gmra.mxu0 %v8040
      %v8215 = vpop.f32.mrf.mxu0
      %v8216 = vadd.f32 0.0, %v8215
      %v8217 = vpop.f32.mrf.mxu0
      %v8218 = vpop.f32.mrf.mxu0
      %v8219 = vadd.f32 0.0, %v8218
      %v8220 = vpop.f32.mrf.mxu0
      %8221 = vdwg.mxu0
      %v8222 = vld [vmem:[#allocation4] sm:$0xff]
      %v8223 = vld [vmem:[#allocation4 + $0x8] sm:$0xff]
      %v8224 = vld [vmem:[#allocation4 + $0x10] sm:$0xff]
      %v8225 = vld [vmem:[#allocation4 + $0x18] sm:$0xff]
      %v8226 = vld [vmem:[#allocation4 + $0x20] sm:$0xff]
      %v8227 = vld [vmem:[#allocation4 + $0x28] sm:$0xff]
      %v8228 = vld [vmem:[#allocation4 + $0x30] sm:$0xff]
      %v8229 = vld [vmem:[#allocation4 + $0x38] sm:$0xff]
      %v8230 = vld [vmem:[#allocation4 + $0x40] sm:$0xff]
      %v8231 = vld [vmem:[#allocation4 + $0x48] sm:$0xff]
      %v8232 = vld [vmem:[#allocation4 + $0x50] sm:$0xff]
      %v8233 = vld [vmem:[#allocation4 + $0x58] sm:$0xff]
      %v8234 = vld [vmem:[#allocation4 + $0x60] sm:$0xff]
      %v8235 = vld [vmem:[#allocation4 + $0x68] sm:$0xff]
      %v8236 = vld [vmem:[#allocation4 + $0x70] sm:$0xff]
      %v8237 = vld [vmem:[#allocation4 + $0x78] sm:$0xff]
      %v8238 = vld [vmem:[#allocation4 + $0x80] sm:$0xff]
      %v8239 = vld [vmem:[#allocation4 + $0x88] sm:$0xff]
      %v8240 = vld [vmem:[#allocation4 + $0x90] sm:$0xff]
      %v8241 = vld [vmem:[#allocation4 + $0x98] sm:$0xff]
      %v8242 = vld [vmem:[#allocation4 + $0xa0] sm:$0xff]
      %v8243 = vld [vmem:[#allocation4 + $0xa8] sm:$0xff]
      %v8244 = vld [vmem:[#allocation4 + $0xb0] sm:$0xff]
      %v8245 = vld [vmem:[#allocation4 + $0xb8] sm:$0xff]
      %v8246 = vld [vmem:[#allocation4 + $0xc0] sm:$0xff]
      %v8247 = vld [vmem:[#allocation4 + $0xc8] sm:$0xff]
      %v8248 = vld [vmem:[#allocation4 + $0xd0] sm:$0xff]
      %v8249 = vld [vmem:[#allocation4 + $0xd8] sm:$0xff]
      %v8250 = vld [vmem:[#allocation4 + $0xe0] sm:$0xff]
      %v8251 = vld [vmem:[#allocation4 + $0xe8] sm:$0xff]
      %v8252 = vld [vmem:[#allocation4 + $0xf0] sm:$0xff]
      %v8253 = vld [vmem:[#allocation4 + $0xf8] sm:$0xff]
      %v8254 = vld [vmem:[#allocation4 + $0x100] sm:$0xff]
      %v8255 = vld [vmem:[#allocation4 + $0x108] sm:$0xff]
      %v8256 = vld [vmem:[#allocation4 + $0x110] sm:$0xff]
      %v8257 = vld [vmem:[#allocation4 + $0x118] sm:$0xff]
      %v8258 = vadd.f32 %v8222, %v8080
      %v8259 = vadd.f32 %v8223, %v8083
      %v8260 = vadd.f32 %v8224, %v8088
      %v8261 = vadd.f32 %v8225, %v8091
      %v8262 = vadd.f32 %v8226, %v8096
      %v8263 = vadd.f32 %v8227, %v8099
      %v8264 = vadd.f32 %v8228, %v8104
      %v8265 = vadd.f32 %v8229, %v8107
      %v8266 = vadd.f32 %v8230, %v8112
      %v8267 = vadd.f32 %v8231, %v8115
      %v8268 = vadd.f32 %v8232, %v8120
      %v8269 = vadd.f32 %v8233, %v8123
      %v8270 = vadd.f32 %v8234, %v8128
      %v8271 = vadd.f32 %v8235, %v8131
      %v8272 = vadd.f32 %v8236, %v8136
      %v8273 = vadd.f32 %v8237, %v8139
      %v8274 = vadd.f32 %v8238, %v8144
      %v8275 = vadd.f32 %v8239, %v8147
      %v8276 = vadd.f32 %v8240, %v8152
      %v8277 = vadd.f32 %v8241, %v8155
      %v8278 = vadd.f32 %v8242, %v8160
      %v8279 = vadd.f32 %v8243, %v8163
      %v8280 = vadd.f32 %v8244, %v8168
      %v8281 = vadd.f32 %v8245, %v8171
      %v8282 = vadd.f32 %v8246, %v8176
      %v8283 = vadd.f32 %v8247, %v8179
      %v8284 = vadd.f32 %v8248, %v8184
      %v8285 = vadd.f32 %v8249, %v8187
      %v8286 = vadd.f32 %v8250, %v8192
      %v8287 = vadd.f32 %v8251, %v8195
      %v8288 = vadd.f32 %v8252, %v8200
      %v8289 = vadd.f32 %v8253, %v8203
      %v8290 = vadd.f32 %v8254, %v8208
      %v8291 = vadd.f32 %v8255, %v8211
      %v8292 = vadd.f32 %v8256, %v8216
      %v8293 = vadd.f32 %v8257, %v8219
      %8294 = vst.msk [vmem:[#allocation4] sm:$0xff] %vm589, %v8258
      %8295 = vst.msk [vmem:[#allocation4 + $0x8] sm:$0xff] %vm589, %v8259
      %8296 = vst.msk [vmem:[#allocation4 + $0x10] sm:$0xff] %vm589, %v8260
      %8297 = vst.msk [vmem:[#allocation4 + $0x18] sm:$0xff] %vm589, %v8261
      %8298 = vst.msk [vmem:[#allocation4 + $0x20] sm:$0xff] %vm589, %v8262
      %8299 = vst.msk [vmem:[#allocation4 + $0x28] sm:$0xff] %vm589, %v8263
      %8300 = vst.msk [vmem:[#allocation4 + $0x30] sm:$0xff] %vm589, %v8264
      %8301 = vst.msk [vmem:[#allocation4 + $0x38] sm:$0xff] %vm589, %v8265
      %8302 = vst.msk [vmem:[#allocation4 + $0x40] sm:$0xff] %vm589, %v8266
      %8303 = vst.msk [vmem:[#allocation4 + $0x48] sm:$0xff] %vm589, %v8267
      %8304 = vst.msk [vmem:[#allocation4 + $0x50] sm:$0xff] %vm589, %v8268
      %8305 = vst.msk [vmem:[#allocation4 + $0x58] sm:$0xff] %vm589, %v8269
      %8306 = vst.msk [vmem:[#allocation4 + $0x60] sm:$0xff] %vm589, %v8270
      %8307 = vst.msk [vmem:[#allocation4 + $0x68] sm:$0xff] %vm589, %v8271
      %8308 = vst.msk [vmem:[#allocation4 + $0x70] sm:$0xff] %vm589, %v8272
      %8309 = vst.msk [vmem:[#allocation4 + $0x78] sm:$0xff] %vm589, %v8273
      %8310 = vst.msk [vmem:[#allocation4 + $0x80] sm:$0xff] %vm589, %v8274
      %8311 = vst.msk [vmem:[#allocation4 + $0x88] sm:$0xff] %vm589, %v8275
      %8312 = vst.msk [vmem:[#allocation4 + $0x90] sm:$0xff] %vm589, %v8276
      %8313 = vst.msk [vmem:[#allocation4 + $0x98] sm:$0xff] %vm589, %v8277
      %8314 = vst.msk [vmem:[#allocation4 + $0xa0] sm:$0xff] %vm589, %v8278
      %8315 = vst.msk [vmem:[#allocation4 + $0xa8] sm:$0xff] %vm589, %v8279
      %8316 = vst.msk [vmem:[#allocation4 + $0xb0] sm:$0xff] %vm589, %v8280
      %8317 = vst.msk [vmem:[#allocation4 + $0xb8] sm:$0xff] %vm589, %v8281
      %8318 = vst.msk [vmem:[#allocation4 + $0xc0] sm:$0xff] %vm589, %v8282
      %8319 = vst.msk [vmem:[#allocation4 + $0xc8] sm:$0xff] %vm589, %v8283
      %8320 = vst.msk [vmem:[#allocation4 + $0xd0] sm:$0xff] %vm589, %v8284
      %8321 = vst.msk [vmem:[#allocation4 + $0xd8] sm:$0xff] %vm589, %v8285
      %8322 = vst.msk [vmem:[#allocation4 + $0xe0] sm:$0xff] %vm589, %v8286
      %8323 = vst.msk [vmem:[#allocation4 + $0xe8] sm:$0xff] %vm589, %v8287
      %8324 = vst.msk [vmem:[#allocation4 + $0xf0] sm:$0xff] %vm589, %v8288
      %8325 = vst.msk [vmem:[#allocation4 + $0xf8] sm:$0xff] %vm589, %v8289
      %8326 = vst.msk [vmem:[#allocation4 + $0x100] sm:$0xff] %vm589, %v8290
      %8327 = vst.msk [vmem:[#allocation4 + $0x108] sm:$0xff] %vm589, %v8291
      %8328 = vst.msk [vmem:[#allocation4 + $0x110] sm:$0xff] %vm589, %v8292
      %8329 = vst.msk [vmem:[#allocation4 + $0x118] sm:$0xff] %vm589, %v8293
      %v8330 = vld [vmem:[#allocation3 + $0x24] sm:$0xff]
      %v8331 = vld [vmem:[#allocation3 + $0x2c] sm:$0xff]
      %v8332 = vld [vmem:[#allocation3 + $0x34] sm:$0xff]
      %v8333 = vld [vmem:[#allocation3 + $0x3c] sm:$0xff]
      %v8334 = vld [vmem:[#allocation3 + $0x44] sm:$0xff]
      %v8335 = vld [vmem:[#allocation3 + $0x4c] sm:$0xff]
      %v8336 = vld [vmem:[#allocation3 + $0x54] sm:$0xff]
      %v8337 = vld [vmem:[#allocation3 + $0x5c] sm:$0xff]
      %v8338 = vld [vmem:[#allocation3 + $0x64] sm:$0xff]
      %v8339 = vld [vmem:[#allocation3 + $0x6c] sm:$0xff]
      %v8340 = vld [vmem:[#allocation3 + $0x74] sm:$0xff]
      %v8341 = vld [vmem:[#allocation3 + $0x7c] sm:$0xff]
      %v8342 = vld [vmem:[#allocation3 + $0x84] sm:$0xff]
      %v8343 = vld [vmem:[#allocation3 + $0x8c] sm:$0xff]
      %v8344 = vld [vmem:[#allocation3 + $0x94] sm:$0xff]
      %v8345 = vld [vmem:[#allocation3 + $0x9c] sm:$0xff]
      %v8346 = vld [vmem:[#allocation3 + $0xa4] sm:$0xff]
      %v8347 = vld [vmem:[#allocation3 + $0xac] sm:$0xff]
      %v8348 = vld [vmem:[#allocation3 + $0xb4] sm:$0xff]
      %v8349 = vld [vmem:[#allocation3 + $0xbc] sm:$0xff]
      %v8350 = vld [vmem:[#allocation3 + $0xc4] sm:$0xff]
      %v8351 = vld [vmem:[#allocation3 + $0xcc] sm:$0xff]
      %v8352 = vld [vmem:[#allocation3 + $0xd4] sm:$0xff]
      %v8353 = vld [vmem:[#allocation3 + $0xdc] sm:$0xff]
      %v8354 = vld [vmem:[#allocation3 + $0xe4] sm:$0xff]
      %v8355 = vld [vmem:[#allocation3 + $0xec] sm:$0xff]
      %v8356 = vld [vmem:[#allocation3 + $0xf4] sm:$0xff]
      %v8357 = vld [vmem:[#allocation3 + $0xfc] sm:$0xff]
      %v8358 = vld [vmem:[#allocation3 + $0x104] sm:$0xff]
      %v8359 = vld [vmem:[#allocation3 + $0x10c] sm:$0xff]
      %v8360 = vld [vmem:[#allocation3 + $0x114] sm:$0xff]
      %v8361 = vld [vmem:[#allocation3 + $0x11c] sm:$0xff]
      %v8362 = vld [vmem:[#allocation3 + $0x124] sm:$0xff]
      %v8363 = vld [vmem:[#allocation3 + $0x12c] sm:$0xff]
      %v8364 = vld [vmem:[#allocation3 + $0x134] sm:$0xff]
      %v8365 = vld [vmem:[#allocation3 + $0x13c] sm:$0xff]
      %v8366 = vpack.c.bf16 %v8331, %v8330
      %v8367 = vpack.c.bf16 %v8333, %v8332
      %v8368 = vpack.c.bf16 %v8335, %v8334
      %v8369 = vpack.c.bf16 %v8337, %v8336
      %v8370 = vpack.c.bf16 %v8339, %v8338
      %v8371 = vpack.c.bf16 %v8341, %v8340
      %v8372 = vpack.c.bf16 %v8343, %v8342
      %v8373 = vpack.c.bf16 %v8345, %v8344
      %v8374 = vpack.c.bf16 %v8347, %v8346
      %v8375 = vpack.c.bf16 %v8349, %v8348
      %v8376 = vpack.c.bf16 %v8351, %v8350
      %v8377 = vpack.c.bf16 %v8353, %v8352
      %v8378 = vpack.c.bf16 %v8355, %v8354
      %v8379 = vpack.c.bf16 %v8357, %v8356
      %v8380 = vpack.c.bf16 %v8359, %v8358
      %v8381 = vpack.c.bf16 %v8361, %v8360
      %v8382 = vpack.c.bf16 %v8363, %v8362
      %v8383 = vpack.c.bf16 %v8365, %v8364
      %s8384 = scalar_lea.vmem %s3, 12
      %v8385 = vld [vmem:[%s8384] sm:$0x3]
      %v8387 = vsel %vm589, %v8366, 0
      %v8390 = vsel %vm589, %v8367, 0
      %v8393 = vsel %vm589, %v8368, 0
      %v8396 = vsel %vm589, %v8369, 0
      %v8399 = vsel %vm589, %v8370, 0
      %v8402 = vsel %vm589, %v8371, 0
      %v8405 = vsel %vm589, %v8372, 0
      %v8408 = vsel %vm589, %v8373, 0
      %v8411 = vsel %vm589, %v8374, 0
      %v8414 = vsel %vm589, %v8375, 0
      %v8417 = vsel %vm589, %v8376, 0
      %v8420 = vsel %vm589, %v8377, 0
      %v8423 = vsel %vm589, %v8378, 0
      %v8426 = vsel %vm589, %v8379, 0
      %v8429 = vsel %vm589, %v8380, 0
      %v8432 = vsel %vm589, %v8381, 0
      %v8435 = vsel %vm589, %v8382, 0
      %v8438 = vsel %vm589, %v8383, 0
      %v8441 = vsel %vm6123, %v8385, 0
      %8443 = vmatprep.subr.bf16.mxu0 0
      %8444 = vmatpush1.bf16.msra.mxu0 0
      %8445 = vmatprep.subr.bf16.mxu0 0
      %8446 = vmatpush1.bf16.msra.mxu0 0
      %8447 = vmatprep.subr.bf16.mxu0 0
      %8448 = vmatpush1.bf16.msra.mxu0 0
      %8449 = vmatprep.subr.bf16.mxu0 0
      %8450 = vmatpush1.bf16.msra.mxu0 0
      %8451 = vmatprep.subr.bf16.mxu0 0
      %8452 = vmatpush1.bf16.msra.mxu0 0
      %8453 = vmatprep.subr.bf16.mxu0 0
      %8454 = vmatpush1.bf16.msra.mxu0 0
      %8455 = vmatprep.subr.bf16.mxu0 0
      %8456 = vmatpush1.bf16.msra.mxu0 0
      %8457 = vmatprep.subr.bf16.mxu0 0
      %8458 = vmatpush1.bf16.msra.mxu0 %v8441
      %8459 = vmatprep.subr.bf16.mxu0 0
      %8460 = vmatpush2.bf16.msra.mxu0 0
      %8461 = vmatprep.subr.bf16.mxu0 0
      %8462 = vmatpush2.bf16.msra.mxu0 0
      %8463 = vmatprep.subr.bf16.mxu0 0
      %8464 = vmatpush2.bf16.msra.mxu0 0
      %8465 = vmatprep.subr.bf16.mxu0 0
      %8466 = vmatpush2.bf16.msra.mxu0 0
      %8467 = vmatprep.subr.bf16.mxu0 0
      %8468 = vmatpush2.bf16.msra.mxu0 0
      %8469 = vmatprep.subr.bf16.mxu0 0
      %8470 = vmatpush2.bf16.msra.mxu0 0
      %8471 = vmatprep.subr.bf16.mxu0 0
      %8472 = vmatpush2.bf16.msra.mxu0 0
      %8473 = vmatprep.subr.bf16.mxu0 0
      %8474 = vmatpush2.bf16.msra.mxu0 0
      %8475 = vmatprep.mubr.bf16.mxu0 0
      %8476 = vmatmul.mubr.bf16.gmra.mxu0 %v8387
      %v8477 = vpop.f32.mrf.mxu0
      %v8478 = vadd.f32 0.0, %v8477
      %v8479 = vpop.f32.mrf.mxu0
      %v8480 = vpop.f32.mrf.mxu0
      %v8481 = vadd.f32 0.0, %v8480
      %v8482 = vpop.f32.mrf.mxu0
      %8483 = vmatprep.mubr.bf16.mxu0 0
      %8484 = vmatmul.mubr.bf16.gmra.mxu0 %v8390
      %v8485 = vpop.f32.mrf.mxu0
      %v8486 = vadd.f32 0.0, %v8485
      %v8487 = vpop.f32.mrf.mxu0
      %v8488 = vpop.f32.mrf.mxu0
      %v8489 = vadd.f32 0.0, %v8488
      %v8490 = vpop.f32.mrf.mxu0
      %8491 = vmatprep.mubr.bf16.mxu0 0
      %8492 = vmatmul.mubr.bf16.gmra.mxu0 %v8393
      %v8493 = vpop.f32.mrf.mxu0
      %v8494 = vadd.f32 0.0, %v8493
      %v8495 = vpop.f32.mrf.mxu0
      %v8496 = vpop.f32.mrf.mxu0
      %v8497 = vadd.f32 0.0, %v8496
      %v8498 = vpop.f32.mrf.mxu0
      %8499 = vmatprep.mubr.bf16.mxu0 0
      %8500 = vmatmul.mubr.bf16.gmra.mxu0 %v8396
      %v8501 = vpop.f32.mrf.mxu0
      %v8502 = vadd.f32 0.0, %v8501
      %v8503 = vpop.f32.mrf.mxu0
      %v8504 = vpop.f32.mrf.mxu0
      %v8505 = vadd.f32 0.0, %v8504
      %v8506 = vpop.f32.mrf.mxu0
      %8507 = vmatprep.mubr.bf16.mxu0 0
      %8508 = vmatmul.mubr.bf16.gmra.mxu0 %v8399
      %v8509 = vpop.f32.mrf.mxu0
      %v8510 = vadd.f32 0.0, %v8509
      %v8511 = vpop.f32.mrf.mxu0
      %v8512 = vpop.f32.mrf.mxu0
      %v8513 = vadd.f32 0.0, %v8512
      %v8514 = vpop.f32.mrf.mxu0
      %8515 = vmatprep.mubr.bf16.mxu0 0
      %8516 = vmatmul.mubr.bf16.gmra.mxu0 %v8402
      %v8517 = vpop.f32.mrf.mxu0
      %v8518 = vadd.f32 0.0, %v8517
      %v8519 = vpop.f32.mrf.mxu0
      %v8520 = vpop.f32.mrf.mxu0
      %v8521 = vadd.f32 0.0, %v8520
      %v8522 = vpop.f32.mrf.mxu0
      %8523 = vmatprep.mubr.bf16.mxu0 0
      %8524 = vmatmul.mubr.bf16.gmra.mxu0 %v8405
      %v8525 = vpop.f32.mrf.mxu0
      %v8526 = vadd.f32 0.0, %v8525
      %v8527 = vpop.f32.mrf.mxu0
      %v8528 = vpop.f32.mrf.mxu0
      %v8529 = vadd.f32 0.0, %v8528
      %v8530 = vpop.f32.mrf.mxu0
      %8531 = vmatprep.mubr.bf16.mxu0 0
      %8532 = vmatmul.mubr.bf16.gmra.mxu0 %v8408
      %v8533 = vpop.f32.mrf.mxu0
      %v8534 = vadd.f32 0.0, %v8533
      %v8535 = vpop.f32.mrf.mxu0
      %v8536 = vpop.f32.mrf.mxu0
      %v8537 = vadd.f32 0.0, %v8536
      %v8538 = vpop.f32.mrf.mxu0
      %8539 = vmatprep.mubr.bf16.mxu0 0
      %8540 = vmatmul.mubr.bf16.gmra.mxu0 %v8411
      %v8541 = vpop.f32.mrf.mxu0
      %v8542 = vadd.f32 0.0, %v8541
      %v8543 = vpop.f32.mrf.mxu0
      %v8544 = vpop.f32.mrf.mxu0
      %v8545 = vadd.f32 0.0, %v8544
      %v8546 = vpop.f32.mrf.mxu0
      %8547 = vmatprep.mubr.bf16.mxu0 0
      %8548 = vmatmul.mubr.bf16.gmra.mxu0 %v8414
      %v8549 = vpop.f32.mrf.mxu0
      %v8550 = vadd.f32 0.0, %v8549
      %v8551 = vpop.f32.mrf.mxu0
      %v8552 = vpop.f32.mrf.mxu0
      %v8553 = vadd.f32 0.0, %v8552
      %v8554 = vpop.f32.mrf.mxu0
      %8555 = vmatprep.mubr.bf16.mxu0 0
      %8556 = vmatmul.mubr.bf16.gmra.mxu0 %v8417
      %v8557 = vpop.f32.mrf.mxu0
      %v8558 = vadd.f32 0.0, %v8557
      %v8559 = vpop.f32.mrf.mxu0
      %v8560 = vpop.f32.mrf.mxu0
      %v8561 = vadd.f32 0.0, %v8560
      %v8562 = vpop.f32.mrf.mxu0
      %8563 = vmatprep.mubr.bf16.mxu0 0
      %8564 = vmatmul.mubr.bf16.gmra.mxu0 %v8420
      %v8565 = vpop.f32.mrf.mxu0
      %v8566 = vadd.f32 0.0, %v8565
      %v8567 = vpop.f32.mrf.mxu0
      %v8568 = vpop.f32.mrf.mxu0
      %v8569 = vadd.f32 0.0, %v8568
      %v8570 = vpop.f32.mrf.mxu0
      %8571 = vmatprep.mubr.bf16.mxu0 0
      %8572 = vmatmul.mubr.bf16.gmra.mxu0 %v8423
      %v8573 = vpop.f32.mrf.mxu0
      %v8574 = vadd.f32 0.0, %v8573
      %v8575 = vpop.f32.mrf.mxu0
      %v8576 = vpop.f32.mrf.mxu0
      %v8577 = vadd.f32 0.0, %v8576
      %v8578 = vpop.f32.mrf.mxu0
      %8579 = vmatprep.mubr.bf16.mxu0 0
      %8580 = vmatmul.mubr.bf16.gmra.mxu0 %v8426
      %v8581 = vpop.f32.mrf.mxu0
      %v8582 = vadd.f32 0.0, %v8581
      %v8583 = vpop.f32.mrf.mxu0
      %v8584 = vpop.f32.mrf.mxu0
      %v8585 = vadd.f32 0.0, %v8584
      %v8586 = vpop.f32.mrf.mxu0
      %8587 = vmatprep.mubr.bf16.mxu0 0
      %8588 = vmatmul.mubr.bf16.gmra.mxu0 %v8429
      %v8589 = vpop.f32.mrf.mxu0
      %v8590 = vadd.f32 0.0, %v8589
      %v8591 = vpop.f32.mrf.mxu0
      %v8592 = vpop.f32.mrf.mxu0
      %v8593 = vadd.f32 0.0, %v8592
      %v8594 = vpop.f32.mrf.mxu0
      %8595 = vmatprep.mubr.bf16.mxu0 0
      %8596 = vmatmul.mubr.bf16.gmra.mxu0 %v8432
      %v8597 = vpop.f32.mrf.mxu0
      %v8598 = vadd.f32 0.0, %v8597
      %v8599 = vpop.f32.mrf.mxu0
      %v8600 = vpop.f32.mrf.mxu0
      %v8601 = vadd.f32 0.0, %v8600
      %v8602 = vpop.f32.mrf.mxu0
      %8603 = vmatprep.mubr.bf16.mxu0 0
      %8604 = vmatmul.mubr.bf16.gmra.mxu0 %v8435
      %v8605 = vpop.f32.mrf.mxu0
      %v8606 = vadd.f32 0.0, %v8605
      %v8607 = vpop.f32.mrf.mxu0
      %v8608 = vpop.f32.mrf.mxu0
      %v8609 = vadd.f32 0.0, %v8608
      %v8610 = vpop.f32.mrf.mxu0
      %8611 = vmatprep.mubr.bf16.mxu0 0
      %8612 = vmatmul.mubr.bf16.gmra.mxu0 %v8438
      %v8613 = vpop.f32.mrf.mxu0
      %v8614 = vadd.f32 0.0, %v8613
      %v8615 = vpop.f32.mrf.mxu0
      %v8616 = vpop.f32.mrf.mxu0
      %v8617 = vadd.f32 0.0, %v8616
      %v8618 = vpop.f32.mrf.mxu0
      %8619 = vdwg.mxu0
      %v8620 = vld [vmem:[#allocation4] sm:$0xff]
      %v8621 = vld [vmem:[#allocation4 + $0x8] sm:$0xff]
      %v8622 = vld [vmem:[#allocation4 + $0x10] sm:$0xff]
      %v8623 = vld [vmem:[#allocation4 + $0x18] sm:$0xff]
      %v8624 = vld [vmem:[#allocation4 + $0x20] sm:$0xff]
      %v8625 = vld [vmem:[#allocation4 + $0x28] sm:$0xff]
      %v8626 = vld [vmem:[#allocation4 + $0x30] sm:$0xff]
      %v8627 = vld [vmem:[#allocation4 + $0x38] sm:$0xff]
      %v8628 = vld [vmem:[#allocation4 + $0x40] sm:$0xff]
      %v8629 = vld [vmem:[#allocation4 + $0x48] sm:$0xff]
      %v8630 = vld [vmem:[#allocation4 + $0x50] sm:$0xff]
      %v8631 = vld [vmem:[#allocation4 + $0x58] sm:$0xff]
      %v8632 = vld [vmem:[#allocation4 + $0x60] sm:$0xff]
      %v8633 = vld [vmem:[#allocation4 + $0x68] sm:$0xff]
      %v8634 = vld [vmem:[#allocation4 + $0x70] sm:$0xff]
      %v8635 = vld [vmem:[#allocation4 + $0x78] sm:$0xff]
      %v8636 = vld [vmem:[#allocation4 + $0x80] sm:$0xff]
      %v8637 = vld [vmem:[#allocation4 + $0x88] sm:$0xff]
      %v8638 = vld [vmem:[#allocation4 + $0x90] sm:$0xff]
      %v8639 = vld [vmem:[#allocation4 + $0x98] sm:$0xff]
      %v8640 = vld [vmem:[#allocation4 + $0xa0] sm:$0xff]
      %v8641 = vld [vmem:[#allocation4 + $0xa8] sm:$0xff]
      %v8642 = vld [vmem:[#allocation4 + $0xb0] sm:$0xff]
      %v8643 = vld [vmem:[#allocation4 + $0xb8] sm:$0xff]
      %v8644 = vld [vmem:[#allocation4 + $0xc0] sm:$0xff]
      %v8645 = vld [vmem:[#allocation4 + $0xc8] sm:$0xff]
      %v8646 = vld [vmem:[#allocation4 + $0xd0] sm:$0xff]
      %v8647 = vld [vmem:[#allocation4 + $0xd8] sm:$0xff]
      %v8648 = vld [vmem:[#allocation4 + $0xe0] sm:$0xff]
      %v8649 = vld [vmem:[#allocation4 + $0xe8] sm:$0xff]
      %v8650 = vld [vmem:[#allocation4 + $0xf0] sm:$0xff]
      %v8651 = vld [vmem:[#allocation4 + $0xf8] sm:$0xff]
      %v8652 = vld [vmem:[#allocation4 + $0x100] sm:$0xff]
      %v8653 = vld [vmem:[#allocation4 + $0x108] sm:$0xff]
      %v8654 = vld [vmem:[#allocation4 + $0x110] sm:$0xff]
      %v8655 = vld [vmem:[#allocation4 + $0x118] sm:$0xff]
      %v8656 = vadd.f32 %v8620, %v8478
      %v8657 = vadd.f32 %v8621, %v8481
      %v8658 = vadd.f32 %v8622, %v8486
      %v8659 = vadd.f32 %v8623, %v8489
      %v8660 = vadd.f32 %v8624, %v8494
      %v8661 = vadd.f32 %v8625, %v8497
      %v8662 = vadd.f32 %v8626, %v8502
      %v8663 = vadd.f32 %v8627, %v8505
      %v8664 = vadd.f32 %v8628, %v8510
      %v8665 = vadd.f32 %v8629, %v8513
      %v8666 = vadd.f32 %v8630, %v8518
      %v8667 = vadd.f32 %v8631, %v8521
      %v8668 = vadd.f32 %v8632, %v8526
      %v8669 = vadd.f32 %v8633, %v8529
      %v8670 = vadd.f32 %v8634, %v8534
      %v8671 = vadd.f32 %v8635, %v8537
      %v8672 = vadd.f32 %v8636, %v8542
      %v8673 = vadd.f32 %v8637, %v8545
      %v8674 = vadd.f32 %v8638, %v8550
      %v8675 = vadd.f32 %v8639, %v8553
      %v8676 = vadd.f32 %v8640, %v8558
      %v8677 = vadd.f32 %v8641, %v8561
      %v8678 = vadd.f32 %v8642, %v8566
      %v8679 = vadd.f32 %v8643, %v8569
      %v8680 = vadd.f32 %v8644, %v8574
      %v8681 = vadd.f32 %v8645, %v8577
      %v8682 = vadd.f32 %v8646, %v8582
      %v8683 = vadd.f32 %v8647, %v8585
      %v8684 = vadd.f32 %v8648, %v8590
      %v8685 = vadd.f32 %v8649, %v8593
      %v8686 = vadd.f32 %v8650, %v8598
      %v8687 = vadd.f32 %v8651, %v8601
      %v8688 = vadd.f32 %v8652, %v8606
      %v8689 = vadd.f32 %v8653, %v8609
      %v8690 = vadd.f32 %v8654, %v8614
      %v8691 = vadd.f32 %v8655, %v8617
      %8692 = vst.msk [vmem:[#allocation4] sm:$0xff] %vm589, %v8656
      %8693 = vst.msk [vmem:[#allocation4 + $0x8] sm:$0xff] %vm589, %v8657
      %8694 = vst.msk [vmem:[#allocation4 + $0x10] sm:$0xff] %vm589, %v8658
      %8695 = vst.msk [vmem:[#allocation4 + $0x18] sm:$0xff] %vm589, %v8659
      %8696 = vst.msk [vmem:[#allocation4 + $0x20] sm:$0xff] %vm589, %v8660
      %8697 = vst.msk [vmem:[#allocation4 + $0x28] sm:$0xff] %vm589, %v8661
      %8698 = vst.msk [vmem:[#allocation4 + $0x30] sm:$0xff] %vm589, %v8662
      %8699 = vst.msk [vmem:[#allocation4 + $0x38] sm:$0xff] %vm589, %v8663
      %8700 = vst.msk [vmem:[#allocation4 + $0x40] sm:$0xff] %vm589, %v8664
      %8701 = vst.msk [vmem:[#allocation4 + $0x48] sm:$0xff] %vm589, %v8665
      %8702 = vst.msk [vmem:[#allocation4 + $0x50] sm:$0xff] %vm589, %v8666
      %8703 = vst.msk [vmem:[#allocation4 + $0x58] sm:$0xff] %vm589, %v8667
      %8704 = vst.msk [vmem:[#allocation4 + $0x60] sm:$0xff] %vm589, %v8668
      %8705 = vst.msk [vmem:[#allocation4 + $0x68] sm:$0xff] %vm589, %v8669
      %8706 = vst.msk [vmem:[#allocation4 + $0x70] sm:$0xff] %vm589, %v8670
      %8707 = vst.msk [vmem:[#allocation4 + $0x78] sm:$0xff] %vm589, %v8671
      %8708 = vst.msk [vmem:[#allocation4 + $0x80] sm:$0xff] %vm589, %v8672
      %8709 = vst.msk [vmem:[#allocation4 + $0x88] sm:$0xff] %vm589, %v8673
      %8710 = vst.msk [vmem:[#allocation4 + $0x90] sm:$0xff] %vm589, %v8674
      %8711 = vst.msk [vmem:[#allocation4 + $0x98] sm:$0xff] %vm589, %v8675
      %8712 = vst.msk [vmem:[#allocation4 + $0xa0] sm:$0xff] %vm589, %v8676
      %8713 = vst.msk [vmem:[#allocation4 + $0xa8] sm:$0xff] %vm589, %v8677
      %8714 = vst.msk [vmem:[#allocation4 + $0xb0] sm:$0xff] %vm589, %v8678
      %8715 = vst.msk [vmem:[#allocation4 + $0xb8] sm:$0xff] %vm589, %v8679
      %8716 = vst.msk [vmem:[#allocation4 + $0xc0] sm:$0xff] %vm589, %v8680
      %8717 = vst.msk [vmem:[#allocation4 + $0xc8] sm:$0xff] %vm589, %v8681
      %8718 = vst.msk [vmem:[#allocation4 + $0xd0] sm:$0xff] %vm589, %v8682
      %8719 = vst.msk [vmem:[#allocation4 + $0xd8] sm:$0xff] %vm589, %v8683
      %8720 = vst.msk [vmem:[#allocation4 + $0xe0] sm:$0xff] %vm589, %v8684
      %8721 = vst.msk [vmem:[#allocation4 + $0xe8] sm:$0xff] %vm589, %v8685
      %8722 = vst.msk [vmem:[#allocation4 + $0xf0] sm:$0xff] %vm589, %v8686
      %8723 = vst.msk [vmem:[#allocation4 + $0xf8] sm:$0xff] %vm589, %v8687
      %8724 = vst.msk [vmem:[#allocation4 + $0x100] sm:$0xff] %vm589, %v8688
      %8725 = vst.msk [vmem:[#allocation4 + $0x108] sm:$0xff] %vm589, %v8689
      %8726 = vst.msk [vmem:[#allocation4 + $0x110] sm:$0xff] %vm589, %v8690
      %8727 = vst.msk [vmem:[#allocation4 + $0x118] sm:$0xff] %vm589, %v8691
      %v8728 = vld [vmem:[#allocation3 + $0x25] sm:$0xff]
      %v8729 = vld [vmem:[#allocation3 + $0x2d] sm:$0xff]
      %v8730 = vld [vmem:[#allocation3 + $0x35] sm:$0xff]
      %v8731 = vld [vmem:[#allocation3 + $0x3d] sm:$0xff]
      %v8732 = vld [vmem:[#allocation3 + $0x45] sm:$0xff]
      %v8733 = vld [vmem:[#allocation3 + $0x4d] sm:$0xff]
      %v8734 = vld [vmem:[#allocation3 + $0x55] sm:$0xff]
      %v8735 = vld [vmem:[#allocation3 + $0x5d] sm:$0xff]
      %v8736 = vld [vmem:[#allocation3 + $0x65] sm:$0xff]
      %v8737 = vld [vmem:[#allocation3 + $0x6d] sm:$0xff]
      %v8738 = vld [vmem:[#allocation3 + $0x75] sm:$0xff]
      %v8739 = vld [vmem:[#allocation3 + $0x7d] sm:$0xff]
      %v8740 = vld [vmem:[#allocation3 + $0x85] sm:$0xff]
      %v8741 = vld [vmem:[#allocation3 + $0x8d] sm:$0xff]
      %v8742 = vld [vmem:[#allocation3 + $0x95] sm:$0xff]
      %v8743 = vld [vmem:[#allocation3 + $0x9d] sm:$0xff]
      %v8744 = vld [vmem:[#allocation3 + $0xa5] sm:$0xff]
      %v8745 = vld [vmem:[#allocation3 + $0xad] sm:$0xff]
      %v8746 = vld [vmem:[#allocation3 + $0xb5] sm:$0xff]
      %v8747 = vld [vmem:[#allocation3 + $0xbd] sm:$0xff]
      %v8748 = vld [vmem:[#allocation3 + $0xc5] sm:$0xff]
      %v8749 = vld [vmem:[#allocation3 + $0xcd] sm:$0xff]
      %v8750 = vld [vmem:[#allocation3 + $0xd5] sm:$0xff]
      %v8751 = vld [vmem:[#allocation3 + $0xdd] sm:$0xff]
      %v8752 = vld [vmem:[#allocation3 + $0xe5] sm:$0xff]
      %v8753 = vld [vmem:[#allocation3 + $0xed] sm:$0xff]
      %v8754 = vld [vmem:[#allocation3 + $0xf5] sm:$0xff]
      %v8755 = vld [vmem:[#allocation3 + $0xfd] sm:$0xff]
      %v8756 = vld [vmem:[#allocation3 + $0x105] sm:$0xff]
      %v8757 = vld [vmem:[#allocation3 + $0x10d] sm:$0xff]
      %v8758 = vld [vmem:[#allocation3 + $0x115] sm:$0xff]
      %v8759 = vld [vmem:[#allocation3 + $0x11d] sm:$0xff]
      %v8760 = vld [vmem:[#allocation3 + $0x125] sm:$0xff]
      %v8761 = vld [vmem:[#allocation3 + $0x12d] sm:$0xff]
      %v8762 = vld [vmem:[#allocation3 + $0x135] sm:$0xff]
      %v8763 = vld [vmem:[#allocation3 + $0x13d] sm:$0xff]
      %v8764 = vpack.c.bf16 %v8729, %v8728
      %v8765 = vpack.c.bf16 %v8731, %v8730
      %v8766 = vpack.c.bf16 %v8733, %v8732
      %v8767 = vpack.c.bf16 %v8735, %v8734
      %v8768 = vpack.c.bf16 %v8737, %v8736
      %v8769 = vpack.c.bf16 %v8739, %v8738
      %v8770 = vpack.c.bf16 %v8741, %v8740
      %v8771 = vpack.c.bf16 %v8743, %v8742
      %v8772 = vpack.c.bf16 %v8745, %v8744
      %v8773 = vpack.c.bf16 %v8747, %v8746
      %v8774 = vpack.c.bf16 %v8749, %v8748
      %v8775 = vpack.c.bf16 %v8751, %v8750
      %v8776 = vpack.c.bf16 %v8753, %v8752
      %v8777 = vpack.c.bf16 %v8755, %v8754
      %v8778 = vpack.c.bf16 %v8757, %v8756
      %v8779 = vpack.c.bf16 %v8759, %v8758
      %v8780 = vpack.c.bf16 %v8761, %v8760
      %v8781 = vpack.c.bf16 %v8763, %v8762
      %s8782 = scalar_lea.vmem %s3, 14
      %v8783 = vld [vmem:[%s8782] sm:$0x3]
      %v8785 = vsel %vm589, %v8764, 0
      %v8788 = vsel %vm589, %v8765, 0
      %v8791 = vsel %vm589, %v8766, 0
      %v8794 = vsel %vm589, %v8767, 0
      %v8797 = vsel %vm589, %v8768, 0
      %v8800 = vsel %vm589, %v8769, 0
      %v8803 = vsel %vm589, %v8770, 0
      %v8806 = vsel %vm589, %v8771, 0
      %v8809 = vsel %vm589, %v8772, 0
      %v8812 = vsel %vm589, %v8773, 0
      %v8815 = vsel %vm589, %v8774, 0
      %v8818 = vsel %vm589, %v8775, 0
      %v8821 = vsel %vm589, %v8776, 0
      %v8824 = vsel %vm589, %v8777, 0
      %v8827 = vsel %vm589, %v8778, 0
      %v8830 = vsel %vm589, %v8779, 0
      %v8833 = vsel %vm589, %v8780, 0
      %v8836 = vsel %vm589, %v8781, 0
      %v8839 = vsel %vm6123, %v8783, 0
      %8841 = vmatprep.subr.bf16.mxu0 0
      %8842 = vmatpush1.bf16.msra.mxu0 0
      %8843 = vmatprep.subr.bf16.mxu0 0
      %8844 = vmatpush1.bf16.msra.mxu0 0
      %8845 = vmatprep.subr.bf16.mxu0 0
      %8846 = vmatpush1.bf16.msra.mxu0 0
      %8847 = vmatprep.subr.bf16.mxu0 0
      %8848 = vmatpush1.bf16.msra.mxu0 0
      %8849 = vmatprep.subr.bf16.mxu0 0
      %8850 = vmatpush1.bf16.msra.mxu0 0
      %8851 = vmatprep.subr.bf16.mxu0 0
      %8852 = vmatpush1.bf16.msra.mxu0 0
      %8853 = vmatprep.subr.bf16.mxu0 0
      %8854 = vmatpush1.bf16.msra.mxu0 0
      %8855 = vmatprep.subr.bf16.mxu0 0
      %8856 = vmatpush1.bf16.msra.mxu0 %v8839
      %8857 = vmatprep.subr.bf16.mxu0 0
      %8858 = vmatpush2.bf16.msra.mxu0 0
      %8859 = vmatprep.subr.bf16.mxu0 0
      %8860 = vmatpush2.bf16.msra.mxu0 0
      %8861 = vmatprep.subr.bf16.mxu0 0
      %8862 = vmatpush2.bf16.msra.mxu0 0
      %8863 = vmatprep.subr.bf16.mxu0 0
      %8864 = vmatpush2.bf16.msra.mxu0 0
      %8865 = vmatprep.subr.bf16.mxu0 0
      %8866 = vmatpush2.bf16.msra.mxu0 0
      %8867 = vmatprep.subr.bf16.mxu0 0
      %8868 = vmatpush2.bf16.msra.mxu0 0
      %8869 = vmatprep.subr.bf16.mxu0 0
      %8870 = vmatpush2.bf16.msra.mxu0 0
      %8871 = vmatprep.subr.bf16.mxu0 0
      %8872 = vmatpush2.bf16.msra.mxu0 0
      %8873 = vmatprep.mubr.bf16.mxu0 0
      %8874 = vmatmul.mubr.bf16.gmra.mxu0 %v8785
      %v8875 = vpop.f32.mrf.mxu0
      %v8876 = vadd.f32 0.0, %v8875
      %v8877 = vpop.f32.mrf.mxu0
      %v8878 = vpop.f32.mrf.mxu0
      %v8879 = vadd.f32 0.0, %v8878
      %v8880 = vpop.f32.mrf.mxu0
      %8881 = vmatprep.mubr.bf16.mxu0 0
      %8882 = vmatmul.mubr.bf16.gmra.mxu0 %v8788
      %v8883 = vpop.f32.mrf.mxu0
      %v8884 = vadd.f32 0.0, %v8883
      %v8885 = vpop.f32.mrf.mxu0
      %v8886 = vpop.f32.mrf.mxu0
      %v8887 = vadd.f32 0.0, %v8886
      %v8888 = vpop.f32.mrf.mxu0
      %8889 = vmatprep.mubr.bf16.mxu0 0
      %8890 = vmatmul.mubr.bf16.gmra.mxu0 %v8791
      %v8891 = vpop.f32.mrf.mxu0
      %v8892 = vadd.f32 0.0, %v8891
      %v8893 = vpop.f32.mrf.mxu0
      %v8894 = vpop.f32.mrf.mxu0
      %v8895 = vadd.f32 0.0, %v8894
      %v8896 = vpop.f32.mrf.mxu0
      %8897 = vmatprep.mubr.bf16.mxu0 0
      %8898 = vmatmul.mubr.bf16.gmra.mxu0 %v8794
      %v8899 = vpop.f32.mrf.mxu0
      %v8900 = vadd.f32 0.0, %v8899
      %v8901 = vpop.f32.mrf.mxu0
      %v8902 = vpop.f32.mrf.mxu0
      %v8903 = vadd.f32 0.0, %v8902
      %v8904 = vpop.f32.mrf.mxu0
      %8905 = vmatprep.mubr.bf16.mxu0 0
      %8906 = vmatmul.mubr.bf16.gmra.mxu0 %v8797
      %v8907 = vpop.f32.mrf.mxu0
      %v8908 = vadd.f32 0.0, %v8907
      %v8909 = vpop.f32.mrf.mxu0
      %v8910 = vpop.f32.mrf.mxu0
      %v8911 = vadd.f32 0.0, %v8910
      %v8912 = vpop.f32.mrf.mxu0
      %8913 = vmatprep.mubr.bf16.mxu0 0
      %8914 = vmatmul.mubr.bf16.gmra.mxu0 %v8800
      %v8915 = vpop.f32.mrf.mxu0
      %v8916 = vadd.f32 0.0, %v8915
      %v8917 = vpop.f32.mrf.mxu0
      %v8918 = vpop.f32.mrf.mxu0
      %v8919 = vadd.f32 0.0, %v8918
      %v8920 = vpop.f32.mrf.mxu0
      %8921 = vmatprep.mubr.bf16.mxu0 0
      %8922 = vmatmul.mubr.bf16.gmra.mxu0 %v8803
      %v8923 = vpop.f32.mrf.mxu0
      %v8924 = vadd.f32 0.0, %v8923
      %v8925 = vpop.f32.mrf.mxu0
      %v8926 = vpop.f32.mrf.mxu0
      %v8927 = vadd.f32 0.0, %v8926
      %v8928 = vpop.f32.mrf.mxu0
      %8929 = vmatprep.mubr.bf16.mxu0 0
      %8930 = vmatmul.mubr.bf16.gmra.mxu0 %v8806
      %v8931 = vpop.f32.mrf.mxu0
      %v8932 = vadd.f32 0.0, %v8931
      %v8933 = vpop.f32.mrf.mxu0
      %v8934 = vpop.f32.mrf.mxu0
      %v8935 = vadd.f32 0.0, %v8934
      %v8936 = vpop.f32.mrf.mxu0
      %8937 = vmatprep.mubr.bf16.mxu0 0
      %8938 = vmatmul.mubr.bf16.gmra.mxu0 %v8809
      %v8939 = vpop.f32.mrf.mxu0
      %v8940 = vadd.f32 0.0, %v8939
      %v8941 = vpop.f32.mrf.mxu0
      %v8942 = vpop.f32.mrf.mxu0
      %v8943 = vadd.f32 0.0, %v8942
      %v8944 = vpop.f32.mrf.mxu0
      %8945 = vmatprep.mubr.bf16.mxu0 0
      %8946 = vmatmul.mubr.bf16.gmra.mxu0 %v8812
      %v8947 = vpop.f32.mrf.mxu0
      %v8948 = vadd.f32 0.0, %v8947
      %v8949 = vpop.f32.mrf.mxu0
      %v8950 = vpop.f32.mrf.mxu0
      %v8951 = vadd.f32 0.0, %v8950
      %v8952 = vpop.f32.mrf.mxu0
      %8953 = vmatprep.mubr.bf16.mxu0 0
      %8954 = vmatmul.mubr.bf16.gmra.mxu0 %v8815
      %v8955 = vpop.f32.mrf.mxu0
      %v8956 = vadd.f32 0.0, %v8955
      %v8957 = vpop.f32.mrf.mxu0
      %v8958 = vpop.f32.mrf.mxu0
      %v8959 = vadd.f32 0.0, %v8958
      %v8960 = vpop.f32.mrf.mxu0
      %8961 = vmatprep.mubr.bf16.mxu0 0
      %8962 = vmatmul.mubr.bf16.gmra.mxu0 %v8818
      %v8963 = vpop.f32.mrf.mxu0
      %v8964 = vadd.f32 0.0, %v8963
      %v8965 = vpop.f32.mrf.mxu0
      %v8966 = vpop.f32.mrf.mxu0
      %v8967 = vadd.f32 0.0, %v8966
      %v8968 = vpop.f32.mrf.mxu0
      %8969 = vmatprep.mubr.bf16.mxu0 0
      %8970 = vmatmul.mubr.bf16.gmra.mxu0 %v8821
      %v8971 = vpop.f32.mrf.mxu0
      %v8972 = vadd.f32 0.0, %v8971
      %v8973 = vpop.f32.mrf.mxu0
      %v8974 = vpop.f32.mrf.mxu0
      %v8975 = vadd.f32 0.0, %v8974
      %v8976 = vpop.f32.mrf.mxu0
      %8977 = vmatprep.mubr.bf16.mxu0 0
      %8978 = vmatmul.mubr.bf16.gmra.mxu0 %v8824
      %v8979 = vpop.f32.mrf.mxu0
      %v8980 = vadd.f32 0.0, %v8979
      %v8981 = vpop.f32.mrf.mxu0
      %v8982 = vpop.f32.mrf.mxu0
      %v8983 = vadd.f32 0.0, %v8982
      %v8984 = vpop.f32.mrf.mxu0
      %8985 = vmatprep.mubr.bf16.mxu0 0
      %8986 = vmatmul.mubr.bf16.gmra.mxu0 %v8827
      %v8987 = vpop.f32.mrf.mxu0
      %v8988 = vadd.f32 0.0, %v8987
      %v8989 = vpop.f32.mrf.mxu0
      %v8990 = vpop.f32.mrf.mxu0
      %v8991 = vadd.f32 0.0, %v8990
      %v8992 = vpop.f32.mrf.mxu0
      %8993 = vmatprep.mubr.bf16.mxu0 0
      %8994 = vmatmul.mubr.bf16.gmra.mxu0 %v8830
      %v8995 = vpop.f32.mrf.mxu0
      %v8996 = vadd.f32 0.0, %v8995
      %v8997 = vpop.f32.mrf.mxu0
      %v8998 = vpop.f32.mrf.mxu0
      %v8999 = vadd.f32 0.0, %v8998
      %v9000 = vpop.f32.mrf.mxu0
      %9001 = vmatprep.mubr.bf16.mxu0 0
      %9002 = vmatmul.mubr.bf16.gmra.mxu0 %v8833
      %v9003 = vpop.f32.mrf.mxu0
      %v9004 = vadd.f32 0.0, %v9003
      %v9005 = vpop.f32.mrf.mxu0
      %v9006 = vpop.f32.mrf.mxu0
      %v9007 = vadd.f32 0.0, %v9006
      %v9008 = vpop.f32.mrf.mxu0
      %9009 = vmatprep.mubr.bf16.mxu0 0
      %9010 = vmatmul.mubr.bf16.gmra.mxu0 %v8836
      %v9011 = vpop.f32.mrf.mxu0
      %v9012 = vadd.f32 0.0, %v9011
      %v9013 = vpop.f32.mrf.mxu0
      %v9014 = vpop.f32.mrf.mxu0
      %v9015 = vadd.f32 0.0, %v9014
      %v9016 = vpop.f32.mrf.mxu0
      %9017 = vdwg.mxu0
      %v9018 = vld [vmem:[#allocation4] sm:$0xff]
      %v9019 = vld [vmem:[#allocation4 + $0x8] sm:$0xff]
      %v9020 = vld [vmem:[#allocation4 + $0x10] sm:$0xff]
      %v9021 = vld [vmem:[#allocation4 + $0x18] sm:$0xff]
      %v9022 = vld [vmem:[#allocation4 + $0x20] sm:$0xff]
      %v9023 = vld [vmem:[#allocation4 + $0x28] sm:$0xff]
      %v9024 = vld [vmem:[#allocation4 + $0x30] sm:$0xff]
      %v9025 = vld [vmem:[#allocation4 + $0x38] sm:$0xff]
      %v9026 = vld [vmem:[#allocation4 + $0x40] sm:$0xff]
      %v9027 = vld [vmem:[#allocation4 + $0x48] sm:$0xff]
      %v9028 = vld [vmem:[#allocation4 + $0x50] sm:$0xff]
      %v9029 = vld [vmem:[#allocation4 + $0x58] sm:$0xff]
      %v9030 = vld [vmem:[#allocation4 + $0x60] sm:$0xff]
      %v9031 = vld [vmem:[#allocation4 + $0x68] sm:$0xff]
      %v9032 = vld [vmem:[#allocation4 + $0x70] sm:$0xff]
      %v9033 = vld [vmem:[#allocation4 + $0x78] sm:$0xff]
      %v9034 = vld [vmem:[#allocation4 + $0x80] sm:$0xff]
      %v9035 = vld [vmem:[#allocation4 + $0x88] sm:$0xff]
      %v9036 = vld [vmem:[#allocation4 + $0x90] sm:$0xff]
      %v9037 = vld [vmem:[#allocation4 + $0x98] sm:$0xff]
      %v9038 = vld [vmem:[#allocation4 + $0xa0] sm:$0xff]
      %v9039 = vld [vmem:[#allocation4 + $0xa8] sm:$0xff]
      %v9040 = vld [vmem:[#allocation4 + $0xb0] sm:$0xff]
      %v9041 = vld [vmem:[#allocation4 + $0xb8] sm:$0xff]
      %v9042 = vld [vmem:[#allocation4 + $0xc0] sm:$0xff]
      %v9043 = vld [vmem:[#allocation4 + $0xc8] sm:$0xff]
      %v9044 = vld [vmem:[#allocation4 + $0xd0] sm:$0xff]
      %v9045 = vld [vmem:[#allocation4 + $0xd8] sm:$0xff]
      %v9046 = vld [vmem:[#allocation4 + $0xe0] sm:$0xff]
      %v9047 = vld [vmem:[#allocation4 + $0xe8] sm:$0xff]
      %v9048 = vld [vmem:[#allocation4 + $0xf0] sm:$0xff]
      %v9049 = vld [vmem:[#allocation4 + $0xf8] sm:$0xff]
      %v9050 = vld [vmem:[#allocation4 + $0x100] sm:$0xff]
      %v9051 = vld [vmem:[#allocation4 + $0x108] sm:$0xff]
      %v9052 = vld [vmem:[#allocation4 + $0x110] sm:$0xff]
      %v9053 = vld [vmem:[#allocation4 + $0x118] sm:$0xff]
      %v9054 = vadd.f32 %v9018, %v8876
      %v9055 = vadd.f32 %v9019, %v8879
      %v9056 = vadd.f32 %v9020, %v8884
      %v9057 = vadd.f32 %v9021, %v8887
      %v9058 = vadd.f32 %v9022, %v8892
      %v9059 = vadd.f32 %v9023, %v8895
      %v9060 = vadd.f32 %v9024, %v8900
      %v9061 = vadd.f32 %v9025, %v8903
      %v9062 = vadd.f32 %v9026, %v8908
      %v9063 = vadd.f32 %v9027, %v8911
      %v9064 = vadd.f32 %v9028, %v8916
      %v9065 = vadd.f32 %v9029, %v8919
      %v9066 = vadd.f32 %v9030, %v8924
      %v9067 = vadd.f32 %v9031, %v8927
      %v9068 = vadd.f32 %v9032, %v8932
      %v9069 = vadd.f32 %v9033, %v8935
      %v9070 = vadd.f32 %v9034, %v8940
      %v9071 = vadd.f32 %v9035, %v8943
      %v9072 = vadd.f32 %v9036, %v8948
      %v9073 = vadd.f32 %v9037, %v8951
      %v9074 = vadd.f32 %v9038, %v8956
      %v9075 = vadd.f32 %v9039, %v8959
      %v9076 = vadd.f32 %v9040, %v8964
      %v9077 = vadd.f32 %v9041, %v8967
      %v9078 = vadd.f32 %v9042, %v8972
      %v9079 = vadd.f32 %v9043, %v8975
      %v9080 = vadd.f32 %v9044, %v8980
      %v9081 = vadd.f32 %v9045, %v8983
      %v9082 = vadd.f32 %v9046, %v8988
      %v9083 = vadd.f32 %v9047, %v8991
      %v9084 = vadd.f32 %v9048, %v8996
      %v9085 = vadd.f32 %v9049, %v8999
      %v9086 = vadd.f32 %v9050, %v9004
      %v9087 = vadd.f32 %v9051, %v9007
      %v9088 = vadd.f32 %v9052, %v9012
      %v9089 = vadd.f32 %v9053, %v9015
      %9090 = vst.msk [vmem:[#allocation4] sm:$0xff] %vm589, %v9054
      %9091 = vst.msk [vmem:[#allocation4 + $0x8] sm:$0xff] %vm589, %v9055
      %9092 = vst.msk [vmem:[#allocation4 + $0x10] sm:$0xff] %vm589, %v9056
      %9093 = vst.msk [vmem:[#allocation4 + $0x18] sm:$0xff] %vm589, %v9057
      %9094 = vst.msk [vmem:[#allocation4 + $0x20] sm:$0xff] %vm589, %v9058
      %9095 = vst.msk [vmem:[#allocation4 + $0x28] sm:$0xff] %vm589, %v9059
      %9096 = vst.msk [vmem:[#allocation4 + $0x30] sm:$0xff] %vm589, %v9060
      %9097 = vst.msk [vmem:[#allocation4 + $0x38] sm:$0xff] %vm589, %v9061
      %9098 = vst.msk [vmem:[#allocation4 + $0x40] sm:$0xff] %vm589, %v9062
      %9099 = vst.msk [vmem:[#allocation4 + $0x48] sm:$0xff] %vm589, %v9063
      %9100 = vst.msk [vmem:[#allocation4 + $0x50] sm:$0xff] %vm589, %v9064
      %9101 = vst.msk [vmem:[#allocation4 + $0x58] sm:$0xff] %vm589, %v9065
      %9102 = vst.msk [vmem:[#allocation4 + $0x60] sm:$0xff] %vm589, %v9066
      %9103 = vst.msk [vmem:[#allocation4 + $0x68] sm:$0xff] %vm589, %v9067
      %9104 = vst.msk [vmem:[#allocation4 + $0x70] sm:$0xff] %vm589, %v9068
      %9105 = vst.msk [vmem:[#allocation4 + $0x78] sm:$0xff] %vm589, %v9069
      %9106 = vst.msk [vmem:[#allocation4 + $0x80] sm:$0xff] %vm589, %v9070
      %9107 = vst.msk [vmem:[#allocation4 + $0x88] sm:$0xff] %vm589, %v9071
      %9108 = vst.msk [vmem:[#allocation4 + $0x90] sm:$0xff] %vm589, %v9072
      %9109 = vst.msk [vmem:[#allocation4 + $0x98] sm:$0xff] %vm589, %v9073
      %9110 = vst.msk [vmem:[#allocation4 + $0xa0] sm:$0xff] %vm589, %v9074
      %9111 = vst.msk [vmem:[#allocation4 + $0xa8] sm:$0xff] %vm589, %v9075
      %9112 = vst.msk [vmem:[#allocation4 + $0xb0] sm:$0xff] %vm589, %v9076
      %9113 = vst.msk [vmem:[#allocation4 + $0xb8] sm:$0xff] %vm589, %v9077
      %9114 = vst.msk [vmem:[#allocation4 + $0xc0] sm:$0xff] %vm589, %v9078
      %9115 = vst.msk [vmem:[#allocation4 + $0xc8] sm:$0xff] %vm589, %v9079
      %9116 = vst.msk [vmem:[#allocation4 + $0xd0] sm:$0xff] %vm589, %v9080
      %9117 = vst.msk [vmem:[#allocation4 + $0xd8] sm:$0xff] %vm589, %v9081
      %9118 = vst.msk [vmem:[#allocation4 + $0xe0] sm:$0xff] %vm589, %v9082
      %9119 = vst.msk [vmem:[#allocation4 + $0xe8] sm:$0xff] %vm589, %v9083
      %9120 = vst.msk [vmem:[#allocation4 + $0xf0] sm:$0xff] %vm589, %v9084
      %9121 = vst.msk [vmem:[#allocation4 + $0xf8] sm:$0xff] %vm589, %v9085
      %9122 = vst.msk [vmem:[#allocation4 + $0x100] sm:$0xff] %vm589, %v9086
      %9123 = vst.msk [vmem:[#allocation4 + $0x108] sm:$0xff] %vm589, %v9087
      %9124 = vst.msk [vmem:[#allocation4 + $0x110] sm:$0xff] %vm589, %v9088
      %9125 = vst.msk [vmem:[#allocation4 + $0x118] sm:$0xff] %vm589, %v9089
      %v9126 = vld [vmem:[#allocation3 + $0x26] sm:$0xff]
      %v9127 = vld [vmem:[#allocation3 + $0x2e] sm:$0xff]
      %v9128 = vld [vmem:[#allocation3 + $0x36] sm:$0xff]
      %v9129 = vld [vmem:[#allocation3 + $0x3e] sm:$0xff]
      %v9130 = vld [vmem:[#allocation3 + $0x46] sm:$0xff]
      %v9131 = vld [vmem:[#allocation3 + $0x4e] sm:$0xff]
      %v9132 = vld [vmem:[#allocation3 + $0x56] sm:$0xff]
      %v9133 = vld [vmem:[#allocation3 + $0x5e] sm:$0xff]
      %v9134 = vld [vmem:[#allocation3 + $0x66] sm:$0xff]
      %v9135 = vld [vmem:[#allocation3 + $0x6e] sm:$0xff]
      %v9136 = vld [vmem:[#allocation3 + $0x76] sm:$0xff]
      %v9137 = vld [vmem:[#allocation3 + $0x7e] sm:$0xff]
      %v9138 = vld [vmem:[#allocation3 + $0x86] sm:$0xff]
      %v9139 = vld [vmem:[#allocation3 + $0x8e] sm:$0xff]
      %v9140 = vld [vmem:[#allocation3 + $0x96] sm:$0xff]
      %v9141 = vld [vmem:[#allocation3 + $0x9e] sm:$0xff]
      %v9142 = vld [vmem:[#allocation3 + $0xa6] sm:$0xff]
      %v9143 = vld [vmem:[#allocation3 + $0xae] sm:$0xff]
      %v9144 = vld [vmem:[#allocation3 + $0xb6] sm:$0xff]
      %v9145 = vld [vmem:[#allocation3 + $0xbe] sm:$0xff]
      %v9146 = vld [vmem:[#allocation3 + $0xc6] sm:$0xff]
      %v9147 = vld [vmem:[#allocation3 + $0xce] sm:$0xff]
      %v9148 = vld [vmem:[#allocation3 + $0xd6] sm:$0xff]
      %v9149 = vld [vmem:[#allocation3 + $0xde] sm:$0xff]
      %v9150 = vld [vmem:[#allocation3 + $0xe6] sm:$0xff]
      %v9151 = vld [vmem:[#allocation3 + $0xee] sm:$0xff]
      %v9152 = vld [vmem:[#allocation3 + $0xf6] sm:$0xff]
      %v9153 = vld [vmem:[#allocation3 + $0xfe] sm:$0xff]
      %v9154 = vld [vmem:[#allocation3 + $0x106] sm:$0xff]
      %v9155 = vld [vmem:[#allocation3 + $0x10e] sm:$0xff]
      %v9156 = vld [vmem:[#allocation3 + $0x116] sm:$0xff]
      %v9157 = vld [vmem:[#allocation3 + $0x11e] sm:$0xff]
      %v9158 = vld [vmem:[#allocation3 + $0x126] sm:$0xff]
      %v9159 = vld [vmem:[#allocation3 + $0x12e] sm:$0xff]
      %v9160 = vld [vmem:[#allocation3 + $0x136] sm:$0xff]
      %v9161 = vld [vmem:[#allocation3 + $0x13e] sm:$0xff]
      %v9162 = vpack.c.bf16 %v9127, %v9126
      %v9163 = vpack.c.bf16 %v9129, %v9128
      %v9164 = vpack.c.bf16 %v9131, %v9130
      %v9165 = vpack.c.bf16 %v9133, %v9132
      %v9166 = vpack.c.bf16 %v9135, %v9134
      %v9167 = vpack.c.bf16 %v9137, %v9136
      %v9168 = vpack.c.bf16 %v9139, %v9138
      %v9169 = vpack.c.bf16 %v9141, %v9140
      %v9170 = vpack.c.bf16 %v9143, %v9142
      %v9171 = vpack.c.bf16 %v9145, %v9144
      %v9172 = vpack.c.bf16 %v9147, %v9146
      %v9173 = vpack.c.bf16 %v9149, %v9148
      %v9174 = vpack.c.bf16 %v9151, %v9150
      %v9175 = vpack.c.bf16 %v9153, %v9152
      %v9176 = vpack.c.bf16 %v9155, %v9154
      %v9177 = vpack.c.bf16 %v9157, %v9156
      %v9178 = vpack.c.bf16 %v9159, %v9158
      %v9179 = vpack.c.bf16 %v9161, %v9160
      %s9180 = scalar_lea.vmem %s3, 16
      %v9181 = vld [vmem:[%s9180] sm:$0x3]
      %v9183 = vsel %vm589, %v9162, 0
      %v9186 = vsel %vm589, %v9163, 0
      %v9189 = vsel %vm589, %v9164, 0
      %v9192 = vsel %vm589, %v9165, 0
      %v9195 = vsel %vm589, %v9166, 0
      %v9198 = vsel %vm589, %v9167, 0
      %v9201 = vsel %vm589, %v9168, 0
      %v9204 = vsel %vm589, %v9169, 0
      %v9207 = vsel %vm589, %v9170, 0
      %v9210 = vsel %vm589, %v9171, 0
      %v9213 = vsel %vm589, %v9172, 0
      %v9216 = vsel %vm589, %v9173, 0
      %v9219 = vsel %vm589, %v9174, 0
      %v9222 = vsel %vm589, %v9175, 0
      %v9225 = vsel %vm589, %v9176, 0
      %v9228 = vsel %vm589, %v9177, 0
      %v9231 = vsel %vm589, %v9178, 0
      %v9234 = vsel %vm589, %v9179, 0
      %v9237 = vsel %vm6123, %v9181, 0
      %9239 = vmatprep.subr.bf16.mxu0 0
      %9240 = vmatpush1.bf16.msra.mxu0 0
      %9241 = vmatprep.subr.bf16.mxu0 0
      %9242 = vmatpush1.bf16.msra.mxu0 0
      %9243 = vmatprep.subr.bf16.mxu0 0
      %9244 = vmatpush1.bf16.msra.mxu0 0
      %9245 = vmatprep.subr.bf16.mxu0 0
      %9246 = vmatpush1.bf16.msra.mxu0 0
      %9247 = vmatprep.subr.bf16.mxu0 0
      %9248 = vmatpush1.bf16.msra.mxu0 0
      %9249 = vmatprep.subr.bf16.mxu0 0
      %9250 = vmatpush1.bf16.msra.mxu0 0
      %9251 = vmatprep.subr.bf16.mxu0 0
      %9252 = vmatpush1.bf16.msra.mxu0 0
      %9253 = vmatprep.subr.bf16.mxu0 0
      %9254 = vmatpush1.bf16.msra.mxu0 %v9237
      %9255 = vmatprep.subr.bf16.mxu0 0
      %9256 = vmatpush2.bf16.msra.mxu0 0
      %9257 = vmatprep.subr.bf16.mxu0 0
      %9258 = vmatpush2.bf16.msra.mxu0 0
      %9259 = vmatprep.subr.bf16.mxu0 0
      %9260 = vmatpush2.bf16.msra.mxu0 0
      %9261 = vmatprep.subr.bf16.mxu0 0
      %9262 = vmatpush2.bf16.msra.mxu0 0
      %9263 = vmatprep.subr.bf16.mxu0 0
      %9264 = vmatpush2.bf16.msra.mxu0 0
      %9265 = vmatprep.subr.bf16.mxu0 0
      %9266 = vmatpush2.bf16.msra.mxu0 0
      %9267 = vmatprep.subr.bf16.mxu0 0
      %9268 = vmatpush2.bf16.msra.mxu0 0
      %9269 = vmatprep.subr.bf16.mxu0 0
      %9270 = vmatpush2.bf16.msra.mxu0 0
      %9271 = vmatprep.mubr.bf16.mxu0 0
      %9272 = vmatmul.mubr.bf16.gmra.mxu0 %v9183
      %v9273 = vpop.f32.mrf.mxu0
      %v9274 = vadd.f32 0.0, %v9273
      %v9275 = vpop.f32.mrf.mxu0
      %v9276 = vpop.f32.mrf.mxu0
      %v9277 = vadd.f32 0.0, %v9276
      %v9278 = vpop.f32.mrf.mxu0
      %9279 = vmatprep.mubr.bf16.mxu0 0
      %9280 = vmatmul.mubr.bf16.gmra.mxu0 %v9186
      %v9281 = vpop.f32.mrf.mxu0
      %v9282 = vadd.f32 0.0, %v9281
      %v9283 = vpop.f32.mrf.mxu0
      %v9284 = vpop.f32.mrf.mxu0
      %v9285 = vadd.f32 0.0, %v9284
      %v9286 = vpop.f32.mrf.mxu0
      %9287 = vmatprep.mubr.bf16.mxu0 0
      %9288 = vmatmul.mubr.bf16.gmra.mxu0 %v9189
      %v9289 = vpop.f32.mrf.mxu0
      %v9290 = vadd.f32 0.0, %v9289
      %v9291 = vpop.f32.mrf.mxu0
      %v9292 = vpop.f32.mrf.mxu0
      %v9293 = vadd.f32 0.0, %v9292
      %v9294 = vpop.f32.mrf.mxu0
      %9295 = vmatprep.mubr.bf16.mxu0 0
      %9296 = vmatmul.mubr.bf16.gmra.mxu0 %v9192
      %v9297 = vpop.f32.mrf.mxu0
      %v9298 = vadd.f32 0.0, %v9297
      %v9299 = vpop.f32.mrf.mxu0
      %v9300 = vpop.f32.mrf.mxu0
      %v9301 = vadd.f32 0.0, %v9300
      %v9302 = vpop.f32.mrf.mxu0
      %9303 = vmatprep.mubr.bf16.mxu0 0
      %9304 = vmatmul.mubr.bf16.gmra.mxu0 %v9195
      %v9305 = vpop.f32.mrf.mxu0
      %v9306 = vadd.f32 0.0, %v9305
      %v9307 = vpop.f32.mrf.mxu0
      %v9308 = vpop.f32.mrf.mxu0
      %v9309 = vadd.f32 0.0, %v9308
      %v9310 = vpop.f32.mrf.mxu0
      %9311 = vmatprep.mubr.bf16.mxu0 0
      %9312 = vmatmul.mubr.bf16.gmra.mxu0 %v9198
      %v9313 = vpop.f32.mrf.mxu0
      %v9314 = vadd.f32 0.0, %v9313
      %v9315 = vpop.f32.mrf.mxu0
      %v9316 = vpop.f32.mrf.mxu0
      %v9317 = vadd.f32 0.0, %v9316
      %v9318 = vpop.f32.mrf.mxu0
      %9319 = vmatprep.mubr.bf16.mxu0 0
      %9320 = vmatmul.mubr.bf16.gmra.mxu0 %v9201
      %v9321 = vpop.f32.mrf.mxu0
      %v9322 = vadd.f32 0.0, %v9321
      %v9323 = vpop.f32.mrf.mxu0
      %v9324 = vpop.f32.mrf.mxu0
      %v9325 = vadd.f32 0.0, %v9324
      %v9326 = vpop.f32.mrf.mxu0
      %9327 = vmatprep.mubr.bf16.mxu0 0
      %9328 = vmatmul.mubr.bf16.gmra.mxu0 %v9204
      %v9329 = vpop.f32.mrf.mxu0
      %v9330 = vadd.f32 0.0, %v9329
      %v9331 = vpop.f32.mrf.mxu0
      %v9332 = vpop.f32.mrf.mxu0
      %v9333 = vadd.f32 0.0, %v9332
      %v9334 = vpop.f32.mrf.mxu0
      %9335 = vmatprep.mubr.bf16.mxu0 0
      %9336 = vmatmul.mubr.bf16.gmra.mxu0 %v9207
      %v9337 = vpop.f32.mrf.mxu0
      %v9338 = vadd.f32 0.0, %v9337
      %v9339 = vpop.f32.mrf.mxu0
      %v9340 = vpop.f32.mrf.mxu0
      %v9341 = vadd.f32 0.0, %v9340
      %v9342 = vpop.f32.mrf.mxu0
      %9343 = vmatprep.mubr.bf16.mxu0 0
      %9344 = vmatmul.mubr.bf16.gmra.mxu0 %v9210
      %v9345 = vpop.f32.mrf.mxu0
      %v9346 = vadd.f32 0.0, %v9345
      %v9347 = vpop.f32.mrf.mxu0
      %v9348 = vpop.f32.mrf.mxu0
      %v9349 = vadd.f32 0.0, %v9348
      %v9350 = vpop.f32.mrf.mxu0
      %9351 = vmatprep.mubr.bf16.mxu0 0
      %9352 = vmatmul.mubr.bf16.gmra.mxu0 %v9213
      %v9353 = vpop.f32.mrf.mxu0
      %v9354 = vadd.f32 0.0, %v9353
      %v9355 = vpop.f32.mrf.mxu0
      %v9356 = vpop.f32.mrf.mxu0
      %v9357 = vadd.f32 0.0, %v9356
      %v9358 = vpop.f32.mrf.mxu0
      %9359 = vmatprep.mubr.bf16.mxu0 0
      %9360 = vmatmul.mubr.bf16.gmra.mxu0 %v9216
      %v9361 = vpop.f32.mrf.mxu0
      %v9362 = vadd.f32 0.0, %v9361
      %v9363 = vpop.f32.mrf.mxu0
      %v9364 = vpop.f32.mrf.mxu0
      %v9365 = vadd.f32 0.0, %v9364
      %v9366 = vpop.f32.mrf.mxu0
      %9367 = vmatprep.mubr.bf16.mxu0 0
      %9368 = vmatmul.mubr.bf16.gmra.mxu0 %v9219
      %v9369 = vpop.f32.mrf.mxu0
      %v9370 = vadd.f32 0.0, %v9369
      %v9371 = vpop.f32.mrf.mxu0
      %v9372 = vpop.f32.mrf.mxu0
      %v9373 = vadd.f32 0.0, %v9372
      %v9374 = vpop.f32.mrf.mxu0
      %9375 = vmatprep.mubr.bf16.mxu0 0
      %9376 = vmatmul.mubr.bf16.gmra.mxu0 %v9222
      %v9377 = vpop.f32.mrf.mxu0
      %v9378 = vadd.f32 0.0, %v9377
      %v9379 = vpop.f32.mrf.mxu0
      %v9380 = vpop.f32.mrf.mxu0
      %v9381 = vadd.f32 0.0, %v9380
      %v9382 = vpop.f32.mrf.mxu0
      %9383 = vmatprep.mubr.bf16.mxu0 0
      %9384 = vmatmul.mubr.bf16.gmra.mxu0 %v9225
      %v9385 = vpop.f32.mrf.mxu0
      %v9386 = vadd.f32 0.0, %v9385
      %v9387 = vpop.f32.mrf.mxu0
      %v9388 = vpop.f32.mrf.mxu0
      %v9389 = vadd.f32 0.0, %v9388
      %v9390 = vpop.f32.mrf.mxu0
      %9391 = vmatprep.mubr.bf16.mxu0 0
      %9392 = vmatmul.mubr.bf16.gmra.mxu0 %v9228
      %v9393 = vpop.f32.mrf.mxu0
      %v9394 = vadd.f32 0.0, %v9393
      %v9395 = vpop.f32.mrf.mxu0
      %v9396 = vpop.f32.mrf.mxu0
      %v9397 = vadd.f32 0.0, %v9396
      %v9398 = vpop.f32.mrf.mxu0
      %9399 = vmatprep.mubr.bf16.mxu0 0
      %9400 = vmatmul.mubr.bf16.gmra.mxu0 %v9231
      %v9401 = vpop.f32.mrf.mxu0
      %v9402 = vadd.f32 0.0, %v9401
      %v9403 = vpop.f32.mrf.mxu0
      %v9404 = vpop.f32.mrf.mxu0
      %v9405 = vadd.f32 0.0, %v9404
      %v9406 = vpop.f32.mrf.mxu0
      %9407 = vmatprep.mubr.bf16.mxu0 0
      %9408 = vmatmul.mubr.bf16.gmra.mxu0 %v9234
      %v9409 = vpop.f32.mrf.mxu0
      %v9410 = vadd.f32 0.0, %v9409
      %v9411 = vpop.f32.mrf.mxu0
      %v9412 = vpop.f32.mrf.mxu0
      %v9413 = vadd.f32 0.0, %v9412
      %v9414 = vpop.f32.mrf.mxu0
      %9415 = vdwg.mxu0
      %v9416 = vld [vmem:[#allocation4] sm:$0xff]
      %v9417 = vld [vmem:[#allocation4 + $0x8] sm:$0xff]
      %v9418 = vld [vmem:[#allocation4 + $0x10] sm:$0xff]
      %v9419 = vld [vmem:[#allocation4 + $0x18] sm:$0xff]
      %v9420 = vld [vmem:[#allocation4 + $0x20] sm:$0xff]
      %v9421 = vld [vmem:[#allocation4 + $0x28] sm:$0xff]
      %v9422 = vld [vmem:[#allocation4 + $0x30] sm:$0xff]
      %v9423 = vld [vmem:[#allocation4 + $0x38] sm:$0xff]
      %v9424 = vld [vmem:[#allocation4 + $0x40] sm:$0xff]
      %v9425 = vld [vmem:[#allocation4 + $0x48] sm:$0xff]
      %v9426 = vld [vmem:[#allocation4 + $0x50] sm:$0xff]
      %v9427 = vld [vmem:[#allocation4 + $0x58] sm:$0xff]
      %v9428 = vld [vmem:[#allocation4 + $0x60] sm:$0xff]
      %v9429 = vld [vmem:[#allocation4 + $0x68] sm:$0xff]
      %v9430 = vld [vmem:[#allocation4 + $0x70] sm:$0xff]
      %v9431 = vld [vmem:[#allocation4 + $0x78] sm:$0xff]
      %v9432 = vld [vmem:[#allocation4 + $0x80] sm:$0xff]
      %v9433 = vld [vmem:[#allocation4 + $0x88] sm:$0xff]
      %v9434 = vld [vmem:[#allocation4 + $0x90] sm:$0xff]
      %v9435 = vld [vmem:[#allocation4 + $0x98] sm:$0xff]
      %v9436 = vld [vmem:[#allocation4 + $0xa0] sm:$0xff]
      %v9437 = vld [vmem:[#allocation4 + $0xa8] sm:$0xff]
      %v9438 = vld [vmem:[#allocation4 + $0xb0] sm:$0xff]
      %v9439 = vld [vmem:[#allocation4 + $0xb8] sm:$0xff]
      %v9440 = vld [vmem:[#allocation4 + $0xc0] sm:$0xff]
      %v9441 = vld [vmem:[#allocation4 + $0xc8] sm:$0xff]
      %v9442 = vld [vmem:[#allocation4 + $0xd0] sm:$0xff]
      %v9443 = vld [vmem:[#allocation4 + $0xd8] sm:$0xff]
      %v9444 = vld [vmem:[#allocation4 + $0xe0] sm:$0xff]
      %v9445 = vld [vmem:[#allocation4 + $0xe8] sm:$0xff]
      %v9446 = vld [vmem:[#allocation4 + $0xf0] sm:$0xff]
      %v9447 = vld [vmem:[#allocation4 + $0xf8] sm:$0xff]
      %v9448 = vld [vmem:[#allocation4 + $0x100] sm:$0xff]
      %v9449 = vld [vmem:[#allocation4 + $0x108] sm:$0xff]
      %v9450 = vld [vmem:[#allocation4 + $0x110] sm:$0xff]
      %v9451 = vld [vmem:[#allocation4 + $0x118] sm:$0xff]
      %v9452 = vadd.f32 %v9416, %v9274
      %v9453 = vadd.f32 %v9417, %v9277
      %v9454 = vadd.f32 %v9418, %v9282
      %v9455 = vadd.f32 %v9419, %v9285
      %v9456 = vadd.f32 %v9420, %v9290
      %v9457 = vadd.f32 %v9421, %v9293
      %v9458 = vadd.f32 %v9422, %v9298
      %v9459 = vadd.f32 %v9423, %v9301
      %v9460 = vadd.f32 %v9424, %v9306
      %v9461 = vadd.f32 %v9425, %v9309
      %v9462 = vadd.f32 %v9426, %v9314
      %v9463 = vadd.f32 %v9427, %v9317
      %v9464 = vadd.f32 %v9428, %v9322
      %v9465 = vadd.f32 %v9429, %v9325
      %v9466 = vadd.f32 %v9430, %v9330
      %v9467 = vadd.f32 %v9431, %v9333
      %v9468 = vadd.f32 %v9432, %v9338
      %v9469 = vadd.f32 %v9433, %v9341
      %v9470 = vadd.f32 %v9434, %v9346
      %v9471 = vadd.f32 %v9435, %v9349
      %v9472 = vadd.f32 %v9436, %v9354
      %v9473 = vadd.f32 %v9437, %v9357
      %v9474 = vadd.f32 %v9438, %v9362
      %v9475 = vadd.f32 %v9439, %v9365
      %v9476 = vadd.f32 %v9440, %v9370
      %v9477 = vadd.f32 %v9441, %v9373
      %v9478 = vadd.f32 %v9442, %v9378
      %v9479 = vadd.f32 %v9443, %v9381
      %v9480 = vadd.f32 %v9444, %v9386
      %v9481 = vadd.f32 %v9445, %v9389
      %v9482 = vadd.f32 %v9446, %v9394
      %v9483 = vadd.f32 %v9447, %v9397
      %v9484 = vadd.f32 %v9448, %v9402
      %v9485 = vadd.f32 %v9449, %v9405
      %v9486 = vadd.f32 %v9450, %v9410
      %v9487 = vadd.f32 %v9451, %v9413
      %9488 = vst.msk [vmem:[#allocation4] sm:$0xff] %vm589, %v9452
      %9489 = vst.msk [vmem:[#allocation4 + $0x8] sm:$0xff] %vm589, %v9453
      %9490 = vst.msk [vmem:[#allocation4 + $0x10] sm:$0xff] %vm589, %v9454
      %9491 = vst.msk [vmem:[#allocation4 + $0x18] sm:$0xff] %vm589, %v9455
      %9492 = vst.msk [vmem:[#allocation4 + $0x20] sm:$0xff] %vm589, %v9456
      %9493 = vst.msk [vmem:[#allocation4 + $0x28] sm:$0xff] %vm589, %v9457
      %9494 = vst.msk [vmem:[#allocation4 + $0x30] sm:$0xff] %vm589, %v9458
      %9495 = vst.msk [vmem:[#allocation4 + $0x38] sm:$0xff] %vm589, %v9459
      %9496 = vst.msk [vmem:[#allocation4 + $0x40] sm:$0xff] %vm589, %v9460
      %9497 = vst.msk [vmem:[#allocation4 + $0x48] sm:$0xff] %vm589, %v9461
      %9498 = vst.msk [vmem:[#allocation4 + $0x50] sm:$0xff] %vm589, %v9462
      %9499 = vst.msk [vmem:[#allocation4 + $0x58] sm:$0xff] %vm589, %v9463
      %9500 = vst.msk [vmem:[#allocation4 + $0x60] sm:$0xff] %vm589, %v9464
      %9501 = vst.msk [vmem:[#allocation4 + $0x68] sm:$0xff] %vm589, %v9465
      %9502 = vst.msk [vmem:[#allocation4 + $0x70] sm:$0xff] %vm589, %v9466
      %9503 = vst.msk [vmem:[#allocation4 + $0x78] sm:$0xff] %vm589, %v9467
      %9504 = vst.msk [vmem:[#allocation4 + $0x80] sm:$0xff] %vm589, %v9468
      %9505 = vst.msk [vmem:[#allocation4 + $0x88] sm:$0xff] %vm589, %v9469
      %9506 = vst.msk [vmem:[#allocation4 + $0x90] sm:$0xff] %vm589, %v9470
      %9507 = vst.msk [vmem:[#allocation4 + $0x98] sm:$0xff] %vm589, %v9471
      %9508 = vst.msk [vmem:[#allocation4 + $0xa0] sm:$0xff] %vm589, %v9472
      %9509 = vst.msk [vmem:[#allocation4 + $0xa8] sm:$0xff] %vm589, %v9473
      %9510 = vst.msk [vmem:[#allocation4 + $0xb0] sm:$0xff] %vm589, %v9474
      %9511 = vst.msk [vmem:[#allocation4 + $0xb8] sm:$0xff] %vm589, %v9475
      %9512 = vst.msk [vmem:[#allocation4 + $0xc0] sm:$0xff] %vm589, %v9476
      %9513 = vst.msk [vmem:[#allocation4 + $0xc8] sm:$0xff] %vm589, %v9477
      %9514 = vst.msk [vmem:[#allocation4 + $0xd0] sm:$0xff] %vm589, %v9478
      %9515 = vst.msk [vmem:[#allocation4 + $0xd8] sm:$0xff] %vm589, %v9479
      %9516 = vst.msk [vmem:[#allocation4 + $0xe0] sm:$0xff] %vm589, %v9480
      %9517 = vst.msk [vmem:[#allocation4 + $0xe8] sm:$0xff] %vm589, %v9481
      %9518 = vst.msk [vmem:[#allocation4 + $0xf0] sm:$0xff] %vm589, %v9482
      %9519 = vst.msk [vmem:[#allocation4 + $0xf8] sm:$0xff] %vm589, %v9483
      %9520 = vst.msk [vmem:[#allocation4 + $0x100] sm:$0xff] %vm589, %v9484
      %9521 = vst.msk [vmem:[#allocation4 + $0x108] sm:$0xff] %vm589, %v9485
      %9522 = vst.msk [vmem:[#allocation4 + $0x110] sm:$0xff] %vm589, %v9486
      %9523 = vst.msk [vmem:[#allocation4 + $0x118] sm:$0xff] %vm589, %v9487
      %v9524 = vld [vmem:[#allocation4] sm:$0xff]
      %v9525 = vld [vmem:[#allocation4 + $0x8] sm:$0xff]
      %v9526 = vld [vmem:[#allocation4 + $0x10] sm:$0xff]
      %v9527 = vld [vmem:[#allocation4 + $0x18] sm:$0xff]
      %v9528 = vld [vmem:[#allocation4 + $0x20] sm:$0xff]
      %v9529 = vld [vmem:[#allocation4 + $0x28] sm:$0xff]
      %v9530 = vld [vmem:[#allocation4 + $0x30] sm:$0xff]
      %v9531 = vld [vmem:[#allocation4 + $0x38] sm:$0xff]
      %v9532 = vld [vmem:[#allocation4 + $0x40] sm:$0xff]
      %v9533 = vld [vmem:[#allocation4 + $0x48] sm:$0xff]
      %v9534 = vld [vmem:[#allocation4 + $0x50] sm:$0xff]
      %v9535 = vld [vmem:[#allocation4 + $0x58] sm:$0xff]
      %v9536 = vld [vmem:[#allocation4 + $0x60] sm:$0xff]
      %v9537 = vld [vmem:[#allocation4 + $0x68] sm:$0xff]
      %v9538 = vld [vmem:[#allocation4 + $0x70] sm:$0xff]
      %v9539 = vld [vmem:[#allocation4 + $0x78] sm:$0xff]
      %v9540 = vld [vmem:[#allocation4 + $0x80] sm:$0xff]
      %v9541 = vld [vmem:[#allocation4 + $0x88] sm:$0xff]
      %v9542 = vld [vmem:[#allocation4 + $0x90] sm:$0xff]
      %v9543 = vld [vmem:[#allocation4 + $0x98] sm:$0xff]
      %v9544 = vld [vmem:[#allocation4 + $0xa0] sm:$0xff]
      %v9545 = vld [vmem:[#allocation4 + $0xa8] sm:$0xff]
      %v9546 = vld [vmem:[#allocation4 + $0xb0] sm:$0xff]
      %v9547 = vld [vmem:[#allocation4 + $0xb8] sm:$0xff]
      %v9548 = vld [vmem:[#allocation4 + $0xc0] sm:$0xff]
      %v9549 = vld [vmem:[#allocation4 + $0xc8] sm:$0xff]
      %v9550 = vld [vmem:[#allocation4 + $0xd0] sm:$0xff]
      %v9551 = vld [vmem:[#allocation4 + $0xd8] sm:$0xff]
      %v9552 = vld [vmem:[#allocation4 + $0xe0] sm:$0xff]
      %v9553 = vld [vmem:[#allocation4 + $0xe8] sm:$0xff]
      %v9554 = vld [vmem:[#allocation4 + $0xf0] sm:$0xff]
      %v9555 = vld [vmem:[#allocation4 + $0xf8] sm:$0xff]
      %v9556 = vld [vmem:[#allocation4 + $0x100] sm:$0xff]
      %v9557 = vld [vmem:[#allocation4 + $0x108] sm:$0xff]
      %v9558 = vld [vmem:[#allocation4 + $0x110] sm:$0xff]
      %v9559 = vld [vmem:[#allocation4 + $0x118] sm:$0xff]
      %v9560 = vld [vmem:[%s4] sm:$0x1]
      %v9562 = vlaneseq
      %v9563 = vshrl.u32 %v9562, 7
      %v9564 = vsub.s32 0, %v9563
      %v9565 = vrot.slane %v9560, %v9564
      %v9567 = vadd.f32 %v9524, %v9565
      %v9568 = vadd.f32 %v9525, %v9565
      %v9569 = vadd.f32 %v9526, %v9565
      %v9570 = vadd.f32 %v9527, %v9565
      %v9571 = vadd.f32 %v9528, %v9565
      %v9572 = vadd.f32 %v9529, %v9565
      %v9573 = vadd.f32 %v9530, %v9565
      %v9574 = vadd.f32 %v9531, %v9565
      %v9575 = vadd.f32 %v9532, %v9565
      %v9576 = vadd.f32 %v9533, %v9565
      %v9577 = vadd.f32 %v9534, %v9565
      %v9578 = vadd.f32 %v9535, %v9565
      %v9579 = vadd.f32 %v9536, %v9565
      %v9580 = vadd.f32 %v9537, %v9565
      %v9581 = vadd.f32 %v9538, %v9565
      %v9582 = vadd.f32 %v9539, %v9565
      %v9583 = vadd.f32 %v9540, %v9565
      %v9584 = vadd.f32 %v9541, %v9565
      %v9585 = vadd.f32 %v9542, %v9565
      %v9586 = vadd.f32 %v9543, %v9565
      %v9587 = vadd.f32 %v9544, %v9565
      %v9588 = vadd.f32 %v9545, %v9565
      %v9589 = vadd.f32 %v9546, %v9565
      %v9590 = vadd.f32 %v9547, %v9565
      %v9591 = vadd.f32 %v9548, %v9565
      %v9592 = vadd.f32 %v9549, %v9565
      %v9593 = vadd.f32 %v9550, %v9565
      %v9594 = vadd.f32 %v9551, %v9565
      %v9595 = vadd.f32 %v9552, %v9565
      %v9596 = vadd.f32 %v9553, %v9565
      %v9597 = vadd.f32 %v9554, %v9565
      %v9598 = vadd.f32 %v9555, %v9565
      %v9599 = vadd.f32 %v9556, %v9565
      %v9600 = vadd.f32 %v9557, %v9565
      %v9601 = vadd.f32 %v9558, %v9565
      %v9602 = vadd.f32 %v9559, %v9565
      %v9603 = vmax.f32 %v9567, 0.0
      %v9604 = vmax.f32 %v9568, 0.0
      %v9605 = vmax.f32 %v9569, 0.0
      %v9606 = vmax.f32 %v9570, 0.0
      %v9607 = vmax.f32 %v9571, 0.0
      %v9608 = vmax.f32 %v9572, 0.0
      %v9609 = vmax.f32 %v9573, 0.0
      %v9610 = vmax.f32 %v9574, 0.0
      %v9611 = vmax.f32 %v9575, 0.0
      %v9612 = vmax.f32 %v9576, 0.0
      %v9613 = vmax.f32 %v9577, 0.0
      %v9614 = vmax.f32 %v9578, 0.0
      %v9615 = vmax.f32 %v9579, 0.0
      %v9616 = vmax.f32 %v9580, 0.0
      %v9617 = vmax.f32 %v9581, 0.0
      %v9618 = vmax.f32 %v9582, 0.0
      %v9619 = vmax.f32 %v9583, 0.0
      %v9620 = vmax.f32 %v9584, 0.0
      %v9621 = vmax.f32 %v9585, 0.0
      %v9622 = vmax.f32 %v9586, 0.0
      %v9623 = vmax.f32 %v9587, 0.0
      %v9624 = vmax.f32 %v9588, 0.0
      %v9625 = vmax.f32 %v9589, 0.0
      %v9626 = vmax.f32 %v9590, 0.0
      %v9627 = vmax.f32 %v9591, 0.0
      %v9628 = vmax.f32 %v9592, 0.0
      %v9629 = vmax.f32 %v9593, 0.0
      %v9630 = vmax.f32 %v9594, 0.0
      %v9631 = vmax.f32 %v9595, 0.0
      %v9632 = vmax.f32 %v9596, 0.0
      %v9633 = vmax.f32 %v9597, 0.0
      %v9634 = vmax.f32 %v9598, 0.0
      %v9635 = vmax.f32 %v9599, 0.0
      %v9636 = vmax.f32 %v9600, 0.0
      %v9637 = vmax.f32 %v9601, 0.0
      %v9638 = vmax.f32 %v9602, 0.0
      %v9639 = vpack.c.bf16 %v9604, %v9603
      %v9640 = vpack.c.bf16 %v9606, %v9605
      %v9641 = vpack.c.bf16 %v9608, %v9607
      %v9642 = vpack.c.bf16 %v9610, %v9609
      %v9643 = vpack.c.bf16 %v9612, %v9611
      %v9644 = vpack.c.bf16 %v9614, %v9613
      %v9645 = vpack.c.bf16 %v9616, %v9615
      %v9646 = vpack.c.bf16 %v9618, %v9617
      %v9647 = vpack.c.bf16 %v9620, %v9619
      %v9648 = vpack.c.bf16 %v9622, %v9621
      %v9649 = vpack.c.bf16 %v9624, %v9623
      %v9650 = vpack.c.bf16 %v9626, %v9625
      %v9651 = vpack.c.bf16 %v9628, %v9627
      %v9652 = vpack.c.bf16 %v9630, %v9629
      %v9653 = vpack.c.bf16 %v9632, %v9631
      %v9654 = vpack.c.bf16 %v9634, %v9633
      %v9655 = vpack.c.bf16 %v9636, %v9635
      %v9656 = vpack.c.bf16 %v9638, %v9637
      %v9675 = vunpack.c.l.b16 %v9639
      %v9676 = vunpack.c.h.b16 %v9639
      %v9677 = vunpack.c.l.b16 %v9640
      %v9678 = vunpack.c.h.b16 %v9640
      %v9679 = vunpack.c.l.b16 %v9641
      %v9680 = vunpack.c.h.b16 %v9641
      %v9681 = vunpack.c.l.b16 %v9642
      %v9682 = vunpack.c.h.b16 %v9642
      %v9683 = vunpack.c.l.b16 %v9643
      %v9684 = vunpack.c.h.b16 %v9643
      %v9685 = vunpack.c.l.b16 %v9644
      %v9686 = vunpack.c.h.b16 %v9644
      %v9687 = vunpack.c.l.b16 %v9645
      %v9688 = vunpack.c.h.b16 %v9645
      %v9689 = vunpack.c.l.b16 %v9646
      %v9690 = vunpack.c.h.b16 %v9646
      %v9691 = vunpack.c.l.b16 %v9647
      %v9692 = vunpack.c.h.b16 %v9647
      %v9693 = vunpack.c.l.b16 %v9648
      %v9694 = vunpack.c.h.b16 %v9648
      %v9695 = vunpack.c.l.b16 %v9649
      %v9696 = vunpack.c.h.b16 %v9649
      %v9697 = vunpack.c.l.b16 %v9650
      %v9698 = vunpack.c.h.b16 %v9650
      %v9699 = vunpack.c.l.b16 %v9651
      %v9700 = vunpack.c.h.b16 %v9651
      %v9701 = vunpack.c.l.b16 %v9652
      %v9702 = vunpack.c.h.b16 %v9652
      %v9703 = vunpack.c.l.b16 %v9653
      %v9704 = vunpack.c.h.b16 %v9653
      %v9705 = vunpack.c.l.b16 %v9654
      %v9706 = vunpack.c.h.b16 %v9654
      %v9707 = vunpack.c.l.b16 %v9655
      %v9708 = vunpack.c.h.b16 %v9655
      %v9709 = vunpack.c.l.b16 %v9656
      %v9710 = vunpack.c.h.b16 %v9656
      %v9711 = vpack.c.b16 %v9675, %v9675
      %v9712 = vpack.c.b16 %v9676, %v9676
      %v9713 = vpack.c.b16 %v9677, %v9677
      %v9714 = vpack.c.b16 %v9678, %v9678
      %v9715 = vpack.c.b16 %v9679, %v9679
      %v9716 = vpack.c.b16 %v9680, %v9680
      %v9717 = vpack.c.b16 %v9681, %v9681
      %v9718 = vpack.c.b16 %v9682, %v9682
      %v9719 = vpack.c.b16 %v9683, %v9683
      %v9720 = vpack.c.b16 %v9684, %v9684
      %v9721 = vpack.c.b16 %v9685, %v9685
      %v9722 = vpack.c.b16 %v9686, %v9686
      %v9723 = vpack.c.b16 %v9687, %v9687
      %v9724 = vpack.c.b16 %v9688, %v9688
      %v9725 = vpack.c.b16 %v9689, %v9689
      %v9726 = vpack.c.b16 %v9690, %v9690
      %v9727 = vpack.c.b16 %v9691, %v9691
      %v9728 = vpack.c.b16 %v9692, %v9692
      %v9729 = vpack.c.b16 %v9693, %v9693
      %v9730 = vpack.c.b16 %v9694, %v9694
      %v9731 = vpack.c.b16 %v9695, %v9695
      %v9732 = vpack.c.b16 %v9696, %v9696
      %v9733 = vpack.c.b16 %v9697, %v9697
      %v9734 = vpack.c.b16 %v9698, %v9698
      %v9735 = vpack.c.b16 %v9699, %v9699
      %v9736 = vpack.c.b16 %v9700, %v9700
      %v9737 = vpack.c.b16 %v9701, %v9701
      %v9738 = vpack.c.b16 %v9702, %v9702
      %v9739 = vpack.c.b16 %v9703, %v9703
      %v9740 = vpack.c.b16 %v9704, %v9704
      %v9741 = vpack.c.b16 %v9705, %v9705
      %v9742 = vpack.c.b16 %v9706, %v9706
      %v9743 = vpack.c.b16 %v9707, %v9707
      %v9744 = vpack.c.b16 %v9708, %v9708
      %v9745 = vpack.c.b16 %v9709, %v9709
      %v9746 = vpack.c.b16 %v9710, %v9710
      %vm9783 = vcmask 27648
      %9784 = vst.msk [vmem:[%s224] sm:$0xf] %vm9783, %v9711
      %9785 = vst.msk [vmem:[%s224 + $0x4] sm:$0xf] %vm9783, %v9712
      %9786 = vst.msk [vmem:[%s224 + $0x8] sm:$0xf] %vm9783, %v9713
      %9787 = vst.msk [vmem:[%s224 + $0xc] sm:$0xf] %vm9783, %v9714
      %9788 = vst.msk [vmem:[%s224 + $0x10] sm:$0xf] %vm9783, %v9715
      %9789 = vst.msk [vmem:[%s224 + $0x14] sm:$0xf] %vm9783, %v9716
      %9790 = vst.msk [vmem:[%s224 + $0x18] sm:$0xf] %vm9783, %v9717
      %9791 = vst.msk [vmem:[%s224 + $0x1c] sm:$0xf] %vm9783, %v9718
      %9792 = vst.msk [vmem:[%s224 + $0x20] sm:$0xf] %vm9783, %v9719
      %9793 = vst.msk [vmem:[%s224 + $0x24] sm:$0xf] %vm9783, %v9720
      %9794 = vst.msk [vmem:[%s224 + $0x28] sm:$0xf] %vm9783, %v9721
      %9795 = vst.msk [vmem:[%s224 + $0x2c] sm:$0xf] %vm9783, %v9722
      %9796 = vst.msk [vmem:[%s224 + $0x30] sm:$0xf] %vm9783, %v9723
      %9797 = vst.msk [vmem:[%s224 + $0x34] sm:$0xf] %vm9783, %v9724
      %9798 = vst.msk [vmem:[%s224 + $0x38] sm:$0xf] %vm9783, %v9725
      %9799 = vst.msk [vmem:[%s224 + $0x3c] sm:$0xf] %vm9783, %v9726
      %9800 = vst.msk [vmem:[%s224 + $0x40] sm:$0xf] %vm9783, %v9727
      %9801 = vst.msk [vmem:[%s224 + $0x44] sm:$0xf] %vm9783, %v9728
      %9802 = vst.msk [vmem:[%s224 + $0x48] sm:$0xf] %vm9783, %v9729
      %9803 = vst.msk [vmem:[%s224 + $0x4c] sm:$0xf] %vm9783, %v9730
      %9804 = vst.msk [vmem:[%s224 + $0x50] sm:$0xf] %vm9783, %v9731
      %9805 = vst.msk [vmem:[%s224 + $0x54] sm:$0xf] %vm9783, %v9732
      %9806 = vst.msk [vmem:[%s224 + $0x58] sm:$0xf] %vm9783, %v9733
      %9807 = vst.msk [vmem:[%s224 + $0x5c] sm:$0xf] %vm9783, %v9734
      %9808 = vst.msk [vmem:[%s224 + $0x60] sm:$0xf] %vm9783, %v9735
      %9809 = vst.msk [vmem:[%s224 + $0x64] sm:$0xf] %vm9783, %v9736
      %9810 = vst.msk [vmem:[%s224 + $0x68] sm:$0xf] %vm9783, %v9737
      %9811 = vst.msk [vmem:[%s224 + $0x6c] sm:$0xf] %vm9783, %v9738
      %9812 = vst.msk [vmem:[%s224 + $0x70] sm:$0xf] %vm9783, %v9739
      %9813 = vst.msk [vmem:[%s224 + $0x74] sm:$0xf] %vm9783, %v9740
      %9814 = vst.msk [vmem:[%s224 + $0x78] sm:$0xf] %vm9783, %v9741
      %9815 = vst.msk [vmem:[%s224 + $0x7c] sm:$0xf] %vm9783, %v9742
      %9816 = vst.msk [vmem:[%s224 + $0x80] sm:$0xf] %vm9783, %v9743
      %9817 = vst.msk [vmem:[%s224 + $0x84] sm:$0xf] %vm9783, %v9744
      %9818 = vst.msk [vmem:[%s224 + $0x88] sm:$0xf] %vm9783, %v9745
      %9819 = vst.msk [vmem:[%s224 + $0x8c] sm:$0xf] %vm9783, %v9746
      %p9820 = scmp.lt.s32.totalorder %s16, 1
      %s9821 = scalar_select %p9820, %s16, 1
      %s9822 = smul.addr %s9821, 36
      %s9823 = smul.addr %s9822, 4
      %s9824 = scalar_lea.vmem %s5, %s9823
      // Predicated region
      $region41: #{upsample_forward.1} parent=39 // pred_check
        %p9825 = pneg %p144
      $region42: #{upsample_forward.1} parent=39 // pred_check_branch
        %9827 = sbr.rel (%p9825) target = $region44
      $region43: #{upsample_forward.1} parent=39 // pred_region
        _
      $region44: #{upsample_forward.1} parent=39 // pred_fallthru
        _
    $region40: #{upsample_forward.1} parent=5 // pred_fallthru
      _
    %p9828 = scmp.le.s32.totalorder 2, %s11
    // Predicated region
    $region45: #{upsample_forward.1} parent=5 // pred_check
      %p9829 = pneg %p9828
    $region46: #{upsample_forward.1} parent=5 // pred_check_branch
      %9831 = sbr.rel (%p9829) target = $region48
    $region47: #{upsample_forward.1} parent=5 // pred_region
      %s9832 = ssub.s32 %s11, 2
      // Predicated region
      $region49: #{upsample_forward.1} parent=47 // pred_check
        %p9833 = pneg %p150
      $region50: #{upsample_forward.1} parent=47 // pred_check_branch
        %9835 = sbr.rel (%p9833) target = $region52
      $region51: #{upsample_forward.1} parent=47 // pred_region
        %p9836 = scmp.lt.s32.totalorder %s17, 1
        %s9837 = scalar_select %p9836, %s17, 1
        %s9838 = smul.addr %s9837, 36
        %s9839 = smul.addr %s9838, 4
        %s9840 = scalar_lea.vmem %s5, %s9839
      $region52: #{upsample_forward.1} parent=47 // pred_fallthru
        _
    $region48: #{upsample_forward.1} parent=5 // pred_fallthru
      _
  $region6: #{upsample_forward.1} parent=0 // loop_footer
    %s15 = sadd.s32 1, %s11
  $region7: #{upsample_forward.1} parent=0 // loop_footer_branch
    %10 = sbr.rel target = $region3
  $region8: #{upsample_forward.1} parent=0 // loop_exit
    _

</llo_original>
